<compile_context>
chip_gen: v7x
topology: tpu7x:2x2x1
jax: 0.10.0
libtpu: 0.0.40
codegen_flags: <defaults>
</compile_context>

<pallas_src>
import functools

import jax
import jax.numpy as jnp
from jax.experimental import pallas as pl
from jax.experimental.pallas import tpu as pltpu

DIM = 768                     # Attention(768) hard-coded in Fusion_Network
HEADS = 8
HEAD_DIM = DIM // HEADS       # 96
QW = HEADS * HEAD_DIM         # 768, unpadded head-major width
PROJ_DIM = 128                # Attention.proj: Linear(768 -> 128)
SCALE = HEAD_DIM ** (-0.5)    # qk_scale = head_dim ** -0.5


def artf_kernel(x_ref, wqkv_ref, wp_ref, bp_ref, wfc_ref, bfc_ref,
                pool_ref, poolT_ref,
                attn_ref, feat_ref, logits_ref, *, M, TB):
    """One batch block (TB examples, all M modality tokens) per grid step.

    x_ref:    (M*TB, C)   bf16, rows ordered (modality, in-block row)
    wqkv_ref: (C, 3*QW)   bf16 fused head-major q|k|v weights
    wp_ref:   (QW, PROJ_DIM) f32 projection weight
    pool_ref: (QW, HEADS) head indicator (for score pooling)
    poolT_ref:(HEADS, QW) head indicator (for head broadcast)
    attn_ref: (TB, 128)   lane-packed attention probs (col = i*M*H + j*H + h)
    feat_ref: (TB, PROJ_DIM)
    logits_ref:(TB, NCLS)
    """
    # ---- fused QKV: ONE (M*TB, C) @ (C, 3*QW) bf16 matmul --------------------
    qkv = jnp.dot(x_ref[...], wqkv_ref[...],
                  preferred_element_type=jnp.float32)            # (M*TB, 3*QW) f32

    q_t = [qkv[i * TB:(i + 1) * TB, 0:QW] for i in range(M)]
    k_t = [qkv[i * TB:(i + 1) * TB, QW:2 * QW] for i in range(M)]
    v_t = [qkv[i * TB:(i + 1) * TB, 2 * QW:3 * QW] for i in range(M)]

    pool = pool_ref[...]          # (QW, HEADS)
    poolT = poolT_ref[...]        # (HEADS, QW)

    # ---- per-head scores s[i][j] : (TB, HEADS) --------------------------------
    # s[b,h] = scale * sum_d q_i[b, h*96+d] * k_j[b, h*96+d]
    s = [[jnp.dot(q_t[i] * k_t[j], pool,
                  preferred_element_type=jnp.float32) * SCALE
          for j in range(M)] for i in range(M)]

    # ---- softmax over j (exact f32); accumulate c[j] = sum_i p[i][j] ----------
    pad = attn_ref.shape[1] - M * M * HEADS
    if pad > 0:
        attn_ref[:, M * M * HEADS:] = jnp.zeros((TB, pad), jnp.float32)

    c = [None] * M
    for i in range(M):
        m = s[i][0]
        for j in range(1, M):
            m = jnp.maximum(m, s[i][j])
        e = [jnp.exp(s[i][j] - m) for j in range(M)]
        denom = e[0]
        for j in range(1, M):
            denom = denom + e[j]
        inv = 1.0 / denom
        for j in range(M):
            pij = e[j] * inv                                     # (TB, HEADS)
            col = (i * M + j) * HEADS
            attn_ref[:, col:col + HEADS] = pij                   # lane-dense block
            c[j] = pij if c[j] is None else c[j] + pij

    # ---- o_sum = sum_i o_i = sum_j (c_j broadcast over head lanes) * v_j ------
    o_sum = jnp.dot(c[0], poolT, preferred_element_type=jnp.float32) * v_t[0]
    for j in range(1, M):
        o_sum = o_sum + jnp.dot(c[j], poolT,
                                preferred_element_type=jnp.float32) * v_t[j]

    # ---- ONE projection matmul; fold modality mean + proj bias ----------------
    feat = (jnp.dot(o_sum, wp_ref[...], preferred_element_type=jnp.float32)
            * (1.0 / M) + bp_ref[...])                           # (TB, PROJ_DIM)
    feat_ref[...] = feat
    logits_ref[...] = (jnp.dot(feat, wfc_ref[...],
                               preferred_element_type=jnp.float32) + bfc_ref[...])


def artfnet_forward(x, wq, wk, wv, wp, bp, wfc, bfc, *, block_b=128):
    B, M, C = x.shape
    assert C == DIM
    ncls = wfc.shape[1]

    # --- head-major (natural PyTorch qkv order), UNPADDED packing, bf16 weights
    def flatten_heads(w):   # (H, C, HEAD_DIM) -> (C, H*HEAD_DIM)
        return jnp.transpose(w, (1, 0, 2)).reshape(C, QW)

    wqkv = jnp.concatenate([flatten_heads(wq), flatten_heads(wk),
                            flatten_heads(wv)], axis=1).astype(jnp.bfloat16)
    wp_flat = wp.reshape(QW, PROJ_DIM).astype(jnp.float32)
    # head-indicator matrix in both orientations (no in-kernel transposes)
    pool = (jnp.arange(QW)[:, None] // HEAD_DIM ==
            jnp.arange(HEADS)[None, :]).astype(jnp.float32)       # (QW, H)
    poolT = jnp.transpose(pool)                                   # (H, QW)

    # --- batch blocking: >= 8 rows (sublane), >= 2 grid steps when B allows it
    half = (B + 1) // 2
    TB = min(block_b, max(8, ((half + 7) // 8) * 8))
    n_blk = (B + TB - 1) // TB
    Bp = n_blk * TB

    x_t = jnp.transpose(x, (1, 0, 2))           # (M, B, C)
    if Bp != B:
        x_t = jnp.pad(x_t, ((0, 0), (0, Bp - B), (0, 0)))
    # rows ordered (block, modality, in-block row): each grid step reads one
    # contiguous (M*TB, C) slab -> single fused QKV matmul, no in-kernel reshape
    x_pack = (x_t.reshape(M, n_blk, TB, C).transpose(1, 0, 2, 3)
                 .reshape(n_blk * M * TB, C).astype(jnp.bfloat16))

    pack_w = ((M * M * HEADS + 127) // 128) * 128   # lane-dense attention width

    out_shapes = (
        jax.ShapeDtypeStruct((Bp, pack_w), jnp.float32),   # packed attention
        jax.ShapeDtypeStruct((Bp, PROJ_DIM), jnp.float32),  # fusion features
        jax.ShapeDtypeStruct((Bp, ncls), jnp.float32),      # logits
    )
    in_specs = [
        pl.BlockSpec((M * TB, C), lambda b: (b, 0)),
        pl.BlockSpec((C, 3 * QW), lambda b: (0, 0)),
        pl.BlockSpec((QW, PROJ_DIM), lambda b: (0, 0)),
        pl.BlockSpec((1, PROJ_DIM), lambda b: (0, 0)),
        pl.BlockSpec((PROJ_DIM, ncls), lambda b: (0, 0)),
        pl.BlockSpec((1, ncls), lambda b: (0, 0)),
        pl.BlockSpec((QW, HEADS), lambda b: (0, 0)),
        pl.BlockSpec((HEADS, QW), lambda b: (0, 0)),
    ]
    out_specs = (
        pl.BlockSpec((TB, pack_w), lambda b: (b, 0)),
        pl.BlockSpec((TB, PROJ_DIM), lambda b: (b, 0)),
        pl.BlockSpec((TB, ncls), lambda b: (b, 0)),
    )

    attn_packed, feat, logits = pl.pallas_call(
        functools.partial(artf_kernel, M=M, TB=TB),
        out_shape=out_shapes,
        grid_spec=pltpu.PrefetchScalarGridSpec(
            num_scalar_prefetch=0,
            grid=(n_blk,),
            in_specs=in_specs,
            out_specs=out_specs,
        ),
        compiler_params=pltpu.CompilerParams(
            dimension_semantics=("parallel",),      # shardable over v7x's 2 TCs
            vmem_limit_bytes=48 * 1024 * 1024,      # < v7x 64 MiB physical VMEM
        ),
    )(x_pack, wqkv, wp_flat, bp.astype(jnp.float32), wfc.astype(jnp.float32),
      bfc.astype(jnp.float32), pool, poolT)

    # unpack: (B, M*M*H) -> (B, H, M, M)  (PyTorch attn layout)
    attn = (attn_packed[:B, :M * M * HEADS]
            .reshape(B, M, M, HEADS).transpose(0, 3, 1, 2))
    return {"logits": logits[:B], "fusion_features": feat[:B], "attention": attn}


def reference_forward(x, wq, wk, wv, wp, bp, wfc, bfc):
    """Pure-JAX f32 reference mirroring the PyTorch forward (eval mode)."""
    q = jnp.einsum("bmd,hdk->bhmk", x, wq)
    k = jnp.einsum("bmd,hdk->bhmk", x, wk)
    v = jnp.einsum("bmd,hdk->bhmk", x, wv)
    s = jnp.einsum("bhmk,bhnk->bhmn", q, k) * SCALE
    p = jax.nn.softmax(s, axis=-1)
    o = jnp.einsum("bhmn,bhnk->bhmk", p, v)
    y = jnp.einsum("bhmk,hkc->bmc", o, wp) + bp          # proj to 128
    feat = jnp.mean(y, axis=1)                           # mean over modalities
    logits = feat @ wfc + bfc
    return p, feat, logits


if __name__ == "__main__":
    B, M, NCLS = 2, 3, 10   # batch=2, 3 modalities (e.g. RGB/Flow/Spec), 10 classes

    key = jax.random.PRNGKey(0)
    ks = jax.random.split(key, 6)

    # Stacked per-modality ViT features (what Fusion_Network concatenates).
    x = jax.random.normal(ks[0], (B, M, DIM), dtype=jnp.float32)

    # Attention.qkv: Linear(768, 2304, bias=False) -> split per head into q/k/v.
    wqkv_full = 0.02 * jax.random.normal(ks[1], (3, HEADS, DIM, HEAD_DIM),
                                         dtype=jnp.float32)
    wq, wk, wv = wqkv_full[0], wqkv_full[1], wqkv_full[2]

    # Attention.proj: Linear(768, 128) -> per-head (HEAD_DIM, 128) slices + bias.
    wp = 0.02 * jax.random.normal(ks[2], (HEADS, HEAD_DIM, PROJ_DIM), dtype=jnp.float32)
    bp = 0.02 * jax.random.normal(ks[3], (1, PROJ_DIM), dtype=jnp.float32)

    # Classification_Network.fc_action: weight ~ N(0, 0.001), bias = 0.
    wfc = 0.001 * jax.random.normal(ks[4], (PROJ_DIM, NCLS), dtype=jnp.float32)
    bfc = jnp.zeros((1, NCLS), dtype=jnp.float32)

    out = artfnet_forward(x, wq, wk, wv, wp, bp, wfc, bfc)
    jax.block_until_ready(out)

    p_ref, feat_ref, logits_ref = reference_forward(x, wq, wk, wv, wp, bp, wfc, bfc)
    # bf16 x / qkv weights -> loosen tolerances vs. the f32 reference
    assert jnp.allclose(out["attention"], p_ref, atol=1e-2, rtol=1e-2)
    assert jnp.allclose(out["fusion_features"], feat_ref, atol=1e-2, rtol=1e-2)
    assert jnp.allclose(out["logits"], logits_ref, atol=1e-2, rtol=1e-2)

    print("KERNEL_OK")
</pallas_src>

<mosaic_0001>
module attributes {stable_mosaic.version = 11 : i64} {
  func.func @artf_kernel(%arg0: i32, %arg1: memref<24x768xbf16, #tpu.memory_space<vmem>>, %arg2: memref<768x2304xbf16, #tpu.memory_space<vmem>>, %arg3: memref<768x128xf32, #tpu.memory_space<vmem>>, %arg4: memref<1x128xf32, #tpu.memory_space<vmem>>, %arg5: memref<128x10xf32, #tpu.memory_space<vmem>>, %arg6: memref<1x10xf32, #tpu.memory_space<vmem>>, %arg7: memref<768x8xf32, #tpu.memory_space<vmem>>, %arg8: memref<8x768xf32, #tpu.memory_space<vmem>>, %arg9: memref<8x128xf32, #tpu.memory_space<vmem>>, %arg10: memref<8x128xf32, #tpu.memory_space<vmem>>, %arg11: memref<8x10xf32, #tpu.memory_space<vmem>>) attributes {dimension_semantics = [#tpu.dimension_semantics<parallel>], iteration_bounds = array<i64: 1>, scalar_prefetch = 0 : i64, scratch_operands = 0 : i64, tpu.core_type = #tpu.core_type<tc>, window_params = [{transform_indices = @transform_0, window_bounds = array<i64: 24, 768>}, {pipeline_mode = #tpu.pipeline_mode<synchronous>, transform_indices = @transform_1, window_bounds = array<i64: 768, 2304>}, {pipeline_mode = #tpu.pipeline_mode<synchronous>, transform_indices = @transform_2, window_bounds = array<i64: 768, 128>}, {pipeline_mode = #tpu.pipeline_mode<synchronous>, transform_indices = @transform_3, window_bounds = array<i64: 1, 128>}, {pipeline_mode = #tpu.pipeline_mode<synchronous>, transform_indices = @transform_4, window_bounds = array<i64: 128, 10>}, {pipeline_mode = #tpu.pipeline_mode<synchronous>, transform_indices = @transform_5, window_bounds = array<i64: 1, 10>}, {pipeline_mode = #tpu.pipeline_mode<synchronous>, transform_indices = @transform_6, window_bounds = array<i64: 768, 8>}, {pipeline_mode = #tpu.pipeline_mode<synchronous>, transform_indices = @transform_7, window_bounds = array<i64: 8, 768>}, {transform_indices = @transform_8, window_bounds = array<i64: 8, 128>}, {transform_indices = @transform_9, window_bounds = array<i64: 8, 128>}, {transform_indices = @transform_10, window_bounds = array<i64: 8, 10>}]} {
    %c0 = arith.constant 0 : index
    %c0_0 = arith.constant 0 : index
    %0 = vector.load %arg1[%c0, %c0_0] : memref<24x768xbf16, #tpu.memory_space<vmem>>, vector<24x768xbf16>
    %c0_1 = arith.constant 0 : index
    %c0_2 = arith.constant 0 : index
    %1 = vector.load %arg2[%c0_1, %c0_2] : memref<768x2304xbf16, #tpu.memory_space<vmem>>, vector<768x2304xbf16>
    %cst = arith.constant dense<0.000000e+00> : vector<24x2304xf32>
    %2 = tpu.matmul %0, %1, %cst {dimension_numbers = #tpu.dot_dimension_numbers<[1], [0], [0], [1], [0, 0, 1, 1], [], []>} : vector<24x768xbf16>, vector<768x2304xbf16>, vector<24x2304xf32> -> vector<24x2304xf32>
    %3 = vector.extract_strided_slice %2 {offsets = [0, 0], sizes = [8, 768], strides = [1, 1]} : vector<24x2304xf32> to vector<8x768xf32>
    %4 = vector.extract_strided_slice %2 {offsets = [8, 0], sizes = [8, 768], strides = [1, 1]} : vector<24x2304xf32> to vector<8x768xf32>
    %5 = vector.extract_strided_slice %2 {offsets = [16, 0], sizes = [8, 768], strides = [1, 1]} : vector<24x2304xf32> to vector<8x768xf32>
    %6 = vector.extract_strided_slice %2 {offsets = [0, 768], sizes = [8, 768], strides = [1, 1]} : vector<24x2304xf32> to vector<8x768xf32>
    %7 = vector.extract_strided_slice %2 {offsets = [8, 768], sizes = [8, 768], strides = [1, 1]} : vector<24x2304xf32> to vector<8x768xf32>
    %8 = vector.extract_strided_slice %2 {offsets = [16, 768], sizes = [8, 768], strides = [1, 1]} : vector<24x2304xf32> to vector<8x768xf32>
    %9 = vector.extract_strided_slice %2 {offsets = [0, 1536], sizes = [8, 768], strides = [1, 1]} : vector<24x2304xf32> to vector<8x768xf32>
    %10 = vector.extract_strided_slice %2 {offsets = [8, 1536], sizes = [8, 768], strides = [1, 1]} : vector<24x2304xf32> to vector<8x768xf32>
    %11 = vector.extract_strided_slice %2 {offsets = [16, 1536], sizes = [8, 768], strides = [1, 1]} : vector<24x2304xf32> to vector<8x768xf32>
    %c0_3 = arith.constant 0 : index
    %c0_4 = arith.constant 0 : index
    %12 = vector.load %arg7[%c0_3, %c0_4] : memref<768x8xf32, #tpu.memory_space<vmem>>, vector<768x8xf32>
    %c0_5 = arith.constant 0 : index
    %c0_6 = arith.constant 0 : index
    %13 = vector.load %arg8[%c0_5, %c0_6] : memref<8x768xf32, #tpu.memory_space<vmem>>, vector<8x768xf32>
    %14 = arith.mulf %3, %6 : vector<8x768xf32>
    %cst_7 = arith.constant dense<0.000000e+00> : vector<8x8xf32>
    %15 = tpu.matmul %14, %12, %cst_7 {dimension_numbers = #tpu.dot_dimension_numbers<[1], [0], [0], [1], [0, 0, 1, 1], [], []>} : vector<8x768xf32>, vector<768x8xf32>, vector<8x8xf32> -> vector<8x8xf32>
    %cst_8 = arith.constant 0.102062076 : f32
    %16 = vector.broadcast %cst_8 : f32 to vector<8x8xf32>
    %17 = arith.mulf %15, %16 : vector<8x8xf32>
    %18 = arith.mulf %3, %7 : vector<8x768xf32>
    %cst_9 = arith.constant dense<0.000000e+00> : vector<8x8xf32>
    %19 = tpu.matmul %18, %12, %cst_9 {dimension_numbers = #tpu.dot_dimension_numbers<[1], [0], [0], [1], [0, 0, 1, 1], [], []>} : vector<8x768xf32>, vector<768x8xf32>, vector<8x8xf32> -> vector<8x8xf32>
    %cst_10 = arith.constant 0.102062076 : f32
    %20 = vector.broadcast %cst_10 : f32 to vector<8x8xf32>
    %21 = arith.mulf %19, %20 : vector<8x8xf32>
    %22 = arith.mulf %3, %8 : vector<8x768xf32>
    %cst_11 = arith.constant dense<0.000000e+00> : vector<8x8xf32>
    %23 = tpu.matmul %22, %12, %cst_11 {dimension_numbers = #tpu.dot_dimension_numbers<[1], [0], [0], [1], [0, 0, 1, 1], [], []>} : vector<8x768xf32>, vector<768x8xf32>, vector<8x8xf32> -> vector<8x8xf32>
    %cst_12 = arith.constant 0.102062076 : f32
    %24 = vector.broadcast %cst_12 : f32 to vector<8x8xf32>
    %25 = arith.mulf %23, %24 : vector<8x8xf32>
    %26 = arith.mulf %4, %6 : vector<8x768xf32>
    %cst_13 = arith.constant dense<0.000000e+00> : vector<8x8xf32>
    %27 = tpu.matmul %26, %12, %cst_13 {dimension_numbers = #tpu.dot_dimension_numbers<[1], [0], [0], [1], [0, 0, 1, 1], [], []>} : vector<8x768xf32>, vector<768x8xf32>, vector<8x8xf32> -> vector<8x8xf32>
    %cst_14 = arith.constant 0.102062076 : f32
    %28 = vector.broadcast %cst_14 : f32 to vector<8x8xf32>
    %29 = arith.mulf %27, %28 : vector<8x8xf32>
    %30 = arith.mulf %4, %7 : vector<8x768xf32>
    %cst_15 = arith.constant dense<0.000000e+00> : vector<8x8xf32>
    %31 = tpu.matmul %30, %12, %cst_15 {dimension_numbers = #tpu.dot_dimension_numbers<[1], [0], [0], [1], [0, 0, 1, 1], [], []>} : vector<8x768xf32>, vector<768x8xf32>, vector<8x8xf32> -> vector<8x8xf32>
    %cst_16 = arith.constant 0.102062076 : f32
    %32 = vector.broadcast %cst_16 : f32 to vector<8x8xf32>
    %33 = arith.mulf %31, %32 : vector<8x8xf32>
    %34 = arith.mulf %4, %8 : vector<8x768xf32>
    %cst_17 = arith.constant dense<0.000000e+00> : vector<8x8xf32>
    %35 = tpu.matmul %34, %12, %cst_17 {dimension_numbers = #tpu.dot_dimension_numbers<[1], [0], [0], [1], [0, 0, 1, 1], [], []>} : vector<8x768xf32>, vector<768x8xf32>, vector<8x8xf32> -> vector<8x8xf32>
    %cst_18 = arith.constant 0.102062076 : f32
    %36 = vector.broadcast %cst_18 : f32 to vector<8x8xf32>
    %37 = arith.mulf %35, %36 : vector<8x8xf32>
    %38 = arith.mulf %5, %6 : vector<8x768xf32>
    %cst_19 = arith.constant dense<0.000000e+00> : vector<8x8xf32>
    %39 = tpu.matmul %38, %12, %cst_19 {dimension_numbers = #tpu.dot_dimension_numbers<[1], [0], [0], [1], [0, 0, 1, 1], [], []>} : vector<8x768xf32>, vector<768x8xf32>, vector<8x8xf32> -> vector<8x8xf32>
    %cst_20 = arith.constant 0.102062076 : f32
    %40 = vector.broadcast %cst_20 : f32 to vector<8x8xf32>
    %41 = arith.mulf %39, %40 : vector<8x8xf32>
    %42 = arith.mulf %5, %7 : vector<8x768xf32>
    %cst_21 = arith.constant dense<0.000000e+00> : vector<8x8xf32>
    %43 = tpu.matmul %42, %12, %cst_21 {dimension_numbers = #tpu.dot_dimension_numbers<[1], [0], [0], [1], [0, 0, 1, 1], [], []>} : vector<8x768xf32>, vector<768x8xf32>, vector<8x8xf32> -> vector<8x8xf32>
    %cst_22 = arith.constant 0.102062076 : f32
    %44 = vector.broadcast %cst_22 : f32 to vector<8x8xf32>
    %45 = arith.mulf %43, %44 : vector<8x8xf32>
    %46 = arith.mulf %5, %8 : vector<8x768xf32>
    %cst_23 = arith.constant dense<0.000000e+00> : vector<8x8xf32>
    %47 = tpu.matmul %46, %12, %cst_23 {dimension_numbers = #tpu.dot_dimension_numbers<[1], [0], [0], [1], [0, 0, 1, 1], [], []>} : vector<8x768xf32>, vector<768x8xf32>, vector<8x8xf32> -> vector<8x8xf32>
    %cst_24 = arith.constant 0.102062076 : f32
    %48 = vector.broadcast %cst_24 : f32 to vector<8x8xf32>
    %49 = arith.mulf %47, %48 : vector<8x8xf32>
    %cst_25 = arith.constant 0.000000e+00 : f32
    %50 = vector.broadcast %cst_25 : f32 to vector<8x56xf32>
    %c0_26 = arith.constant 0 : index
    %c72 = arith.constant 72 : index
    %51 = vector.load %arg9[%c0_26, %c72] : memref<8x128xf32, #tpu.memory_space<vmem>>, vector<8x56xf32>
    tpu.vector_store %arg9[%c0_26, %c72], %50 {strides = array<i32>} : memref<8x128xf32, #tpu.memory_space<vmem>>, vector<8x56xf32>,
    %52 = arith.maximumf %17, %21 : vector<8x8xf32>
    %53 = arith.maximumf %52, %25 : vector<8x8xf32>
    %54 = arith.subf %17, %53 : vector<8x8xf32>
    %55 = math.exp %54 : vector<8x8xf32>
    %56 = arith.subf %21, %53 : vector<8x8xf32>
    %57 = math.exp %56 : vector<8x8xf32>
    %58 = arith.subf %25, %53 : vector<8x8xf32>
    %59 = math.exp %58 : vector<8x8xf32>
    %60 = arith.addf %55, %57 : vector<8x8xf32>
    %61 = arith.addf %60, %59 : vector<8x8xf32>
    %cst_27 = arith.constant 1.000000e+00 : f32
    %62 = vector.broadcast %cst_27 : f32 to vector<8x8xf32>
    %63 = arith.divf %62, %61 : vector<8x8xf32>
    %64 = arith.mulf %55, %63 : vector<8x8xf32>
    %c0_28 = arith.constant 0 : index
    %c0_29 = arith.constant 0 : index
    %65 = vector.load %arg9[%c0_28, %c0_29] : memref<8x128xf32, #tpu.memory_space<vmem>>, vector<8x8xf32>
    tpu.vector_store %arg9[%c0_28, %c0_29], %64 {strides = array<i32>} : memref<8x128xf32, #tpu.memory_space<vmem>>, vector<8x8xf32>,
    %66 = arith.mulf %57, %63 : vector<8x8xf32>
    %c0_30 = arith.constant 0 : index
    %c8 = arith.constant 8 : index
    %67 = vector.load %arg9[%c0_30, %c8] : memref<8x128xf32, #tpu.memory_space<vmem>>, vector<8x8xf32>
    tpu.vector_store %arg9[%c0_30, %c8], %66 {strides = array<i32>} : memref<8x128xf32, #tpu.memory_space<vmem>>, vector<8x8xf32>,
    %68 = arith.mulf %59, %63 : vector<8x8xf32>
    %c0_31 = arith.constant 0 : index
    %c16 = arith.constant 16 : index
    %69 = vector.load %arg9[%c0_31, %c16] : memref<8x128xf32, #tpu.memory_space<vmem>>, vector<8x8xf32>
    tpu.vector_store %arg9[%c0_31, %c16], %68 {strides = array<i32>} : memref<8x128xf32, #tpu.memory_space<vmem>>, vector<8x8xf32>,
    %70 = arith.maximumf %29, %33 : vector<8x8xf32>
    %71 = arith.maximumf %70, %37 : vector<8x8xf32>
    %72 = arith.subf %29, %71 : vector<8x8xf32>
    %73 = math.exp %72 : vector<8x8xf32>
    %74 = arith.subf %33, %71 : vector<8x8xf32>
    %75 = math.exp %74 : vector<8x8xf32>
    %76 = arith.subf %37, %71 : vector<8x8xf32>
    %77 = math.exp %76 : vector<8x8xf32>
    %78 = arith.addf %73, %75 : vector<8x8xf32>
    %79 = arith.addf %78, %77 : vector<8x8xf32>
    %cst_32 = arith.constant 1.000000e+00 : f32
    %80 = vector.broadcast %cst_32 : f32 to vector<8x8xf32>
    %81 = arith.divf %80, %79 : vector<8x8xf32>
    %82 = arith.mulf %73, %81 : vector<8x8xf32>
    %c0_33 = arith.constant 0 : index
    %c24 = arith.constant 24 : index
    %83 = vector.load %arg9[%c0_33, %c24] : memref<8x128xf32, #tpu.memory_space<vmem>>, vector<8x8xf32>
    tpu.vector_store %arg9[%c0_33, %c24], %82 {strides = array<i32>} : memref<8x128xf32, #tpu.memory_space<vmem>>, vector<8x8xf32>,
    %84 = arith.addf %64, %82 : vector<8x8xf32>
    %85 = arith.mulf %75, %81 : vector<8x8xf32>
    %c0_34 = arith.constant 0 : index
    %c32 = arith.constant 32 : index
    %86 = vector.load %arg9[%c0_34, %c32] : memref<8x128xf32, #tpu.memory_space<vmem>>, vector<8x8xf32>
    tpu.vector_store %arg9[%c0_34, %c32], %85 {strides = array<i32>} : memref<8x128xf32, #tpu.memory_space<vmem>>, vector<8x8xf32>,
    %87 = arith.addf %66, %85 : vector<8x8xf32>
    %88 = arith.mulf %77, %81 : vector<8x8xf32>
    %c0_35 = arith.constant 0 : index
    %c40 = arith.constant 40 : index
    %89 = vector.load %arg9[%c0_35, %c40] : memref<8x128xf32, #tpu.memory_space<vmem>>, vector<8x8xf32>
    tpu.vector_store %arg9[%c0_35, %c40], %88 {strides = array<i32>} : memref<8x128xf32, #tpu.memory_space<vmem>>, vector<8x8xf32>,
    %90 = arith.addf %68, %88 : vector<8x8xf32>
    %91 = arith.maximumf %41, %45 : vector<8x8xf32>
    %92 = arith.maximumf %91, %49 : vector<8x8xf32>
    %93 = arith.subf %41, %92 : vector<8x8xf32>
    %94 = math.exp %93 : vector<8x8xf32>
    %95 = arith.subf %45, %92 : vector<8x8xf32>
    %96 = math.exp %95 : vector<8x8xf32>
    %97 = arith.subf %49, %92 : vector<8x8xf32>
    %98 = math.exp %97 : vector<8x8xf32>
    %99 = arith.addf %94, %96 : vector<8x8xf32>
    %100 = arith.addf %99, %98 : vector<8x8xf32>
    %cst_36 = arith.constant 1.000000e+00 : f32
    %101 = vector.broadcast %cst_36 : f32 to vector<8x8xf32>
    %102 = arith.divf %101, %100 : vector<8x8xf32>
    %103 = arith.mulf %94, %102 : vector<8x8xf32>
    %c0_37 = arith.constant 0 : index
    %c48 = arith.constant 48 : index
    %104 = vector.load %arg9[%c0_37, %c48] : memref<8x128xf32, #tpu.memory_space<vmem>>, vector<8x8xf32>
    tpu.vector_store %arg9[%c0_37, %c48], %103 {strides = array<i32>} : memref<8x128xf32, #tpu.memory_space<vmem>>, vector<8x8xf32>,
    %105 = arith.addf %84, %103 : vector<8x8xf32>
    %106 = arith.mulf %96, %102 : vector<8x8xf32>
    %c0_38 = arith.constant 0 : index
    %c56 = arith.constant 56 : index
    %107 = vector.load %arg9[%c0_38, %c56] : memref<8x128xf32, #tpu.memory_space<vmem>>, vector<8x8xf32>
    tpu.vector_store %arg9[%c0_38, %c56], %106 {strides = array<i32>} : memref<8x128xf32, #tpu.memory_space<vmem>>, vector<8x8xf32>,
    %108 = arith.addf %87, %106 : vector<8x8xf32>
    %109 = arith.mulf %98, %102 : vector<8x8xf32>
    %c0_39 = arith.constant 0 : index
    %c64 = arith.constant 64 : index
    %110 = vector.load %arg9[%c0_39, %c64] : memref<8x128xf32, #tpu.memory_space<vmem>>, vector<8x8xf32>
    tpu.vector_store %arg9[%c0_39, %c64], %109 {strides = array<i32>} : memref<8x128xf32, #tpu.memory_space<vmem>>, vector<8x8xf32>,
    %111 = arith.addf %90, %109 : vector<8x8xf32>
    %cst_40 = arith.constant dense<0.000000e+00> : vector<8x768xf32>
    %112 = tpu.matmul %105, %13, %cst_40 {dimension_numbers = #tpu.dot_dimension_numbers<[1], [0], [0], [1], [0, 0, 1, 1], [], []>} : vector<8x8xf32>, vector<8x768xf32>, vector<8x768xf32> -> vector<8x768xf32>
    %113 = arith.mulf %112, %9 : vector<8x768xf32>
    %cst_41 = arith.constant dense<0.000000e+00> : vector<8x768xf32>
    %114 = tpu.matmul %108, %13, %cst_41 {dimension_numbers = #tpu.dot_dimension_numbers<[1], [0], [0], [1], [0, 0, 1, 1], [], []>} : vector<8x8xf32>, vector<8x768xf32>, vector<8x768xf32> -> vector<8x768xf32>
    %115 = arith.mulf %114, %10 : vector<8x768xf32>
    %116 = arith.addf %113, %115 : vector<8x768xf32>
    %cst_42 = arith.constant dense<0.000000e+00> : vector<8x768xf32>
    %117 = tpu.matmul %111, %13, %cst_42 {dimension_numbers = #tpu.dot_dimension_numbers<[1], [0], [0], [1], [0, 0, 1, 1], [], []>} : vector<8x8xf32>, vector<8x768xf32>, vector<8x768xf32> -> vector<8x768xf32>
    %118 = arith.mulf %117, %11 : vector<8x768xf32>
    %119 = arith.addf %116, %118 : vector<8x768xf32>
    %c0_43 = arith.constant 0 : index
    %c0_44 = arith.constant 0 : index
    %120 = vector.load %arg3[%c0_43, %c0_44] : memref<768x128xf32, #tpu.memory_space<vmem>>, vector<768x128xf32>
    %cst_45 = arith.constant dense<0.000000e+00> : vector<8x128xf32>
    %121 = tpu.matmul %119, %120, %cst_45 {dimension_numbers = #tpu.dot_dimension_numbers<[1], [0], [0], [1], [0, 0, 1, 1], [], []>} : vector<8x768xf32>, vector<768x128xf32>, vector<8x128xf32> -> vector<8x128xf32>
    %cst_46 = arith.constant 0.333333343 : f32
    %122 = vector.broadcast %cst_46 : f32 to vector<8x128xf32>
    %123 = arith.mulf %121, %122 : vector<8x128xf32>
    %c0_47 = arith.constant 0 : index
    %c0_48 = arith.constant 0 : index
    %124 = vector.load %arg4[%c0_47, %c0_48] : memref<1x128xf32, #tpu.memory_space<vmem>>, vector<1x128xf32>
    %125 = vector.broadcast %124 : vector<1x128xf32> to vector<8x128xf32>
    %126 = arith.addf %123, %125 : vector<8x128xf32>
    %c0_49 = arith.constant 0 : index
    %c0_50 = arith.constant 0 : index
    %127 = vector.load %arg10[%c0_49, %c0_50] : memref<8x128xf32, #tpu.memory_space<vmem>>, vector<8x128xf32>
    tpu.vector_store %arg10[%c0_49, %c0_50], %126 {strides = array<i32>} : memref<8x128xf32, #tpu.memory_space<vmem>>, vector<8x128xf32>,
    %c0_51 = arith.constant 0 : index
    %c0_52 = arith.constant 0 : index
    %128 = vector.load %arg5[%c0_51, %c0_52] : memref<128x10xf32, #tpu.memory_space<vmem>>, vector<128x10xf32>
    %cst_53 = arith.constant dense<0.000000e+00> : vector<8x10xf32>
    %129 = tpu.matmul %126, %128, %cst_53 {dimension_numbers = #tpu.dot_dimension_numbers<[1], [0], [0], [1], [0, 0, 1, 1], [], []>} : vector<8x128xf32>, vector<128x10xf32>, vector<8x10xf32> -> vector<8x10xf32>
    %c0_54 = arith.constant 0 : index
    %c0_55 = arith.constant 0 : index
    %130 = vector.load %arg6[%c0_54, %c0_55] : memref<1x10xf32, #tpu.memory_space<vmem>>, vector<1x10xf32>
    %131 = vector.broadcast %130 : vector<1x10xf32> to vector<8x10xf32>
    %132 = arith.addf %129, %131 : vector<8x10xf32>
    %c0_56 = arith.constant 0 : index
    %c0_57 = arith.constant 0 : index
    %133 = vector.load %arg11[%c0_56, %c0_57] : memref<8x10xf32, #tpu.memory_space<vmem>>, vector<8x10xf32>
    tpu.vector_store %arg11[%c0_56, %c0_57], %132 {strides = array<i32>} : memref<8x10xf32, #tpu.memory_space<vmem>>, vector<8x10xf32>,
    return
  }
  func.func @transform_0(%arg0: i32) -> (i32, i32) {
    %c0_i32 = arith.constant 0 : i32
    %c0_i32_0 = arith.constant 0 : i32
    return %arg0, %c0_i32 : i32, i32
  }
  func.func @transform_1(%arg0: i32) -> (i32, i32) {
    %c0_i32 = arith.constant 0 : i32
    %c0_i32_0 = arith.constant 0 : i32
    %c0_i32_1 = arith.constant 0 : i32
    return %c0_i32, %c0_i32_0 : i32, i32
  }
  func.func @transform_2(%arg0: i32) -> (i32, i32) {
    %c0_i32 = arith.constant 0 : i32
    %c0_i32_0 = arith.constant 0 : i32
    %c0_i32_1 = arith.constant 0 : i32
    return %c0_i32, %c0_i32_0 : i32, i32
  }
  func.func @transform_3(%arg0: i32) -> (i32, i32) {
    %c0_i32 = arith.constant 0 : i32
    %c0_i32_0 = arith.constant 0 : i32
    %c0_i32_1 = arith.constant 0 : i32
    return %c0_i32, %c0_i32_0 : i32, i32
  }
  func.func @transform_4(%arg0: i32) -> (i32, i32) {
    %c0_i32 = arith.constant 0 : i32
    %c0_i32_0 = arith.constant 0 : i32
    %c0_i32_1 = arith.constant 0 : i32
    return %c0_i32, %c0_i32_0 : i32, i32
  }
  func.func @transform_5(%arg0: i32) -> (i32, i32) {
    %c0_i32 = arith.constant 0 : i32
    %c0_i32_0 = arith.constant 0 : i32
    %c0_i32_1 = arith.constant 0 : i32
    return %c0_i32, %c0_i32_0 : i32, i32
  }
  func.func @transform_6(%arg0: i32) -> (i32, i32) {
    %c0_i32 = arith.constant 0 : i32
    %c0_i32_0 = arith.constant 0 : i32
    %c0_i32_1 = arith.constant 0 : i32
    return %c0_i32, %c0_i32_0 : i32, i32
  }
  func.func @transform_7(%arg0: i32) -> (i32, i32) {
    %c0_i32 = arith.constant 0 : i32
    %c0_i32_0 = arith.constant 0 : i32
    %c0_i32_1 = arith.constant 0 : i32
    return %c0_i32, %c0_i32_0 : i32, i32
  }
  func.func @transform_8(%arg0: i32) -> (i32, i32) {
    %c0_i32 = arith.constant 0 : i32
    %c0_i32_0 = arith.constant 0 : i32
    return %arg0, %c0_i32 : i32, i32
  }
  func.func @transform_9(%arg0: i32) -> (i32, i32) {
    %c0_i32 = arith.constant 0 : i32
    %c0_i32_0 = arith.constant 0 : i32
    return %arg0, %c0_i32 : i32, i32
  }
  func.func @transform_10(%arg0: i32) -> (i32, i32) {
    %c0_i32 = arith.constant 0 : i32
    %c0_i32_0 = arith.constant 0 : i32
    return %arg0, %c0_i32 : i32, i32
  }
}

</mosaic_0001>

<llo_original>
// kernel: tpu_custom_call.1
$region0: #{tpu_custom_call.1}
  #allocation0 [shape = 'u32[]', space=smem, size = 0x4, offset = 0x4, fixed_abs, tag = 'smem constant byte address 0x4 - core index']
  #allocation1 [shape = 'u32[144,128]{1,0:T(1,128)}', space=vmem, size = 0x12000, scoped, tag = 'internal scratch']
  %s0 = inlined_call_operand.hbm [shape: bf16[24,768], index: 0, kind: input, shape index: {}]
  %s1 = inlined_call_operand.hbm [shape: bf16[768,2304], index: 1, kind: input, shape index: {}]
  %s2 = inlined_call_operand.hbm [shape: f32[768,128], index: 2, kind: input, shape index: {}]
  %s3 = inlined_call_operand.hbm [shape: f32[1,128], index: 3, kind: input, shape index: {}]
  %s4 = inlined_call_operand.vmem [shape: f32[128,10], index: 4, kind: input, shape index: {}]
  %s5 = inlined_call_operand.hbm [shape: f32[1,10], index: 5, kind: input, shape index: {}]
  %s6 = inlined_call_operand.vmem [shape: f32[768,8], index: 6, kind: input, shape index: {}]
  %s7 = inlined_call_operand.hbm [shape: f32[8,768], index: 7, kind: input, shape index: {}]
  %s8 = inlined_call_operand.hbm [shape: f32[8,128], index: 8, kind: output, shape index: {0}]
  %s9 = inlined_call_operand.hbm [shape: f32[8,128], index: 9, kind: output, shape index: {1}]
  %s10 = inlined_call_operand.hbm [shape: f32[8,10], index: 10, kind: output, shape index: {2}]
  %11 = xla_tuple %s8, %s9, %s10
  %s12 = sld [smem:[#allocation0]]
  $region82: #{tpu_custom_call.1} parent=0
    _
  %s14 = ssub.s32 1, %s12
  %s15 = scalar_select 0, %s14, %s12
  $region1: #{tpu_custom_call.1} parent=0
    #allocation2 [shape = 'u8[36864]{0}', space=vmem, size = 0x9000, scoped, tag = 'input window, operand 0, single buffered']
    #allocation3 [shape = 's32[1]{0}', space=sflag, size = 0x4, scoped, tag = 'scoped memory for tpu_custom_call.1']
    #allocation4 [shape = 's32[1]{0}', space=sflag, size = 0x4, scoped, tag = 'scoped memory for tpu_custom_call.1']
    #allocation5 [shape = 'u8[3538944]{0}', space=vmem, size = 0x360000, scoped, tag = 'input window, operand 1, single buffered']
    #allocation6 [shape = 's32[1]{0}', space=sflag, size = 0x4, scoped, tag = 'scoped memory for tpu_custom_call.1']
    #allocation7 [shape = 'u8[393216]{0}', space=vmem, size = 0x60000, scoped, tag = 'input window, operand 2, single buffered']
    #allocation8 [shape = 'u8[512]{0}', space=vmem, size = 0x400, scoped, tag = 'input window, operand 3, single buffered']
    #allocation9 [shape = 's32[1]{0}', space=sflag, size = 0x4, scoped, tag = 'scoped memory for tpu_custom_call.1']
    #allocation10 [shape = 'u8[512]{0}', space=vmem, size = 0x400, scoped, tag = 'input window, operand 5, single buffered']
    #allocation11 [shape = 'u8[24576]{0}', space=vmem, size = 0x6000, scoped, tag = 'input window, operand 7, single buffered']
    #allocation12 [shape = 's32[1]{0}', space=sflag, size = 0x4, scoped, tag = 'scoped memory for tpu_custom_call.1']
    #allocation13 [shape = 'u8[4096]{0}', space=vmem, size = 0x1000, scoped, tag = 'output window, operand 0, single buffered']
    #allocation14 [shape = 'u8[4096]{0}', space=vmem, size = 0x1000, scoped, tag = 'output window, operand 1, single buffered']
    #allocation15 [shape = 's32[1]{0}', space=sflag, size = 0x4, scoped, tag = 'scoped memory for tpu_custom_call.1']
    #allocation16 [shape = 'u8[4096]{0}', space=vmem, size = 0x1000, scoped, tag = 'output window, operand 2, single buffered']
    %16 = vsyncpa [#allocation3], 0
    %17 = vsyncpa [#allocation6], 0
    %18 = vsyncpa [#allocation9], 0
    %19 = vsyncpa [#allocation12], 0
    %20 = vsyncpa [#allocation4], 0
    %21 = vsyncpa [#allocation15], 0
    // Predicated region
    $region2: #{tpu_custom_call.1} parent=1 // pred_check
      _
    $region3: #{tpu_custom_call.1} parent=1 // pred_check_branch
      %23 = sbr.rel (0) target = $region5
    $region4: #{tpu_custom_call.1} parent=1 // pred_region
      %s25 = ssub.s32 1152, 1152
      %26 = vsyncadd [#allocation3], %s25
      %s27 = sshll.u32 [#allocation2], 4
      %s28 = int_to_ptr.vmem [resolvable:$true] %s27
      %33 = dma.hbm_to_vmem [thread:$0]  %s0, 1152, %s28, [#allocation3], 384, 384, 24
    $region5: #{tpu_custom_call.1} parent=1 // pred_fallthru
      _
    // Predicated region
    $region6: #{tpu_custom_call.1} parent=1 // pred_check
      _
    $region7: #{tpu_custom_call.1} parent=1 // pred_check_branch
      %35 = sbr.rel (0) target = $region9
    $region8: #{tpu_custom_call.1} parent=1 // pred_region
      %s37 = ssub.s32 110592, 110592
      %38 = vsyncadd [#allocation6], %s37
      %s39 = sshll.u32 [#allocation5], 4
      %s40 = int_to_ptr.vmem [resolvable:$true] %s39
      %45 = dma.hbm_to_vmem [thread:$0]  %s1, 110592, %s40, [#allocation6], 1152, 1152, 72
    $region9: #{tpu_custom_call.1} parent=1 // pred_fallthru
      _
    // Predicated region
    $region10: #{tpu_custom_call.1} parent=1 // pred_check
      _
    $region11: #{tpu_custom_call.1} parent=1 // pred_check_branch
      %47 = sbr.rel (0) target = $region13
    $region12: #{tpu_custom_call.1} parent=1 // pred_region
      %s49 = ssub.s32 12288, 12288
      %50 = vsyncadd [#allocation6], %s49
      %s51 = sshll.u32 [#allocation7], 4
      %s52 = int_to_ptr.vmem [resolvable:$true] %s51
      %57 = dma.hbm_to_vmem [thread:$0]  %s2, 12288, %s52, [#allocation6], 128, 128, 8
    $region13: #{tpu_custom_call.1} parent=1 // pred_fallthru
      _
    // Predicated region
    $region14: #{tpu_custom_call.1} parent=1 // pred_check
      _
    $region15: #{tpu_custom_call.1} parent=1 // pred_check_branch
      %59 = sbr.rel (0) target = $region17
    $region16: #{tpu_custom_call.1} parent=1 // pred_region
      %s61 = ssub.s32 16, 16
      %62 = vsyncadd [#allocation9], %s61
      %s64 = sshll.u32 [#allocation8], 4
      %s65 = int_to_ptr.vmem [resolvable:$true] %s64
      %67 = dma.hbm_to_vmem [thread:$0]  %s3, 16, %s65, [#allocation9]
    $region17: #{tpu_custom_call.1} parent=1 // pred_fallthru
      _
    // Predicated region
    $region18: #{tpu_custom_call.1} parent=1 // pred_check
      _
    $region19: #{tpu_custom_call.1} parent=1 // pred_check_branch
      %69 = sbr.rel (0) target = $region21
    $region20: #{tpu_custom_call.1} parent=1 // pred_region
      _
    $region21: #{tpu_custom_call.1} parent=1 // pred_fallthru
      _
    // Predicated region
    $region22: #{tpu_custom_call.1} parent=1 // pred_check
      _
    $region23: #{tpu_custom_call.1} parent=1 // pred_check_branch
      %71 = sbr.rel (0) target = $region25
    $region24: #{tpu_custom_call.1} parent=1 // pred_region
      %s73 = ssub.s32 16, 16
      %74 = vsyncadd [#allocation9], %s73
      %s76 = sshll.u32 [#allocation10], 4
      %s77 = int_to_ptr.vmem [resolvable:$true] %s76
      %79 = dma.hbm_to_vmem [thread:$0]  %s5, 16, %s77, [#allocation9]
    $region25: #{tpu_custom_call.1} parent=1 // pred_fallthru
      _
    // Predicated region
    $region26: #{tpu_custom_call.1} parent=1 // pred_check
      _
    $region27: #{tpu_custom_call.1} parent=1 // pred_check_branch
      %81 = sbr.rel (0) target = $region29
    $region28: #{tpu_custom_call.1} parent=1 // pred_region
      _
    $region29: #{tpu_custom_call.1} parent=1 // pred_fallthru
      _
    // Predicated region
    $region30: #{tpu_custom_call.1} parent=1 // pred_check
      _
    $region31: #{tpu_custom_call.1} parent=1 // pred_check_branch
      %83 = sbr.rel (0) target = $region33
    $region32: #{tpu_custom_call.1} parent=1 // pred_region
      %s85 = ssub.s32 768, 768
      %86 = vsyncadd [#allocation12], %s85
      %s88 = sshll.u32 [#allocation11], 4
      %s89 = int_to_ptr.vmem [resolvable:$true] %s88
      %91 = dma.hbm_to_vmem [thread:$0]  %s7, 768, %s89, [#allocation12]
    $region33: #{tpu_custom_call.1} parent=1 // pred_fallthru
      _
    // Predicated region
    $region34: #{tpu_custom_call.1} parent=1 // pred_check
      _
    $region35: #{tpu_custom_call.1} parent=1 // pred_check_branch
      %93 = sbr.rel (0) target = $region37
    $region36: #{tpu_custom_call.1} parent=1 // pred_region
      %94 = dma.done [#allocation3], 1152
    $region37: #{tpu_custom_call.1} parent=1 // pred_fallthru
      _
    // Predicated region
    $region38: #{tpu_custom_call.1} parent=1 // pred_check
      _
    $region39: #{tpu_custom_call.1} parent=1 // pred_check_branch
      %96 = sbr.rel (0) target = $region41
    $region40: #{tpu_custom_call.1} parent=1 // pred_region
      %97 = dma.done [#allocation6], 110592
    $region41: #{tpu_custom_call.1} parent=1 // pred_fallthru
      _
    // Predicated region
    $region42: #{tpu_custom_call.1} parent=1 // pred_check
      _
    $region43: #{tpu_custom_call.1} parent=1 // pred_check_branch
      %99 = sbr.rel (0) target = $region45
    $region44: #{tpu_custom_call.1} parent=1 // pred_region
      %100 = dma.done [#allocation6], 12288
    $region45: #{tpu_custom_call.1} parent=1 // pred_fallthru
      _
    // Predicated region
    $region46: #{tpu_custom_call.1} parent=1 // pred_check
      _
    $region47: #{tpu_custom_call.1} parent=1 // pred_check_branch
      %102 = sbr.rel (0) target = $region49
    $region48: #{tpu_custom_call.1} parent=1 // pred_region
      %103 = dma.done [#allocation9], 16
    $region49: #{tpu_custom_call.1} parent=1 // pred_fallthru
      _
    // Predicated region
    $region50: #{tpu_custom_call.1} parent=1 // pred_check
      _
    $region51: #{tpu_custom_call.1} parent=1 // pred_check_branch
      %105 = sbr.rel (0) target = $region53
    $region52: #{tpu_custom_call.1} parent=1 // pred_region
      %106 = dma.done [#allocation9], 16
    $region53: #{tpu_custom_call.1} parent=1 // pred_fallthru
      _
    // Predicated region
    $region54: #{tpu_custom_call.1} parent=1 // pred_check
      _
    $region55: #{tpu_custom_call.1} parent=1 // pred_check_branch
      %108 = sbr.rel (0) target = $region57
    $region56: #{tpu_custom_call.1} parent=1 // pred_region
      %109 = dma.done [#allocation12], 768
    $region57: #{tpu_custom_call.1} parent=1 // pred_fallthru
      _
    %v110 = vld [vmem:[#allocation2] sm:$0xff]
    %v111 = vld [vmem:[#allocation2 + $0x8] sm:$0xff]
    %v112 = vld [vmem:[#allocation2 + $0x10] sm:$0xff]
    %v113 = vld [vmem:[#allocation2 + $0x18] sm:$0xff]
    %v114 = vld [vmem:[#allocation2 + $0x20] sm:$0xff]
    %v115 = vld [vmem:[#allocation2 + $0x28] sm:$0xff]
    %v116 = vld [vmem:[#allocation2 + $0x30] sm:$0xff]
    %v117 = vld [vmem:[#allocation2 + $0x38] sm:$0xff]
    %v118 = vld [vmem:[#allocation2 + $0x40] sm:$0xff]
    %v119 = vld [vmem:[#allocation5] sm:$0xff]
    %v120 = vld [vmem:[#allocation5 + $0x8] sm:$0xff]
    %v121 = vld [vmem:[#allocation5 + $0x10] sm:$0xff]
    %v122 = vld [vmem:[#allocation5 + $0x18] sm:$0xff]
    %v123 = vld [vmem:[#allocation5 + $0x20] sm:$0xff]
    %v124 = vld [vmem:[#allocation5 + $0x28] sm:$0xff]
    %v125 = vld [vmem:[#allocation5 + $0x30] sm:$0xff]
    %v126 = vld [vmem:[#allocation5 + $0x38] sm:$0xff]
    %v127 = vld [vmem:[#allocation5 + $0x40] sm:$0xff]
    %v128 = vld [vmem:[#allocation5 + $0x48] sm:$0xff]
    %v129 = vld [vmem:[#allocation5 + $0x50] sm:$0xff]
    %v130 = vld [vmem:[#allocation5 + $0x58] sm:$0xff]
    %v131 = vld [vmem:[#allocation5 + $0x60] sm:$0xff]
    %v132 = vld [vmem:[#allocation5 + $0x68] sm:$0xff]
    %v133 = vld [vmem:[#allocation5 + $0x70] sm:$0xff]
    %v134 = vld [vmem:[#allocation5 + $0x78] sm:$0xff]
    %v135 = vld [vmem:[#allocation5 + $0x80] sm:$0xff]
    %v136 = vld [vmem:[#allocation5 + $0x88] sm:$0xff]
    %v137 = vld [vmem:[#allocation5 + $0x90] sm:$0xff]
    %v138 = vld [vmem:[#allocation5 + $0x98] sm:$0xff]
    %v139 = vld [vmem:[#allocation5 + $0xa0] sm:$0xff]
    %v140 = vld [vmem:[#allocation5 + $0xa8] sm:$0xff]
    %v141 = vld [vmem:[#allocation5 + $0xb0] sm:$0xff]
    %v142 = vld [vmem:[#allocation5 + $0xb8] sm:$0xff]
    %v143 = vld [vmem:[#allocation5 + $0xc0] sm:$0xff]
    %v144 = vld [vmem:[#allocation5 + $0xc8] sm:$0xff]
    %v145 = vld [vmem:[#allocation5 + $0xd0] sm:$0xff]
    %v146 = vld [vmem:[#allocation5 + $0xd8] sm:$0xff]
    %v147 = vld [vmem:[#allocation5 + $0xe0] sm:$0xff]
    %v148 = vld [vmem:[#allocation5 + $0xe8] sm:$0xff]
    %v149 = vld [vmem:[#allocation5 + $0xf0] sm:$0xff]
    %v150 = vld [vmem:[#allocation5 + $0xf8] sm:$0xff]
    %v151 = vld [vmem:[#allocation5 + $0x100] sm:$0xff]
    %v152 = vld [vmem:[#allocation5 + $0x108] sm:$0xff]
    %v153 = vld [vmem:[#allocation5 + $0x110] sm:$0xff]
    %v154 = vld [vmem:[#allocation5 + $0x118] sm:$0xff]
    %v155 = vld [vmem:[#allocation5 + $0x120] sm:$0xff]
    %v156 = vld [vmem:[#allocation5 + $0x128] sm:$0xff]
    %v157 = vld [vmem:[#allocation5 + $0x130] sm:$0xff]
    %v158 = vld [vmem:[#allocation5 + $0x138] sm:$0xff]
    %v159 = vld [vmem:[#allocation5 + $0x140] sm:$0xff]
    %v160 = vld [vmem:[#allocation5 + $0x148] sm:$0xff]
    %v161 = vld [vmem:[#allocation5 + $0x150] sm:$0xff]
    %v162 = vld [vmem:[#allocation5 + $0x158] sm:$0xff]
    %v163 = vld [vmem:[#allocation5 + $0x160] sm:$0xff]
    %v164 = vld [vmem:[#allocation5 + $0x168] sm:$0xff]
    %v165 = vld [vmem:[#allocation5 + $0x170] sm:$0xff]
    %v166 = vld [vmem:[#allocation5 + $0x178] sm:$0xff]
    %v167 = vld [vmem:[#allocation5 + $0x180] sm:$0xff]
    %v168 = vld [vmem:[#allocation5 + $0x188] sm:$0xff]
    %v169 = vld [vmem:[#allocation5 + $0x190] sm:$0xff]
    %v170 = vld [vmem:[#allocation5 + $0x198] sm:$0xff]
    %v171 = vld [vmem:[#allocation5 + $0x1a0] sm:$0xff]
    %v172 = vld [vmem:[#allocation5 + $0x1a8] sm:$0xff]
    %v173 = vld [vmem:[#allocation5 + $0x1b0] sm:$0xff]
    %v174 = vld [vmem:[#allocation5 + $0x1b8] sm:$0xff]
    %v175 = vld [vmem:[#allocation5 + $0x1c0] sm:$0xff]
    %v176 = vld [vmem:[#allocation5 + $0x1c8] sm:$0xff]
    %v177 = vld [vmem:[#allocation5 + $0x1d0] sm:$0xff]
    %v178 = vld [vmem:[#allocation5 + $0x1d8] sm:$0xff]
    %v179 = vld [vmem:[#allocation5 + $0x1e0] sm:$0xff]
    %v180 = vld [vmem:[#allocation5 + $0x1e8] sm:$0xff]
    %v181 = vld [vmem:[#allocation5 + $0x1f0] sm:$0xff]
    %v182 = vld [vmem:[#allocation5 + $0x1f8] sm:$0xff]
    %v183 = vld [vmem:[#allocation5 + $0x200] sm:$0xff]
    %v184 = vld [vmem:[#allocation5 + $0x208] sm:$0xff]
    %v185 = vld [vmem:[#allocation5 + $0x210] sm:$0xff]
    %v186 = vld [vmem:[#allocation5 + $0x218] sm:$0xff]
    %v187 = vld [vmem:[#allocation5 + $0x220] sm:$0xff]
    %v188 = vld [vmem:[#allocation5 + $0x228] sm:$0xff]
    %v189 = vld [vmem:[#allocation5 + $0x230] sm:$0xff]
    %v190 = vld [vmem:[#allocation5 + $0x238] sm:$0xff]
    %v191 = vld [vmem:[#allocation5 + $0x240] sm:$0xff]
    %v192 = vld [vmem:[#allocation5 + $0x248] sm:$0xff]
    %v193 = vld [vmem:[#allocation5 + $0x250] sm:$0xff]
    %v194 = vld [vmem:[#allocation5 + $0x258] sm:$0xff]
    %v195 = vld [vmem:[#allocation5 + $0x260] sm:$0xff]
    %v196 = vld [vmem:[#allocation5 + $0x268] sm:$0xff]
    %v197 = vld [vmem:[#allocation5 + $0x270] sm:$0xff]
    %v198 = vld [vmem:[#allocation5 + $0x278] sm:$0xff]
    %v199 = vld [vmem:[#allocation5 + $0x280] sm:$0xff]
    %v200 = vld [vmem:[#allocation5 + $0x288] sm:$0xff]
    %v201 = vld [vmem:[#allocation5 + $0x290] sm:$0xff]
    %v202 = vld [vmem:[#allocation5 + $0x298] sm:$0xff]
    %v203 = vld [vmem:[#allocation5 + $0x2a0] sm:$0xff]
    %v204 = vld [vmem:[#allocation5 + $0x2a8] sm:$0xff]
    %v205 = vld [vmem:[#allocation5 + $0x2b0] sm:$0xff]
    %v206 = vld [vmem:[#allocation5 + $0x2b8] sm:$0xff]
    %v207 = vld [vmem:[#allocation5 + $0x2c0] sm:$0xff]
    %v208 = vld [vmem:[#allocation5 + $0x2c8] sm:$0xff]
    %v209 = vld [vmem:[#allocation5 + $0x2d0] sm:$0xff]
    %v210 = vld [vmem:[#allocation5 + $0x2d8] sm:$0xff]
    %v211 = vld [vmem:[#allocation5 + $0x2e0] sm:$0xff]
    %v212 = vld [vmem:[#allocation5 + $0x2e8] sm:$0xff]
    %v213 = vld [vmem:[#allocation5 + $0x2f0] sm:$0xff]
    %v214 = vld [vmem:[#allocation5 + $0x2f8] sm:$0xff]
    %v215 = vld [vmem:[#allocation5 + $0x300] sm:$0xff]
    %v216 = vld [vmem:[#allocation5 + $0x308] sm:$0xff]
    %v217 = vld [vmem:[#allocation5 + $0x310] sm:$0xff]
    %v218 = vld [vmem:[#allocation5 + $0x318] sm:$0xff]
    %v219 = vld [vmem:[#allocation5 + $0x320] sm:$0xff]
    %v220 = vld [vmem:[#allocation5 + $0x328] sm:$0xff]
    %v221 = vld [vmem:[#allocation5 + $0x330] sm:$0xff]
    %v222 = vld [vmem:[#allocation5 + $0x338] sm:$0xff]
    %v223 = vld [vmem:[#allocation5 + $0x340] sm:$0xff]
    %v224 = vld [vmem:[#allocation5 + $0x348] sm:$0xff]
    %v225 = vld [vmem:[#allocation5 + $0x350] sm:$0xff]
    %v226 = vld [vmem:[#allocation5 + $0x358] sm:$0xff]
    %v227 = vld [vmem:[#allocation5 + $0x360] sm:$0xff]
    %v228 = vld [vmem:[#allocation5 + $0x368] sm:$0xff]
    %v229 = vld [vmem:[#allocation5 + $0x370] sm:$0xff]
    %v230 = vld [vmem:[#allocation5 + $0x378] sm:$0xff]
    %v231 = vld [vmem:[#allocation5 + $0x380] sm:$0xff]
    %v232 = vld [vmem:[#allocation5 + $0x388] sm:$0xff]
    %v233 = vld [vmem:[#allocation5 + $0x390] sm:$0xff]
    %v234 = vld [vmem:[#allocation5 + $0x398] sm:$0xff]
    %v235 = vld [vmem:[#allocation5 + $0x3a0] sm:$0xff]
    %v236 = vld [vmem:[#allocation5 + $0x3a8] sm:$0xff]
    %v237 = vld [vmem:[#allocation5 + $0x3b0] sm:$0xff]
    %v238 = vld [vmem:[#allocation5 + $0x3b8] sm:$0xff]
    %v239 = vld [vmem:[#allocation5 + $0x3c0] sm:$0xff]
    %v240 = vld [vmem:[#allocation5 + $0x3c8] sm:$0xff]
    %v241 = vld [vmem:[#allocation5 + $0x3d0] sm:$0xff]
    %v242 = vld [vmem:[#allocation5 + $0x3d8] sm:$0xff]
    %v243 = vld [vmem:[#allocation5 + $0x3e0] sm:$0xff]
    %v244 = vld [vmem:[#allocation5 + $0x3e8] sm:$0xff]
    %v245 = vld [vmem:[#allocation5 + $0x3f0] sm:$0xff]
    %v246 = vld [vmem:[#allocation5 + $0x3f8] sm:$0xff]
    %v247 = vld [vmem:[#allocation5 + $0x400] sm:$0xff]
    %v248 = vld [vmem:[#allocation5 + $0x408] sm:$0xff]
    %v249 = vld [vmem:[#allocation5 + $0x410] sm:$0xff]
    %v250 = vld [vmem:[#allocation5 + $0x418] sm:$0xff]
    %v251 = vld [vmem:[#allocation5 + $0x420] sm:$0xff]
    %v252 = vld [vmem:[#allocation5 + $0x428] sm:$0xff]
    %v253 = vld [vmem:[#allocation5 + $0x430] sm:$0xff]
    %v254 = vld [vmem:[#allocation5 + $0x438] sm:$0xff]
    %v255 = vld [vmem:[#allocation5 + $0x440] sm:$0xff]
    %v256 = vld [vmem:[#allocation5 + $0x448] sm:$0xff]
    %v257 = vld [vmem:[#allocation5 + $0x450] sm:$0xff]
    %v258 = vld [vmem:[#allocation5 + $0x458] sm:$0xff]
    %v259 = vld [vmem:[#allocation5 + $0x460] sm:$0xff]
    %v260 = vld [vmem:[#allocation5 + $0x468] sm:$0xff]
    %v261 = vld [vmem:[#allocation5 + $0x470] sm:$0xff]
    %v262 = vld [vmem:[#allocation5 + $0x478] sm:$0xff]
    %v263 = vld [vmem:[#allocation5 + $0x480] sm:$0xff]
    %v264 = vld [vmem:[#allocation5 + $0x488] sm:$0xff]
    %v265 = vld [vmem:[#allocation5 + $0x490] sm:$0xff]
    %v266 = vld [vmem:[#allocation5 + $0x498] sm:$0xff]
    %v267 = vld [vmem:[#allocation5 + $0x4a0] sm:$0xff]
    %v268 = vld [vmem:[#allocation5 + $0x4a8] sm:$0xff]
    %v269 = vld [vmem:[#allocation5 + $0x4b0] sm:$0xff]
    %v270 = vld [vmem:[#allocation5 + $0x4b8] sm:$0xff]
    %v271 = vld [vmem:[#allocation5 + $0x4c0] sm:$0xff]
    %v272 = vld [vmem:[#allocation5 + $0x4c8] sm:$0xff]
    %v273 = vld [vmem:[#allocation5 + $0x4d0] sm:$0xff]
    %v274 = vld [vmem:[#allocation5 + $0x4d8] sm:$0xff]
    %v275 = vld [vmem:[#allocation5 + $0x4e0] sm:$0xff]
    %v276 = vld [vmem:[#allocation5 + $0x4e8] sm:$0xff]
    %v277 = vld [vmem:[#allocation5 + $0x4f0] sm:$0xff]
    %v278 = vld [vmem:[#allocation5 + $0x4f8] sm:$0xff]
    %v279 = vld [vmem:[#allocation5 + $0x500] sm:$0xff]
    %v280 = vld [vmem:[#allocation5 + $0x508] sm:$0xff]
    %v281 = vld [vmem:[#allocation5 + $0x510] sm:$0xff]
    %v282 = vld [vmem:[#allocation5 + $0x518] sm:$0xff]
    %v283 = vld [vmem:[#allocation5 + $0x520] sm:$0xff]
    %v284 = vld [vmem:[#allocation5 + $0x528] sm:$0xff]
    %v285 = vld [vmem:[#allocation5 + $0x530] sm:$0xff]
    %v286 = vld [vmem:[#allocation5 + $0x538] sm:$0xff]
    %v287 = vld [vmem:[#allocation5 + $0x540] sm:$0xff]
    %v288 = vld [vmem:[#allocation5 + $0x548] sm:$0xff]
    %v289 = vld [vmem:[#allocation5 + $0x550] sm:$0xff]
    %v290 = vld [vmem:[#allocation5 + $0x558] sm:$0xff]
    %v291 = vld [vmem:[#allocation5 + $0x560] sm:$0xff]
    %v292 = vld [vmem:[#allocation5 + $0x568] sm:$0xff]
    %v293 = vld [vmem:[#allocation5 + $0x570] sm:$0xff]
    %v294 = vld [vmem:[#allocation5 + $0x578] sm:$0xff]
    %v295 = vld [vmem:[#allocation5 + $0x580] sm:$0xff]
    %v296 = vld [vmem:[#allocation5 + $0x588] sm:$0xff]
    %v297 = vld [vmem:[#allocation5 + $0x590] sm:$0xff]
    %v298 = vld [vmem:[#allocation5 + $0x598] sm:$0xff]
    %v299 = vld [vmem:[#allocation5 + $0x5a0] sm:$0xff]
    %v300 = vld [vmem:[#allocation5 + $0x5a8] sm:$0xff]
    %v301 = vld [vmem:[#allocation5 + $0x5b0] sm:$0xff]
    %v302 = vld [vmem:[#allocation5 + $0x5b8] sm:$0xff]
    %v303 = vld [vmem:[#allocation5 + $0x5c0] sm:$0xff]
    %v304 = vld [vmem:[#allocation5 + $0x5c8] sm:$0xff]
    %v305 = vld [vmem:[#allocation5 + $0x5d0] sm:$0xff]
    %v306 = vld [vmem:[#allocation5 + $0x5d8] sm:$0xff]
    %v307 = vld [vmem:[#allocation5 + $0x5e0] sm:$0xff]
    %v308 = vld [vmem:[#allocation5 + $0x5e8] sm:$0xff]
    %v309 = vld [vmem:[#allocation5 + $0x5f0] sm:$0xff]
    %v310 = vld [vmem:[#allocation5 + $0x5f8] sm:$0xff]
    %v311 = vld [vmem:[#allocation5 + $0x600] sm:$0xff]
    %v312 = vld [vmem:[#allocation5 + $0x608] sm:$0xff]
    %v313 = vld [vmem:[#allocation5 + $0x610] sm:$0xff]
    %v314 = vld [vmem:[#allocation5 + $0x618] sm:$0xff]
    %v315 = vld [vmem:[#allocation5 + $0x620] sm:$0xff]
    %v316 = vld [vmem:[#allocation5 + $0x628] sm:$0xff]
    %v317 = vld [vmem:[#allocation5 + $0x630] sm:$0xff]
    %v318 = vld [vmem:[#allocation5 + $0x638] sm:$0xff]
    %v319 = vld [vmem:[#allocation5 + $0x640] sm:$0xff]
    %v320 = vld [vmem:[#allocation5 + $0x648] sm:$0xff]
    %v321 = vld [vmem:[#allocation5 + $0x650] sm:$0xff]
    %v322 = vld [vmem:[#allocation5 + $0x658] sm:$0xff]
    %v323 = vld [vmem:[#allocation5 + $0x660] sm:$0xff]
    %v324 = vld [vmem:[#allocation5 + $0x668] sm:$0xff]
    %v325 = vld [vmem:[#allocation5 + $0x670] sm:$0xff]
    %v326 = vld [vmem:[#allocation5 + $0x678] sm:$0xff]
    %v327 = vld [vmem:[#allocation5 + $0x680] sm:$0xff]
    %v328 = vld [vmem:[#allocation5 + $0x688] sm:$0xff]
    %v329 = vld [vmem:[#allocation5 + $0x690] sm:$0xff]
    %v330 = vld [vmem:[#allocation5 + $0x698] sm:$0xff]
    %v331 = vld [vmem:[#allocation5 + $0x6a0] sm:$0xff]
    %v332 = vld [vmem:[#allocation5 + $0x6a8] sm:$0xff]
    %v333 = vld [vmem:[#allocation5 + $0x6b0] sm:$0xff]
    %v334 = vld [vmem:[#allocation5 + $0x6b8] sm:$0xff]
    %v335 = vld [vmem:[#allocation5 + $0x6c0] sm:$0xff]
    %v336 = vld [vmem:[#allocation5 + $0x6c8] sm:$0xff]
    %v337 = vld [vmem:[#allocation5 + $0x6d0] sm:$0xff]
    %v338 = vld [vmem:[#allocation5 + $0x6d8] sm:$0xff]
    %v339 = vld [vmem:[#allocation5 + $0x6e0] sm:$0xff]
    %v340 = vld [vmem:[#allocation5 + $0x6e8] sm:$0xff]
    %v341 = vld [vmem:[#allocation5 + $0x6f0] sm:$0xff]
    %v342 = vld [vmem:[#allocation5 + $0x6f8] sm:$0xff]
    %v343 = vld [vmem:[#allocation5 + $0x700] sm:$0xff]
    %v344 = vld [vmem:[#allocation5 + $0x708] sm:$0xff]
    %v345 = vld [vmem:[#allocation5 + $0x710] sm:$0xff]
    %v346 = vld [vmem:[#allocation5 + $0x718] sm:$0xff]
    %v347 = vld [vmem:[#allocation5 + $0x720] sm:$0xff]
    %v348 = vld [vmem:[#allocation5 + $0x728] sm:$0xff]
    %v349 = vld [vmem:[#allocation5 + $0x730] sm:$0xff]
    %v350 = vld [vmem:[#allocation5 + $0x738] sm:$0xff]
    %v351 = vld [vmem:[#allocation5 + $0x740] sm:$0xff]
    %v352 = vld [vmem:[#allocation5 + $0x748] sm:$0xff]
    %v353 = vld [vmem:[#allocation5 + $0x750] sm:$0xff]
    %v354 = vld [vmem:[#allocation5 + $0x758] sm:$0xff]
    %v355 = vld [vmem:[#allocation5 + $0x760] sm:$0xff]
    %v356 = vld [vmem:[#allocation5 + $0x768] sm:$0xff]
    %v357 = vld [vmem:[#allocation5 + $0x770] sm:$0xff]
    %v358 = vld [vmem:[#allocation5 + $0x778] sm:$0xff]
    %v359 = vld [vmem:[#allocation5 + $0x780] sm:$0xff]
    %v360 = vld [vmem:[#allocation5 + $0x788] sm:$0xff]
    %v361 = vld [vmem:[#allocation5 + $0x790] sm:$0xff]
    %v362 = vld [vmem:[#allocation5 + $0x798] sm:$0xff]
    %v363 = vld [vmem:[#allocation5 + $0x7a0] sm:$0xff]
    %v364 = vld [vmem:[#allocation5 + $0x7a8] sm:$0xff]
    %v365 = vld [vmem:[#allocation5 + $0x7b0] sm:$0xff]
    %v366 = vld [vmem:[#allocation5 + $0x7b8] sm:$0xff]
    %v367 = vld [vmem:[#allocation5 + $0x7c0] sm:$0xff]
    %v368 = vld [vmem:[#allocation5 + $0x7c8] sm:$0xff]
    %v369 = vld [vmem:[#allocation5 + $0x7d0] sm:$0xff]
    %v370 = vld [vmem:[#allocation5 + $0x7d8] sm:$0xff]
    %v371 = vld [vmem:[#allocation5 + $0x7e0] sm:$0xff]
    %v372 = vld [vmem:[#allocation5 + $0x7e8] sm:$0xff]
    %v373 = vld [vmem:[#allocation5 + $0x7f0] sm:$0xff]
    %v374 = vld [vmem:[#allocation5 + $0x7f8] sm:$0xff]
    %v375 = vld [vmem:[#allocation5 + $0x800] sm:$0xff]
    %v376 = vld [vmem:[#allocation5 + $0x808] sm:$0xff]
    %v377 = vld [vmem:[#allocation5 + $0x810] sm:$0xff]
    %v378 = vld [vmem:[#allocation5 + $0x818] sm:$0xff]
    %v379 = vld [vmem:[#allocation5 + $0x820] sm:$0xff]
    %v380 = vld [vmem:[#allocation5 + $0x828] sm:$0xff]
    %v381 = vld [vmem:[#allocation5 + $0x830] sm:$0xff]
    %v382 = vld [vmem:[#allocation5 + $0x838] sm:$0xff]
    %v383 = vld [vmem:[#allocation5 + $0x840] sm:$0xff]
    %v384 = vld [vmem:[#allocation5 + $0x848] sm:$0xff]
    %v385 = vld [vmem:[#allocation5 + $0x850] sm:$0xff]
    %v386 = vld [vmem:[#allocation5 + $0x858] sm:$0xff]
    %v387 = vld [vmem:[#allocation5 + $0x860] sm:$0xff]
    %v388 = vld [vmem:[#allocation5 + $0x868] sm:$0xff]
    %v389 = vld [vmem:[#allocation5 + $0x870] sm:$0xff]
    %v390 = vld [vmem:[#allocation5 + $0x878] sm:$0xff]
    %v391 = vld [vmem:[#allocation5 + $0x880] sm:$0xff]
    %v392 = vld [vmem:[#allocation5 + $0x888] sm:$0xff]
    %v393 = vld [vmem:[#allocation5 + $0x890] sm:$0xff]
    %v394 = vld [vmem:[#allocation5 + $0x898] sm:$0xff]
    %v395 = vld [vmem:[#allocation5 + $0x8a0] sm:$0xff]
    %v396 = vld [vmem:[#allocation5 + $0x8a8] sm:$0xff]
    %v397 = vld [vmem:[#allocation5 + $0x8b0] sm:$0xff]
    %v398 = vld [vmem:[#allocation5 + $0x8b8] sm:$0xff]
    %v399 = vld [vmem:[#allocation5 + $0x8c0] sm:$0xff]
    %v400 = vld [vmem:[#allocation5 + $0x8c8] sm:$0xff]
    %v401 = vld [vmem:[#allocation5 + $0x8d0] sm:$0xff]
    %v402 = vld [vmem:[#allocation5 + $0x8d8] sm:$0xff]
    %v403 = vld [vmem:[#allocation5 + $0x8e0] sm:$0xff]
    %v404 = vld [vmem:[#allocation5 + $0x8e8] sm:$0xff]
    %v405 = vld [vmem:[#allocation5 + $0x8f0] sm:$0xff]
    %v406 = vld [vmem:[#allocation5 + $0x8f8] sm:$0xff]
    %v407 = vld [vmem:[#allocation5 + $0x900] sm:$0xff]
    %v408 = vld [vmem:[#allocation5 + $0x908] sm:$0xff]
    %v409 = vld [vmem:[#allocation5 + $0x910] sm:$0xff]
    %v410 = vld [vmem:[#allocation5 + $0x918] sm:$0xff]
    %v411 = vld [vmem:[#allocation5 + $0x920] sm:$0xff]
    %v412 = vld [vmem:[#allocation5 + $0x928] sm:$0xff]
    %v413 = vld [vmem:[#allocation5 + $0x930] sm:$0xff]
    %v414 = vld [vmem:[#allocation5 + $0x938] sm:$0xff]
    %v415 = vld [vmem:[#allocation5 + $0x940] sm:$0xff]
    %v416 = vld [vmem:[#allocation5 + $0x948] sm:$0xff]
    %v417 = vld [vmem:[#allocation5 + $0x950] sm:$0xff]
    %v418 = vld [vmem:[#allocation5 + $0x958] sm:$0xff]
    %v419 = vld [vmem:[#allocation5 + $0x960] sm:$0xff]
    %v420 = vld [vmem:[#allocation5 + $0x968] sm:$0xff]
    %v421 = vld [vmem:[#allocation5 + $0x970] sm:$0xff]
    %v422 = vld [vmem:[#allocation5 + $0x978] sm:$0xff]
    %v423 = vld [vmem:[#allocation5 + $0x980] sm:$0xff]
    %v424 = vld [vmem:[#allocation5 + $0x988] sm:$0xff]
    %v425 = vld [vmem:[#allocation5 + $0x990] sm:$0xff]
    %v426 = vld [vmem:[#allocation5 + $0x998] sm:$0xff]
    %v427 = vld [vmem:[#allocation5 + $0x9a0] sm:$0xff]
    %v428 = vld [vmem:[#allocation5 + $0x9a8] sm:$0xff]
    %v429 = vld [vmem:[#allocation5 + $0x9b0] sm:$0xff]
    %v430 = vld [vmem:[#allocation5 + $0x9b8] sm:$0xff]
    %v431 = vld [vmem:[#allocation5 + $0x9c0] sm:$0xff]
    %v432 = vld [vmem:[#allocation5 + $0x9c8] sm:$0xff]
    %v433 = vld [vmem:[#allocation5 + $0x9d0] sm:$0xff]
    %v434 = vld [vmem:[#allocation5 + $0x9d8] sm:$0xff]
    %v435 = vld [vmem:[#allocation5 + $0x9e0] sm:$0xff]
    %v436 = vld [vmem:[#allocation5 + $0x9e8] sm:$0xff]
    %v437 = vld [vmem:[#allocation5 + $0x9f0] sm:$0xff]
    %v438 = vld [vmem:[#allocation5 + $0x9f8] sm:$0xff]
    %v439 = vld [vmem:[#allocation5 + $0xa00] sm:$0xff]
    %v440 = vld [vmem:[#allocation5 + $0xa08] sm:$0xff]
    %v441 = vld [vmem:[#allocation5 + $0xa10] sm:$0xff]
    %v442 = vld [vmem:[#allocation5 + $0xa18] sm:$0xff]
    %v443 = vld [vmem:[#allocation5 + $0xa20] sm:$0xff]
    %v444 = vld [vmem:[#allocation5 + $0xa28] sm:$0xff]
    %v445 = vld [vmem:[#allocation5 + $0xa30] sm:$0xff]
    %v446 = vld [vmem:[#allocation5 + $0xa38] sm:$0xff]
    %v447 = vld [vmem:[#allocation5 + $0xa40] sm:$0xff]
    %v448 = vld [vmem:[#allocation5 + $0xa48] sm:$0xff]
    %v449 = vld [vmem:[#allocation5 + $0xa50] sm:$0xff]
    %v450 = vld [vmem:[#allocation5 + $0xa58] sm:$0xff]
    %v451 = vld [vmem:[#allocation5 + $0xa60] sm:$0xff]
    %v452 = vld [vmem:[#allocation5 + $0xa68] sm:$0xff]
    %v453 = vld [vmem:[#allocation5 + $0xa70] sm:$0xff]
    %v454 = vld [vmem:[#allocation5 + $0xa78] sm:$0xff]
    %v455 = vld [vmem:[#allocation5 + $0xa80] sm:$0xff]
    %v456 = vld [vmem:[#allocation5 + $0xa88] sm:$0xff]
    %v457 = vld [vmem:[#allocation5 + $0xa90] sm:$0xff]
    %v458 = vld [vmem:[#allocation5 + $0xa98] sm:$0xff]
    %v459 = vld [vmem:[#allocation5 + $0xaa0] sm:$0xff]
    %v460 = vld [vmem:[#allocation5 + $0xaa8] sm:$0xff]
    %v461 = vld [vmem:[#allocation5 + $0xab0] sm:$0xff]
    %v462 = vld [vmem:[#allocation5 + $0xab8] sm:$0xff]
    %v463 = vld [vmem:[#allocation5 + $0xac0] sm:$0xff]
    %v464 = vld [vmem:[#allocation5 + $0xac8] sm:$0xff]
    %v465 = vld [vmem:[#allocation5 + $0xad0] sm:$0xff]
    %v466 = vld [vmem:[#allocation5 + $0xad8] sm:$0xff]
    %v467 = vld [vmem:[#allocation5 + $0xae0] sm:$0xff]
    %v468 = vld [vmem:[#allocation5 + $0xae8] sm:$0xff]
    %v469 = vld [vmem:[#allocation5 + $0xaf0] sm:$0xff]
    %v470 = vld [vmem:[#allocation5 + $0xaf8] sm:$0xff]
    %v471 = vld [vmem:[#allocation5 + $0xb00] sm:$0xff]
    %v472 = vld [vmem:[#allocation5 + $0xb08] sm:$0xff]
    %v473 = vld [vmem:[#allocation5 + $0xb10] sm:$0xff]
    %v474 = vld [vmem:[#allocation5 + $0xb18] sm:$0xff]
    %v475 = vld [vmem:[#allocation5 + $0xb20] sm:$0xff]
    %v476 = vld [vmem:[#allocation5 + $0xb28] sm:$0xff]
    %v477 = vld [vmem:[#allocation5 + $0xb30] sm:$0xff]
    %v478 = vld [vmem:[#allocation5 + $0xb38] sm:$0xff]
    %v479 = vld [vmem:[#allocation5 + $0xb40] sm:$0xff]
    %v480 = vld [vmem:[#allocation5 + $0xb48] sm:$0xff]
    %v481 = vld [vmem:[#allocation5 + $0xb50] sm:$0xff]
    %v482 = vld [vmem:[#allocation5 + $0xb58] sm:$0xff]
    %v483 = vld [vmem:[#allocation5 + $0xb60] sm:$0xff]
    %v484 = vld [vmem:[#allocation5 + $0xb68] sm:$0xff]
    %v485 = vld [vmem:[#allocation5 + $0xb70] sm:$0xff]
    %v486 = vld [vmem:[#allocation5 + $0xb78] sm:$0xff]
    %v487 = vld [vmem:[#allocation5 + $0xb80] sm:$0xff]
    %v488 = vld [vmem:[#allocation5 + $0xb88] sm:$0xff]
    %v489 = vld [vmem:[#allocation5 + $0xb90] sm:$0xff]
    %v490 = vld [vmem:[#allocation5 + $0xb98] sm:$0xff]
    %v491 = vld [vmem:[#allocation5 + $0xba0] sm:$0xff]
    %v492 = vld [vmem:[#allocation5 + $0xba8] sm:$0xff]
    %v493 = vld [vmem:[#allocation5 + $0xbb0] sm:$0xff]
    %v494 = vld [vmem:[#allocation5 + $0xbb8] sm:$0xff]
    %v495 = vld [vmem:[#allocation5 + $0xbc0] sm:$0xff]
    %v496 = vld [vmem:[#allocation5 + $0xbc8] sm:$0xff]
    %v497 = vld [vmem:[#allocation5 + $0xbd0] sm:$0xff]
    %v498 = vld [vmem:[#allocation5 + $0xbd8] sm:$0xff]
    %v499 = vld [vmem:[#allocation5 + $0xbe0] sm:$0xff]
    %v500 = vld [vmem:[#allocation5 + $0xbe8] sm:$0xff]
    %v501 = vld [vmem:[#allocation5 + $0xbf0] sm:$0xff]
    %v502 = vld [vmem:[#allocation5 + $0xbf8] sm:$0xff]
    %v503 = vld [vmem:[#allocation5 + $0xc00] sm:$0xff]
    %v504 = vld [vmem:[#allocation5 + $0xc08] sm:$0xff]
    %v505 = vld [vmem:[#allocation5 + $0xc10] sm:$0xff]
    %v506 = vld [vmem:[#allocation5 + $0xc18] sm:$0xff]
    %v507 = vld [vmem:[#allocation5 + $0xc20] sm:$0xff]
    %v508 = vld [vmem:[#allocation5 + $0xc28] sm:$0xff]
    %v509 = vld [vmem:[#allocation5 + $0xc30] sm:$0xff]
    %v510 = vld [vmem:[#allocation5 + $0xc38] sm:$0xff]
    %v511 = vld [vmem:[#allocation5 + $0xc40] sm:$0xff]
    %v512 = vld [vmem:[#allocation5 + $0xc48] sm:$0xff]
    %v513 = vld [vmem:[#allocation5 + $0xc50] sm:$0xff]
    %v514 = vld [vmem:[#allocation5 + $0xc58] sm:$0xff]
    %v515 = vld [vmem:[#allocation5 + $0xc60] sm:$0xff]
    %v516 = vld [vmem:[#allocation5 + $0xc68] sm:$0xff]
    %v517 = vld [vmem:[#allocation5 + $0xc70] sm:$0xff]
    %v518 = vld [vmem:[#allocation5 + $0xc78] sm:$0xff]
    %v519 = vld [vmem:[#allocation5 + $0xc80] sm:$0xff]
    %v520 = vld [vmem:[#allocation5 + $0xc88] sm:$0xff]
    %v521 = vld [vmem:[#allocation5 + $0xc90] sm:$0xff]
    %v522 = vld [vmem:[#allocation5 + $0xc98] sm:$0xff]
    %v523 = vld [vmem:[#allocation5 + $0xca0] sm:$0xff]
    %v524 = vld [vmem:[#allocation5 + $0xca8] sm:$0xff]
    %v525 = vld [vmem:[#allocation5 + $0xcb0] sm:$0xff]
    %v526 = vld [vmem:[#allocation5 + $0xcb8] sm:$0xff]
    %v527 = vld [vmem:[#allocation5 + $0xcc0] sm:$0xff]
    %v528 = vld [vmem:[#allocation5 + $0xcc8] sm:$0xff]
    %v529 = vld [vmem:[#allocation5 + $0xcd0] sm:$0xff]
    %v530 = vld [vmem:[#allocation5 + $0xcd8] sm:$0xff]
    %v531 = vld [vmem:[#allocation5 + $0xce0] sm:$0xff]
    %v532 = vld [vmem:[#allocation5 + $0xce8] sm:$0xff]
    %v533 = vld [vmem:[#allocation5 + $0xcf0] sm:$0xff]
    %v534 = vld [vmem:[#allocation5 + $0xcf8] sm:$0xff]
    %v535 = vld [vmem:[#allocation5 + $0xd00] sm:$0xff]
    %v536 = vld [vmem:[#allocation5 + $0xd08] sm:$0xff]
    %v537 = vld [vmem:[#allocation5 + $0xd10] sm:$0xff]
    %v538 = vld [vmem:[#allocation5 + $0xd18] sm:$0xff]
    %v539 = vld [vmem:[#allocation5 + $0xd20] sm:$0xff]
    %v540 = vld [vmem:[#allocation5 + $0xd28] sm:$0xff]
    %v541 = vld [vmem:[#allocation5 + $0xd30] sm:$0xff]
    %v542 = vld [vmem:[#allocation5 + $0xd38] sm:$0xff]
    %v543 = vld [vmem:[#allocation5 + $0xd40] sm:$0xff]
    %v544 = vld [vmem:[#allocation5 + $0xd48] sm:$0xff]
    %v545 = vld [vmem:[#allocation5 + $0xd50] sm:$0xff]
    %v546 = vld [vmem:[#allocation5 + $0xd58] sm:$0xff]
    %v547 = vld [vmem:[#allocation5 + $0xd60] sm:$0xff]
    %v548 = vld [vmem:[#allocation5 + $0xd68] sm:$0xff]
    %v549 = vld [vmem:[#allocation5 + $0xd70] sm:$0xff]
    %v550 = vld [vmem:[#allocation5 + $0xd78] sm:$0xff]
    %v551 = vld [vmem:[#allocation5 + $0xd80] sm:$0xff]
    %v552 = vld [vmem:[#allocation5 + $0xd88] sm:$0xff]
    %v553 = vld [vmem:[#allocation5 + $0xd90] sm:$0xff]
    %v554 = vld [vmem:[#allocation5 + $0xd98] sm:$0xff]
    %v555 = vld [vmem:[#allocation5 + $0xda0] sm:$0xff]
    %v556 = vld [vmem:[#allocation5 + $0xda8] sm:$0xff]
    %v557 = vld [vmem:[#allocation5 + $0xdb0] sm:$0xff]
    %v558 = vld [vmem:[#allocation5 + $0xdb8] sm:$0xff]
    %v559 = vld [vmem:[#allocation5 + $0xdc0] sm:$0xff]
    %v560 = vld [vmem:[#allocation5 + $0xdc8] sm:$0xff]
    %v561 = vld [vmem:[#allocation5 + $0xdd0] sm:$0xff]
    %v562 = vld [vmem:[#allocation5 + $0xdd8] sm:$0xff]
    %v563 = vld [vmem:[#allocation5 + $0xde0] sm:$0xff]
    %v564 = vld [vmem:[#allocation5 + $0xde8] sm:$0xff]
    %v565 = vld [vmem:[#allocation5 + $0xdf0] sm:$0xff]
    %v566 = vld [vmem:[#allocation5 + $0xdf8] sm:$0xff]
    %v567 = vld [vmem:[#allocation5 + $0xe00] sm:$0xff]
    %v568 = vld [vmem:[#allocation5 + $0xe08] sm:$0xff]
    %v569 = vld [vmem:[#allocation5 + $0xe10] sm:$0xff]
    %v570 = vld [vmem:[#allocation5 + $0xe18] sm:$0xff]
    %v571 = vld [vmem:[#allocation5 + $0xe20] sm:$0xff]
    %v572 = vld [vmem:[#allocation5 + $0xe28] sm:$0xff]
    %v573 = vld [vmem:[#allocation5 + $0xe30] sm:$0xff]
    %v574 = vld [vmem:[#allocation5 + $0xe38] sm:$0xff]
    %v575 = vld [vmem:[#allocation5 + $0xe40] sm:$0xff]
    %v576 = vld [vmem:[#allocation5 + $0xe48] sm:$0xff]
    %v577 = vld [vmem:[#allocation5 + $0xe50] sm:$0xff]
    %v578 = vld [vmem:[#allocation5 + $0xe58] sm:$0xff]
    %v579 = vld [vmem:[#allocation5 + $0xe60] sm:$0xff]
    %v580 = vld [vmem:[#allocation5 + $0xe68] sm:$0xff]
    %v581 = vld [vmem:[#allocation5 + $0xe70] sm:$0xff]
    %v582 = vld [vmem:[#allocation5 + $0xe78] sm:$0xff]
    %v583 = vld [vmem:[#allocation5 + $0xe80] sm:$0xff]
    %v584 = vld [vmem:[#allocation5 + $0xe88] sm:$0xff]
    %v585 = vld [vmem:[#allocation5 + $0xe90] sm:$0xff]
    %v586 = vld [vmem:[#allocation5 + $0xe98] sm:$0xff]
    %v587 = vld [vmem:[#allocation5 + $0xea0] sm:$0xff]
    %v588 = vld [vmem:[#allocation5 + $0xea8] sm:$0xff]
    %v589 = vld [vmem:[#allocation5 + $0xeb0] sm:$0xff]
    %v590 = vld [vmem:[#allocation5 + $0xeb8] sm:$0xff]
    %v591 = vld [vmem:[#allocation5 + $0xec0] sm:$0xff]
    %v592 = vld [vmem:[#allocation5 + $0xec8] sm:$0xff]
    %v593 = vld [vmem:[#allocation5 + $0xed0] sm:$0xff]
    %v594 = vld [vmem:[#allocation5 + $0xed8] sm:$0xff]
    %v595 = vld [vmem:[#allocation5 + $0xee0] sm:$0xff]
    %v596 = vld [vmem:[#allocation5 + $0xee8] sm:$0xff]
    %v597 = vld [vmem:[#allocation5 + $0xef0] sm:$0xff]
    %v598 = vld [vmem:[#allocation5 + $0xef8] sm:$0xff]
    %v599 = vld [vmem:[#allocation5 + $0xf00] sm:$0xff]
    %v600 = vld [vmem:[#allocation5 + $0xf08] sm:$0xff]
    %v601 = vld [vmem:[#allocation5 + $0xf10] sm:$0xff]
    %v602 = vld [vmem:[#allocation5 + $0xf18] sm:$0xff]
    %v603 = vld [vmem:[#allocation5 + $0xf20] sm:$0xff]
    %v604 = vld [vmem:[#allocation5 + $0xf28] sm:$0xff]
    %v605 = vld [vmem:[#allocation5 + $0xf30] sm:$0xff]
    %v606 = vld [vmem:[#allocation5 + $0xf38] sm:$0xff]
    %v607 = vld [vmem:[#allocation5 + $0xf40] sm:$0xff]
    %v608 = vld [vmem:[#allocation5 + $0xf48] sm:$0xff]
    %v609 = vld [vmem:[#allocation5 + $0xf50] sm:$0xff]
    %v610 = vld [vmem:[#allocation5 + $0xf58] sm:$0xff]
    %v611 = vld [vmem:[#allocation5 + $0xf60] sm:$0xff]
    %v612 = vld [vmem:[#allocation5 + $0xf68] sm:$0xff]
    %v613 = vld [vmem:[#allocation5 + $0xf70] sm:$0xff]
    %v614 = vld [vmem:[#allocation5 + $0xf78] sm:$0xff]
    %v615 = vld [vmem:[#allocation5 + $0xf80] sm:$0xff]
    %v616 = vld [vmem:[#allocation5 + $0xf88] sm:$0xff]
    %v617 = vld [vmem:[#allocation5 + $0xf90] sm:$0xff]
    %v618 = vld [vmem:[#allocation5 + $0xf98] sm:$0xff]
    %v619 = vld [vmem:[#allocation5 + $0xfa0] sm:$0xff]
    %v620 = vld [vmem:[#allocation5 + $0xfa8] sm:$0xff]
    %v621 = vld [vmem:[#allocation5 + $0xfb0] sm:$0xff]
    %v622 = vld [vmem:[#allocation5 + $0xfb8] sm:$0xff]
    %v623 = vld [vmem:[#allocation5 + $0xfc0] sm:$0xff]
    %v624 = vld [vmem:[#allocation5 + $0xfc8] sm:$0xff]
    %v625 = vld [vmem:[#allocation5 + $0xfd0] sm:$0xff]
    %v626 = vld [vmem:[#allocation5 + $0xfd8] sm:$0xff]
    %v627 = vld [vmem:[#allocation5 + $0xfe0] sm:$0xff]
    %v628 = vld [vmem:[#allocation5 + $0xfe8] sm:$0xff]
    %v629 = vld [vmem:[#allocation5 + $0xff0] sm:$0xff]
    %v630 = vld [vmem:[#allocation5 + $0xff8] sm:$0xff]
    %v631 = vld [vmem:[#allocation5 + $0x1000] sm:$0xff]
    %v632 = vld [vmem:[#allocation5 + $0x1008] sm:$0xff]
    %v633 = vld [vmem:[#allocation5 + $0x1010] sm:$0xff]
    %v634 = vld [vmem:[#allocation5 + $0x1018] sm:$0xff]
    %v635 = vld [vmem:[#allocation5 + $0x1020] sm:$0xff]
    %v636 = vld [vmem:[#allocation5 + $0x1028] sm:$0xff]
    %v637 = vld [vmem:[#allocation5 + $0x1030] sm:$0xff]
    %v638 = vld [vmem:[#allocation5 + $0x1038] sm:$0xff]
    %v639 = vld [vmem:[#allocation5 + $0x1040] sm:$0xff]
    %v640 = vld [vmem:[#allocation5 + $0x1048] sm:$0xff]
    %v641 = vld [vmem:[#allocation5 + $0x1050] sm:$0xff]
    %v642 = vld [vmem:[#allocation5 + $0x1058] sm:$0xff]
    %v643 = vld [vmem:[#allocation5 + $0x1060] sm:$0xff]
    %v644 = vld [vmem:[#allocation5 + $0x1068] sm:$0xff]
    %v645 = vld [vmem:[#allocation5 + $0x1070] sm:$0xff]
    %v646 = vld [vmem:[#allocation5 + $0x1078] sm:$0xff]
    %v647 = vld [vmem:[#allocation5 + $0x1080] sm:$0xff]
    %v648 = vld [vmem:[#allocation5 + $0x1088] sm:$0xff]
    %v649 = vld [vmem:[#allocation5 + $0x1090] sm:$0xff]
    %v650 = vld [vmem:[#allocation5 + $0x1098] sm:$0xff]
    %v651 = vld [vmem:[#allocation5 + $0x10a0] sm:$0xff]
    %v652 = vld [vmem:[#allocation5 + $0x10a8] sm:$0xff]
    %v653 = vld [vmem:[#allocation5 + $0x10b0] sm:$0xff]
    %v654 = vld [vmem:[#allocation5 + $0x10b8] sm:$0xff]
    %v655 = vld [vmem:[#allocation5 + $0x10c0] sm:$0xff]
    %v656 = vld [vmem:[#allocation5 + $0x10c8] sm:$0xff]
    %v657 = vld [vmem:[#allocation5 + $0x10d0] sm:$0xff]
    %v658 = vld [vmem:[#allocation5 + $0x10d8] sm:$0xff]
    %v659 = vld [vmem:[#allocation5 + $0x10e0] sm:$0xff]
    %v660 = vld [vmem:[#allocation5 + $0x10e8] sm:$0xff]
    %v661 = vld [vmem:[#allocation5 + $0x10f0] sm:$0xff]
    %v662 = vld [vmem:[#allocation5 + $0x10f8] sm:$0xff]
    %v663 = vld [vmem:[#allocation5 + $0x1100] sm:$0xff]
    %v664 = vld [vmem:[#allocation5 + $0x1108] sm:$0xff]
    %v665 = vld [vmem:[#allocation5 + $0x1110] sm:$0xff]
    %v666 = vld [vmem:[#allocation5 + $0x1118] sm:$0xff]
    %v667 = vld [vmem:[#allocation5 + $0x1120] sm:$0xff]
    %v668 = vld [vmem:[#allocation5 + $0x1128] sm:$0xff]
    %v669 = vld [vmem:[#allocation5 + $0x1130] sm:$0xff]
    %v670 = vld [vmem:[#allocation5 + $0x1138] sm:$0xff]
    %v671 = vld [vmem:[#allocation5 + $0x1140] sm:$0xff]
    %v672 = vld [vmem:[#allocation5 + $0x1148] sm:$0xff]
    %v673 = vld [vmem:[#allocation5 + $0x1150] sm:$0xff]
    %v674 = vld [vmem:[#allocation5 + $0x1158] sm:$0xff]
    %v675 = vld [vmem:[#allocation5 + $0x1160] sm:$0xff]
    %v676 = vld [vmem:[#allocation5 + $0x1168] sm:$0xff]
    %v677 = vld [vmem:[#allocation5 + $0x1170] sm:$0xff]
    %v678 = vld [vmem:[#allocation5 + $0x1178] sm:$0xff]
    %v679 = vld [vmem:[#allocation5 + $0x1180] sm:$0xff]
    %v680 = vld [vmem:[#allocation5 + $0x1188] sm:$0xff]
    %v681 = vld [vmem:[#allocation5 + $0x1190] sm:$0xff]
    %v682 = vld [vmem:[#allocation5 + $0x1198] sm:$0xff]
    %v683 = vld [vmem:[#allocation5 + $0x11a0] sm:$0xff]
    %v684 = vld [vmem:[#allocation5 + $0x11a8] sm:$0xff]
    %v685 = vld [vmem:[#allocation5 + $0x11b0] sm:$0xff]
    %v686 = vld [vmem:[#allocation5 + $0x11b8] sm:$0xff]
    %v687 = vld [vmem:[#allocation5 + $0x11c0] sm:$0xff]
    %v688 = vld [vmem:[#allocation5 + $0x11c8] sm:$0xff]
    %v689 = vld [vmem:[#allocation5 + $0x11d0] sm:$0xff]
    %v690 = vld [vmem:[#allocation5 + $0x11d8] sm:$0xff]
    %v691 = vld [vmem:[#allocation5 + $0x11e0] sm:$0xff]
    %v692 = vld [vmem:[#allocation5 + $0x11e8] sm:$0xff]
    %v693 = vld [vmem:[#allocation5 + $0x11f0] sm:$0xff]
    %v694 = vld [vmem:[#allocation5 + $0x11f8] sm:$0xff]
    %v695 = vld [vmem:[#allocation5 + $0x1200] sm:$0xff]
    %v696 = vld [vmem:[#allocation5 + $0x1208] sm:$0xff]
    %v697 = vld [vmem:[#allocation5 + $0x1210] sm:$0xff]
    %v698 = vld [vmem:[#allocation5 + $0x1218] sm:$0xff]
    %v699 = vld [vmem:[#allocation5 + $0x1220] sm:$0xff]
    %v700 = vld [vmem:[#allocation5 + $0x1228] sm:$0xff]
    %v701 = vld [vmem:[#allocation5 + $0x1230] sm:$0xff]
    %v702 = vld [vmem:[#allocation5 + $0x1238] sm:$0xff]
    %v703 = vld [vmem:[#allocation5 + $0x1240] sm:$0xff]
    %v704 = vld [vmem:[#allocation5 + $0x1248] sm:$0xff]
    %v705 = vld [vmem:[#allocation5 + $0x1250] sm:$0xff]
    %v706 = vld [vmem:[#allocation5 + $0x1258] sm:$0xff]
    %v707 = vld [vmem:[#allocation5 + $0x1260] sm:$0xff]
    %v708 = vld [vmem:[#allocation5 + $0x1268] sm:$0xff]
    %v709 = vld [vmem:[#allocation5 + $0x1270] sm:$0xff]
    %v710 = vld [vmem:[#allocation5 + $0x1278] sm:$0xff]
    %v711 = vld [vmem:[#allocation5 + $0x1280] sm:$0xff]
    %v712 = vld [vmem:[#allocation5 + $0x1288] sm:$0xff]
    %v713 = vld [vmem:[#allocation5 + $0x1290] sm:$0xff]
    %v714 = vld [vmem:[#allocation5 + $0x1298] sm:$0xff]
    %v715 = vld [vmem:[#allocation5 + $0x12a0] sm:$0xff]
    %v716 = vld [vmem:[#allocation5 + $0x12a8] sm:$0xff]
    %v717 = vld [vmem:[#allocation5 + $0x12b0] sm:$0xff]
    %v718 = vld [vmem:[#allocation5 + $0x12b8] sm:$0xff]
    %v719 = vld [vmem:[#allocation5 + $0x12c0] sm:$0xff]
    %v720 = vld [vmem:[#allocation5 + $0x12c8] sm:$0xff]
    %v721 = vld [vmem:[#allocation5 + $0x12d0] sm:$0xff]
    %v722 = vld [vmem:[#allocation5 + $0x12d8] sm:$0xff]
    %v723 = vld [vmem:[#allocation5 + $0x12e0] sm:$0xff]
    %v724 = vld [vmem:[#allocation5 + $0x12e8] sm:$0xff]
    %v725 = vld [vmem:[#allocation5 + $0x12f0] sm:$0xff]
    %v726 = vld [vmem:[#allocation5 + $0x12f8] sm:$0xff]
    %v727 = vld [vmem:[#allocation5 + $0x1300] sm:$0xff]
    %v728 = vld [vmem:[#allocation5 + $0x1308] sm:$0xff]
    %v729 = vld [vmem:[#allocation5 + $0x1310] sm:$0xff]
    %v730 = vld [vmem:[#allocation5 + $0x1318] sm:$0xff]
    %v731 = vld [vmem:[#allocation5 + $0x1320] sm:$0xff]
    %v732 = vld [vmem:[#allocation5 + $0x1328] sm:$0xff]
    %v733 = vld [vmem:[#allocation5 + $0x1330] sm:$0xff]
    %v734 = vld [vmem:[#allocation5 + $0x1338] sm:$0xff]
    %v735 = vld [vmem:[#allocation5 + $0x1340] sm:$0xff]
    %v736 = vld [vmem:[#allocation5 + $0x1348] sm:$0xff]
    %v737 = vld [vmem:[#allocation5 + $0x1350] sm:$0xff]
    %v738 = vld [vmem:[#allocation5 + $0x1358] sm:$0xff]
    %v739 = vld [vmem:[#allocation5 + $0x1360] sm:$0xff]
    %v740 = vld [vmem:[#allocation5 + $0x1368] sm:$0xff]
    %v741 = vld [vmem:[#allocation5 + $0x1370] sm:$0xff]
    %v742 = vld [vmem:[#allocation5 + $0x1378] sm:$0xff]
    %v743 = vld [vmem:[#allocation5 + $0x1380] sm:$0xff]
    %v744 = vld [vmem:[#allocation5 + $0x1388] sm:$0xff]
    %v745 = vld [vmem:[#allocation5 + $0x1390] sm:$0xff]
    %v746 = vld [vmem:[#allocation5 + $0x1398] sm:$0xff]
    %v747 = vld [vmem:[#allocation5 + $0x13a0] sm:$0xff]
    %v748 = vld [vmem:[#allocation5 + $0x13a8] sm:$0xff]
    %v749 = vld [vmem:[#allocation5 + $0x13b0] sm:$0xff]
    %v750 = vld [vmem:[#allocation5 + $0x13b8] sm:$0xff]
    %v751 = vld [vmem:[#allocation5 + $0x13c0] sm:$0xff]
    %v752 = vld [vmem:[#allocation5 + $0x13c8] sm:$0xff]
    %v753 = vld [vmem:[#allocation5 + $0x13d0] sm:$0xff]
    %v754 = vld [vmem:[#allocation5 + $0x13d8] sm:$0xff]
    %v755 = vld [vmem:[#allocation5 + $0x13e0] sm:$0xff]
    %v756 = vld [vmem:[#allocation5 + $0x13e8] sm:$0xff]
    %v757 = vld [vmem:[#allocation5 + $0x13f0] sm:$0xff]
    %v758 = vld [vmem:[#allocation5 + $0x13f8] sm:$0xff]
    %v759 = vld [vmem:[#allocation5 + $0x1400] sm:$0xff]
    %v760 = vld [vmem:[#allocation5 + $0x1408] sm:$0xff]
    %v761 = vld [vmem:[#allocation5 + $0x1410] sm:$0xff]
    %v762 = vld [vmem:[#allocation5 + $0x1418] sm:$0xff]
    %v763 = vld [vmem:[#allocation5 + $0x1420] sm:$0xff]
    %v764 = vld [vmem:[#allocation5 + $0x1428] sm:$0xff]
    %v765 = vld [vmem:[#allocation5 + $0x1430] sm:$0xff]
    %v766 = vld [vmem:[#allocation5 + $0x1438] sm:$0xff]
    %v767 = vld [vmem:[#allocation5 + $0x1440] sm:$0xff]
    %v768 = vld [vmem:[#allocation5 + $0x1448] sm:$0xff]
    %v769 = vld [vmem:[#allocation5 + $0x1450] sm:$0xff]
    %v770 = vld [vmem:[#allocation5 + $0x1458] sm:$0xff]
    %v771 = vld [vmem:[#allocation5 + $0x1460] sm:$0xff]
    %v772 = vld [vmem:[#allocation5 + $0x1468] sm:$0xff]
    %v773 = vld [vmem:[#allocation5 + $0x1470] sm:$0xff]
    %v774 = vld [vmem:[#allocation5 + $0x1478] sm:$0xff]
    %v775 = vld [vmem:[#allocation5 + $0x1480] sm:$0xff]
    %v776 = vld [vmem:[#allocation5 + $0x1488] sm:$0xff]
    %v777 = vld [vmem:[#allocation5 + $0x1490] sm:$0xff]
    %v778 = vld [vmem:[#allocation5 + $0x1498] sm:$0xff]
    %v779 = vld [vmem:[#allocation5 + $0x14a0] sm:$0xff]
    %v780 = vld [vmem:[#allocation5 + $0x14a8] sm:$0xff]
    %v781 = vld [vmem:[#allocation5 + $0x14b0] sm:$0xff]
    %v782 = vld [vmem:[#allocation5 + $0x14b8] sm:$0xff]
    %v783 = vld [vmem:[#allocation5 + $0x14c0] sm:$0xff]
    %v784 = vld [vmem:[#allocation5 + $0x14c8] sm:$0xff]
    %v785 = vld [vmem:[#allocation5 + $0x14d0] sm:$0xff]
    %v786 = vld [vmem:[#allocation5 + $0x14d8] sm:$0xff]
    %v787 = vld [vmem:[#allocation5 + $0x14e0] sm:$0xff]
    %v788 = vld [vmem:[#allocation5 + $0x14e8] sm:$0xff]
    %v789 = vld [vmem:[#allocation5 + $0x14f0] sm:$0xff]
    %v790 = vld [vmem:[#allocation5 + $0x14f8] sm:$0xff]
    %v791 = vld [vmem:[#allocation5 + $0x1500] sm:$0xff]
    %v792 = vld [vmem:[#allocation5 + $0x1508] sm:$0xff]
    %v793 = vld [vmem:[#allocation5 + $0x1510] sm:$0xff]
    %v794 = vld [vmem:[#allocation5 + $0x1518] sm:$0xff]
    %v795 = vld [vmem:[#allocation5 + $0x1520] sm:$0xff]
    %v796 = vld [vmem:[#allocation5 + $0x1528] sm:$0xff]
    %v797 = vld [vmem:[#allocation5 + $0x1530] sm:$0xff]
    %v798 = vld [vmem:[#allocation5 + $0x1538] sm:$0xff]
    %v799 = vld [vmem:[#allocation5 + $0x1540] sm:$0xff]
    %v800 = vld [vmem:[#allocation5 + $0x1548] sm:$0xff]
    %v801 = vld [vmem:[#allocation5 + $0x1550] sm:$0xff]
    %v802 = vld [vmem:[#allocation5 + $0x1558] sm:$0xff]
    %v803 = vld [vmem:[#allocation5 + $0x1560] sm:$0xff]
    %v804 = vld [vmem:[#allocation5 + $0x1568] sm:$0xff]
    %v805 = vld [vmem:[#allocation5 + $0x1570] sm:$0xff]
    %v806 = vld [vmem:[#allocation5 + $0x1578] sm:$0xff]
    %v807 = vld [vmem:[#allocation5 + $0x1580] sm:$0xff]
    %v808 = vld [vmem:[#allocation5 + $0x1588] sm:$0xff]
    %v809 = vld [vmem:[#allocation5 + $0x1590] sm:$0xff]
    %v810 = vld [vmem:[#allocation5 + $0x1598] sm:$0xff]
    %v811 = vld [vmem:[#allocation5 + $0x15a0] sm:$0xff]
    %v812 = vld [vmem:[#allocation5 + $0x15a8] sm:$0xff]
    %v813 = vld [vmem:[#allocation5 + $0x15b0] sm:$0xff]
    %v814 = vld [vmem:[#allocation5 + $0x15b8] sm:$0xff]
    %v815 = vld [vmem:[#allocation5 + $0x15c0] sm:$0xff]
    %v816 = vld [vmem:[#allocation5 + $0x15c8] sm:$0xff]
    %v817 = vld [vmem:[#allocation5 + $0x15d0] sm:$0xff]
    %v818 = vld [vmem:[#allocation5 + $0x15d8] sm:$0xff]
    %v819 = vld [vmem:[#allocation5 + $0x15e0] sm:$0xff]
    %v820 = vld [vmem:[#allocation5 + $0x15e8] sm:$0xff]
    %v821 = vld [vmem:[#allocation5 + $0x15f0] sm:$0xff]
    %v822 = vld [vmem:[#allocation5 + $0x15f8] sm:$0xff]
    %v823 = vld [vmem:[#allocation5 + $0x1600] sm:$0xff]
    %v824 = vld [vmem:[#allocation5 + $0x1608] sm:$0xff]
    %v825 = vld [vmem:[#allocation5 + $0x1610] sm:$0xff]
    %v826 = vld [vmem:[#allocation5 + $0x1618] sm:$0xff]
    %v827 = vld [vmem:[#allocation5 + $0x1620] sm:$0xff]
    %v828 = vld [vmem:[#allocation5 + $0x1628] sm:$0xff]
    %v829 = vld [vmem:[#allocation5 + $0x1630] sm:$0xff]
    %v830 = vld [vmem:[#allocation5 + $0x1638] sm:$0xff]
    %v831 = vld [vmem:[#allocation5 + $0x1640] sm:$0xff]
    %v832 = vld [vmem:[#allocation5 + $0x1648] sm:$0xff]
    %v833 = vld [vmem:[#allocation5 + $0x1650] sm:$0xff]
    %v834 = vld [vmem:[#allocation5 + $0x1658] sm:$0xff]
    %v835 = vld [vmem:[#allocation5 + $0x1660] sm:$0xff]
    %v836 = vld [vmem:[#allocation5 + $0x1668] sm:$0xff]
    %v837 = vld [vmem:[#allocation5 + $0x1670] sm:$0xff]
    %v838 = vld [vmem:[#allocation5 + $0x1678] sm:$0xff]
    %v839 = vld [vmem:[#allocation5 + $0x1680] sm:$0xff]
    %v840 = vld [vmem:[#allocation5 + $0x1688] sm:$0xff]
    %v841 = vld [vmem:[#allocation5 + $0x1690] sm:$0xff]
    %v842 = vld [vmem:[#allocation5 + $0x1698] sm:$0xff]
    %v843 = vld [vmem:[#allocation5 + $0x16a0] sm:$0xff]
    %v844 = vld [vmem:[#allocation5 + $0x16a8] sm:$0xff]
    %v845 = vld [vmem:[#allocation5 + $0x16b0] sm:$0xff]
    %v846 = vld [vmem:[#allocation5 + $0x16b8] sm:$0xff]
    %v847 = vld [vmem:[#allocation5 + $0x16c0] sm:$0xff]
    %v848 = vld [vmem:[#allocation5 + $0x16c8] sm:$0xff]
    %v849 = vld [vmem:[#allocation5 + $0x16d0] sm:$0xff]
    %v850 = vld [vmem:[#allocation5 + $0x16d8] sm:$0xff]
    %v851 = vld [vmem:[#allocation5 + $0x16e0] sm:$0xff]
    %v852 = vld [vmem:[#allocation5 + $0x16e8] sm:$0xff]
    %v853 = vld [vmem:[#allocation5 + $0x16f0] sm:$0xff]
    %v854 = vld [vmem:[#allocation5 + $0x16f8] sm:$0xff]
    %v855 = vld [vmem:[#allocation5 + $0x1700] sm:$0xff]
    %v856 = vld [vmem:[#allocation5 + $0x1708] sm:$0xff]
    %v857 = vld [vmem:[#allocation5 + $0x1710] sm:$0xff]
    %v858 = vld [vmem:[#allocation5 + $0x1718] sm:$0xff]
    %v859 = vld [vmem:[#allocation5 + $0x1720] sm:$0xff]
    %v860 = vld [vmem:[#allocation5 + $0x1728] sm:$0xff]
    %v861 = vld [vmem:[#allocation5 + $0x1730] sm:$0xff]
    %v862 = vld [vmem:[#allocation5 + $0x1738] sm:$0xff]
    %v863 = vld [vmem:[#allocation5 + $0x1740] sm:$0xff]
    %v864 = vld [vmem:[#allocation5 + $0x1748] sm:$0xff]
    %v865 = vld [vmem:[#allocation5 + $0x1750] sm:$0xff]
    %v866 = vld [vmem:[#allocation5 + $0x1758] sm:$0xff]
    %v867 = vld [vmem:[#allocation5 + $0x1760] sm:$0xff]
    %v868 = vld [vmem:[#allocation5 + $0x1768] sm:$0xff]
    %v869 = vld [vmem:[#allocation5 + $0x1770] sm:$0xff]
    %v870 = vld [vmem:[#allocation5 + $0x1778] sm:$0xff]
    %v871 = vld [vmem:[#allocation5 + $0x1780] sm:$0xff]
    %v872 = vld [vmem:[#allocation5 + $0x1788] sm:$0xff]
    %v873 = vld [vmem:[#allocation5 + $0x1790] sm:$0xff]
    %v874 = vld [vmem:[#allocation5 + $0x1798] sm:$0xff]
    %v875 = vld [vmem:[#allocation5 + $0x17a0] sm:$0xff]
    %v876 = vld [vmem:[#allocation5 + $0x17a8] sm:$0xff]
    %v877 = vld [vmem:[#allocation5 + $0x17b0] sm:$0xff]
    %v878 = vld [vmem:[#allocation5 + $0x17b8] sm:$0xff]
    %v879 = vld [vmem:[#allocation5 + $0x17c0] sm:$0xff]
    %v880 = vld [vmem:[#allocation5 + $0x17c8] sm:$0xff]
    %v881 = vld [vmem:[#allocation5 + $0x17d0] sm:$0xff]
    %v882 = vld [vmem:[#allocation5 + $0x17d8] sm:$0xff]
    %v883 = vld [vmem:[#allocation5 + $0x17e0] sm:$0xff]
    %v884 = vld [vmem:[#allocation5 + $0x17e8] sm:$0xff]
    %v885 = vld [vmem:[#allocation5 + $0x17f0] sm:$0xff]
    %v886 = vld [vmem:[#allocation5 + $0x17f8] sm:$0xff]
    %v887 = vld [vmem:[#allocation5 + $0x1800] sm:$0xff]
    %v888 = vld [vmem:[#allocation5 + $0x1808] sm:$0xff]
    %v889 = vld [vmem:[#allocation5 + $0x1810] sm:$0xff]
    %v890 = vld [vmem:[#allocation5 + $0x1818] sm:$0xff]
    %v891 = vld [vmem:[#allocation5 + $0x1820] sm:$0xff]
    %v892 = vld [vmem:[#allocation5 + $0x1828] sm:$0xff]
    %v893 = vld [vmem:[#allocation5 + $0x1830] sm:$0xff]
    %v894 = vld [vmem:[#allocation5 + $0x1838] sm:$0xff]
    %v895 = vld [vmem:[#allocation5 + $0x1840] sm:$0xff]
    %v896 = vld [vmem:[#allocation5 + $0x1848] sm:$0xff]
    %v897 = vld [vmem:[#allocation5 + $0x1850] sm:$0xff]
    %v898 = vld [vmem:[#allocation5 + $0x1858] sm:$0xff]
    %v899 = vld [vmem:[#allocation5 + $0x1860] sm:$0xff]
    %v900 = vld [vmem:[#allocation5 + $0x1868] sm:$0xff]
    %v901 = vld [vmem:[#allocation5 + $0x1870] sm:$0xff]
    %v902 = vld [vmem:[#allocation5 + $0x1878] sm:$0xff]
    %v903 = vld [vmem:[#allocation5 + $0x1880] sm:$0xff]
    %v904 = vld [vmem:[#allocation5 + $0x1888] sm:$0xff]
    %v905 = vld [vmem:[#allocation5 + $0x1890] sm:$0xff]
    %v906 = vld [vmem:[#allocation5 + $0x1898] sm:$0xff]
    %v907 = vld [vmem:[#allocation5 + $0x18a0] sm:$0xff]
    %v908 = vld [vmem:[#allocation5 + $0x18a8] sm:$0xff]
    %v909 = vld [vmem:[#allocation5 + $0x18b0] sm:$0xff]
    %v910 = vld [vmem:[#allocation5 + $0x18b8] sm:$0xff]
    %v911 = vld [vmem:[#allocation5 + $0x18c0] sm:$0xff]
    %v912 = vld [vmem:[#allocation5 + $0x18c8] sm:$0xff]
    %v913 = vld [vmem:[#allocation5 + $0x18d0] sm:$0xff]
    %v914 = vld [vmem:[#allocation5 + $0x18d8] sm:$0xff]
    %v915 = vld [vmem:[#allocation5 + $0x18e0] sm:$0xff]
    %v916 = vld [vmem:[#allocation5 + $0x18e8] sm:$0xff]
    %v917 = vld [vmem:[#allocation5 + $0x18f0] sm:$0xff]
    %v918 = vld [vmem:[#allocation5 + $0x18f8] sm:$0xff]
    %v919 = vld [vmem:[#allocation5 + $0x1900] sm:$0xff]
    %v920 = vld [vmem:[#allocation5 + $0x1908] sm:$0xff]
    %v921 = vld [vmem:[#allocation5 + $0x1910] sm:$0xff]
    %v922 = vld [vmem:[#allocation5 + $0x1918] sm:$0xff]
    %v923 = vld [vmem:[#allocation5 + $0x1920] sm:$0xff]
    %v924 = vld [vmem:[#allocation5 + $0x1928] sm:$0xff]
    %v925 = vld [vmem:[#allocation5 + $0x1930] sm:$0xff]
    %v926 = vld [vmem:[#allocation5 + $0x1938] sm:$0xff]
    %v927 = vld [vmem:[#allocation5 + $0x1940] sm:$0xff]
    %v928 = vld [vmem:[#allocation5 + $0x1948] sm:$0xff]
    %v929 = vld [vmem:[#allocation5 + $0x1950] sm:$0xff]
    %v930 = vld [vmem:[#allocation5 + $0x1958] sm:$0xff]
    %v931 = vld [vmem:[#allocation5 + $0x1960] sm:$0xff]
    %v932 = vld [vmem:[#allocation5 + $0x1968] sm:$0xff]
    %v933 = vld [vmem:[#allocation5 + $0x1970] sm:$0xff]
    %v934 = vld [vmem:[#allocation5 + $0x1978] sm:$0xff]
    %v935 = vld [vmem:[#allocation5 + $0x1980] sm:$0xff]
    %v936 = vld [vmem:[#allocation5 + $0x1988] sm:$0xff]
    %v937 = vld [vmem:[#allocation5 + $0x1990] sm:$0xff]
    %v938 = vld [vmem:[#allocation5 + $0x1998] sm:$0xff]
    %v939 = vld [vmem:[#allocation5 + $0x19a0] sm:$0xff]
    %v940 = vld [vmem:[#allocation5 + $0x19a8] sm:$0xff]
    %v941 = vld [vmem:[#allocation5 + $0x19b0] sm:$0xff]
    %v942 = vld [vmem:[#allocation5 + $0x19b8] sm:$0xff]
    %v943 = vld [vmem:[#allocation5 + $0x19c0] sm:$0xff]
    %v944 = vld [vmem:[#allocation5 + $0x19c8] sm:$0xff]
    %v945 = vld [vmem:[#allocation5 + $0x19d0] sm:$0xff]
    %v946 = vld [vmem:[#allocation5 + $0x19d8] sm:$0xff]
    %v947 = vld [vmem:[#allocation5 + $0x19e0] sm:$0xff]
    %v948 = vld [vmem:[#allocation5 + $0x19e8] sm:$0xff]
    %v949 = vld [vmem:[#allocation5 + $0x19f0] sm:$0xff]
    %v950 = vld [vmem:[#allocation5 + $0x19f8] sm:$0xff]
    %v951 = vld [vmem:[#allocation5 + $0x1a00] sm:$0xff]
    %v952 = vld [vmem:[#allocation5 + $0x1a08] sm:$0xff]
    %v953 = vld [vmem:[#allocation5 + $0x1a10] sm:$0xff]
    %v954 = vld [vmem:[#allocation5 + $0x1a18] sm:$0xff]
    %v955 = vld [vmem:[#allocation5 + $0x1a20] sm:$0xff]
    %v956 = vld [vmem:[#allocation5 + $0x1a28] sm:$0xff]
    %v957 = vld [vmem:[#allocation5 + $0x1a30] sm:$0xff]
    %v958 = vld [vmem:[#allocation5 + $0x1a38] sm:$0xff]
    %v959 = vld [vmem:[#allocation5 + $0x1a40] sm:$0xff]
    %v960 = vld [vmem:[#allocation5 + $0x1a48] sm:$0xff]
    %v961 = vld [vmem:[#allocation5 + $0x1a50] sm:$0xff]
    %v962 = vld [vmem:[#allocation5 + $0x1a58] sm:$0xff]
    %v963 = vld [vmem:[#allocation5 + $0x1a60] sm:$0xff]
    %v964 = vld [vmem:[#allocation5 + $0x1a68] sm:$0xff]
    %v965 = vld [vmem:[#allocation5 + $0x1a70] sm:$0xff]
    %v966 = vld [vmem:[#allocation5 + $0x1a78] sm:$0xff]
    %v967 = vld [vmem:[#allocation5 + $0x1a80] sm:$0xff]
    %v968 = vld [vmem:[#allocation5 + $0x1a88] sm:$0xff]
    %v969 = vld [vmem:[#allocation5 + $0x1a90] sm:$0xff]
    %v970 = vld [vmem:[#allocation5 + $0x1a98] sm:$0xff]
    %v971 = vld [vmem:[#allocation5 + $0x1aa0] sm:$0xff]
    %v972 = vld [vmem:[#allocation5 + $0x1aa8] sm:$0xff]
    %v973 = vld [vmem:[#allocation5 + $0x1ab0] sm:$0xff]
    %v974 = vld [vmem:[#allocation5 + $0x1ab8] sm:$0xff]
    %v975 = vld [vmem:[#allocation5 + $0x1ac0] sm:$0xff]
    %v976 = vld [vmem:[#allocation5 + $0x1ac8] sm:$0xff]
    %v977 = vld [vmem:[#allocation5 + $0x1ad0] sm:$0xff]
    %v978 = vld [vmem:[#allocation5 + $0x1ad8] sm:$0xff]
    %v979 = vld [vmem:[#allocation5 + $0x1ae0] sm:$0xff]
    %v980 = vld [vmem:[#allocation5 + $0x1ae8] sm:$0xff]
    %v981 = vld [vmem:[#allocation5 + $0x1af0] sm:$0xff]
    %v982 = vld [vmem:[#allocation5 + $0x1af8] sm:$0xff]
    %v992 = vunpack.c.l.b16 %v110
    %v993 = vunpack.c.h.b16 %v110
    %v994 = vunpack.c.l.b16 %v111
    %v995 = vunpack.c.h.b16 %v111
    %v996 = vunpack.c.l.b16 %v112
    %v997 = vunpack.c.h.b16 %v112
    %v998 = vunpack.c.l.b16 %v113
    %v999 = vunpack.c.h.b16 %v113
    %v1000 = vunpack.c.l.b16 %v114
    %v1001 = vunpack.c.h.b16 %v114
    %v1002 = vunpack.c.l.b16 %v115
    %v1003 = vunpack.c.h.b16 %v115
    %v1004 = vunpack.c.l.b16 %v116
    %v1005 = vunpack.c.h.b16 %v116
    %v1006 = vunpack.c.l.b16 %v117
    %v1007 = vunpack.c.h.b16 %v117
    %v1008 = vunpack.c.l.b16 %v118
    %v1009 = vunpack.c.h.b16 %v118
    %v1010 = vpack.c.b16 %v998, %v992
    %v1011 = vpack.c.b16 %v999, %v993
    %v1012 = vpack.c.b16 %v1000, %v994
    %v1013 = vpack.c.b16 %v1001, %v995
    %v1014 = vpack.c.b16 %v1002, %v996
    %v1015 = vpack.c.b16 %v1003, %v997
    %v1016 = vpack.c.b16 %v1004, %v1004
    %v1017 = vpack.c.b16 %v1005, %v1005
    %v1018 = vpack.c.b16 %v1006, %v1006
    %v1019 = vpack.c.b16 %v1007, %v1007
    %v1020 = vpack.c.b16 %v1008, %v1008
    %v1021 = vpack.c.b16 %v1009, %v1009
    %v1898 = vunpack.c.l.b16 %v119
    %v1899 = vunpack.c.h.b16 %v119
    %v1900 = vunpack.c.l.b16 %v120
    %v1901 = vunpack.c.h.b16 %v120
    %v1902 = vunpack.c.l.b16 %v121
    %v1903 = vunpack.c.h.b16 %v121
    %v1904 = vunpack.c.l.b16 %v122
    %v1905 = vunpack.c.h.b16 %v122
    %v1906 = vunpack.c.l.b16 %v123
    %v1907 = vunpack.c.h.b16 %v123
    %v1908 = vunpack.c.l.b16 %v124
    %v1909 = vunpack.c.h.b16 %v124
    %v1910 = vunpack.c.l.b16 %v125
    %v1911 = vunpack.c.h.b16 %v125
    %v1912 = vunpack.c.l.b16 %v126
    %v1913 = vunpack.c.h.b16 %v126
    %v1914 = vunpack.c.l.b16 %v127
    %v1915 = vunpack.c.h.b16 %v127
    %v1916 = vunpack.c.l.b16 %v128
    %v1917 = vunpack.c.h.b16 %v128
    %v1918 = vunpack.c.l.b16 %v129
    %v1919 = vunpack.c.h.b16 %v129
    %v1920 = vunpack.c.l.b16 %v130
    %v1921 = vunpack.c.h.b16 %v130
    %v1922 = vunpack.c.l.b16 %v131
    %v1923 = vunpack.c.h.b16 %v131
    %v1924 = vunpack.c.l.b16 %v132
    %v1925 = vunpack.c.h.b16 %v132
    %v1926 = vunpack.c.l.b16 %v133
    %v1927 = vunpack.c.h.b16 %v133
    %v1928 = vunpack.c.l.b16 %v134
    %v1929 = vunpack.c.h.b16 %v134
    %v1930 = vunpack.c.l.b16 %v135
    %v1931 = vunpack.c.h.b16 %v135
    %v1932 = vunpack.c.l.b16 %v136
    %v1933 = vunpack.c.h.b16 %v136
    %v1934 = vunpack.c.l.b16 %v137
    %v1935 = vunpack.c.h.b16 %v137
    %v1936 = vunpack.c.l.b16 %v138
    %v1937 = vunpack.c.h.b16 %v138
    %v1938 = vunpack.c.l.b16 %v139
    %v1939 = vunpack.c.h.b16 %v139
    %v1940 = vunpack.c.l.b16 %v140
    %v1941 = vunpack.c.h.b16 %v140
    %v1942 = vunpack.c.l.b16 %v141
    %v1943 = vunpack.c.h.b16 %v141
    %v1944 = vunpack.c.l.b16 %v142
    %v1945 = vunpack.c.h.b16 %v142
    %v1946 = vunpack.c.l.b16 %v143
    %v1947 = vunpack.c.h.b16 %v143
    %v1948 = vunpack.c.l.b16 %v144
    %v1949 = vunpack.c.h.b16 %v144
    %v1950 = vunpack.c.l.b16 %v145
    %v1951 = vunpack.c.h.b16 %v145
    %v1952 = vunpack.c.l.b16 %v146
    %v1953 = vunpack.c.h.b16 %v146
    %v1954 = vunpack.c.l.b16 %v147
    %v1955 = vunpack.c.h.b16 %v147
    %v1956 = vunpack.c.l.b16 %v148
    %v1957 = vunpack.c.h.b16 %v148
    %v1958 = vunpack.c.l.b16 %v149
    %v1959 = vunpack.c.h.b16 %v149
    %v1960 = vunpack.c.l.b16 %v150
    %v1961 = vunpack.c.h.b16 %v150
    %v1962 = vunpack.c.l.b16 %v151
    %v1963 = vunpack.c.h.b16 %v151
    %v1964 = vunpack.c.l.b16 %v152
    %v1965 = vunpack.c.h.b16 %v152
    %v1966 = vunpack.c.l.b16 %v153
    %v1967 = vunpack.c.h.b16 %v153
    %v1968 = vunpack.c.l.b16 %v154
    %v1969 = vunpack.c.h.b16 %v154
    %v1970 = vunpack.c.l.b16 %v155
    %v1971 = vunpack.c.h.b16 %v155
    %v1972 = vunpack.c.l.b16 %v156
    %v1973 = vunpack.c.h.b16 %v156
    %v1974 = vunpack.c.l.b16 %v157
    %v1975 = vunpack.c.h.b16 %v157
    %v1976 = vunpack.c.l.b16 %v158
    %v1977 = vunpack.c.h.b16 %v158
    %v1978 = vunpack.c.l.b16 %v159
    %v1979 = vunpack.c.h.b16 %v159
    %v1980 = vunpack.c.l.b16 %v160
    %v1981 = vunpack.c.h.b16 %v160
    %v1982 = vunpack.c.l.b16 %v161
    %v1983 = vunpack.c.h.b16 %v161
    %v1984 = vunpack.c.l.b16 %v162
    %v1985 = vunpack.c.h.b16 %v162
    %v1986 = vunpack.c.l.b16 %v163
    %v1987 = vunpack.c.h.b16 %v163
    %v1988 = vunpack.c.l.b16 %v164
    %v1989 = vunpack.c.h.b16 %v164
    %v1990 = vunpack.c.l.b16 %v165
    %v1991 = vunpack.c.h.b16 %v165
    %v1992 = vunpack.c.l.b16 %v166
    %v1993 = vunpack.c.h.b16 %v166
    %v1994 = vunpack.c.l.b16 %v167
    %v1995 = vunpack.c.h.b16 %v167
    %v1996 = vunpack.c.l.b16 %v168
    %v1997 = vunpack.c.h.b16 %v168
    %v1998 = vunpack.c.l.b16 %v169
    %v1999 = vunpack.c.h.b16 %v169
    %v2000 = vunpack.c.l.b16 %v170
    %v2001 = vunpack.c.h.b16 %v170
    %v2002 = vunpack.c.l.b16 %v171
    %v2003 = vunpack.c.h.b16 %v171
    %v2004 = vunpack.c.l.b16 %v172
    %v2005 = vunpack.c.h.b16 %v172
    %v2006 = vunpack.c.l.b16 %v173
    %v2007 = vunpack.c.h.b16 %v173
    %v2008 = vunpack.c.l.b16 %v174
    %v2009 = vunpack.c.h.b16 %v174
    %v2010 = vunpack.c.l.b16 %v175
    %v2011 = vunpack.c.h.b16 %v175
    %v2012 = vunpack.c.l.b16 %v176
    %v2013 = vunpack.c.h.b16 %v176
    %v2014 = vunpack.c.l.b16 %v177
    %v2015 = vunpack.c.h.b16 %v177
    %v2016 = vunpack.c.l.b16 %v178
    %v2017 = vunpack.c.h.b16 %v178
    %v2018 = vunpack.c.l.b16 %v179
    %v2019 = vunpack.c.h.b16 %v179
    %v2020 = vunpack.c.l.b16 %v180
    %v2021 = vunpack.c.h.b16 %v180
    %v2022 = vunpack.c.l.b16 %v181
    %v2023 = vunpack.c.h.b16 %v181
    %v2024 = vunpack.c.l.b16 %v182
    %v2025 = vunpack.c.h.b16 %v182
    %v2026 = vunpack.c.l.b16 %v183
    %v2027 = vunpack.c.h.b16 %v183
    %v2028 = vunpack.c.l.b16 %v184
    %v2029 = vunpack.c.h.b16 %v184
    %v2030 = vunpack.c.l.b16 %v185
    %v2031 = vunpack.c.h.b16 %v185
    %v2032 = vunpack.c.l.b16 %v186
    %v2033 = vunpack.c.h.b16 %v186
    %v2034 = vunpack.c.l.b16 %v187
    %v2035 = vunpack.c.h.b16 %v187
    %v2036 = vunpack.c.l.b16 %v188
    %v2037 = vunpack.c.h.b16 %v188
    %v2038 = vunpack.c.l.b16 %v189
    %v2039 = vunpack.c.h.b16 %v189
    %v2040 = vunpack.c.l.b16 %v190
    %v2041 = vunpack.c.h.b16 %v190
    %v2042 = vunpack.c.l.b16 %v191
    %v2043 = vunpack.c.h.b16 %v191
    %v2044 = vunpack.c.l.b16 %v192
    %v2045 = vunpack.c.h.b16 %v192
    %v2046 = vunpack.c.l.b16 %v193
    %v2047 = vunpack.c.h.b16 %v193
    %v2048 = vunpack.c.l.b16 %v194
    %v2049 = vunpack.c.h.b16 %v194
    %v2050 = vunpack.c.l.b16 %v195
    %v2051 = vunpack.c.h.b16 %v195
    %v2052 = vunpack.c.l.b16 %v196
    %v2053 = vunpack.c.h.b16 %v196
    %v2054 = vunpack.c.l.b16 %v197
    %v2055 = vunpack.c.h.b16 %v197
    %v2056 = vunpack.c.l.b16 %v198
    %v2057 = vunpack.c.h.b16 %v198
    %v2058 = vunpack.c.l.b16 %v199
    %v2059 = vunpack.c.h.b16 %v199
    %v2060 = vunpack.c.l.b16 %v200
    %v2061 = vunpack.c.h.b16 %v200
    %v2062 = vunpack.c.l.b16 %v201
    %v2063 = vunpack.c.h.b16 %v201
    %v2064 = vunpack.c.l.b16 %v202
    %v2065 = vunpack.c.h.b16 %v202
    %v2066 = vunpack.c.l.b16 %v203
    %v2067 = vunpack.c.h.b16 %v203
    %v2068 = vunpack.c.l.b16 %v204
    %v2069 = vunpack.c.h.b16 %v204
    %v2070 = vunpack.c.l.b16 %v205
    %v2071 = vunpack.c.h.b16 %v205
    %v2072 = vunpack.c.l.b16 %v206
    %v2073 = vunpack.c.h.b16 %v206
    %v2074 = vunpack.c.l.b16 %v207
    %v2075 = vunpack.c.h.b16 %v207
    %v2076 = vunpack.c.l.b16 %v208
    %v2077 = vunpack.c.h.b16 %v208
    %v2078 = vunpack.c.l.b16 %v209
    %v2079 = vunpack.c.h.b16 %v209
    %v2080 = vunpack.c.l.b16 %v210
    %v2081 = vunpack.c.h.b16 %v210
    %v2082 = vunpack.c.l.b16 %v211
    %v2083 = vunpack.c.h.b16 %v211
    %v2084 = vunpack.c.l.b16 %v212
    %v2085 = vunpack.c.h.b16 %v212
    %v2086 = vunpack.c.l.b16 %v213
    %v2087 = vunpack.c.h.b16 %v213
    %v2088 = vunpack.c.l.b16 %v214
    %v2089 = vunpack.c.h.b16 %v214
    %v2090 = vunpack.c.l.b16 %v215
    %v2091 = vunpack.c.h.b16 %v215
    %v2092 = vunpack.c.l.b16 %v216
    %v2093 = vunpack.c.h.b16 %v216
    %v2094 = vunpack.c.l.b16 %v217
    %v2095 = vunpack.c.h.b16 %v217
    %v2096 = vunpack.c.l.b16 %v218
    %v2097 = vunpack.c.h.b16 %v218
    %v2098 = vunpack.c.l.b16 %v219
    %v2099 = vunpack.c.h.b16 %v219
    %v2100 = vunpack.c.l.b16 %v220
    %v2101 = vunpack.c.h.b16 %v220
    %v2102 = vunpack.c.l.b16 %v221
    %v2103 = vunpack.c.h.b16 %v221
    %v2104 = vunpack.c.l.b16 %v222
    %v2105 = vunpack.c.h.b16 %v222
    %v2106 = vunpack.c.l.b16 %v223
    %v2107 = vunpack.c.h.b16 %v223
    %v2108 = vunpack.c.l.b16 %v224
    %v2109 = vunpack.c.h.b16 %v224
    %v2110 = vunpack.c.l.b16 %v225
    %v2111 = vunpack.c.h.b16 %v225
    %v2112 = vunpack.c.l.b16 %v226
    %v2113 = vunpack.c.h.b16 %v226
    %v2114 = vunpack.c.l.b16 %v227
    %v2115 = vunpack.c.h.b16 %v227
    %v2116 = vunpack.c.l.b16 %v228
    %v2117 = vunpack.c.h.b16 %v228
    %v2118 = vunpack.c.l.b16 %v229
    %v2119 = vunpack.c.h.b16 %v229
    %v2120 = vunpack.c.l.b16 %v230
    %v2121 = vunpack.c.h.b16 %v230
    %v2122 = vunpack.c.l.b16 %v231
    %v2123 = vunpack.c.h.b16 %v231
    %v2124 = vunpack.c.l.b16 %v232
    %v2125 = vunpack.c.h.b16 %v232
    %v2126 = vunpack.c.l.b16 %v233
    %v2127 = vunpack.c.h.b16 %v233
    %v2128 = vunpack.c.l.b16 %v234
    %v2129 = vunpack.c.h.b16 %v234
    %v2130 = vunpack.c.l.b16 %v235
    %v2131 = vunpack.c.h.b16 %v235
    %v2132 = vunpack.c.l.b16 %v236
    %v2133 = vunpack.c.h.b16 %v236
    %v2134 = vunpack.c.l.b16 %v237
    %v2135 = vunpack.c.h.b16 %v237
    %v2136 = vunpack.c.l.b16 %v238
    %v2137 = vunpack.c.h.b16 %v238
    %v2138 = vunpack.c.l.b16 %v239
    %v2139 = vunpack.c.h.b16 %v239
    %v2140 = vunpack.c.l.b16 %v240
    %v2141 = vunpack.c.h.b16 %v240
    %v2142 = vunpack.c.l.b16 %v241
    %v2143 = vunpack.c.h.b16 %v241
    %v2144 = vunpack.c.l.b16 %v242
    %v2145 = vunpack.c.h.b16 %v242
    %v2146 = vunpack.c.l.b16 %v243
    %v2147 = vunpack.c.h.b16 %v243
    %v2148 = vunpack.c.l.b16 %v244
    %v2149 = vunpack.c.h.b16 %v244
    %v2150 = vunpack.c.l.b16 %v245
    %v2151 = vunpack.c.h.b16 %v245
    %v2152 = vunpack.c.l.b16 %v246
    %v2153 = vunpack.c.h.b16 %v246
    %v2154 = vunpack.c.l.b16 %v247
    %v2155 = vunpack.c.h.b16 %v247
    %v2156 = vunpack.c.l.b16 %v248
    %v2157 = vunpack.c.h.b16 %v248
    %v2158 = vunpack.c.l.b16 %v249
    %v2159 = vunpack.c.h.b16 %v249
    %v2160 = vunpack.c.l.b16 %v250
    %v2161 = vunpack.c.h.b16 %v250
    %v2162 = vunpack.c.l.b16 %v251
    %v2163 = vunpack.c.h.b16 %v251
    %v2164 = vunpack.c.l.b16 %v252
    %v2165 = vunpack.c.h.b16 %v252
    %v2166 = vunpack.c.l.b16 %v253
    %v2167 = vunpack.c.h.b16 %v253
    %v2168 = vunpack.c.l.b16 %v254
    %v2169 = vunpack.c.h.b16 %v254
    %v2170 = vunpack.c.l.b16 %v255
    %v2171 = vunpack.c.h.b16 %v255
    %v2172 = vunpack.c.l.b16 %v256
    %v2173 = vunpack.c.h.b16 %v256
    %v2174 = vunpack.c.l.b16 %v257
    %v2175 = vunpack.c.h.b16 %v257
    %v2176 = vunpack.c.l.b16 %v258
    %v2177 = vunpack.c.h.b16 %v258
    %v2178 = vunpack.c.l.b16 %v259
    %v2179 = vunpack.c.h.b16 %v259
    %v2180 = vunpack.c.l.b16 %v260
    %v2181 = vunpack.c.h.b16 %v260
    %v2182 = vunpack.c.l.b16 %v261
    %v2183 = vunpack.c.h.b16 %v261
    %v2184 = vunpack.c.l.b16 %v262
    %v2185 = vunpack.c.h.b16 %v262
    %v2186 = vunpack.c.l.b16 %v263
    %v2187 = vunpack.c.h.b16 %v263
    %v2188 = vunpack.c.l.b16 %v264
    %v2189 = vunpack.c.h.b16 %v264
    %v2190 = vunpack.c.l.b16 %v265
    %v2191 = vunpack.c.h.b16 %v265
    %v2192 = vunpack.c.l.b16 %v266
    %v2193 = vunpack.c.h.b16 %v266
    %v2194 = vunpack.c.l.b16 %v267
    %v2195 = vunpack.c.h.b16 %v267
    %v2196 = vunpack.c.l.b16 %v268
    %v2197 = vunpack.c.h.b16 %v268
    %v2198 = vunpack.c.l.b16 %v269
    %v2199 = vunpack.c.h.b16 %v269
    %v2200 = vunpack.c.l.b16 %v270
    %v2201 = vunpack.c.h.b16 %v270
    %v2202 = vunpack.c.l.b16 %v271
    %v2203 = vunpack.c.h.b16 %v271
    %v2204 = vunpack.c.l.b16 %v272
    %v2205 = vunpack.c.h.b16 %v272
    %v2206 = vunpack.c.l.b16 %v273
    %v2207 = vunpack.c.h.b16 %v273
    %v2208 = vunpack.c.l.b16 %v274
    %v2209 = vunpack.c.h.b16 %v274
    %v2210 = vunpack.c.l.b16 %v275
    %v2211 = vunpack.c.h.b16 %v275
    %v2212 = vunpack.c.l.b16 %v276
    %v2213 = vunpack.c.h.b16 %v276
    %v2214 = vunpack.c.l.b16 %v277
    %v2215 = vunpack.c.h.b16 %v277
    %v2216 = vunpack.c.l.b16 %v278
    %v2217 = vunpack.c.h.b16 %v278
    %v2218 = vunpack.c.l.b16 %v279
    %v2219 = vunpack.c.h.b16 %v279
    %v2220 = vunpack.c.l.b16 %v280
    %v2221 = vunpack.c.h.b16 %v280
    %v2222 = vunpack.c.l.b16 %v281
    %v2223 = vunpack.c.h.b16 %v281
    %v2224 = vunpack.c.l.b16 %v282
    %v2225 = vunpack.c.h.b16 %v282
    %v2226 = vunpack.c.l.b16 %v283
    %v2227 = vunpack.c.h.b16 %v283
    %v2228 = vunpack.c.l.b16 %v284
    %v2229 = vunpack.c.h.b16 %v284
    %v2230 = vunpack.c.l.b16 %v285
    %v2231 = vunpack.c.h.b16 %v285
    %v2232 = vunpack.c.l.b16 %v286
    %v2233 = vunpack.c.h.b16 %v286
    %v2234 = vunpack.c.l.b16 %v287
    %v2235 = vunpack.c.h.b16 %v287
    %v2236 = vunpack.c.l.b16 %v288
    %v2237 = vunpack.c.h.b16 %v288
    %v2238 = vunpack.c.l.b16 %v289
    %v2239 = vunpack.c.h.b16 %v289
    %v2240 = vunpack.c.l.b16 %v290
    %v2241 = vunpack.c.h.b16 %v290
    %v2242 = vunpack.c.l.b16 %v291
    %v2243 = vunpack.c.h.b16 %v291
    %v2244 = vunpack.c.l.b16 %v292
    %v2245 = vunpack.c.h.b16 %v292
    %v2246 = vunpack.c.l.b16 %v293
    %v2247 = vunpack.c.h.b16 %v293
    %v2248 = vunpack.c.l.b16 %v294
    %v2249 = vunpack.c.h.b16 %v294
    %v2250 = vunpack.c.l.b16 %v295
    %v2251 = vunpack.c.h.b16 %v295
    %v2252 = vunpack.c.l.b16 %v296
    %v2253 = vunpack.c.h.b16 %v296
    %v2254 = vunpack.c.l.b16 %v297
    %v2255 = vunpack.c.h.b16 %v297
    %v2256 = vunpack.c.l.b16 %v298
    %v2257 = vunpack.c.h.b16 %v298
    %v2258 = vunpack.c.l.b16 %v299
    %v2259 = vunpack.c.h.b16 %v299
    %v2260 = vunpack.c.l.b16 %v300
    %v2261 = vunpack.c.h.b16 %v300
    %v2262 = vunpack.c.l.b16 %v301
    %v2263 = vunpack.c.h.b16 %v301
    %v2264 = vunpack.c.l.b16 %v302
    %v2265 = vunpack.c.h.b16 %v302
    %v2266 = vunpack.c.l.b16 %v303
    %v2267 = vunpack.c.h.b16 %v303
    %v2268 = vunpack.c.l.b16 %v304
    %v2269 = vunpack.c.h.b16 %v304
    %v2270 = vunpack.c.l.b16 %v305
    %v2271 = vunpack.c.h.b16 %v305
    %v2272 = vunpack.c.l.b16 %v306
    %v2273 = vunpack.c.h.b16 %v306
    %v2274 = vunpack.c.l.b16 %v307
    %v2275 = vunpack.c.h.b16 %v307
    %v2276 = vunpack.c.l.b16 %v308
    %v2277 = vunpack.c.h.b16 %v308
    %v2278 = vunpack.c.l.b16 %v309
    %v2279 = vunpack.c.h.b16 %v309
    %v2280 = vunpack.c.l.b16 %v310
    %v2281 = vunpack.c.h.b16 %v310
    %v2282 = vunpack.c.l.b16 %v311
    %v2283 = vunpack.c.h.b16 %v311
    %v2284 = vunpack.c.l.b16 %v312
    %v2285 = vunpack.c.h.b16 %v312
    %v2286 = vunpack.c.l.b16 %v313
    %v2287 = vunpack.c.h.b16 %v313
    %v2288 = vunpack.c.l.b16 %v314
    %v2289 = vunpack.c.h.b16 %v314
    %v2290 = vunpack.c.l.b16 %v315
    %v2291 = vunpack.c.h.b16 %v315
    %v2292 = vunpack.c.l.b16 %v316
    %v2293 = vunpack.c.h.b16 %v316
    %v2294 = vunpack.c.l.b16 %v317
    %v2295 = vunpack.c.h.b16 %v317
    %v2296 = vunpack.c.l.b16 %v318
    %v2297 = vunpack.c.h.b16 %v318
    %v2298 = vunpack.c.l.b16 %v319
    %v2299 = vunpack.c.h.b16 %v319
    %v2300 = vunpack.c.l.b16 %v320
    %v2301 = vunpack.c.h.b16 %v320
    %v2302 = vunpack.c.l.b16 %v321
    %v2303 = vunpack.c.h.b16 %v321
    %v2304 = vunpack.c.l.b16 %v322
    %v2305 = vunpack.c.h.b16 %v322
    %v2306 = vunpack.c.l.b16 %v323
    %v2307 = vunpack.c.h.b16 %v323
    %v2308 = vunpack.c.l.b16 %v324
    %v2309 = vunpack.c.h.b16 %v324
    %v2310 = vunpack.c.l.b16 %v325
    %v2311 = vunpack.c.h.b16 %v325
    %v2312 = vunpack.c.l.b16 %v326
    %v2313 = vunpack.c.h.b16 %v326
    %v2314 = vunpack.c.l.b16 %v327
    %v2315 = vunpack.c.h.b16 %v327
    %v2316 = vunpack.c.l.b16 %v328
    %v2317 = vunpack.c.h.b16 %v328
    %v2318 = vunpack.c.l.b16 %v329
    %v2319 = vunpack.c.h.b16 %v329
    %v2320 = vunpack.c.l.b16 %v330
    %v2321 = vunpack.c.h.b16 %v330
    %v2322 = vunpack.c.l.b16 %v331
    %v2323 = vunpack.c.h.b16 %v331
    %v2324 = vunpack.c.l.b16 %v332
    %v2325 = vunpack.c.h.b16 %v332
    %v2326 = vunpack.c.l.b16 %v333
    %v2327 = vunpack.c.h.b16 %v333
    %v2328 = vunpack.c.l.b16 %v334
    %v2329 = vunpack.c.h.b16 %v334
    %v2330 = vunpack.c.l.b16 %v335
    %v2331 = vunpack.c.h.b16 %v335
    %v2332 = vunpack.c.l.b16 %v336
    %v2333 = vunpack.c.h.b16 %v336
    %v2334 = vunpack.c.l.b16 %v337
    %v2335 = vunpack.c.h.b16 %v337
    %v2336 = vunpack.c.l.b16 %v338
    %v2337 = vunpack.c.h.b16 %v338
    %v2338 = vunpack.c.l.b16 %v339
    %v2339 = vunpack.c.h.b16 %v339
    %v2340 = vunpack.c.l.b16 %v340
    %v2341 = vunpack.c.h.b16 %v340
    %v2342 = vunpack.c.l.b16 %v341
    %v2343 = vunpack.c.h.b16 %v341
    %v2344 = vunpack.c.l.b16 %v342
    %v2345 = vunpack.c.h.b16 %v342
    %v2346 = vunpack.c.l.b16 %v343
    %v2347 = vunpack.c.h.b16 %v343
    %v2348 = vunpack.c.l.b16 %v344
    %v2349 = vunpack.c.h.b16 %v344
    %v2350 = vunpack.c.l.b16 %v345
    %v2351 = vunpack.c.h.b16 %v345
    %v2352 = vunpack.c.l.b16 %v346
    %v2353 = vunpack.c.h.b16 %v346
    %v2354 = vunpack.c.l.b16 %v347
    %v2355 = vunpack.c.h.b16 %v347
    %v2356 = vunpack.c.l.b16 %v348
    %v2357 = vunpack.c.h.b16 %v348
    %v2358 = vunpack.c.l.b16 %v349
    %v2359 = vunpack.c.h.b16 %v349
    %v2360 = vunpack.c.l.b16 %v350
    %v2361 = vunpack.c.h.b16 %v350
    %v2362 = vunpack.c.l.b16 %v351
    %v2363 = vunpack.c.h.b16 %v351
    %v2364 = vunpack.c.l.b16 %v352
    %v2365 = vunpack.c.h.b16 %v352
    %v2366 = vunpack.c.l.b16 %v353
    %v2367 = vunpack.c.h.b16 %v353
    %v2368 = vunpack.c.l.b16 %v354
    %v2369 = vunpack.c.h.b16 %v354
    %v2370 = vunpack.c.l.b16 %v355
    %v2371 = vunpack.c.h.b16 %v355
    %v2372 = vunpack.c.l.b16 %v356
    %v2373 = vunpack.c.h.b16 %v356
    %v2374 = vunpack.c.l.b16 %v357
    %v2375 = vunpack.c.h.b16 %v357
    %v2376 = vunpack.c.l.b16 %v358
    %v2377 = vunpack.c.h.b16 %v358
    %v2378 = vunpack.c.l.b16 %v359
    %v2379 = vunpack.c.h.b16 %v359
    %v2380 = vunpack.c.l.b16 %v360
    %v2381 = vunpack.c.h.b16 %v360
    %v2382 = vunpack.c.l.b16 %v361
    %v2383 = vunpack.c.h.b16 %v361
    %v2384 = vunpack.c.l.b16 %v362
    %v2385 = vunpack.c.h.b16 %v362
    %v2386 = vunpack.c.l.b16 %v363
    %v2387 = vunpack.c.h.b16 %v363
    %v2388 = vunpack.c.l.b16 %v364
    %v2389 = vunpack.c.h.b16 %v364
    %v2390 = vunpack.c.l.b16 %v365
    %v2391 = vunpack.c.h.b16 %v365
    %v2392 = vunpack.c.l.b16 %v366
    %v2393 = vunpack.c.h.b16 %v366
    %v2394 = vunpack.c.l.b16 %v367
    %v2395 = vunpack.c.h.b16 %v367
    %v2396 = vunpack.c.l.b16 %v368
    %v2397 = vunpack.c.h.b16 %v368
    %v2398 = vunpack.c.l.b16 %v369
    %v2399 = vunpack.c.h.b16 %v369
    %v2400 = vunpack.c.l.b16 %v370
    %v2401 = vunpack.c.h.b16 %v370
    %v2402 = vunpack.c.l.b16 %v371
    %v2403 = vunpack.c.h.b16 %v371
    %v2404 = vunpack.c.l.b16 %v372
    %v2405 = vunpack.c.h.b16 %v372
    %v2406 = vunpack.c.l.b16 %v373
    %v2407 = vunpack.c.h.b16 %v373
    %v2408 = vunpack.c.l.b16 %v374
    %v2409 = vunpack.c.h.b16 %v374
    %v2410 = vunpack.c.l.b16 %v375
    %v2411 = vunpack.c.h.b16 %v375
    %v2412 = vunpack.c.l.b16 %v376
    %v2413 = vunpack.c.h.b16 %v376
    %v2414 = vunpack.c.l.b16 %v377
    %v2415 = vunpack.c.h.b16 %v377
    %v2416 = vunpack.c.l.b16 %v378
    %v2417 = vunpack.c.h.b16 %v378
    %v2418 = vunpack.c.l.b16 %v379
    %v2419 = vunpack.c.h.b16 %v379
    %v2420 = vunpack.c.l.b16 %v380
    %v2421 = vunpack.c.h.b16 %v380
    %v2422 = vunpack.c.l.b16 %v381
    %v2423 = vunpack.c.h.b16 %v381
    %v2424 = vunpack.c.l.b16 %v382
    %v2425 = vunpack.c.h.b16 %v382
    %v2426 = vunpack.c.l.b16 %v383
    %v2427 = vunpack.c.h.b16 %v383
    %v2428 = vunpack.c.l.b16 %v384
    %v2429 = vunpack.c.h.b16 %v384
    %v2430 = vunpack.c.l.b16 %v385
    %v2431 = vunpack.c.h.b16 %v385
    %v2432 = vunpack.c.l.b16 %v386
    %v2433 = vunpack.c.h.b16 %v386
    %v2434 = vunpack.c.l.b16 %v387
    %v2435 = vunpack.c.h.b16 %v387
    %v2436 = vunpack.c.l.b16 %v388
    %v2437 = vunpack.c.h.b16 %v388
    %v2438 = vunpack.c.l.b16 %v389
    %v2439 = vunpack.c.h.b16 %v389
    %v2440 = vunpack.c.l.b16 %v390
    %v2441 = vunpack.c.h.b16 %v390
    %v2442 = vunpack.c.l.b16 %v391
    %v2443 = vunpack.c.h.b16 %v391
    %v2444 = vunpack.c.l.b16 %v392
    %v2445 = vunpack.c.h.b16 %v392
    %v2446 = vunpack.c.l.b16 %v393
    %v2447 = vunpack.c.h.b16 %v393
    %v2448 = vunpack.c.l.b16 %v394
    %v2449 = vunpack.c.h.b16 %v394
    %v2450 = vunpack.c.l.b16 %v395
    %v2451 = vunpack.c.h.b16 %v395
    %v2452 = vunpack.c.l.b16 %v396
    %v2453 = vunpack.c.h.b16 %v396
    %v2454 = vunpack.c.l.b16 %v397
    %v2455 = vunpack.c.h.b16 %v397
    %v2456 = vunpack.c.l.b16 %v398
    %v2457 = vunpack.c.h.b16 %v398
    %v2458 = vunpack.c.l.b16 %v399
    %v2459 = vunpack.c.h.b16 %v399
    %v2460 = vunpack.c.l.b16 %v400
    %v2461 = vunpack.c.h.b16 %v400
    %v2462 = vunpack.c.l.b16 %v401
    %v2463 = vunpack.c.h.b16 %v401
    %v2464 = vunpack.c.l.b16 %v402
    %v2465 = vunpack.c.h.b16 %v402
    %v2466 = vunpack.c.l.b16 %v403
    %v2467 = vunpack.c.h.b16 %v403
    %v2468 = vunpack.c.l.b16 %v404
    %v2469 = vunpack.c.h.b16 %v404
    %v2470 = vunpack.c.l.b16 %v405
    %v2471 = vunpack.c.h.b16 %v405
    %v2472 = vunpack.c.l.b16 %v406
    %v2473 = vunpack.c.h.b16 %v406
    %v2474 = vunpack.c.l.b16 %v407
    %v2475 = vunpack.c.h.b16 %v407
    %v2476 = vunpack.c.l.b16 %v408
    %v2477 = vunpack.c.h.b16 %v408
    %v2478 = vunpack.c.l.b16 %v409
    %v2479 = vunpack.c.h.b16 %v409
    %v2480 = vunpack.c.l.b16 %v410
    %v2481 = vunpack.c.h.b16 %v410
    %v2482 = vunpack.c.l.b16 %v411
    %v2483 = vunpack.c.h.b16 %v411
    %v2484 = vunpack.c.l.b16 %v412
    %v2485 = vunpack.c.h.b16 %v412
    %v2486 = vunpack.c.l.b16 %v413
    %v2487 = vunpack.c.h.b16 %v413
    %v2488 = vunpack.c.l.b16 %v414
    %v2489 = vunpack.c.h.b16 %v414
    %v2490 = vunpack.c.l.b16 %v415
    %v2491 = vunpack.c.h.b16 %v415
    %v2492 = vunpack.c.l.b16 %v416
    %v2493 = vunpack.c.h.b16 %v416
    %v2494 = vunpack.c.l.b16 %v417
    %v2495 = vunpack.c.h.b16 %v417
    %v2496 = vunpack.c.l.b16 %v418
    %v2497 = vunpack.c.h.b16 %v418
    %v2498 = vunpack.c.l.b16 %v419
    %v2499 = vunpack.c.h.b16 %v419
    %v2500 = vunpack.c.l.b16 %v420
    %v2501 = vunpack.c.h.b16 %v420
    %v2502 = vunpack.c.l.b16 %v421
    %v2503 = vunpack.c.h.b16 %v421
    %v2504 = vunpack.c.l.b16 %v422
    %v2505 = vunpack.c.h.b16 %v422
    %v2506 = vunpack.c.l.b16 %v423
    %v2507 = vunpack.c.h.b16 %v423
    %v2508 = vunpack.c.l.b16 %v424
    %v2509 = vunpack.c.h.b16 %v424
    %v2510 = vunpack.c.l.b16 %v425
    %v2511 = vunpack.c.h.b16 %v425
    %v2512 = vunpack.c.l.b16 %v426
    %v2513 = vunpack.c.h.b16 %v426
    %v2514 = vunpack.c.l.b16 %v427
    %v2515 = vunpack.c.h.b16 %v427
    %v2516 = vunpack.c.l.b16 %v428
    %v2517 = vunpack.c.h.b16 %v428
    %v2518 = vunpack.c.l.b16 %v429
    %v2519 = vunpack.c.h.b16 %v429
    %v2520 = vunpack.c.l.b16 %v430
    %v2521 = vunpack.c.h.b16 %v430
    %v2522 = vunpack.c.l.b16 %v431
    %v2523 = vunpack.c.h.b16 %v431
    %v2524 = vunpack.c.l.b16 %v432
    %v2525 = vunpack.c.h.b16 %v432
    %v2526 = vunpack.c.l.b16 %v433
    %v2527 = vunpack.c.h.b16 %v433
    %v2528 = vunpack.c.l.b16 %v434
    %v2529 = vunpack.c.h.b16 %v434
    %v2530 = vunpack.c.l.b16 %v435
    %v2531 = vunpack.c.h.b16 %v435
    %v2532 = vunpack.c.l.b16 %v436
    %v2533 = vunpack.c.h.b16 %v436
    %v2534 = vunpack.c.l.b16 %v437
    %v2535 = vunpack.c.h.b16 %v437
    %v2536 = vunpack.c.l.b16 %v438
    %v2537 = vunpack.c.h.b16 %v438
    %v2538 = vunpack.c.l.b16 %v439
    %v2539 = vunpack.c.h.b16 %v439
    %v2540 = vunpack.c.l.b16 %v440
    %v2541 = vunpack.c.h.b16 %v440
    %v2542 = vunpack.c.l.b16 %v441
    %v2543 = vunpack.c.h.b16 %v441
    %v2544 = vunpack.c.l.b16 %v442
    %v2545 = vunpack.c.h.b16 %v442
    %v2546 = vunpack.c.l.b16 %v443
    %v2547 = vunpack.c.h.b16 %v443
    %v2548 = vunpack.c.l.b16 %v444
    %v2549 = vunpack.c.h.b16 %v444
    %v2550 = vunpack.c.l.b16 %v445
    %v2551 = vunpack.c.h.b16 %v445
    %v2552 = vunpack.c.l.b16 %v446
    %v2553 = vunpack.c.h.b16 %v446
    %v2554 = vunpack.c.l.b16 %v447
    %v2555 = vunpack.c.h.b16 %v447
    %v2556 = vunpack.c.l.b16 %v448
    %v2557 = vunpack.c.h.b16 %v448
    %v2558 = vunpack.c.l.b16 %v449
    %v2559 = vunpack.c.h.b16 %v449
    %v2560 = vunpack.c.l.b16 %v450
    %v2561 = vunpack.c.h.b16 %v450
    %v2562 = vunpack.c.l.b16 %v451
    %v2563 = vunpack.c.h.b16 %v451
    %v2564 = vunpack.c.l.b16 %v452
    %v2565 = vunpack.c.h.b16 %v452
    %v2566 = vunpack.c.l.b16 %v453
    %v2567 = vunpack.c.h.b16 %v453
    %v2568 = vunpack.c.l.b16 %v454
    %v2569 = vunpack.c.h.b16 %v454
    %v2570 = vunpack.c.l.b16 %v455
    %v2571 = vunpack.c.h.b16 %v455
    %v2572 = vunpack.c.l.b16 %v456
    %v2573 = vunpack.c.h.b16 %v456
    %v2574 = vunpack.c.l.b16 %v457
    %v2575 = vunpack.c.h.b16 %v457
    %v2576 = vunpack.c.l.b16 %v458
    %v2577 = vunpack.c.h.b16 %v458
    %v2578 = vunpack.c.l.b16 %v459
    %v2579 = vunpack.c.h.b16 %v459
    %v2580 = vunpack.c.l.b16 %v460
    %v2581 = vunpack.c.h.b16 %v460
    %v2582 = vunpack.c.l.b16 %v461
    %v2583 = vunpack.c.h.b16 %v461
    %v2584 = vunpack.c.l.b16 %v462
    %v2585 = vunpack.c.h.b16 %v462
    %v2586 = vunpack.c.l.b16 %v463
    %v2587 = vunpack.c.h.b16 %v463
    %v2588 = vunpack.c.l.b16 %v464
    %v2589 = vunpack.c.h.b16 %v464
    %v2590 = vunpack.c.l.b16 %v465
    %v2591 = vunpack.c.h.b16 %v465
    %v2592 = vunpack.c.l.b16 %v466
    %v2593 = vunpack.c.h.b16 %v466
    %v2594 = vunpack.c.l.b16 %v467
    %v2595 = vunpack.c.h.b16 %v467
    %v2596 = vunpack.c.l.b16 %v468
    %v2597 = vunpack.c.h.b16 %v468
    %v2598 = vunpack.c.l.b16 %v469
    %v2599 = vunpack.c.h.b16 %v469
    %v2600 = vunpack.c.l.b16 %v470
    %v2601 = vunpack.c.h.b16 %v470
    %v2602 = vunpack.c.l.b16 %v471
    %v2603 = vunpack.c.h.b16 %v471
    %v2604 = vunpack.c.l.b16 %v472
    %v2605 = vunpack.c.h.b16 %v472
    %v2606 = vunpack.c.l.b16 %v473
    %v2607 = vunpack.c.h.b16 %v473
    %v2608 = vunpack.c.l.b16 %v474
    %v2609 = vunpack.c.h.b16 %v474
    %v2610 = vunpack.c.l.b16 %v475
    %v2611 = vunpack.c.h.b16 %v475
    %v2612 = vunpack.c.l.b16 %v476
    %v2613 = vunpack.c.h.b16 %v476
    %v2614 = vunpack.c.l.b16 %v477
    %v2615 = vunpack.c.h.b16 %v477
    %v2616 = vunpack.c.l.b16 %v478
    %v2617 = vunpack.c.h.b16 %v478
    %v2618 = vunpack.c.l.b16 %v479
    %v2619 = vunpack.c.h.b16 %v479
    %v2620 = vunpack.c.l.b16 %v480
    %v2621 = vunpack.c.h.b16 %v480
    %v2622 = vunpack.c.l.b16 %v481
    %v2623 = vunpack.c.h.b16 %v481
    %v2624 = vunpack.c.l.b16 %v482
    %v2625 = vunpack.c.h.b16 %v482
    %v2626 = vunpack.c.l.b16 %v483
    %v2627 = vunpack.c.h.b16 %v483
    %v2628 = vunpack.c.l.b16 %v484
    %v2629 = vunpack.c.h.b16 %v484
    %v2630 = vunpack.c.l.b16 %v485
    %v2631 = vunpack.c.h.b16 %v485
    %v2632 = vunpack.c.l.b16 %v486
    %v2633 = vunpack.c.h.b16 %v486
    %v2634 = vunpack.c.l.b16 %v487
    %v2635 = vunpack.c.h.b16 %v487
    %v2636 = vunpack.c.l.b16 %v488
    %v2637 = vunpack.c.h.b16 %v488
    %v2638 = vunpack.c.l.b16 %v489
    %v2639 = vunpack.c.h.b16 %v489
    %v2640 = vunpack.c.l.b16 %v490
    %v2641 = vunpack.c.h.b16 %v490
    %v2642 = vunpack.c.l.b16 %v491
    %v2643 = vunpack.c.h.b16 %v491
    %v2644 = vunpack.c.l.b16 %v492
    %v2645 = vunpack.c.h.b16 %v492
    %v2646 = vunpack.c.l.b16 %v493
    %v2647 = vunpack.c.h.b16 %v493
    %v2648 = vunpack.c.l.b16 %v494
    %v2649 = vunpack.c.h.b16 %v494
    %v2650 = vunpack.c.l.b16 %v495
    %v2651 = vunpack.c.h.b16 %v495
    %v2652 = vunpack.c.l.b16 %v496
    %v2653 = vunpack.c.h.b16 %v496
    %v2654 = vunpack.c.l.b16 %v497
    %v2655 = vunpack.c.h.b16 %v497
    %v2656 = vunpack.c.l.b16 %v498
    %v2657 = vunpack.c.h.b16 %v498
    %v2658 = vunpack.c.l.b16 %v499
    %v2659 = vunpack.c.h.b16 %v499
    %v2660 = vunpack.c.l.b16 %v500
    %v2661 = vunpack.c.h.b16 %v500
    %v2662 = vunpack.c.l.b16 %v501
    %v2663 = vunpack.c.h.b16 %v501
    %v2664 = vunpack.c.l.b16 %v502
    %v2665 = vunpack.c.h.b16 %v502
    %v2666 = vunpack.c.l.b16 %v503
    %v2667 = vunpack.c.h.b16 %v503
    %v2668 = vunpack.c.l.b16 %v504
    %v2669 = vunpack.c.h.b16 %v504
    %v2670 = vunpack.c.l.b16 %v505
    %v2671 = vunpack.c.h.b16 %v505
    %v2672 = vunpack.c.l.b16 %v506
    %v2673 = vunpack.c.h.b16 %v506
    %v2674 = vunpack.c.l.b16 %v507
    %v2675 = vunpack.c.h.b16 %v507
    %v2676 = vunpack.c.l.b16 %v508
    %v2677 = vunpack.c.h.b16 %v508
    %v2678 = vunpack.c.l.b16 %v509
    %v2679 = vunpack.c.h.b16 %v509
    %v2680 = vunpack.c.l.b16 %v510
    %v2681 = vunpack.c.h.b16 %v510
    %v2682 = vunpack.c.l.b16 %v511
    %v2683 = vunpack.c.h.b16 %v511
    %v2684 = vunpack.c.l.b16 %v512
    %v2685 = vunpack.c.h.b16 %v512
    %v2686 = vunpack.c.l.b16 %v513
    %v2687 = vunpack.c.h.b16 %v513
    %v2688 = vunpack.c.l.b16 %v514
    %v2689 = vunpack.c.h.b16 %v514
    %v2690 = vunpack.c.l.b16 %v515
    %v2691 = vunpack.c.h.b16 %v515
    %v2692 = vunpack.c.l.b16 %v516
    %v2693 = vunpack.c.h.b16 %v516
    %v2694 = vunpack.c.l.b16 %v517
    %v2695 = vunpack.c.h.b16 %v517
    %v2696 = vunpack.c.l.b16 %v518
    %v2697 = vunpack.c.h.b16 %v518
    %v2698 = vunpack.c.l.b16 %v519
    %v2699 = vunpack.c.h.b16 %v519
    %v2700 = vunpack.c.l.b16 %v520
    %v2701 = vunpack.c.h.b16 %v520
    %v2702 = vunpack.c.l.b16 %v521
    %v2703 = vunpack.c.h.b16 %v521
    %v2704 = vunpack.c.l.b16 %v522
    %v2705 = vunpack.c.h.b16 %v522
    %v2706 = vunpack.c.l.b16 %v523
    %v2707 = vunpack.c.h.b16 %v523
    %v2708 = vunpack.c.l.b16 %v524
    %v2709 = vunpack.c.h.b16 %v524
    %v2710 = vunpack.c.l.b16 %v525
    %v2711 = vunpack.c.h.b16 %v525
    %v2712 = vunpack.c.l.b16 %v526
    %v2713 = vunpack.c.h.b16 %v526
    %v2714 = vunpack.c.l.b16 %v527
    %v2715 = vunpack.c.h.b16 %v527
    %v2716 = vunpack.c.l.b16 %v528
    %v2717 = vunpack.c.h.b16 %v528
    %v2718 = vunpack.c.l.b16 %v529
    %v2719 = vunpack.c.h.b16 %v529
    %v2720 = vunpack.c.l.b16 %v530
    %v2721 = vunpack.c.h.b16 %v530
    %v2722 = vunpack.c.l.b16 %v531
    %v2723 = vunpack.c.h.b16 %v531
    %v2724 = vunpack.c.l.b16 %v532
    %v2725 = vunpack.c.h.b16 %v532
    %v2726 = vunpack.c.l.b16 %v533
    %v2727 = vunpack.c.h.b16 %v533
    %v2728 = vunpack.c.l.b16 %v534
    %v2729 = vunpack.c.h.b16 %v534
    %v2730 = vunpack.c.l.b16 %v535
    %v2731 = vunpack.c.h.b16 %v535
    %v2732 = vunpack.c.l.b16 %v536
    %v2733 = vunpack.c.h.b16 %v536
    %v2734 = vunpack.c.l.b16 %v537
    %v2735 = vunpack.c.h.b16 %v537
    %v2736 = vunpack.c.l.b16 %v538
    %v2737 = vunpack.c.h.b16 %v538
    %v2738 = vunpack.c.l.b16 %v539
    %v2739 = vunpack.c.h.b16 %v539
    %v2740 = vunpack.c.l.b16 %v540
    %v2741 = vunpack.c.h.b16 %v540
    %v2742 = vunpack.c.l.b16 %v541
    %v2743 = vunpack.c.h.b16 %v541
    %v2744 = vunpack.c.l.b16 %v542
    %v2745 = vunpack.c.h.b16 %v542
    %v2746 = vunpack.c.l.b16 %v543
    %v2747 = vunpack.c.h.b16 %v543
    %v2748 = vunpack.c.l.b16 %v544
    %v2749 = vunpack.c.h.b16 %v544
    %v2750 = vunpack.c.l.b16 %v545
    %v2751 = vunpack.c.h.b16 %v545
    %v2752 = vunpack.c.l.b16 %v546
    %v2753 = vunpack.c.h.b16 %v546
    %v2754 = vunpack.c.l.b16 %v547
    %v2755 = vunpack.c.h.b16 %v547
    %v2756 = vunpack.c.l.b16 %v548
    %v2757 = vunpack.c.h.b16 %v548
    %v2758 = vunpack.c.l.b16 %v549
    %v2759 = vunpack.c.h.b16 %v549
    %v2760 = vunpack.c.l.b16 %v550
    %v2761 = vunpack.c.h.b16 %v550
    %v2762 = vunpack.c.l.b16 %v551
    %v2763 = vunpack.c.h.b16 %v551
    %v2764 = vunpack.c.l.b16 %v552
    %v2765 = vunpack.c.h.b16 %v552
    %v2766 = vunpack.c.l.b16 %v553
    %v2767 = vunpack.c.h.b16 %v553
    %v2768 = vunpack.c.l.b16 %v554
    %v2769 = vunpack.c.h.b16 %v554
    %v2770 = vunpack.c.l.b16 %v555
    %v2771 = vunpack.c.h.b16 %v555
    %v2772 = vunpack.c.l.b16 %v556
    %v2773 = vunpack.c.h.b16 %v556
    %v2774 = vunpack.c.l.b16 %v557
    %v2775 = vunpack.c.h.b16 %v557
    %v2776 = vunpack.c.l.b16 %v558
    %v2777 = vunpack.c.h.b16 %v558
    %v2778 = vunpack.c.l.b16 %v559
    %v2779 = vunpack.c.h.b16 %v559
    %v2780 = vunpack.c.l.b16 %v560
    %v2781 = vunpack.c.h.b16 %v560
    %v2782 = vunpack.c.l.b16 %v561
    %v2783 = vunpack.c.h.b16 %v561
    %v2784 = vunpack.c.l.b16 %v562
    %v2785 = vunpack.c.h.b16 %v562
    %v2786 = vunpack.c.l.b16 %v563
    %v2787 = vunpack.c.h.b16 %v563
    %v2788 = vunpack.c.l.b16 %v564
    %v2789 = vunpack.c.h.b16 %v564
    %v2790 = vunpack.c.l.b16 %v565
    %v2791 = vunpack.c.h.b16 %v565
    %v2792 = vunpack.c.l.b16 %v566
    %v2793 = vunpack.c.h.b16 %v566
    %v2794 = vunpack.c.l.b16 %v567
    %v2795 = vunpack.c.h.b16 %v567
    %v2796 = vunpack.c.l.b16 %v568
    %v2797 = vunpack.c.h.b16 %v568
    %v2798 = vunpack.c.l.b16 %v569
    %v2799 = vunpack.c.h.b16 %v569
    %v2800 = vunpack.c.l.b16 %v570
    %v2801 = vunpack.c.h.b16 %v570
    %v2802 = vunpack.c.l.b16 %v571
    %v2803 = vunpack.c.h.b16 %v571
    %v2804 = vunpack.c.l.b16 %v572
    %v2805 = vunpack.c.h.b16 %v572
    %v2806 = vunpack.c.l.b16 %v573
    %v2807 = vunpack.c.h.b16 %v573
    %v2808 = vunpack.c.l.b16 %v574
    %v2809 = vunpack.c.h.b16 %v574
    %v2810 = vunpack.c.l.b16 %v575
    %v2811 = vunpack.c.h.b16 %v575
    %v2812 = vunpack.c.l.b16 %v576
    %v2813 = vunpack.c.h.b16 %v576
    %v2814 = vunpack.c.l.b16 %v577
    %v2815 = vunpack.c.h.b16 %v577
    %v2816 = vunpack.c.l.b16 %v578
    %v2817 = vunpack.c.h.b16 %v578
    %v2818 = vunpack.c.l.b16 %v579
    %v2819 = vunpack.c.h.b16 %v579
    %v2820 = vunpack.c.l.b16 %v580
    %v2821 = vunpack.c.h.b16 %v580
    %v2822 = vunpack.c.l.b16 %v581
    %v2823 = vunpack.c.h.b16 %v581
    %v2824 = vunpack.c.l.b16 %v582
    %v2825 = vunpack.c.h.b16 %v582
    %v2826 = vunpack.c.l.b16 %v583
    %v2827 = vunpack.c.h.b16 %v583
    %v2828 = vunpack.c.l.b16 %v584
    %v2829 = vunpack.c.h.b16 %v584
    %v2830 = vunpack.c.l.b16 %v585
    %v2831 = vunpack.c.h.b16 %v585
    %v2832 = vunpack.c.l.b16 %v586
    %v2833 = vunpack.c.h.b16 %v586
    %v2834 = vunpack.c.l.b16 %v587
    %v2835 = vunpack.c.h.b16 %v587
    %v2836 = vunpack.c.l.b16 %v588
    %v2837 = vunpack.c.h.b16 %v588
    %v2838 = vunpack.c.l.b16 %v589
    %v2839 = vunpack.c.h.b16 %v589
    %v2840 = vunpack.c.l.b16 %v590
    %v2841 = vunpack.c.h.b16 %v590
    %v2842 = vunpack.c.l.b16 %v591
    %v2843 = vunpack.c.h.b16 %v591
    %v2844 = vunpack.c.l.b16 %v592
    %v2845 = vunpack.c.h.b16 %v592
    %v2846 = vunpack.c.l.b16 %v593
    %v2847 = vunpack.c.h.b16 %v593
    %v2848 = vunpack.c.l.b16 %v594
    %v2849 = vunpack.c.h.b16 %v594
    %v2850 = vunpack.c.l.b16 %v595
    %v2851 = vunpack.c.h.b16 %v595
    %v2852 = vunpack.c.l.b16 %v596
    %v2853 = vunpack.c.h.b16 %v596
    %v2854 = vunpack.c.l.b16 %v597
    %v2855 = vunpack.c.h.b16 %v597
    %v2856 = vunpack.c.l.b16 %v598
    %v2857 = vunpack.c.h.b16 %v598
    %v2858 = vunpack.c.l.b16 %v599
    %v2859 = vunpack.c.h.b16 %v599
    %v2860 = vunpack.c.l.b16 %v600
    %v2861 = vunpack.c.h.b16 %v600
    %v2862 = vunpack.c.l.b16 %v601
    %v2863 = vunpack.c.h.b16 %v601
    %v2864 = vunpack.c.l.b16 %v602
    %v2865 = vunpack.c.h.b16 %v602
    %v2866 = vunpack.c.l.b16 %v603
    %v2867 = vunpack.c.h.b16 %v603
    %v2868 = vunpack.c.l.b16 %v604
    %v2869 = vunpack.c.h.b16 %v604
    %v2870 = vunpack.c.l.b16 %v605
    %v2871 = vunpack.c.h.b16 %v605
    %v2872 = vunpack.c.l.b16 %v606
    %v2873 = vunpack.c.h.b16 %v606
    %v2874 = vunpack.c.l.b16 %v607
    %v2875 = vunpack.c.h.b16 %v607
    %v2876 = vunpack.c.l.b16 %v608
    %v2877 = vunpack.c.h.b16 %v608
    %v2878 = vunpack.c.l.b16 %v609
    %v2879 = vunpack.c.h.b16 %v609
    %v2880 = vunpack.c.l.b16 %v610
    %v2881 = vunpack.c.h.b16 %v610
    %v2882 = vunpack.c.l.b16 %v611
    %v2883 = vunpack.c.h.b16 %v611
    %v2884 = vunpack.c.l.b16 %v612
    %v2885 = vunpack.c.h.b16 %v612
    %v2886 = vunpack.c.l.b16 %v613
    %v2887 = vunpack.c.h.b16 %v613
    %v2888 = vunpack.c.l.b16 %v614
    %v2889 = vunpack.c.h.b16 %v614
    %v2890 = vunpack.c.l.b16 %v615
    %v2891 = vunpack.c.h.b16 %v615
    %v2892 = vunpack.c.l.b16 %v616
    %v2893 = vunpack.c.h.b16 %v616
    %v2894 = vunpack.c.l.b16 %v617
    %v2895 = vunpack.c.h.b16 %v617
    %v2896 = vunpack.c.l.b16 %v618
    %v2897 = vunpack.c.h.b16 %v618
    %v2898 = vunpack.c.l.b16 %v619
    %v2899 = vunpack.c.h.b16 %v619
    %v2900 = vunpack.c.l.b16 %v620
    %v2901 = vunpack.c.h.b16 %v620
    %v2902 = vunpack.c.l.b16 %v621
    %v2903 = vunpack.c.h.b16 %v621
    %v2904 = vunpack.c.l.b16 %v622
    %v2905 = vunpack.c.h.b16 %v622
    %v2906 = vunpack.c.l.b16 %v623
    %v2907 = vunpack.c.h.b16 %v623
    %v2908 = vunpack.c.l.b16 %v624
    %v2909 = vunpack.c.h.b16 %v624
    %v2910 = vunpack.c.l.b16 %v625
    %v2911 = vunpack.c.h.b16 %v625
    %v2912 = vunpack.c.l.b16 %v626
    %v2913 = vunpack.c.h.b16 %v626
    %v2914 = vunpack.c.l.b16 %v627
    %v2915 = vunpack.c.h.b16 %v627
    %v2916 = vunpack.c.l.b16 %v628
    %v2917 = vunpack.c.h.b16 %v628
    %v2918 = vunpack.c.l.b16 %v629
    %v2919 = vunpack.c.h.b16 %v629
    %v2920 = vunpack.c.l.b16 %v630
    %v2921 = vunpack.c.h.b16 %v630
    %v2922 = vunpack.c.l.b16 %v631
    %v2923 = vunpack.c.h.b16 %v631
    %v2924 = vunpack.c.l.b16 %v632
    %v2925 = vunpack.c.h.b16 %v632
    %v2926 = vunpack.c.l.b16 %v633
    %v2927 = vunpack.c.h.b16 %v633
    %v2928 = vunpack.c.l.b16 %v634
    %v2929 = vunpack.c.h.b16 %v634
    %v2930 = vunpack.c.l.b16 %v635
    %v2931 = vunpack.c.h.b16 %v635
    %v2932 = vunpack.c.l.b16 %v636
    %v2933 = vunpack.c.h.b16 %v636
    %v2934 = vunpack.c.l.b16 %v637
    %v2935 = vunpack.c.h.b16 %v637
    %v2936 = vunpack.c.l.b16 %v638
    %v2937 = vunpack.c.h.b16 %v638
    %v2938 = vunpack.c.l.b16 %v639
    %v2939 = vunpack.c.h.b16 %v639
    %v2940 = vunpack.c.l.b16 %v640
    %v2941 = vunpack.c.h.b16 %v640
    %v2942 = vunpack.c.l.b16 %v641
    %v2943 = vunpack.c.h.b16 %v641
    %v2944 = vunpack.c.l.b16 %v642
    %v2945 = vunpack.c.h.b16 %v642
    %v2946 = vunpack.c.l.b16 %v643
    %v2947 = vunpack.c.h.b16 %v643
    %v2948 = vunpack.c.l.b16 %v644
    %v2949 = vunpack.c.h.b16 %v644
    %v2950 = vunpack.c.l.b16 %v645
    %v2951 = vunpack.c.h.b16 %v645
    %v2952 = vunpack.c.l.b16 %v646
    %v2953 = vunpack.c.h.b16 %v646
    %v2954 = vunpack.c.l.b16 %v647
    %v2955 = vunpack.c.h.b16 %v647
    %v2956 = vunpack.c.l.b16 %v648
    %v2957 = vunpack.c.h.b16 %v648
    %v2958 = vunpack.c.l.b16 %v649
    %v2959 = vunpack.c.h.b16 %v649
    %v2960 = vunpack.c.l.b16 %v650
    %v2961 = vunpack.c.h.b16 %v650
    %v2962 = vunpack.c.l.b16 %v651
    %v2963 = vunpack.c.h.b16 %v651
    %v2964 = vunpack.c.l.b16 %v652
    %v2965 = vunpack.c.h.b16 %v652
    %v2966 = vunpack.c.l.b16 %v653
    %v2967 = vunpack.c.h.b16 %v653
    %v2968 = vunpack.c.l.b16 %v654
    %v2969 = vunpack.c.h.b16 %v654
    %v2970 = vunpack.c.l.b16 %v655
    %v2971 = vunpack.c.h.b16 %v655
    %v2972 = vunpack.c.l.b16 %v656
    %v2973 = vunpack.c.h.b16 %v656
    %v2974 = vunpack.c.l.b16 %v657
    %v2975 = vunpack.c.h.b16 %v657
    %v2976 = vunpack.c.l.b16 %v658
    %v2977 = vunpack.c.h.b16 %v658
    %v2978 = vunpack.c.l.b16 %v659
    %v2979 = vunpack.c.h.b16 %v659
    %v2980 = vunpack.c.l.b16 %v660
    %v2981 = vunpack.c.h.b16 %v660
    %v2982 = vunpack.c.l.b16 %v661
    %v2983 = vunpack.c.h.b16 %v661
    %v2984 = vunpack.c.l.b16 %v662
    %v2985 = vunpack.c.h.b16 %v662
    %v2986 = vunpack.c.l.b16 %v663
    %v2987 = vunpack.c.h.b16 %v663
    %v2988 = vunpack.c.l.b16 %v664
    %v2989 = vunpack.c.h.b16 %v664
    %v2990 = vunpack.c.l.b16 %v665
    %v2991 = vunpack.c.h.b16 %v665
    %v2992 = vunpack.c.l.b16 %v666
    %v2993 = vunpack.c.h.b16 %v666
    %v2994 = vunpack.c.l.b16 %v667
    %v2995 = vunpack.c.h.b16 %v667
    %v2996 = vunpack.c.l.b16 %v668
    %v2997 = vunpack.c.h.b16 %v668
    %v2998 = vunpack.c.l.b16 %v669
    %v2999 = vunpack.c.h.b16 %v669
    %v3000 = vunpack.c.l.b16 %v670
    %v3001 = vunpack.c.h.b16 %v670
    %v3002 = vunpack.c.l.b16 %v671
    %v3003 = vunpack.c.h.b16 %v671
    %v3004 = vunpack.c.l.b16 %v672
    %v3005 = vunpack.c.h.b16 %v672
    %v3006 = vunpack.c.l.b16 %v673
    %v3007 = vunpack.c.h.b16 %v673
    %v3008 = vunpack.c.l.b16 %v674
    %v3009 = vunpack.c.h.b16 %v674
    %v3010 = vunpack.c.l.b16 %v675
    %v3011 = vunpack.c.h.b16 %v675
    %v3012 = vunpack.c.l.b16 %v676
    %v3013 = vunpack.c.h.b16 %v676
    %v3014 = vunpack.c.l.b16 %v677
    %v3015 = vunpack.c.h.b16 %v677
    %v3016 = vunpack.c.l.b16 %v678
    %v3017 = vunpack.c.h.b16 %v678
    %v3018 = vunpack.c.l.b16 %v679
    %v3019 = vunpack.c.h.b16 %v679
    %v3020 = vunpack.c.l.b16 %v680
    %v3021 = vunpack.c.h.b16 %v680
    %v3022 = vunpack.c.l.b16 %v681
    %v3023 = vunpack.c.h.b16 %v681
    %v3024 = vunpack.c.l.b16 %v682
    %v3025 = vunpack.c.h.b16 %v682
    %v3026 = vunpack.c.l.b16 %v683
    %v3027 = vunpack.c.h.b16 %v683
    %v3028 = vunpack.c.l.b16 %v684
    %v3029 = vunpack.c.h.b16 %v684
    %v3030 = vunpack.c.l.b16 %v685
    %v3031 = vunpack.c.h.b16 %v685
    %v3032 = vunpack.c.l.b16 %v686
    %v3033 = vunpack.c.h.b16 %v686
    %v3034 = vunpack.c.l.b16 %v687
    %v3035 = vunpack.c.h.b16 %v687
    %v3036 = vunpack.c.l.b16 %v688
    %v3037 = vunpack.c.h.b16 %v688
    %v3038 = vunpack.c.l.b16 %v689
    %v3039 = vunpack.c.h.b16 %v689
    %v3040 = vunpack.c.l.b16 %v690
    %v3041 = vunpack.c.h.b16 %v690
    %v3042 = vunpack.c.l.b16 %v691
    %v3043 = vunpack.c.h.b16 %v691
    %v3044 = vunpack.c.l.b16 %v692
    %v3045 = vunpack.c.h.b16 %v692
    %v3046 = vunpack.c.l.b16 %v693
    %v3047 = vunpack.c.h.b16 %v693
    %v3048 = vunpack.c.l.b16 %v694
    %v3049 = vunpack.c.h.b16 %v694
    %v3050 = vunpack.c.l.b16 %v695
    %v3051 = vunpack.c.h.b16 %v695
    %v3052 = vunpack.c.l.b16 %v696
    %v3053 = vunpack.c.h.b16 %v696
    %v3054 = vunpack.c.l.b16 %v697
    %v3055 = vunpack.c.h.b16 %v697
    %v3056 = vunpack.c.l.b16 %v698
    %v3057 = vunpack.c.h.b16 %v698
    %v3058 = vunpack.c.l.b16 %v699
    %v3059 = vunpack.c.h.b16 %v699
    %v3060 = vunpack.c.l.b16 %v700
    %v3061 = vunpack.c.h.b16 %v700
    %v3062 = vunpack.c.l.b16 %v701
    %v3063 = vunpack.c.h.b16 %v701
    %v3064 = vunpack.c.l.b16 %v702
    %v3065 = vunpack.c.h.b16 %v702
    %v3066 = vunpack.c.l.b16 %v703
    %v3067 = vunpack.c.h.b16 %v703
    %v3068 = vunpack.c.l.b16 %v704
    %v3069 = vunpack.c.h.b16 %v704
    %v3070 = vunpack.c.l.b16 %v705
    %v3071 = vunpack.c.h.b16 %v705
    %v3072 = vunpack.c.l.b16 %v706
    %v3073 = vunpack.c.h.b16 %v706
    %v3074 = vunpack.c.l.b16 %v707
    %v3075 = vunpack.c.h.b16 %v707
    %v3076 = vunpack.c.l.b16 %v708
    %v3077 = vunpack.c.h.b16 %v708
    %v3078 = vunpack.c.l.b16 %v709
    %v3079 = vunpack.c.h.b16 %v709
    %v3080 = vunpack.c.l.b16 %v710
    %v3081 = vunpack.c.h.b16 %v710
    %v3082 = vunpack.c.l.b16 %v711
    %v3083 = vunpack.c.h.b16 %v711
    %v3084 = vunpack.c.l.b16 %v712
    %v3085 = vunpack.c.h.b16 %v712
    %v3086 = vunpack.c.l.b16 %v713
    %v3087 = vunpack.c.h.b16 %v713
    %v3088 = vunpack.c.l.b16 %v714
    %v3089 = vunpack.c.h.b16 %v714
    %v3090 = vunpack.c.l.b16 %v715
    %v3091 = vunpack.c.h.b16 %v715
    %v3092 = vunpack.c.l.b16 %v716
    %v3093 = vunpack.c.h.b16 %v716
    %v3094 = vunpack.c.l.b16 %v717
    %v3095 = vunpack.c.h.b16 %v717
    %v3096 = vunpack.c.l.b16 %v718
    %v3097 = vunpack.c.h.b16 %v718
    %v3098 = vunpack.c.l.b16 %v719
    %v3099 = vunpack.c.h.b16 %v719
    %v3100 = vunpack.c.l.b16 %v720
    %v3101 = vunpack.c.h.b16 %v720
    %v3102 = vunpack.c.l.b16 %v721
    %v3103 = vunpack.c.h.b16 %v721
    %v3104 = vunpack.c.l.b16 %v722
    %v3105 = vunpack.c.h.b16 %v722
    %v3106 = vunpack.c.l.b16 %v723
    %v3107 = vunpack.c.h.b16 %v723
    %v3108 = vunpack.c.l.b16 %v724
    %v3109 = vunpack.c.h.b16 %v724
    %v3110 = vunpack.c.l.b16 %v725
    %v3111 = vunpack.c.h.b16 %v725
    %v3112 = vunpack.c.l.b16 %v726
    %v3113 = vunpack.c.h.b16 %v726
    %v3114 = vunpack.c.l.b16 %v727
    %v3115 = vunpack.c.h.b16 %v727
    %v3116 = vunpack.c.l.b16 %v728
    %v3117 = vunpack.c.h.b16 %v728
    %v3118 = vunpack.c.l.b16 %v729
    %v3119 = vunpack.c.h.b16 %v729
    %v3120 = vunpack.c.l.b16 %v730
    %v3121 = vunpack.c.h.b16 %v730
    %v3122 = vunpack.c.l.b16 %v731
    %v3123 = vunpack.c.h.b16 %v731
    %v3124 = vunpack.c.l.b16 %v732
    %v3125 = vunpack.c.h.b16 %v732
    %v3126 = vunpack.c.l.b16 %v733
    %v3127 = vunpack.c.h.b16 %v733
    %v3128 = vunpack.c.l.b16 %v734
    %v3129 = vunpack.c.h.b16 %v734
    %v3130 = vunpack.c.l.b16 %v735
    %v3131 = vunpack.c.h.b16 %v735
    %v3132 = vunpack.c.l.b16 %v736
    %v3133 = vunpack.c.h.b16 %v736
    %v3134 = vunpack.c.l.b16 %v737
    %v3135 = vunpack.c.h.b16 %v737
    %v3136 = vunpack.c.l.b16 %v738
    %v3137 = vunpack.c.h.b16 %v738
    %v3138 = vunpack.c.l.b16 %v739
    %v3139 = vunpack.c.h.b16 %v739
    %v3140 = vunpack.c.l.b16 %v740
    %v3141 = vunpack.c.h.b16 %v740
    %v3142 = vunpack.c.l.b16 %v741
    %v3143 = vunpack.c.h.b16 %v741
    %v3144 = vunpack.c.l.b16 %v742
    %v3145 = vunpack.c.h.b16 %v742
    %v3146 = vunpack.c.l.b16 %v743
    %v3147 = vunpack.c.h.b16 %v743
    %v3148 = vunpack.c.l.b16 %v744
    %v3149 = vunpack.c.h.b16 %v744
    %v3150 = vunpack.c.l.b16 %v745
    %v3151 = vunpack.c.h.b16 %v745
    %v3152 = vunpack.c.l.b16 %v746
    %v3153 = vunpack.c.h.b16 %v746
    %v3154 = vunpack.c.l.b16 %v747
    %v3155 = vunpack.c.h.b16 %v747
    %v3156 = vunpack.c.l.b16 %v748
    %v3157 = vunpack.c.h.b16 %v748
    %v3158 = vunpack.c.l.b16 %v749
    %v3159 = vunpack.c.h.b16 %v749
    %v3160 = vunpack.c.l.b16 %v750
    %v3161 = vunpack.c.h.b16 %v750
    %v3162 = vunpack.c.l.b16 %v751
    %v3163 = vunpack.c.h.b16 %v751
    %v3164 = vunpack.c.l.b16 %v752
    %v3165 = vunpack.c.h.b16 %v752
    %v3166 = vunpack.c.l.b16 %v753
    %v3167 = vunpack.c.h.b16 %v753
    %v3168 = vunpack.c.l.b16 %v754
    %v3169 = vunpack.c.h.b16 %v754
    %v3170 = vunpack.c.l.b16 %v755
    %v3171 = vunpack.c.h.b16 %v755
    %v3172 = vunpack.c.l.b16 %v756
    %v3173 = vunpack.c.h.b16 %v756
    %v3174 = vunpack.c.l.b16 %v757
    %v3175 = vunpack.c.h.b16 %v757
    %v3176 = vunpack.c.l.b16 %v758
    %v3177 = vunpack.c.h.b16 %v758
    %v3178 = vunpack.c.l.b16 %v759
    %v3179 = vunpack.c.h.b16 %v759
    %v3180 = vunpack.c.l.b16 %v760
    %v3181 = vunpack.c.h.b16 %v760
    %v3182 = vunpack.c.l.b16 %v761
    %v3183 = vunpack.c.h.b16 %v761
    %v3184 = vunpack.c.l.b16 %v762
    %v3185 = vunpack.c.h.b16 %v762
    %v3186 = vunpack.c.l.b16 %v763
    %v3187 = vunpack.c.h.b16 %v763
    %v3188 = vunpack.c.l.b16 %v764
    %v3189 = vunpack.c.h.b16 %v764
    %v3190 = vunpack.c.l.b16 %v765
    %v3191 = vunpack.c.h.b16 %v765
    %v3192 = vunpack.c.l.b16 %v766
    %v3193 = vunpack.c.h.b16 %v766
    %v3194 = vunpack.c.l.b16 %v767
    %v3195 = vunpack.c.h.b16 %v767
    %v3196 = vunpack.c.l.b16 %v768
    %v3197 = vunpack.c.h.b16 %v768
    %v3198 = vunpack.c.l.b16 %v769
    %v3199 = vunpack.c.h.b16 %v769
    %v3200 = vunpack.c.l.b16 %v770
    %v3201 = vunpack.c.h.b16 %v770
    %v3202 = vunpack.c.l.b16 %v771
    %v3203 = vunpack.c.h.b16 %v771
    %v3204 = vunpack.c.l.b16 %v772
    %v3205 = vunpack.c.h.b16 %v772
    %v3206 = vunpack.c.l.b16 %v773
    %v3207 = vunpack.c.h.b16 %v773
    %v3208 = vunpack.c.l.b16 %v774
    %v3209 = vunpack.c.h.b16 %v774
    %v3210 = vunpack.c.l.b16 %v775
    %v3211 = vunpack.c.h.b16 %v775
    %v3212 = vunpack.c.l.b16 %v776
    %v3213 = vunpack.c.h.b16 %v776
    %v3214 = vunpack.c.l.b16 %v777
    %v3215 = vunpack.c.h.b16 %v777
    %v3216 = vunpack.c.l.b16 %v778
    %v3217 = vunpack.c.h.b16 %v778
    %v3218 = vunpack.c.l.b16 %v779
    %v3219 = vunpack.c.h.b16 %v779
    %v3220 = vunpack.c.l.b16 %v780
    %v3221 = vunpack.c.h.b16 %v780
    %v3222 = vunpack.c.l.b16 %v781
    %v3223 = vunpack.c.h.b16 %v781
    %v3224 = vunpack.c.l.b16 %v782
    %v3225 = vunpack.c.h.b16 %v782
    %v3226 = vunpack.c.l.b16 %v783
    %v3227 = vunpack.c.h.b16 %v783
    %v3228 = vunpack.c.l.b16 %v784
    %v3229 = vunpack.c.h.b16 %v784
    %v3230 = vunpack.c.l.b16 %v785
    %v3231 = vunpack.c.h.b16 %v785
    %v3232 = vunpack.c.l.b16 %v786
    %v3233 = vunpack.c.h.b16 %v786
    %v3234 = vunpack.c.l.b16 %v787
    %v3235 = vunpack.c.h.b16 %v787
    %v3236 = vunpack.c.l.b16 %v788
    %v3237 = vunpack.c.h.b16 %v788
    %v3238 = vunpack.c.l.b16 %v789
    %v3239 = vunpack.c.h.b16 %v789
    %v3240 = vunpack.c.l.b16 %v790
    %v3241 = vunpack.c.h.b16 %v790
    %v3242 = vunpack.c.l.b16 %v791
    %v3243 = vunpack.c.h.b16 %v791
    %v3244 = vunpack.c.l.b16 %v792
    %v3245 = vunpack.c.h.b16 %v792
    %v3246 = vunpack.c.l.b16 %v793
    %v3247 = vunpack.c.h.b16 %v793
    %v3248 = vunpack.c.l.b16 %v794
    %v3249 = vunpack.c.h.b16 %v794
    %v3250 = vunpack.c.l.b16 %v795
    %v3251 = vunpack.c.h.b16 %v795
    %v3252 = vunpack.c.l.b16 %v796
    %v3253 = vunpack.c.h.b16 %v796
    %v3254 = vunpack.c.l.b16 %v797
    %v3255 = vunpack.c.h.b16 %v797
    %v3256 = vunpack.c.l.b16 %v798
    %v3257 = vunpack.c.h.b16 %v798
    %v3258 = vunpack.c.l.b16 %v799
    %v3259 = vunpack.c.h.b16 %v799
    %v3260 = vunpack.c.l.b16 %v800
    %v3261 = vunpack.c.h.b16 %v800
    %v3262 = vunpack.c.l.b16 %v801
    %v3263 = vunpack.c.h.b16 %v801
    %v3264 = vunpack.c.l.b16 %v802
    %v3265 = vunpack.c.h.b16 %v802
    %v3266 = vunpack.c.l.b16 %v803
    %v3267 = vunpack.c.h.b16 %v803
    %v3268 = vunpack.c.l.b16 %v804
    %v3269 = vunpack.c.h.b16 %v804
    %v3270 = vunpack.c.l.b16 %v805
    %v3271 = vunpack.c.h.b16 %v805
    %v3272 = vunpack.c.l.b16 %v806
    %v3273 = vunpack.c.h.b16 %v806
    %v3274 = vunpack.c.l.b16 %v807
    %v3275 = vunpack.c.h.b16 %v807
    %v3276 = vunpack.c.l.b16 %v808
    %v3277 = vunpack.c.h.b16 %v808
    %v3278 = vunpack.c.l.b16 %v809
    %v3279 = vunpack.c.h.b16 %v809
    %v3280 = vunpack.c.l.b16 %v810
    %v3281 = vunpack.c.h.b16 %v810
    %v3282 = vunpack.c.l.b16 %v811
    %v3283 = vunpack.c.h.b16 %v811
    %v3284 = vunpack.c.l.b16 %v812
    %v3285 = vunpack.c.h.b16 %v812
    %v3286 = vunpack.c.l.b16 %v813
    %v3287 = vunpack.c.h.b16 %v813
    %v3288 = vunpack.c.l.b16 %v814
    %v3289 = vunpack.c.h.b16 %v814
    %v3290 = vunpack.c.l.b16 %v815
    %v3291 = vunpack.c.h.b16 %v815
    %v3292 = vunpack.c.l.b16 %v816
    %v3293 = vunpack.c.h.b16 %v816
    %v3294 = vunpack.c.l.b16 %v817
    %v3295 = vunpack.c.h.b16 %v817
    %v3296 = vunpack.c.l.b16 %v818
    %v3297 = vunpack.c.h.b16 %v818
    %v3298 = vunpack.c.l.b16 %v819
    %v3299 = vunpack.c.h.b16 %v819
    %v3300 = vunpack.c.l.b16 %v820
    %v3301 = vunpack.c.h.b16 %v820
    %v3302 = vunpack.c.l.b16 %v821
    %v3303 = vunpack.c.h.b16 %v821
    %v3304 = vunpack.c.l.b16 %v822
    %v3305 = vunpack.c.h.b16 %v822
    %v3306 = vunpack.c.l.b16 %v823
    %v3307 = vunpack.c.h.b16 %v823
    %v3308 = vunpack.c.l.b16 %v824
    %v3309 = vunpack.c.h.b16 %v824
    %v3310 = vunpack.c.l.b16 %v825
    %v3311 = vunpack.c.h.b16 %v825
    %v3312 = vunpack.c.l.b16 %v826
    %v3313 = vunpack.c.h.b16 %v826
    %v3314 = vunpack.c.l.b16 %v827
    %v3315 = vunpack.c.h.b16 %v827
    %v3316 = vunpack.c.l.b16 %v828
    %v3317 = vunpack.c.h.b16 %v828
    %v3318 = vunpack.c.l.b16 %v829
    %v3319 = vunpack.c.h.b16 %v829
    %v3320 = vunpack.c.l.b16 %v830
    %v3321 = vunpack.c.h.b16 %v830
    %v3322 = vunpack.c.l.b16 %v831
    %v3323 = vunpack.c.h.b16 %v831
    %v3324 = vunpack.c.l.b16 %v832
    %v3325 = vunpack.c.h.b16 %v832
    %v3326 = vunpack.c.l.b16 %v833
    %v3327 = vunpack.c.h.b16 %v833
    %v3328 = vunpack.c.l.b16 %v834
    %v3329 = vunpack.c.h.b16 %v834
    %v3330 = vunpack.c.l.b16 %v835
    %v3331 = vunpack.c.h.b16 %v835
    %v3332 = vunpack.c.l.b16 %v836
    %v3333 = vunpack.c.h.b16 %v836
    %v3334 = vunpack.c.l.b16 %v837
    %v3335 = vunpack.c.h.b16 %v837
    %v3336 = vunpack.c.l.b16 %v838
    %v3337 = vunpack.c.h.b16 %v838
    %v3338 = vunpack.c.l.b16 %v839
    %v3339 = vunpack.c.h.b16 %v839
    %v3340 = vunpack.c.l.b16 %v840
    %v3341 = vunpack.c.h.b16 %v840
    %v3342 = vunpack.c.l.b16 %v841
    %v3343 = vunpack.c.h.b16 %v841
    %v3344 = vunpack.c.l.b16 %v842
    %v3345 = vunpack.c.h.b16 %v842
    %v3346 = vunpack.c.l.b16 %v843
    %v3347 = vunpack.c.h.b16 %v843
    %v3348 = vunpack.c.l.b16 %v844
    %v3349 = vunpack.c.h.b16 %v844
    %v3350 = vunpack.c.l.b16 %v845
    %v3351 = vunpack.c.h.b16 %v845
    %v3352 = vunpack.c.l.b16 %v846
    %v3353 = vunpack.c.h.b16 %v846
    %v3354 = vunpack.c.l.b16 %v847
    %v3355 = vunpack.c.h.b16 %v847
    %v3356 = vunpack.c.l.b16 %v848
    %v3357 = vunpack.c.h.b16 %v848
    %v3358 = vunpack.c.l.b16 %v849
    %v3359 = vunpack.c.h.b16 %v849
    %v3360 = vunpack.c.l.b16 %v850
    %v3361 = vunpack.c.h.b16 %v850
    %v3362 = vunpack.c.l.b16 %v851
    %v3363 = vunpack.c.h.b16 %v851
    %v3364 = vunpack.c.l.b16 %v852
    %v3365 = vunpack.c.h.b16 %v852
    %v3366 = vunpack.c.l.b16 %v853
    %v3367 = vunpack.c.h.b16 %v853
    %v3368 = vunpack.c.l.b16 %v854
    %v3369 = vunpack.c.h.b16 %v854
    %v3370 = vunpack.c.l.b16 %v855
    %v3371 = vunpack.c.h.b16 %v855
    %v3372 = vunpack.c.l.b16 %v856
    %v3373 = vunpack.c.h.b16 %v856
    %v3374 = vunpack.c.l.b16 %v857
    %v3375 = vunpack.c.h.b16 %v857
    %v3376 = vunpack.c.l.b16 %v858
    %v3377 = vunpack.c.h.b16 %v858
    %v3378 = vunpack.c.l.b16 %v859
    %v3379 = vunpack.c.h.b16 %v859
    %v3380 = vunpack.c.l.b16 %v860
    %v3381 = vunpack.c.h.b16 %v860
    %v3382 = vunpack.c.l.b16 %v861
    %v3383 = vunpack.c.h.b16 %v861
    %v3384 = vunpack.c.l.b16 %v862
    %v3385 = vunpack.c.h.b16 %v862
    %v3386 = vunpack.c.l.b16 %v863
    %v3387 = vunpack.c.h.b16 %v863
    %v3388 = vunpack.c.l.b16 %v864
    %v3389 = vunpack.c.h.b16 %v864
    %v3390 = vunpack.c.l.b16 %v865
    %v3391 = vunpack.c.h.b16 %v865
    %v3392 = vunpack.c.l.b16 %v866
    %v3393 = vunpack.c.h.b16 %v866
    %v3394 = vunpack.c.l.b16 %v867
    %v3395 = vunpack.c.h.b16 %v867
    %v3396 = vunpack.c.l.b16 %v868
    %v3397 = vunpack.c.h.b16 %v868
    %v3398 = vunpack.c.l.b16 %v869
    %v3399 = vunpack.c.h.b16 %v869
    %v3400 = vunpack.c.l.b16 %v870
    %v3401 = vunpack.c.h.b16 %v870
    %v3402 = vunpack.c.l.b16 %v871
    %v3403 = vunpack.c.h.b16 %v871
    %v3404 = vunpack.c.l.b16 %v872
    %v3405 = vunpack.c.h.b16 %v872
    %v3406 = vunpack.c.l.b16 %v873
    %v3407 = vunpack.c.h.b16 %v873
    %v3408 = vunpack.c.l.b16 %v874
    %v3409 = vunpack.c.h.b16 %v874
    %v3410 = vunpack.c.l.b16 %v875
    %v3411 = vunpack.c.h.b16 %v875
    %v3412 = vunpack.c.l.b16 %v876
    %v3413 = vunpack.c.h.b16 %v876
    %v3414 = vunpack.c.l.b16 %v877
    %v3415 = vunpack.c.h.b16 %v877
    %v3416 = vunpack.c.l.b16 %v878
    %v3417 = vunpack.c.h.b16 %v878
    %v3418 = vunpack.c.l.b16 %v879
    %v3419 = vunpack.c.h.b16 %v879
    %v3420 = vunpack.c.l.b16 %v880
    %v3421 = vunpack.c.h.b16 %v880
    %v3422 = vunpack.c.l.b16 %v881
    %v3423 = vunpack.c.h.b16 %v881
    %v3424 = vunpack.c.l.b16 %v882
    %v3425 = vunpack.c.h.b16 %v882
    %v3426 = vunpack.c.l.b16 %v883
    %v3427 = vunpack.c.h.b16 %v883
    %v3428 = vunpack.c.l.b16 %v884
    %v3429 = vunpack.c.h.b16 %v884
    %v3430 = vunpack.c.l.b16 %v885
    %v3431 = vunpack.c.h.b16 %v885
    %v3432 = vunpack.c.l.b16 %v886
    %v3433 = vunpack.c.h.b16 %v886
    %v3434 = vunpack.c.l.b16 %v887
    %v3435 = vunpack.c.h.b16 %v887
    %v3436 = vunpack.c.l.b16 %v888
    %v3437 = vunpack.c.h.b16 %v888
    %v3438 = vunpack.c.l.b16 %v889
    %v3439 = vunpack.c.h.b16 %v889
    %v3440 = vunpack.c.l.b16 %v890
    %v3441 = vunpack.c.h.b16 %v890
    %v3442 = vunpack.c.l.b16 %v891
    %v3443 = vunpack.c.h.b16 %v891
    %v3444 = vunpack.c.l.b16 %v892
    %v3445 = vunpack.c.h.b16 %v892
    %v3446 = vunpack.c.l.b16 %v893
    %v3447 = vunpack.c.h.b16 %v893
    %v3448 = vunpack.c.l.b16 %v894
    %v3449 = vunpack.c.h.b16 %v894
    %v3450 = vunpack.c.l.b16 %v895
    %v3451 = vunpack.c.h.b16 %v895
    %v3452 = vunpack.c.l.b16 %v896
    %v3453 = vunpack.c.h.b16 %v896
    %v3454 = vunpack.c.l.b16 %v897
    %v3455 = vunpack.c.h.b16 %v897
    %v3456 = vunpack.c.l.b16 %v898
    %v3457 = vunpack.c.h.b16 %v898
    %v3458 = vunpack.c.l.b16 %v899
    %v3459 = vunpack.c.h.b16 %v899
    %v3460 = vunpack.c.l.b16 %v900
    %v3461 = vunpack.c.h.b16 %v900
    %v3462 = vunpack.c.l.b16 %v901
    %v3463 = vunpack.c.h.b16 %v901
    %v3464 = vunpack.c.l.b16 %v902
    %v3465 = vunpack.c.h.b16 %v902
    %v3466 = vunpack.c.l.b16 %v903
    %v3467 = vunpack.c.h.b16 %v903
    %v3468 = vunpack.c.l.b16 %v904
    %v3469 = vunpack.c.h.b16 %v904
    %v3470 = vunpack.c.l.b16 %v905
    %v3471 = vunpack.c.h.b16 %v905
    %v3472 = vunpack.c.l.b16 %v906
    %v3473 = vunpack.c.h.b16 %v906
    %v3474 = vunpack.c.l.b16 %v907
    %v3475 = vunpack.c.h.b16 %v907
    %v3476 = vunpack.c.l.b16 %v908
    %v3477 = vunpack.c.h.b16 %v908
    %v3478 = vunpack.c.l.b16 %v909
    %v3479 = vunpack.c.h.b16 %v909
    %v3480 = vunpack.c.l.b16 %v910
    %v3481 = vunpack.c.h.b16 %v910
    %v3482 = vunpack.c.l.b16 %v911
    %v3483 = vunpack.c.h.b16 %v911
    %v3484 = vunpack.c.l.b16 %v912
    %v3485 = vunpack.c.h.b16 %v912
    %v3486 = vunpack.c.l.b16 %v913
    %v3487 = vunpack.c.h.b16 %v913
    %v3488 = vunpack.c.l.b16 %v914
    %v3489 = vunpack.c.h.b16 %v914
    %v3490 = vunpack.c.l.b16 %v915
    %v3491 = vunpack.c.h.b16 %v915
    %v3492 = vunpack.c.l.b16 %v916
    %v3493 = vunpack.c.h.b16 %v916
    %v3494 = vunpack.c.l.b16 %v917
    %v3495 = vunpack.c.h.b16 %v917
    %v3496 = vunpack.c.l.b16 %v918
    %v3497 = vunpack.c.h.b16 %v918
    %v3498 = vunpack.c.l.b16 %v919
    %v3499 = vunpack.c.h.b16 %v919
    %v3500 = vunpack.c.l.b16 %v920
    %v3501 = vunpack.c.h.b16 %v920
    %v3502 = vunpack.c.l.b16 %v921
    %v3503 = vunpack.c.h.b16 %v921
    %v3504 = vunpack.c.l.b16 %v922
    %v3505 = vunpack.c.h.b16 %v922
    %v3506 = vunpack.c.l.b16 %v923
    %v3507 = vunpack.c.h.b16 %v923
    %v3508 = vunpack.c.l.b16 %v924
    %v3509 = vunpack.c.h.b16 %v924
    %v3510 = vunpack.c.l.b16 %v925
    %v3511 = vunpack.c.h.b16 %v925
    %v3512 = vunpack.c.l.b16 %v926
    %v3513 = vunpack.c.h.b16 %v926
    %v3514 = vunpack.c.l.b16 %v927
    %v3515 = vunpack.c.h.b16 %v927
    %v3516 = vunpack.c.l.b16 %v928
    %v3517 = vunpack.c.h.b16 %v928
    %v3518 = vunpack.c.l.b16 %v929
    %v3519 = vunpack.c.h.b16 %v929
    %v3520 = vunpack.c.l.b16 %v930
    %v3521 = vunpack.c.h.b16 %v930
    %v3522 = vunpack.c.l.b16 %v931
    %v3523 = vunpack.c.h.b16 %v931
    %v3524 = vunpack.c.l.b16 %v932
    %v3525 = vunpack.c.h.b16 %v932
    %v3526 = vunpack.c.l.b16 %v933
    %v3527 = vunpack.c.h.b16 %v933
    %v3528 = vunpack.c.l.b16 %v934
    %v3529 = vunpack.c.h.b16 %v934
    %v3530 = vunpack.c.l.b16 %v935
    %v3531 = vunpack.c.h.b16 %v935
    %v3532 = vunpack.c.l.b16 %v936
    %v3533 = vunpack.c.h.b16 %v936
    %v3534 = vunpack.c.l.b16 %v937
    %v3535 = vunpack.c.h.b16 %v937
    %v3536 = vunpack.c.l.b16 %v938
    %v3537 = vunpack.c.h.b16 %v938
    %v3538 = vunpack.c.l.b16 %v939
    %v3539 = vunpack.c.h.b16 %v939
    %v3540 = vunpack.c.l.b16 %v940
    %v3541 = vunpack.c.h.b16 %v940
    %v3542 = vunpack.c.l.b16 %v941
    %v3543 = vunpack.c.h.b16 %v941
    %v3544 = vunpack.c.l.b16 %v942
    %v3545 = vunpack.c.h.b16 %v942
    %v3546 = vunpack.c.l.b16 %v943
    %v3547 = vunpack.c.h.b16 %v943
    %v3548 = vunpack.c.l.b16 %v944
    %v3549 = vunpack.c.h.b16 %v944
    %v3550 = vunpack.c.l.b16 %v945
    %v3551 = vunpack.c.h.b16 %v945
    %v3552 = vunpack.c.l.b16 %v946
    %v3553 = vunpack.c.h.b16 %v946
    %v3554 = vunpack.c.l.b16 %v947
    %v3555 = vunpack.c.h.b16 %v947
    %v3556 = vunpack.c.l.b16 %v948
    %v3557 = vunpack.c.h.b16 %v948
    %v3558 = vunpack.c.l.b16 %v949
    %v3559 = vunpack.c.h.b16 %v949
    %v3560 = vunpack.c.l.b16 %v950
    %v3561 = vunpack.c.h.b16 %v950
    %v3562 = vunpack.c.l.b16 %v951
    %v3563 = vunpack.c.h.b16 %v951
    %v3564 = vunpack.c.l.b16 %v952
    %v3565 = vunpack.c.h.b16 %v952
    %v3566 = vunpack.c.l.b16 %v953
    %v3567 = vunpack.c.h.b16 %v953
    %v3568 = vunpack.c.l.b16 %v954
    %v3569 = vunpack.c.h.b16 %v954
    %v3570 = vunpack.c.l.b16 %v955
    %v3571 = vunpack.c.h.b16 %v955
    %v3572 = vunpack.c.l.b16 %v956
    %v3573 = vunpack.c.h.b16 %v956
    %v3574 = vunpack.c.l.b16 %v957
    %v3575 = vunpack.c.h.b16 %v957
    %v3576 = vunpack.c.l.b16 %v958
    %v3577 = vunpack.c.h.b16 %v958
    %v3578 = vunpack.c.l.b16 %v959
    %v3579 = vunpack.c.h.b16 %v959
    %v3580 = vunpack.c.l.b16 %v960
    %v3581 = vunpack.c.h.b16 %v960
    %v3582 = vunpack.c.l.b16 %v961
    %v3583 = vunpack.c.h.b16 %v961
    %v3584 = vunpack.c.l.b16 %v962
    %v3585 = vunpack.c.h.b16 %v962
    %v3586 = vunpack.c.l.b16 %v963
    %v3587 = vunpack.c.h.b16 %v963
    %v3588 = vunpack.c.l.b16 %v964
    %v3589 = vunpack.c.h.b16 %v964
    %v3590 = vunpack.c.l.b16 %v965
    %v3591 = vunpack.c.h.b16 %v965
    %v3592 = vunpack.c.l.b16 %v966
    %v3593 = vunpack.c.h.b16 %v966
    %v3594 = vunpack.c.l.b16 %v967
    %v3595 = vunpack.c.h.b16 %v967
    %v3596 = vunpack.c.l.b16 %v968
    %v3597 = vunpack.c.h.b16 %v968
    %v3598 = vunpack.c.l.b16 %v969
    %v3599 = vunpack.c.h.b16 %v969
    %v3600 = vunpack.c.l.b16 %v970
    %v3601 = vunpack.c.h.b16 %v970
    %v3602 = vunpack.c.l.b16 %v971
    %v3603 = vunpack.c.h.b16 %v971
    %v3604 = vunpack.c.l.b16 %v972
    %v3605 = vunpack.c.h.b16 %v972
    %v3606 = vunpack.c.l.b16 %v973
    %v3607 = vunpack.c.h.b16 %v973
    %v3608 = vunpack.c.l.b16 %v974
    %v3609 = vunpack.c.h.b16 %v974
    %v3610 = vunpack.c.l.b16 %v975
    %v3611 = vunpack.c.h.b16 %v975
    %v3612 = vunpack.c.l.b16 %v976
    %v3613 = vunpack.c.h.b16 %v976
    %v3614 = vunpack.c.l.b16 %v977
    %v3615 = vunpack.c.h.b16 %v977
    %v3616 = vunpack.c.l.b16 %v978
    %v3617 = vunpack.c.h.b16 %v978
    %v3618 = vunpack.c.l.b16 %v979
    %v3619 = vunpack.c.h.b16 %v979
    %v3620 = vunpack.c.l.b16 %v980
    %v3621 = vunpack.c.h.b16 %v980
    %v3622 = vunpack.c.l.b16 %v981
    %v3623 = vunpack.c.h.b16 %v981
    %v3624 = vunpack.c.l.b16 %v982
    %v3625 = vunpack.c.h.b16 %v982
    %v3626 = vpack.c.b16 %v1916, %v1898
    %v3627 = vpack.c.b16 %v1917, %v1899
    %v3628 = vpack.c.b16 %v1918, %v1900
    %v3629 = vpack.c.b16 %v1919, %v1901
    %v3630 = vpack.c.b16 %v1920, %v1902
    %v3631 = vpack.c.b16 %v1921, %v1903
    %v3632 = vpack.c.b16 %v1922, %v1904
    %v3633 = vpack.c.b16 %v1923, %v1905
    %v3634 = vpack.c.b16 %v1924, %v1906
    %v3635 = vpack.c.b16 %v1925, %v1907
    %v3636 = vpack.c.b16 %v1926, %v1908
    %v3637 = vpack.c.b16 %v1927, %v1909
    %v3638 = vpack.c.b16 %v1928, %v1910
    %v3639 = vpack.c.b16 %v1929, %v1911
    %v3640 = vpack.c.b16 %v1930, %v1912
    %v3641 = vpack.c.b16 %v1931, %v1913
    %v3642 = vpack.c.b16 %v1932, %v1914
    %v3643 = vpack.c.b16 %v1933, %v1915
    %v3644 = vpack.c.b16 %v1952, %v1934
    %v3645 = vpack.c.b16 %v1953, %v1935
    %v3646 = vpack.c.b16 %v1954, %v1936
    %v3647 = vpack.c.b16 %v1955, %v1937
    %v3648 = vpack.c.b16 %v1956, %v1938
    %v3649 = vpack.c.b16 %v1957, %v1939
    %v3650 = vpack.c.b16 %v1958, %v1940
    %v3651 = vpack.c.b16 %v1959, %v1941
    %v3652 = vpack.c.b16 %v1960, %v1942
    %v3653 = vpack.c.b16 %v1961, %v1943
    %v3654 = vpack.c.b16 %v1962, %v1944
    %v3655 = vpack.c.b16 %v1963, %v1945
    %v3656 = vpack.c.b16 %v1964, %v1946
    %v3657 = vpack.c.b16 %v1965, %v1947
    %v3658 = vpack.c.b16 %v1966, %v1948
    %v3659 = vpack.c.b16 %v1967, %v1949
    %v3660 = vpack.c.b16 %v1968, %v1950
    %v3661 = vpack.c.b16 %v1969, %v1951
    %v3662 = vpack.c.b16 %v1988, %v1970
    %v3663 = vpack.c.b16 %v1989, %v1971
    %v3664 = vpack.c.b16 %v1990, %v1972
    %v3665 = vpack.c.b16 %v1991, %v1973
    %v3666 = vpack.c.b16 %v1992, %v1974
    %v3667 = vpack.c.b16 %v1993, %v1975
    %v3668 = vpack.c.b16 %v1994, %v1976
    %v3669 = vpack.c.b16 %v1995, %v1977
    %v3670 = vpack.c.b16 %v1996, %v1978
    %v3671 = vpack.c.b16 %v1997, %v1979
    %v3672 = vpack.c.b16 %v1998, %v1980
    %v3673 = vpack.c.b16 %v1999, %v1981
    %v3674 = vpack.c.b16 %v2000, %v1982
    %v3675 = vpack.c.b16 %v2001, %v1983
    %v3676 = vpack.c.b16 %v2002, %v1984
    %v3677 = vpack.c.b16 %v2003, %v1985
    %v3678 = vpack.c.b16 %v2004, %v1986
    %v3679 = vpack.c.b16 %v2005, %v1987
    %v3680 = vpack.c.b16 %v2024, %v2006
    %v3681 = vpack.c.b16 %v2025, %v2007
    %v3682 = vpack.c.b16 %v2026, %v2008
    %v3683 = vpack.c.b16 %v2027, %v2009
    %v3684 = vpack.c.b16 %v2028, %v2010
    %v3685 = vpack.c.b16 %v2029, %v2011
    %v3686 = vpack.c.b16 %v2030, %v2012
    %v3687 = vpack.c.b16 %v2031, %v2013
    %v3688 = vpack.c.b16 %v2032, %v2014
    %v3689 = vpack.c.b16 %v2033, %v2015
    %v3690 = vpack.c.b16 %v2034, %v2016
    %v3691 = vpack.c.b16 %v2035, %v2017
    %v3692 = vpack.c.b16 %v2036, %v2018
    %v3693 = vpack.c.b16 %v2037, %v2019
    %v3694 = vpack.c.b16 %v2038, %v2020
    %v3695 = vpack.c.b16 %v2039, %v2021
    %v3696 = vpack.c.b16 %v2040, %v2022
    %v3697 = vpack.c.b16 %v2041, %v2023
    %v3698 = vpack.c.b16 %v2060, %v2042
    %v3699 = vpack.c.b16 %v2061, %v2043
    %v3700 = vpack.c.b16 %v2062, %v2044
    %v3701 = vpack.c.b16 %v2063, %v2045
    %v3702 = vpack.c.b16 %v2064, %v2046
    %v3703 = vpack.c.b16 %v2065, %v2047
    %v3704 = vpack.c.b16 %v2066, %v2048
    %v3705 = vpack.c.b16 %v2067, %v2049
    %v3706 = vpack.c.b16 %v2068, %v2050
    %v3707 = vpack.c.b16 %v2069, %v2051
    %v3708 = vpack.c.b16 %v2070, %v2052
    %v3709 = vpack.c.b16 %v2071, %v2053
    %v3710 = vpack.c.b16 %v2072, %v2054
    %v3711 = vpack.c.b16 %v2073, %v2055
    %v3712 = vpack.c.b16 %v2074, %v2056
    %v3713 = vpack.c.b16 %v2075, %v2057
    %v3714 = vpack.c.b16 %v2076, %v2058
    %v3715 = vpack.c.b16 %v2077, %v2059
    %v3716 = vpack.c.b16 %v2096, %v2078
    %v3717 = vpack.c.b16 %v2097, %v2079
    %v3718 = vpack.c.b16 %v2098, %v2080
    %v3719 = vpack.c.b16 %v2099, %v2081
    %v3720 = vpack.c.b16 %v2100, %v2082
    %v3721 = vpack.c.b16 %v2101, %v2083
    %v3722 = vpack.c.b16 %v2102, %v2084
    %v3723 = vpack.c.b16 %v2103, %v2085
    %v3724 = vpack.c.b16 %v2104, %v2086
    %v3725 = vpack.c.b16 %v2105, %v2087
    %v3726 = vpack.c.b16 %v2106, %v2088
    %v3727 = vpack.c.b16 %v2107, %v2089
    %v3728 = vpack.c.b16 %v2108, %v2090
    %v3729 = vpack.c.b16 %v2109, %v2091
    %v3730 = vpack.c.b16 %v2110, %v2092
    %v3731 = vpack.c.b16 %v2111, %v2093
    %v3732 = vpack.c.b16 %v2112, %v2094
    %v3733 = vpack.c.b16 %v2113, %v2095
    %v3734 = vpack.c.b16 %v2132, %v2114
    %v3735 = vpack.c.b16 %v2133, %v2115
    %v3736 = vpack.c.b16 %v2134, %v2116
    %v3737 = vpack.c.b16 %v2135, %v2117
    %v3738 = vpack.c.b16 %v2136, %v2118
    %v3739 = vpack.c.b16 %v2137, %v2119
    %v3740 = vpack.c.b16 %v2138, %v2120
    %v3741 = vpack.c.b16 %v2139, %v2121
    %v3742 = vpack.c.b16 %v2140, %v2122
    %v3743 = vpack.c.b16 %v2141, %v2123
    %v3744 = vpack.c.b16 %v2142, %v2124
    %v3745 = vpack.c.b16 %v2143, %v2125
    %v3746 = vpack.c.b16 %v2144, %v2126
    %v3747 = vpack.c.b16 %v2145, %v2127
    %v3748 = vpack.c.b16 %v2146, %v2128
    %v3749 = vpack.c.b16 %v2147, %v2129
    %v3750 = vpack.c.b16 %v2148, %v2130
    %v3751 = vpack.c.b16 %v2149, %v2131
    %v3752 = vpack.c.b16 %v2168, %v2150
    %v3753 = vpack.c.b16 %v2169, %v2151
    %v3754 = vpack.c.b16 %v2170, %v2152
    %v3755 = vpack.c.b16 %v2171, %v2153
    %v3756 = vpack.c.b16 %v2172, %v2154
    %v3757 = vpack.c.b16 %v2173, %v2155
    %v3758 = vpack.c.b16 %v2174, %v2156
    %v3759 = vpack.c.b16 %v2175, %v2157
    %v3760 = vpack.c.b16 %v2176, %v2158
    %v3761 = vpack.c.b16 %v2177, %v2159
    %v3762 = vpack.c.b16 %v2178, %v2160
    %v3763 = vpack.c.b16 %v2179, %v2161
    %v3764 = vpack.c.b16 %v2180, %v2162
    %v3765 = vpack.c.b16 %v2181, %v2163
    %v3766 = vpack.c.b16 %v2182, %v2164
    %v3767 = vpack.c.b16 %v2183, %v2165
    %v3768 = vpack.c.b16 %v2184, %v2166
    %v3769 = vpack.c.b16 %v2185, %v2167
    %v3770 = vpack.c.b16 %v2204, %v2186
    %v3771 = vpack.c.b16 %v2205, %v2187
    %v3772 = vpack.c.b16 %v2206, %v2188
    %v3773 = vpack.c.b16 %v2207, %v2189
    %v3774 = vpack.c.b16 %v2208, %v2190
    %v3775 = vpack.c.b16 %v2209, %v2191
    %v3776 = vpack.c.b16 %v2210, %v2192
    %v3777 = vpack.c.b16 %v2211, %v2193
    %v3778 = vpack.c.b16 %v2212, %v2194
    %v3779 = vpack.c.b16 %v2213, %v2195
    %v3780 = vpack.c.b16 %v2214, %v2196
    %v3781 = vpack.c.b16 %v2215, %v2197
    %v3782 = vpack.c.b16 %v2216, %v2198
    %v3783 = vpack.c.b16 %v2217, %v2199
    %v3784 = vpack.c.b16 %v2218, %v2200
    %v3785 = vpack.c.b16 %v2219, %v2201
    %v3786 = vpack.c.b16 %v2220, %v2202
    %v3787 = vpack.c.b16 %v2221, %v2203
    %v3788 = vpack.c.b16 %v2240, %v2222
    %v3789 = vpack.c.b16 %v2241, %v2223
    %v3790 = vpack.c.b16 %v2242, %v2224
    %v3791 = vpack.c.b16 %v2243, %v2225
    %v3792 = vpack.c.b16 %v2244, %v2226
    %v3793 = vpack.c.b16 %v2245, %v2227
    %v3794 = vpack.c.b16 %v2246, %v2228
    %v3795 = vpack.c.b16 %v2247, %v2229
    %v3796 = vpack.c.b16 %v2248, %v2230
    %v3797 = vpack.c.b16 %v2249, %v2231
    %v3798 = vpack.c.b16 %v2250, %v2232
    %v3799 = vpack.c.b16 %v2251, %v2233
    %v3800 = vpack.c.b16 %v2252, %v2234
    %v3801 = vpack.c.b16 %v2253, %v2235
    %v3802 = vpack.c.b16 %v2254, %v2236
    %v3803 = vpack.c.b16 %v2255, %v2237
    %v3804 = vpack.c.b16 %v2256, %v2238
    %v3805 = vpack.c.b16 %v2257, %v2239
    %v3806 = vpack.c.b16 %v2276, %v2258
    %v3807 = vpack.c.b16 %v2277, %v2259
    %v3808 = vpack.c.b16 %v2278, %v2260
    %v3809 = vpack.c.b16 %v2279, %v2261
    %v3810 = vpack.c.b16 %v2280, %v2262
    %v3811 = vpack.c.b16 %v2281, %v2263
    %v3812 = vpack.c.b16 %v2282, %v2264
    %v3813 = vpack.c.b16 %v2283, %v2265
    %v3814 = vpack.c.b16 %v2284, %v2266
    %v3815 = vpack.c.b16 %v2285, %v2267
    %v3816 = vpack.c.b16 %v2286, %v2268
    %v3817 = vpack.c.b16 %v2287, %v2269
    %v3818 = vpack.c.b16 %v2288, %v2270
    %v3819 = vpack.c.b16 %v2289, %v2271
    %v3820 = vpack.c.b16 %v2290, %v2272
    %v3821 = vpack.c.b16 %v2291, %v2273
    %v3822 = vpack.c.b16 %v2292, %v2274
    %v3823 = vpack.c.b16 %v2293, %v2275
    %v3824 = vpack.c.b16 %v2312, %v2294
    %v3825 = vpack.c.b16 %v2313, %v2295
    %v3826 = vpack.c.b16 %v2314, %v2296
    %v3827 = vpack.c.b16 %v2315, %v2297
    %v3828 = vpack.c.b16 %v2316, %v2298
    %v3829 = vpack.c.b16 %v2317, %v2299
    %v3830 = vpack.c.b16 %v2318, %v2300
    %v3831 = vpack.c.b16 %v2319, %v2301
    %v3832 = vpack.c.b16 %v2320, %v2302
    %v3833 = vpack.c.b16 %v2321, %v2303
    %v3834 = vpack.c.b16 %v2322, %v2304
    %v3835 = vpack.c.b16 %v2323, %v2305
    %v3836 = vpack.c.b16 %v2324, %v2306
    %v3837 = vpack.c.b16 %v2325, %v2307
    %v3838 = vpack.c.b16 %v2326, %v2308
    %v3839 = vpack.c.b16 %v2327, %v2309
    %v3840 = vpack.c.b16 %v2328, %v2310
    %v3841 = vpack.c.b16 %v2329, %v2311
    %v3842 = vpack.c.b16 %v2348, %v2330
    %v3843 = vpack.c.b16 %v2349, %v2331
    %v3844 = vpack.c.b16 %v2350, %v2332
    %v3845 = vpack.c.b16 %v2351, %v2333
    %v3846 = vpack.c.b16 %v2352, %v2334
    %v3847 = vpack.c.b16 %v2353, %v2335
    %v3848 = vpack.c.b16 %v2354, %v2336
    %v3849 = vpack.c.b16 %v2355, %v2337
    %v3850 = vpack.c.b16 %v2356, %v2338
    %v3851 = vpack.c.b16 %v2357, %v2339
    %v3852 = vpack.c.b16 %v2358, %v2340
    %v3853 = vpack.c.b16 %v2359, %v2341
    %v3854 = vpack.c.b16 %v2360, %v2342
    %v3855 = vpack.c.b16 %v2361, %v2343
    %v3856 = vpack.c.b16 %v2362, %v2344
    %v3857 = vpack.c.b16 %v2363, %v2345
    %v3858 = vpack.c.b16 %v2364, %v2346
    %v3859 = vpack.c.b16 %v2365, %v2347
    %v3860 = vpack.c.b16 %v2384, %v2366
    %v3861 = vpack.c.b16 %v2385, %v2367
    %v3862 = vpack.c.b16 %v2386, %v2368
    %v3863 = vpack.c.b16 %v2387, %v2369
    %v3864 = vpack.c.b16 %v2388, %v2370
    %v3865 = vpack.c.b16 %v2389, %v2371
    %v3866 = vpack.c.b16 %v2390, %v2372
    %v3867 = vpack.c.b16 %v2391, %v2373
    %v3868 = vpack.c.b16 %v2392, %v2374
    %v3869 = vpack.c.b16 %v2393, %v2375
    %v3870 = vpack.c.b16 %v2394, %v2376
    %v3871 = vpack.c.b16 %v2395, %v2377
    %v3872 = vpack.c.b16 %v2396, %v2378
    %v3873 = vpack.c.b16 %v2397, %v2379
    %v3874 = vpack.c.b16 %v2398, %v2380
    %v3875 = vpack.c.b16 %v2399, %v2381
    %v3876 = vpack.c.b16 %v2400, %v2382
    %v3877 = vpack.c.b16 %v2401, %v2383
    %v3878 = vpack.c.b16 %v2420, %v2402
    %v3879 = vpack.c.b16 %v2421, %v2403
    %v3880 = vpack.c.b16 %v2422, %v2404
    %v3881 = vpack.c.b16 %v2423, %v2405
    %v3882 = vpack.c.b16 %v2424, %v2406
    %v3883 = vpack.c.b16 %v2425, %v2407
    %v3884 = vpack.c.b16 %v2426, %v2408
    %v3885 = vpack.c.b16 %v2427, %v2409
    %v3886 = vpack.c.b16 %v2428, %v2410
    %v3887 = vpack.c.b16 %v2429, %v2411
    %v3888 = vpack.c.b16 %v2430, %v2412
    %v3889 = vpack.c.b16 %v2431, %v2413
    %v3890 = vpack.c.b16 %v2432, %v2414
    %v3891 = vpack.c.b16 %v2433, %v2415
    %v3892 = vpack.c.b16 %v2434, %v2416
    %v3893 = vpack.c.b16 %v2435, %v2417
    %v3894 = vpack.c.b16 %v2436, %v2418
    %v3895 = vpack.c.b16 %v2437, %v2419
    %v3896 = vpack.c.b16 %v2456, %v2438
    %v3897 = vpack.c.b16 %v2457, %v2439
    %v3898 = vpack.c.b16 %v2458, %v2440
    %v3899 = vpack.c.b16 %v2459, %v2441
    %v3900 = vpack.c.b16 %v2460, %v2442
    %v3901 = vpack.c.b16 %v2461, %v2443
    %v3902 = vpack.c.b16 %v2462, %v2444
    %v3903 = vpack.c.b16 %v2463, %v2445
    %v3904 = vpack.c.b16 %v2464, %v2446
    %v3905 = vpack.c.b16 %v2465, %v2447
    %v3906 = vpack.c.b16 %v2466, %v2448
    %v3907 = vpack.c.b16 %v2467, %v2449
    %v3908 = vpack.c.b16 %v2468, %v2450
    %v3909 = vpack.c.b16 %v2469, %v2451
    %v3910 = vpack.c.b16 %v2470, %v2452
    %v3911 = vpack.c.b16 %v2471, %v2453
    %v3912 = vpack.c.b16 %v2472, %v2454
    %v3913 = vpack.c.b16 %v2473, %v2455
    %v3914 = vpack.c.b16 %v2492, %v2474
    %v3915 = vpack.c.b16 %v2493, %v2475
    %v3916 = vpack.c.b16 %v2494, %v2476
    %v3917 = vpack.c.b16 %v2495, %v2477
    %v3918 = vpack.c.b16 %v2496, %v2478
    %v3919 = vpack.c.b16 %v2497, %v2479
    %v3920 = vpack.c.b16 %v2498, %v2480
    %v3921 = vpack.c.b16 %v2499, %v2481
    %v3922 = vpack.c.b16 %v2500, %v2482
    %v3923 = vpack.c.b16 %v2501, %v2483
    %v3924 = vpack.c.b16 %v2502, %v2484
    %v3925 = vpack.c.b16 %v2503, %v2485
    %v3926 = vpack.c.b16 %v2504, %v2486
    %v3927 = vpack.c.b16 %v2505, %v2487
    %v3928 = vpack.c.b16 %v2506, %v2488
    %v3929 = vpack.c.b16 %v2507, %v2489
    %v3930 = vpack.c.b16 %v2508, %v2490
    %v3931 = vpack.c.b16 %v2509, %v2491
    %v3932 = vpack.c.b16 %v2528, %v2510
    %v3933 = vpack.c.b16 %v2529, %v2511
    %v3934 = vpack.c.b16 %v2530, %v2512
    %v3935 = vpack.c.b16 %v2531, %v2513
    %v3936 = vpack.c.b16 %v2532, %v2514
    %v3937 = vpack.c.b16 %v2533, %v2515
    %v3938 = vpack.c.b16 %v2534, %v2516
    %v3939 = vpack.c.b16 %v2535, %v2517
    %v3940 = vpack.c.b16 %v2536, %v2518
    %v3941 = vpack.c.b16 %v2537, %v2519
    %v3942 = vpack.c.b16 %v2538, %v2520
    %v3943 = vpack.c.b16 %v2539, %v2521
    %v3944 = vpack.c.b16 %v2540, %v2522
    %v3945 = vpack.c.b16 %v2541, %v2523
    %v3946 = vpack.c.b16 %v2542, %v2524
    %v3947 = vpack.c.b16 %v2543, %v2525
    %v3948 = vpack.c.b16 %v2544, %v2526
    %v3949 = vpack.c.b16 %v2545, %v2527
    %v3950 = vpack.c.b16 %v2564, %v2546
    %v3951 = vpack.c.b16 %v2565, %v2547
    %v3952 = vpack.c.b16 %v2566, %v2548
    %v3953 = vpack.c.b16 %v2567, %v2549
    %v3954 = vpack.c.b16 %v2568, %v2550
    %v3955 = vpack.c.b16 %v2569, %v2551
    %v3956 = vpack.c.b16 %v2570, %v2552
    %v3957 = vpack.c.b16 %v2571, %v2553
    %v3958 = vpack.c.b16 %v2572, %v2554
    %v3959 = vpack.c.b16 %v2573, %v2555
    %v3960 = vpack.c.b16 %v2574, %v2556
    %v3961 = vpack.c.b16 %v2575, %v2557
    %v3962 = vpack.c.b16 %v2576, %v2558
    %v3963 = vpack.c.b16 %v2577, %v2559
    %v3964 = vpack.c.b16 %v2578, %v2560
    %v3965 = vpack.c.b16 %v2579, %v2561
    %v3966 = vpack.c.b16 %v2580, %v2562
    %v3967 = vpack.c.b16 %v2581, %v2563
    %v3968 = vpack.c.b16 %v2600, %v2582
    %v3969 = vpack.c.b16 %v2601, %v2583
    %v3970 = vpack.c.b16 %v2602, %v2584
    %v3971 = vpack.c.b16 %v2603, %v2585
    %v3972 = vpack.c.b16 %v2604, %v2586
    %v3973 = vpack.c.b16 %v2605, %v2587
    %v3974 = vpack.c.b16 %v2606, %v2588
    %v3975 = vpack.c.b16 %v2607, %v2589
    %v3976 = vpack.c.b16 %v2608, %v2590
    %v3977 = vpack.c.b16 %v2609, %v2591
    %v3978 = vpack.c.b16 %v2610, %v2592
    %v3979 = vpack.c.b16 %v2611, %v2593
    %v3980 = vpack.c.b16 %v2612, %v2594
    %v3981 = vpack.c.b16 %v2613, %v2595
    %v3982 = vpack.c.b16 %v2614, %v2596
    %v3983 = vpack.c.b16 %v2615, %v2597
    %v3984 = vpack.c.b16 %v2616, %v2598
    %v3985 = vpack.c.b16 %v2617, %v2599
    %v3986 = vpack.c.b16 %v2636, %v2618
    %v3987 = vpack.c.b16 %v2637, %v2619
    %v3988 = vpack.c.b16 %v2638, %v2620
    %v3989 = vpack.c.b16 %v2639, %v2621
    %v3990 = vpack.c.b16 %v2640, %v2622
    %v3991 = vpack.c.b16 %v2641, %v2623
    %v3992 = vpack.c.b16 %v2642, %v2624
    %v3993 = vpack.c.b16 %v2643, %v2625
    %v3994 = vpack.c.b16 %v2644, %v2626
    %v3995 = vpack.c.b16 %v2645, %v2627
    %v3996 = vpack.c.b16 %v2646, %v2628
    %v3997 = vpack.c.b16 %v2647, %v2629
    %v3998 = vpack.c.b16 %v2648, %v2630
    %v3999 = vpack.c.b16 %v2649, %v2631
    %v4000 = vpack.c.b16 %v2650, %v2632
    %v4001 = vpack.c.b16 %v2651, %v2633
    %v4002 = vpack.c.b16 %v2652, %v2634
    %v4003 = vpack.c.b16 %v2653, %v2635
    %v4004 = vpack.c.b16 %v2672, %v2654
    %v4005 = vpack.c.b16 %v2673, %v2655
    %v4006 = vpack.c.b16 %v2674, %v2656
    %v4007 = vpack.c.b16 %v2675, %v2657
    %v4008 = vpack.c.b16 %v2676, %v2658
    %v4009 = vpack.c.b16 %v2677, %v2659
    %v4010 = vpack.c.b16 %v2678, %v2660
    %v4011 = vpack.c.b16 %v2679, %v2661
    %v4012 = vpack.c.b16 %v2680, %v2662
    %v4013 = vpack.c.b16 %v2681, %v2663
    %v4014 = vpack.c.b16 %v2682, %v2664
    %v4015 = vpack.c.b16 %v2683, %v2665
    %v4016 = vpack.c.b16 %v2684, %v2666
    %v4017 = vpack.c.b16 %v2685, %v2667
    %v4018 = vpack.c.b16 %v2686, %v2668
    %v4019 = vpack.c.b16 %v2687, %v2669
    %v4020 = vpack.c.b16 %v2688, %v2670
    %v4021 = vpack.c.b16 %v2689, %v2671
    %v4022 = vpack.c.b16 %v2708, %v2690
    %v4023 = vpack.c.b16 %v2709, %v2691
    %v4024 = vpack.c.b16 %v2710, %v2692
    %v4025 = vpack.c.b16 %v2711, %v2693
    %v4026 = vpack.c.b16 %v2712, %v2694
    %v4027 = vpack.c.b16 %v2713, %v2695
    %v4028 = vpack.c.b16 %v2714, %v2696
    %v4029 = vpack.c.b16 %v2715, %v2697
    %v4030 = vpack.c.b16 %v2716, %v2698
    %v4031 = vpack.c.b16 %v2717, %v2699
    %v4032 = vpack.c.b16 %v2718, %v2700
    %v4033 = vpack.c.b16 %v2719, %v2701
    %v4034 = vpack.c.b16 %v2720, %v2702
    %v4035 = vpack.c.b16 %v2721, %v2703
    %v4036 = vpack.c.b16 %v2722, %v2704
    %v4037 = vpack.c.b16 %v2723, %v2705
    %v4038 = vpack.c.b16 %v2724, %v2706
    %v4039 = vpack.c.b16 %v2725, %v2707
    %v4040 = vpack.c.b16 %v2744, %v2726
    %v4041 = vpack.c.b16 %v2745, %v2727
    %v4042 = vpack.c.b16 %v2746, %v2728
    %v4043 = vpack.c.b16 %v2747, %v2729
    %v4044 = vpack.c.b16 %v2748, %v2730
    %v4045 = vpack.c.b16 %v2749, %v2731
    %v4046 = vpack.c.b16 %v2750, %v2732
    %v4047 = vpack.c.b16 %v2751, %v2733
    %v4048 = vpack.c.b16 %v2752, %v2734
    %v4049 = vpack.c.b16 %v2753, %v2735
    %v4050 = vpack.c.b16 %v2754, %v2736
    %v4051 = vpack.c.b16 %v2755, %v2737
    %v4052 = vpack.c.b16 %v2756, %v2738
    %v4053 = vpack.c.b16 %v2757, %v2739
    %v4054 = vpack.c.b16 %v2758, %v2740
    %v4055 = vpack.c.b16 %v2759, %v2741
    %v4056 = vpack.c.b16 %v2760, %v2742
    %v4057 = vpack.c.b16 %v2761, %v2743
    %v4058 = vpack.c.b16 %v2780, %v2762
    %v4059 = vpack.c.b16 %v2781, %v2763
    %v4060 = vpack.c.b16 %v2782, %v2764
    %v4061 = vpack.c.b16 %v2783, %v2765
    %v4062 = vpack.c.b16 %v2784, %v2766
    %v4063 = vpack.c.b16 %v2785, %v2767
    %v4064 = vpack.c.b16 %v2786, %v2768
    %v4065 = vpack.c.b16 %v2787, %v2769
    %v4066 = vpack.c.b16 %v2788, %v2770
    %v4067 = vpack.c.b16 %v2789, %v2771
    %v4068 = vpack.c.b16 %v2790, %v2772
    %v4069 = vpack.c.b16 %v2791, %v2773
    %v4070 = vpack.c.b16 %v2792, %v2774
    %v4071 = vpack.c.b16 %v2793, %v2775
    %v4072 = vpack.c.b16 %v2794, %v2776
    %v4073 = vpack.c.b16 %v2795, %v2777
    %v4074 = vpack.c.b16 %v2796, %v2778
    %v4075 = vpack.c.b16 %v2797, %v2779
    %v4076 = vpack.c.b16 %v2816, %v2798
    %v4077 = vpack.c.b16 %v2817, %v2799
    %v4078 = vpack.c.b16 %v2818, %v2800
    %v4079 = vpack.c.b16 %v2819, %v2801
    %v4080 = vpack.c.b16 %v2820, %v2802
    %v4081 = vpack.c.b16 %v2821, %v2803
    %v4082 = vpack.c.b16 %v2822, %v2804
    %v4083 = vpack.c.b16 %v2823, %v2805
    %v4084 = vpack.c.b16 %v2824, %v2806
    %v4085 = vpack.c.b16 %v2825, %v2807
    %v4086 = vpack.c.b16 %v2826, %v2808
    %v4087 = vpack.c.b16 %v2827, %v2809
    %v4088 = vpack.c.b16 %v2828, %v2810
    %v4089 = vpack.c.b16 %v2829, %v2811
    %v4090 = vpack.c.b16 %v2830, %v2812
    %v4091 = vpack.c.b16 %v2831, %v2813
    %v4092 = vpack.c.b16 %v2832, %v2814
    %v4093 = vpack.c.b16 %v2833, %v2815
    %v4094 = vpack.c.b16 %v2852, %v2834
    %v4095 = vpack.c.b16 %v2853, %v2835
    %v4096 = vpack.c.b16 %v2854, %v2836
    %v4097 = vpack.c.b16 %v2855, %v2837
    %v4098 = vpack.c.b16 %v2856, %v2838
    %v4099 = vpack.c.b16 %v2857, %v2839
    %v4100 = vpack.c.b16 %v2858, %v2840
    %v4101 = vpack.c.b16 %v2859, %v2841
    %v4102 = vpack.c.b16 %v2860, %v2842
    %v4103 = vpack.c.b16 %v2861, %v2843
    %v4104 = vpack.c.b16 %v2862, %v2844
    %v4105 = vpack.c.b16 %v2863, %v2845
    %v4106 = vpack.c.b16 %v2864, %v2846
    %v4107 = vpack.c.b16 %v2865, %v2847
    %v4108 = vpack.c.b16 %v2866, %v2848
    %v4109 = vpack.c.b16 %v2867, %v2849
    %v4110 = vpack.c.b16 %v2868, %v2850
    %v4111 = vpack.c.b16 %v2869, %v2851
    %v4112 = vpack.c.b16 %v2888, %v2870
    %v4113 = vpack.c.b16 %v2889, %v2871
    %v4114 = vpack.c.b16 %v2890, %v2872
    %v4115 = vpack.c.b16 %v2891, %v2873
    %v4116 = vpack.c.b16 %v2892, %v2874
    %v4117 = vpack.c.b16 %v2893, %v2875
    %v4118 = vpack.c.b16 %v2894, %v2876
    %v4119 = vpack.c.b16 %v2895, %v2877
    %v4120 = vpack.c.b16 %v2896, %v2878
    %v4121 = vpack.c.b16 %v2897, %v2879
    %v4122 = vpack.c.b16 %v2898, %v2880
    %v4123 = vpack.c.b16 %v2899, %v2881
    %v4124 = vpack.c.b16 %v2900, %v2882
    %v4125 = vpack.c.b16 %v2901, %v2883
    %v4126 = vpack.c.b16 %v2902, %v2884
    %v4127 = vpack.c.b16 %v2903, %v2885
    %v4128 = vpack.c.b16 %v2904, %v2886
    %v4129 = vpack.c.b16 %v2905, %v2887
    %v4130 = vpack.c.b16 %v2924, %v2906
    %v4131 = vpack.c.b16 %v2925, %v2907
    %v4132 = vpack.c.b16 %v2926, %v2908
    %v4133 = vpack.c.b16 %v2927, %v2909
    %v4134 = vpack.c.b16 %v2928, %v2910
    %v4135 = vpack.c.b16 %v2929, %v2911
    %v4136 = vpack.c.b16 %v2930, %v2912
    %v4137 = vpack.c.b16 %v2931, %v2913
    %v4138 = vpack.c.b16 %v2932, %v2914
    %v4139 = vpack.c.b16 %v2933, %v2915
    %v4140 = vpack.c.b16 %v2934, %v2916
    %v4141 = vpack.c.b16 %v2935, %v2917
    %v4142 = vpack.c.b16 %v2936, %v2918
    %v4143 = vpack.c.b16 %v2937, %v2919
    %v4144 = vpack.c.b16 %v2938, %v2920
    %v4145 = vpack.c.b16 %v2939, %v2921
    %v4146 = vpack.c.b16 %v2940, %v2922
    %v4147 = vpack.c.b16 %v2941, %v2923
    %v4148 = vpack.c.b16 %v2960, %v2942
    %v4149 = vpack.c.b16 %v2961, %v2943
    %v4150 = vpack.c.b16 %v2962, %v2944
    %v4151 = vpack.c.b16 %v2963, %v2945
    %v4152 = vpack.c.b16 %v2964, %v2946
    %v4153 = vpack.c.b16 %v2965, %v2947
    %v4154 = vpack.c.b16 %v2966, %v2948
    %v4155 = vpack.c.b16 %v2967, %v2949
    %v4156 = vpack.c.b16 %v2968, %v2950
    %v4157 = vpack.c.b16 %v2969, %v2951
    %v4158 = vpack.c.b16 %v2970, %v2952
    %v4159 = vpack.c.b16 %v2971, %v2953
    %v4160 = vpack.c.b16 %v2972, %v2954
    %v4161 = vpack.c.b16 %v2973, %v2955
    %v4162 = vpack.c.b16 %v2974, %v2956
    %v4163 = vpack.c.b16 %v2975, %v2957
    %v4164 = vpack.c.b16 %v2976, %v2958
    %v4165 = vpack.c.b16 %v2977, %v2959
    %v4166 = vpack.c.b16 %v2996, %v2978
    %v4167 = vpack.c.b16 %v2997, %v2979
    %v4168 = vpack.c.b16 %v2998, %v2980
    %v4169 = vpack.c.b16 %v2999, %v2981
    %v4170 = vpack.c.b16 %v3000, %v2982
    %v4171 = vpack.c.b16 %v3001, %v2983
    %v4172 = vpack.c.b16 %v3002, %v2984
    %v4173 = vpack.c.b16 %v3003, %v2985
    %v4174 = vpack.c.b16 %v3004, %v2986
    %v4175 = vpack.c.b16 %v3005, %v2987
    %v4176 = vpack.c.b16 %v3006, %v2988
    %v4177 = vpack.c.b16 %v3007, %v2989
    %v4178 = vpack.c.b16 %v3008, %v2990
    %v4179 = vpack.c.b16 %v3009, %v2991
    %v4180 = vpack.c.b16 %v3010, %v2992
    %v4181 = vpack.c.b16 %v3011, %v2993
    %v4182 = vpack.c.b16 %v3012, %v2994
    %v4183 = vpack.c.b16 %v3013, %v2995
    %v4184 = vpack.c.b16 %v3032, %v3014
    %v4185 = vpack.c.b16 %v3033, %v3015
    %v4186 = vpack.c.b16 %v3034, %v3016
    %v4187 = vpack.c.b16 %v3035, %v3017
    %v4188 = vpack.c.b16 %v3036, %v3018
    %v4189 = vpack.c.b16 %v3037, %v3019
    %v4190 = vpack.c.b16 %v3038, %v3020
    %v4191 = vpack.c.b16 %v3039, %v3021
    %v4192 = vpack.c.b16 %v3040, %v3022
    %v4193 = vpack.c.b16 %v3041, %v3023
    %v4194 = vpack.c.b16 %v3042, %v3024
    %v4195 = vpack.c.b16 %v3043, %v3025
    %v4196 = vpack.c.b16 %v3044, %v3026
    %v4197 = vpack.c.b16 %v3045, %v3027
    %v4198 = vpack.c.b16 %v3046, %v3028
    %v4199 = vpack.c.b16 %v3047, %v3029
    %v4200 = vpack.c.b16 %v3048, %v3030
    %v4201 = vpack.c.b16 %v3049, %v3031
    %v4202 = vpack.c.b16 %v3068, %v3050
    %v4203 = vpack.c.b16 %v3069, %v3051
    %v4204 = vpack.c.b16 %v3070, %v3052
    %v4205 = vpack.c.b16 %v3071, %v3053
    %v4206 = vpack.c.b16 %v3072, %v3054
    %v4207 = vpack.c.b16 %v3073, %v3055
    %v4208 = vpack.c.b16 %v3074, %v3056
    %v4209 = vpack.c.b16 %v3075, %v3057
    %v4210 = vpack.c.b16 %v3076, %v3058
    %v4211 = vpack.c.b16 %v3077, %v3059
    %v4212 = vpack.c.b16 %v3078, %v3060
    %v4213 = vpack.c.b16 %v3079, %v3061
    %v4214 = vpack.c.b16 %v3080, %v3062
    %v4215 = vpack.c.b16 %v3081, %v3063
    %v4216 = vpack.c.b16 %v3082, %v3064
    %v4217 = vpack.c.b16 %v3083, %v3065
    %v4218 = vpack.c.b16 %v3084, %v3066
    %v4219 = vpack.c.b16 %v3085, %v3067
    %v4220 = vpack.c.b16 %v3104, %v3086
    %v4221 = vpack.c.b16 %v3105, %v3087
    %v4222 = vpack.c.b16 %v3106, %v3088
    %v4223 = vpack.c.b16 %v3107, %v3089
    %v4224 = vpack.c.b16 %v3108, %v3090
    %v4225 = vpack.c.b16 %v3109, %v3091
    %v4226 = vpack.c.b16 %v3110, %v3092
    %v4227 = vpack.c.b16 %v3111, %v3093
    %v4228 = vpack.c.b16 %v3112, %v3094
    %v4229 = vpack.c.b16 %v3113, %v3095
    %v4230 = vpack.c.b16 %v3114, %v3096
    %v4231 = vpack.c.b16 %v3115, %v3097
    %v4232 = vpack.c.b16 %v3116, %v3098
    %v4233 = vpack.c.b16 %v3117, %v3099
    %v4234 = vpack.c.b16 %v3118, %v3100
    %v4235 = vpack.c.b16 %v3119, %v3101
    %v4236 = vpack.c.b16 %v3120, %v3102
    %v4237 = vpack.c.b16 %v3121, %v3103
    %v4238 = vpack.c.b16 %v3140, %v3122
    %v4239 = vpack.c.b16 %v3141, %v3123
    %v4240 = vpack.c.b16 %v3142, %v3124
    %v4241 = vpack.c.b16 %v3143, %v3125
    %v4242 = vpack.c.b16 %v3144, %v3126
    %v4243 = vpack.c.b16 %v3145, %v3127
    %v4244 = vpack.c.b16 %v3146, %v3128
    %v4245 = vpack.c.b16 %v3147, %v3129
    %v4246 = vpack.c.b16 %v3148, %v3130
    %v4247 = vpack.c.b16 %v3149, %v3131
    %v4248 = vpack.c.b16 %v3150, %v3132
    %v4249 = vpack.c.b16 %v3151, %v3133
    %v4250 = vpack.c.b16 %v3152, %v3134
    %v4251 = vpack.c.b16 %v3153, %v3135
    %v4252 = vpack.c.b16 %v3154, %v3136
    %v4253 = vpack.c.b16 %v3155, %v3137
    %v4254 = vpack.c.b16 %v3156, %v3138
    %v4255 = vpack.c.b16 %v3157, %v3139
    %v4256 = vpack.c.b16 %v3176, %v3158
    %v4257 = vpack.c.b16 %v3177, %v3159
    %v4258 = vpack.c.b16 %v3178, %v3160
    %v4259 = vpack.c.b16 %v3179, %v3161
    %v4260 = vpack.c.b16 %v3180, %v3162
    %v4261 = vpack.c.b16 %v3181, %v3163
    %v4262 = vpack.c.b16 %v3182, %v3164
    %v4263 = vpack.c.b16 %v3183, %v3165
    %v4264 = vpack.c.b16 %v3184, %v3166
    %v4265 = vpack.c.b16 %v3185, %v3167
    %v4266 = vpack.c.b16 %v3186, %v3168
    %v4267 = vpack.c.b16 %v3187, %v3169
    %v4268 = vpack.c.b16 %v3188, %v3170
    %v4269 = vpack.c.b16 %v3189, %v3171
    %v4270 = vpack.c.b16 %v3190, %v3172
    %v4271 = vpack.c.b16 %v3191, %v3173
    %v4272 = vpack.c.b16 %v3192, %v3174
    %v4273 = vpack.c.b16 %v3193, %v3175
    %v4274 = vpack.c.b16 %v3212, %v3194
    %v4275 = vpack.c.b16 %v3213, %v3195
    %v4276 = vpack.c.b16 %v3214, %v3196
    %v4277 = vpack.c.b16 %v3215, %v3197
    %v4278 = vpack.c.b16 %v3216, %v3198
    %v4279 = vpack.c.b16 %v3217, %v3199
    %v4280 = vpack.c.b16 %v3218, %v3200
    %v4281 = vpack.c.b16 %v3219, %v3201
    %v4282 = vpack.c.b16 %v3220, %v3202
    %v4283 = vpack.c.b16 %v3221, %v3203
    %v4284 = vpack.c.b16 %v3222, %v3204
    %v4285 = vpack.c.b16 %v3223, %v3205
    %v4286 = vpack.c.b16 %v3224, %v3206
    %v4287 = vpack.c.b16 %v3225, %v3207
    %v4288 = vpack.c.b16 %v3226, %v3208
    %v4289 = vpack.c.b16 %v3227, %v3209
    %v4290 = vpack.c.b16 %v3228, %v3210
    %v4291 = vpack.c.b16 %v3229, %v3211
    %v4292 = vpack.c.b16 %v3248, %v3230
    %v4293 = vpack.c.b16 %v3249, %v3231
    %v4294 = vpack.c.b16 %v3250, %v3232
    %v4295 = vpack.c.b16 %v3251, %v3233
    %v4296 = vpack.c.b16 %v3252, %v3234
    %v4297 = vpack.c.b16 %v3253, %v3235
    %v4298 = vpack.c.b16 %v3254, %v3236
    %v4299 = vpack.c.b16 %v3255, %v3237
    %v4300 = vpack.c.b16 %v3256, %v3238
    %v4301 = vpack.c.b16 %v3257, %v3239
    %v4302 = vpack.c.b16 %v3258, %v3240
    %v4303 = vpack.c.b16 %v3259, %v3241
    %v4304 = vpack.c.b16 %v3260, %v3242
    %v4305 = vpack.c.b16 %v3261, %v3243
    %v4306 = vpack.c.b16 %v3262, %v3244
    %v4307 = vpack.c.b16 %v3263, %v3245
    %v4308 = vpack.c.b16 %v3264, %v3246
    %v4309 = vpack.c.b16 %v3265, %v3247
    %v4310 = vpack.c.b16 %v3284, %v3266
    %v4311 = vpack.c.b16 %v3285, %v3267
    %v4312 = vpack.c.b16 %v3286, %v3268
    %v4313 = vpack.c.b16 %v3287, %v3269
    %v4314 = vpack.c.b16 %v3288, %v3270
    %v4315 = vpack.c.b16 %v3289, %v3271
    %v4316 = vpack.c.b16 %v3290, %v3272
    %v4317 = vpack.c.b16 %v3291, %v3273
    %v4318 = vpack.c.b16 %v3292, %v3274
    %v4319 = vpack.c.b16 %v3293, %v3275
    %v4320 = vpack.c.b16 %v3294, %v3276
    %v4321 = vpack.c.b16 %v3295, %v3277
    %v4322 = vpack.c.b16 %v3296, %v3278
    %v4323 = vpack.c.b16 %v3297, %v3279
    %v4324 = vpack.c.b16 %v3298, %v3280
    %v4325 = vpack.c.b16 %v3299, %v3281
    %v4326 = vpack.c.b16 %v3300, %v3282
    %v4327 = vpack.c.b16 %v3301, %v3283
    %v4328 = vpack.c.b16 %v3320, %v3302
    %v4329 = vpack.c.b16 %v3321, %v3303
    %v4330 = vpack.c.b16 %v3322, %v3304
    %v4331 = vpack.c.b16 %v3323, %v3305
    %v4332 = vpack.c.b16 %v3324, %v3306
    %v4333 = vpack.c.b16 %v3325, %v3307
    %v4334 = vpack.c.b16 %v3326, %v3308
    %v4335 = vpack.c.b16 %v3327, %v3309
    %v4336 = vpack.c.b16 %v3328, %v3310
    %v4337 = vpack.c.b16 %v3329, %v3311
    %v4338 = vpack.c.b16 %v3330, %v3312
    %v4339 = vpack.c.b16 %v3331, %v3313
    %v4340 = vpack.c.b16 %v3332, %v3314
    %v4341 = vpack.c.b16 %v3333, %v3315
    %v4342 = vpack.c.b16 %v3334, %v3316
    %v4343 = vpack.c.b16 %v3335, %v3317
    %v4344 = vpack.c.b16 %v3336, %v3318
    %v4345 = vpack.c.b16 %v3337, %v3319
    %v4346 = vpack.c.b16 %v3356, %v3338
    %v4347 = vpack.c.b16 %v3357, %v3339
    %v4348 = vpack.c.b16 %v3358, %v3340
    %v4349 = vpack.c.b16 %v3359, %v3341
    %v4350 = vpack.c.b16 %v3360, %v3342
    %v4351 = vpack.c.b16 %v3361, %v3343
    %v4352 = vpack.c.b16 %v3362, %v3344
    %v4353 = vpack.c.b16 %v3363, %v3345
    %v4354 = vpack.c.b16 %v3364, %v3346
    %v4355 = vpack.c.b16 %v3365, %v3347
    %v4356 = vpack.c.b16 %v3366, %v3348
    %v4357 = vpack.c.b16 %v3367, %v3349
    %v4358 = vpack.c.b16 %v3368, %v3350
    %v4359 = vpack.c.b16 %v3369, %v3351
    %v4360 = vpack.c.b16 %v3370, %v3352
    %v4361 = vpack.c.b16 %v3371, %v3353
    %v4362 = vpack.c.b16 %v3372, %v3354
    %v4363 = vpack.c.b16 %v3373, %v3355
    %v4364 = vpack.c.b16 %v3392, %v3374
    %v4365 = vpack.c.b16 %v3393, %v3375
    %v4366 = vpack.c.b16 %v3394, %v3376
    %v4367 = vpack.c.b16 %v3395, %v3377
    %v4368 = vpack.c.b16 %v3396, %v3378
    %v4369 = vpack.c.b16 %v3397, %v3379
    %v4370 = vpack.c.b16 %v3398, %v3380
    %v4371 = vpack.c.b16 %v3399, %v3381
    %v4372 = vpack.c.b16 %v3400, %v3382
    %v4373 = vpack.c.b16 %v3401, %v3383
    %v4374 = vpack.c.b16 %v3402, %v3384
    %v4375 = vpack.c.b16 %v3403, %v3385
    %v4376 = vpack.c.b16 %v3404, %v3386
    %v4377 = vpack.c.b16 %v3405, %v3387
    %v4378 = vpack.c.b16 %v3406, %v3388
    %v4379 = vpack.c.b16 %v3407, %v3389
    %v4380 = vpack.c.b16 %v3408, %v3390
    %v4381 = vpack.c.b16 %v3409, %v3391
    %v4382 = vpack.c.b16 %v3428, %v3410
    %v4383 = vpack.c.b16 %v3429, %v3411
    %v4384 = vpack.c.b16 %v3430, %v3412
    %v4385 = vpack.c.b16 %v3431, %v3413
    %v4386 = vpack.c.b16 %v3432, %v3414
    %v4387 = vpack.c.b16 %v3433, %v3415
    %v4388 = vpack.c.b16 %v3434, %v3416
    %v4389 = vpack.c.b16 %v3435, %v3417
    %v4390 = vpack.c.b16 %v3436, %v3418
    %v4391 = vpack.c.b16 %v3437, %v3419
    %v4392 = vpack.c.b16 %v3438, %v3420
    %v4393 = vpack.c.b16 %v3439, %v3421
    %v4394 = vpack.c.b16 %v3440, %v3422
    %v4395 = vpack.c.b16 %v3441, %v3423
    %v4396 = vpack.c.b16 %v3442, %v3424
    %v4397 = vpack.c.b16 %v3443, %v3425
    %v4398 = vpack.c.b16 %v3444, %v3426
    %v4399 = vpack.c.b16 %v3445, %v3427
    %v4400 = vpack.c.b16 %v3464, %v3446
    %v4401 = vpack.c.b16 %v3465, %v3447
    %v4402 = vpack.c.b16 %v3466, %v3448
    %v4403 = vpack.c.b16 %v3467, %v3449
    %v4404 = vpack.c.b16 %v3468, %v3450
    %v4405 = vpack.c.b16 %v3469, %v3451
    %v4406 = vpack.c.b16 %v3470, %v3452
    %v4407 = vpack.c.b16 %v3471, %v3453
    %v4408 = vpack.c.b16 %v3472, %v3454
    %v4409 = vpack.c.b16 %v3473, %v3455
    %v4410 = vpack.c.b16 %v3474, %v3456
    %v4411 = vpack.c.b16 %v3475, %v3457
    %v4412 = vpack.c.b16 %v3476, %v3458
    %v4413 = vpack.c.b16 %v3477, %v3459
    %v4414 = vpack.c.b16 %v3478, %v3460
    %v4415 = vpack.c.b16 %v3479, %v3461
    %v4416 = vpack.c.b16 %v3480, %v3462
    %v4417 = vpack.c.b16 %v3481, %v3463
    %v4418 = vpack.c.b16 %v3500, %v3482
    %v4419 = vpack.c.b16 %v3501, %v3483
    %v4420 = vpack.c.b16 %v3502, %v3484
    %v4421 = vpack.c.b16 %v3503, %v3485
    %v4422 = vpack.c.b16 %v3504, %v3486
    %v4423 = vpack.c.b16 %v3505, %v3487
    %v4424 = vpack.c.b16 %v3506, %v3488
    %v4425 = vpack.c.b16 %v3507, %v3489
    %v4426 = vpack.c.b16 %v3508, %v3490
    %v4427 = vpack.c.b16 %v3509, %v3491
    %v4428 = vpack.c.b16 %v3510, %v3492
    %v4429 = vpack.c.b16 %v3511, %v3493
    %v4430 = vpack.c.b16 %v3512, %v3494
    %v4431 = vpack.c.b16 %v3513, %v3495
    %v4432 = vpack.c.b16 %v3514, %v3496
    %v4433 = vpack.c.b16 %v3515, %v3497
    %v4434 = vpack.c.b16 %v3516, %v3498
    %v4435 = vpack.c.b16 %v3517, %v3499
    %v4436 = vpack.c.b16 %v3536, %v3518
    %v4437 = vpack.c.b16 %v3537, %v3519
    %v4438 = vpack.c.b16 %v3538, %v3520
    %v4439 = vpack.c.b16 %v3539, %v3521
    %v4440 = vpack.c.b16 %v3540, %v3522
    %v4441 = vpack.c.b16 %v3541, %v3523
    %v4442 = vpack.c.b16 %v3542, %v3524
    %v4443 = vpack.c.b16 %v3543, %v3525
    %v4444 = vpack.c.b16 %v3544, %v3526
    %v4445 = vpack.c.b16 %v3545, %v3527
    %v4446 = vpack.c.b16 %v3546, %v3528
    %v4447 = vpack.c.b16 %v3547, %v3529
    %v4448 = vpack.c.b16 %v3548, %v3530
    %v4449 = vpack.c.b16 %v3549, %v3531
    %v4450 = vpack.c.b16 %v3550, %v3532
    %v4451 = vpack.c.b16 %v3551, %v3533
    %v4452 = vpack.c.b16 %v3552, %v3534
    %v4453 = vpack.c.b16 %v3553, %v3535
    %v4454 = vpack.c.b16 %v3572, %v3554
    %v4455 = vpack.c.b16 %v3573, %v3555
    %v4456 = vpack.c.b16 %v3574, %v3556
    %v4457 = vpack.c.b16 %v3575, %v3557
    %v4458 = vpack.c.b16 %v3576, %v3558
    %v4459 = vpack.c.b16 %v3577, %v3559
    %v4460 = vpack.c.b16 %v3578, %v3560
    %v4461 = vpack.c.b16 %v3579, %v3561
    %v4462 = vpack.c.b16 %v3580, %v3562
    %v4463 = vpack.c.b16 %v3581, %v3563
    %v4464 = vpack.c.b16 %v3582, %v3564
    %v4465 = vpack.c.b16 %v3583, %v3565
    %v4466 = vpack.c.b16 %v3584, %v3566
    %v4467 = vpack.c.b16 %v3585, %v3567
    %v4468 = vpack.c.b16 %v3586, %v3568
    %v4469 = vpack.c.b16 %v3587, %v3569
    %v4470 = vpack.c.b16 %v3588, %v3570
    %v4471 = vpack.c.b16 %v3589, %v3571
    %v4472 = vpack.c.b16 %v3608, %v3590
    %v4473 = vpack.c.b16 %v3609, %v3591
    %v4474 = vpack.c.b16 %v3610, %v3592
    %v4475 = vpack.c.b16 %v3611, %v3593
    %v4476 = vpack.c.b16 %v3612, %v3594
    %v4477 = vpack.c.b16 %v3613, %v3595
    %v4478 = vpack.c.b16 %v3614, %v3596
    %v4479 = vpack.c.b16 %v3615, %v3597
    %v4480 = vpack.c.b16 %v3616, %v3598
    %v4481 = vpack.c.b16 %v3617, %v3599
    %v4482 = vpack.c.b16 %v3618, %v3600
    %v4483 = vpack.c.b16 %v3619, %v3601
    %v4484 = vpack.c.b16 %v3620, %v3602
    %v4485 = vpack.c.b16 %v3621, %v3603
    %v4486 = vpack.c.b16 %v3622, %v3604
    %v4487 = vpack.c.b16 %v3623, %v3605
    %v4488 = vpack.c.b16 %v3624, %v3606
    %v4489 = vpack.c.b16 %v3625, %v3607
    %5354 = vmatprep.subr.bf16.mxu0 %v3627
    %5355 = vmatpush1.bf16.msra.mxu0 %v3626
    %5356 = vmatprep.subr.bf16.mxu0 %v3645
    %5357 = vmatpush1.bf16.msra.mxu0 %v3644
    %5358 = vmatprep.subr.bf16.mxu0 %v3663
    %5359 = vmatpush1.bf16.msra.mxu0 %v3662
    %5360 = vmatprep.subr.bf16.mxu0 %v3681
    %5361 = vmatpush1.bf16.msra.mxu0 %v3680
    %5362 = vmatprep.subr.bf16.mxu0 %v3699
    %5363 = vmatpush1.bf16.msra.mxu0 %v3698
    %5364 = vmatprep.subr.bf16.mxu0 %v3717
    %5365 = vmatpush1.bf16.msra.mxu0 %v3716
    %5366 = vmatprep.subr.bf16.mxu0 %v3735
    %5367 = vmatpush1.bf16.msra.mxu0 %v3734
    %5368 = vmatprep.subr.bf16.mxu0 %v3753
    %5369 = vmatpush1.bf16.msra.mxu0 %v3752
    %5370 = vmatprep.subr.bf16.mxu0 %v3771
    %5371 = vmatpush1.bf16.msra.mxu0 %v3770
    %5372 = vmatprep.subr.bf16.mxu0 %v3789
    %5373 = vmatpush1.bf16.msra.mxu0 %v3788
    %5374 = vmatprep.subr.bf16.mxu0 %v3807
    %5375 = vmatpush1.bf16.msra.mxu0 %v3806
    %5376 = vmatprep.subr.bf16.mxu0 %v3825
    %5377 = vmatpush1.bf16.msra.mxu0 %v3824
    %5378 = vmatprep.subr.bf16.mxu0 %v3843
    %5379 = vmatpush1.bf16.msra.mxu0 %v3842
    %5380 = vmatprep.subr.bf16.mxu0 %v3861
    %5381 = vmatpush1.bf16.msra.mxu0 %v3860
    %5382 = vmatprep.subr.bf16.mxu0 %v3879
    %5383 = vmatpush1.bf16.msra.mxu0 %v3878
    %5384 = vmatprep.subr.bf16.mxu0 %v3897
    %5385 = vmatpush1.bf16.msra.mxu0 %v3896
    %5386 = vmatprep.mubr.bf16.mxu0 %v1011
    %5387 = vmatmul.mubr.bf16.gmra.mrb[0].mxu0 %v1010
    %v5388 = vpop.f32.mrb[0].mxu0
    %v5389 = vadd.f32 0.0, %v5388
    %v5390 = vpop.f32.mrb[0].mxu0
    %v5391 = vadd.f32 0.0, %v5390
    %v5392 = vpop.f32.mrb[0].mxu0
    %v5393 = vadd.f32 0.0, %v5392
    %v5394 = vpop.f32.mrb[0].mxu0
    %v5395 = vadd.f32 0.0, %v5394
    %5396 = vmatprep.mubr.bf16.mxu0 %v1017
    %5397 = vmatmul.mubr.bf16.gmra.mrb[0].mxu0 %v1016
    %v5398 = vpop.f32.mrb[0].mxu0
    %v5399 = vadd.f32 0.0, %v5398
    %v5400 = vpop.f32.mrb[0].mxu0
    %v5401 = vadd.f32 0.0, %v5400
    %v5402 = vpop.f32.mrb[0].mxu0
    %v5403 = vpop.f32.mrb[0].mxu0
    %5404 = vdwg.mxu0
    %5405 = vmatprep.subr.bf16.mxu0 %v3915
    %5406 = vmatpush1.bf16.msra.mxu0 %v3914
    %5407 = vmatprep.subr.bf16.mxu0 %v3933
    %5408 = vmatpush1.bf16.msra.mxu0 %v3932
    %5409 = vmatprep.subr.bf16.mxu0 %v3951
    %5410 = vmatpush1.bf16.msra.mxu0 %v3950
    %5411 = vmatprep.subr.bf16.mxu0 %v3969
    %5412 = vmatpush1.bf16.msra.mxu0 %v3968
    %5413 = vmatprep.subr.bf16.mxu0 %v3987
    %5414 = vmatpush1.bf16.msra.mxu0 %v3986
    %5415 = vmatprep.subr.bf16.mxu0 %v4005
    %5416 = vmatpush1.bf16.msra.mxu0 %v4004
    %5417 = vmatprep.subr.bf16.mxu0 %v4023
    %5418 = vmatpush1.bf16.msra.mxu0 %v4022
    %5419 = vmatprep.subr.bf16.mxu0 %v4041
    %5420 = vmatpush1.bf16.msra.mxu0 %v4040
    %5421 = vmatprep.subr.bf16.mxu0 %v4059
    %5422 = vmatpush1.bf16.msra.mxu0 %v4058
    %5423 = vmatprep.subr.bf16.mxu0 %v4077
    %5424 = vmatpush1.bf16.msra.mxu0 %v4076
    %5425 = vmatprep.subr.bf16.mxu0 %v4095
    %5426 = vmatpush1.bf16.msra.mxu0 %v4094
    %5427 = vmatprep.subr.bf16.mxu0 %v4113
    %5428 = vmatpush1.bf16.msra.mxu0 %v4112
    %5429 = vmatprep.subr.bf16.mxu0 %v4131
    %5430 = vmatpush1.bf16.msra.mxu0 %v4130
    %5431 = vmatprep.subr.bf16.mxu0 %v4149
    %5432 = vmatpush1.bf16.msra.mxu0 %v4148
    %5433 = vmatprep.subr.bf16.mxu0 %v4167
    %5434 = vmatpush1.bf16.msra.mxu0 %v4166
    %5435 = vmatprep.subr.bf16.mxu0 %v4185
    %5436 = vmatpush1.bf16.msra.mxu0 %v4184
    %5437 = vmatprep.mubr.bf16.mxu0 %v1013
    %5438 = vmatmul.mubr.bf16.gmra.mrb[0].mxu0 %v1012
    %v5439 = vpop.f32.mrb[0].mxu0
    %v5440 = vadd.f32 %v5389, %v5439
    %v5441 = vpop.f32.mrb[0].mxu0
    %v5442 = vadd.f32 %v5391, %v5441
    %v5443 = vpop.f32.mrb[0].mxu0
    %v5444 = vadd.f32 %v5393, %v5443
    %v5445 = vpop.f32.mrb[0].mxu0
    %v5446 = vadd.f32 %v5395, %v5445
    %5447 = vmatprep.mubr.bf16.mxu0 %v1019
    %5448 = vmatmul.mubr.bf16.gmra.mrb[0].mxu0 %v1018
    %v5449 = vpop.f32.mrb[0].mxu0
    %v5450 = vadd.f32 %v5399, %v5449
    %v5451 = vpop.f32.mrb[0].mxu0
    %v5452 = vadd.f32 %v5401, %v5451
    %v5453 = vpop.f32.mrb[0].mxu0
    %v5454 = vpop.f32.mrb[0].mxu0
    %5455 = vdwg.mxu0
    %5456 = vmatprep.subr.bf16.mxu0 %v4203
    %5457 = vmatpush1.bf16.msra.mxu0 %v4202
    %5458 = vmatprep.subr.bf16.mxu0 %v4221
    %5459 = vmatpush1.bf16.msra.mxu0 %v4220
    %5460 = vmatprep.subr.bf16.mxu0 %v4239
    %5461 = vmatpush1.bf16.msra.mxu0 %v4238
    %5462 = vmatprep.subr.bf16.mxu0 %v4257
    %5463 = vmatpush1.bf16.msra.mxu0 %v4256
    %5464 = vmatprep.subr.bf16.mxu0 %v4275
    %5465 = vmatpush1.bf16.msra.mxu0 %v4274
    %5466 = vmatprep.subr.bf16.mxu0 %v4293
    %5467 = vmatpush1.bf16.msra.mxu0 %v4292
    %5468 = vmatprep.subr.bf16.mxu0 %v4311
    %5469 = vmatpush1.bf16.msra.mxu0 %v4310
    %5470 = vmatprep.subr.bf16.mxu0 %v4329
    %5471 = vmatpush1.bf16.msra.mxu0 %v4328
    %5472 = vmatprep.subr.bf16.mxu0 %v4347
    %5473 = vmatpush1.bf16.msra.mxu0 %v4346
    %5474 = vmatprep.subr.bf16.mxu0 %v4365
    %5475 = vmatpush1.bf16.msra.mxu0 %v4364
    %5476 = vmatprep.subr.bf16.mxu0 %v4383
    %5477 = vmatpush1.bf16.msra.mxu0 %v4382
    %5478 = vmatprep.subr.bf16.mxu0 %v4401
    %5479 = vmatpush1.bf16.msra.mxu0 %v4400
    %5480 = vmatprep.subr.bf16.mxu0 %v4419
    %5481 = vmatpush1.bf16.msra.mxu0 %v4418
    %5482 = vmatprep.subr.bf16.mxu0 %v4437
    %5483 = vmatpush1.bf16.msra.mxu0 %v4436
    %5484 = vmatprep.subr.bf16.mxu0 %v4455
    %5485 = vmatpush1.bf16.msra.mxu0 %v4454
    %5486 = vmatprep.subr.bf16.mxu0 %v4473
    %5487 = vmatpush1.bf16.msra.mxu0 %v4472
    %5488 = vmatprep.mubr.bf16.mxu0 %v1015
    %5489 = vmatmul.mubr.bf16.gmra.mrb[0].mxu0 %v1014
    %v5490 = vpop.f32.mrb[0].mxu0
    %v5491 = vadd.f32 %v5440, %v5490
    %v5492 = vpop.f32.mrb[0].mxu0
    %v5493 = vadd.f32 %v5442, %v5492
    %v5494 = vpop.f32.mrb[0].mxu0
    %v5495 = vadd.f32 %v5444, %v5494
    %v5496 = vpop.f32.mrb[0].mxu0
    %v5497 = vadd.f32 %v5446, %v5496
    %5498 = vmatprep.mubr.bf16.mxu0 %v1021
    %5499 = vmatmul.mubr.bf16.gmra.mrb[0].mxu0 %v1020
    %v5500 = vpop.f32.mrb[0].mxu0
    %v5501 = vadd.f32 %v5450, %v5500
    %v5502 = vpop.f32.mrb[0].mxu0
    %v5503 = vadd.f32 %v5452, %v5502
    %v5504 = vpop.f32.mrb[0].mxu0
    %v5505 = vpop.f32.mrb[0].mxu0
    %5506 = vdwg.mxu0
    %5507 = vmatprep.subr.bf16.mxu0 %v3629
    %5508 = vmatpush1.bf16.msra.mxu0 %v3628
    %5509 = vmatprep.subr.bf16.mxu0 %v3647
    %5510 = vmatpush1.bf16.msra.mxu0 %v3646
    %5511 = vmatprep.subr.bf16.mxu0 %v3665
    %5512 = vmatpush1.bf16.msra.mxu0 %v3664
    %5513 = vmatprep.subr.bf16.mxu0 %v3683
    %5514 = vmatpush1.bf16.msra.mxu0 %v3682
    %5515 = vmatprep.subr.bf16.mxu0 %v3701
    %5516 = vmatpush1.bf16.msra.mxu0 %v3700
    %5517 = vmatprep.subr.bf16.mxu0 %v3719
    %5518 = vmatpush1.bf16.msra.mxu0 %v3718
    %5519 = vmatprep.subr.bf16.mxu0 %v3737
    %5520 = vmatpush1.bf16.msra.mxu0 %v3736
    %5521 = vmatprep.subr.bf16.mxu0 %v3755
    %5522 = vmatpush1.bf16.msra.mxu0 %v3754
    %5523 = vmatprep.subr.bf16.mxu0 %v3773
    %5524 = vmatpush1.bf16.msra.mxu0 %v3772
    %5525 = vmatprep.subr.bf16.mxu0 %v3791
    %5526 = vmatpush1.bf16.msra.mxu0 %v3790
    %5527 = vmatprep.subr.bf16.mxu0 %v3809
    %5528 = vmatpush1.bf16.msra.mxu0 %v3808
    %5529 = vmatprep.subr.bf16.mxu0 %v3827
    %5530 = vmatpush1.bf16.msra.mxu0 %v3826
    %5531 = vmatprep.subr.bf16.mxu0 %v3845
    %5532 = vmatpush1.bf16.msra.mxu0 %v3844
    %5533 = vmatprep.subr.bf16.mxu0 %v3863
    %5534 = vmatpush1.bf16.msra.mxu0 %v3862
    %5535 = vmatprep.subr.bf16.mxu0 %v3881
    %5536 = vmatpush1.bf16.msra.mxu0 %v3880
    %5537 = vmatprep.subr.bf16.mxu0 %v3899
    %5538 = vmatpush1.bf16.msra.mxu0 %v3898
    %5539 = vmatprep.mubr.bf16.mxu0 %v1011
    %5540 = vmatmul.mubr.bf16.gmra.mrb[0].mxu0 %v1010
    %v5541 = vpop.f32.mrb[0].mxu0
    %v5542 = vadd.f32 0.0, %v5541
    %v5543 = vpop.f32.mrb[0].mxu0
    %v5544 = vadd.f32 0.0, %v5543
    %v5545 = vpop.f32.mrb[0].mxu0
    %v5546 = vadd.f32 0.0, %v5545
    %v5547 = vpop.f32.mrb[0].mxu0
    %v5548 = vadd.f32 0.0, %v5547
    %5549 = vmatprep.mubr.bf16.mxu0 %v1017
    %5550 = vmatmul.mubr.bf16.gmra.mrb[0].mxu0 %v1016
    %v5551 = vpop.f32.mrb[0].mxu0
    %v5552 = vadd.f32 0.0, %v5551
    %v5553 = vpop.f32.mrb[0].mxu0
    %v5554 = vadd.f32 0.0, %v5553
    %v5555 = vpop.f32.mrb[0].mxu0
    %v5556 = vpop.f32.mrb[0].mxu0
    %5557 = vdwg.mxu0
    %5558 = vmatprep.subr.bf16.mxu0 %v3917
    %5559 = vmatpush1.bf16.msra.mxu0 %v3916
    %5560 = vmatprep.subr.bf16.mxu0 %v3935
    %5561 = vmatpush1.bf16.msra.mxu0 %v3934
    %5562 = vmatprep.subr.bf16.mxu0 %v3953
    %5563 = vmatpush1.bf16.msra.mxu0 %v3952
    %5564 = vmatprep.subr.bf16.mxu0 %v3971
    %5565 = vmatpush1.bf16.msra.mxu0 %v3970
    %5566 = vmatprep.subr.bf16.mxu0 %v3989
    %5567 = vmatpush1.bf16.msra.mxu0 %v3988
    %5568 = vmatprep.subr.bf16.mxu0 %v4007
    %5569 = vmatpush1.bf16.msra.mxu0 %v4006
    %5570 = vmatprep.subr.bf16.mxu0 %v4025
    %5571 = vmatpush1.bf16.msra.mxu0 %v4024
    %5572 = vmatprep.subr.bf16.mxu0 %v4043
    %5573 = vmatpush1.bf16.msra.mxu0 %v4042
    %5574 = vmatprep.subr.bf16.mxu0 %v4061
    %5575 = vmatpush1.bf16.msra.mxu0 %v4060
    %5576 = vmatprep.subr.bf16.mxu0 %v4079
    %5577 = vmatpush1.bf16.msra.mxu0 %v4078
    %5578 = vmatprep.subr.bf16.mxu0 %v4097
    %5579 = vmatpush1.bf16.msra.mxu0 %v4096
    %5580 = vmatprep.subr.bf16.mxu0 %v4115
    %5581 = vmatpush1.bf16.msra.mxu0 %v4114
    %5582 = vmatprep.subr.bf16.mxu0 %v4133
    %5583 = vmatpush1.bf16.msra.mxu0 %v4132
    %5584 = vmatprep.subr.bf16.mxu0 %v4151
    %5585 = vmatpush1.bf16.msra.mxu0 %v4150
    %5586 = vmatprep.subr.bf16.mxu0 %v4169
    %5587 = vmatpush1.bf16.msra.mxu0 %v4168
    %5588 = vmatprep.subr.bf16.mxu0 %v4187
    %5589 = vmatpush1.bf16.msra.mxu0 %v4186
    %5590 = vmatprep.mubr.bf16.mxu0 %v1013
    %5591 = vmatmul.mubr.bf16.gmra.mrb[0].mxu0 %v1012
    %v5592 = vpop.f32.mrb[0].mxu0
    %v5593 = vadd.f32 %v5542, %v5592
    %v5594 = vpop.f32.mrb[0].mxu0
    %v5595 = vadd.f32 %v5544, %v5594
    %v5596 = vpop.f32.mrb[0].mxu0
    %v5597 = vadd.f32 %v5546, %v5596
    %v5598 = vpop.f32.mrb[0].mxu0
    %v5599 = vadd.f32 %v5548, %v5598
    %5600 = vmatprep.mubr.bf16.mxu0 %v1019
    %5601 = vmatmul.mubr.bf16.gmra.mrb[0].mxu0 %v1018
    %v5602 = vpop.f32.mrb[0].mxu0
    %v5603 = vadd.f32 %v5552, %v5602
    %v5604 = vpop.f32.mrb[0].mxu0
    %v5605 = vadd.f32 %v5554, %v5604
    %v5606 = vpop.f32.mrb[0].mxu0
    %v5607 = vpop.f32.mrb[0].mxu0
    %5608 = vdwg.mxu0
    %5609 = vmatprep.subr.bf16.mxu0 %v4205
    %5610 = vmatpush1.bf16.msra.mxu0 %v4204
    %5611 = vmatprep.subr.bf16.mxu0 %v4223
    %5612 = vmatpush1.bf16.msra.mxu0 %v4222
    %5613 = vmatprep.subr.bf16.mxu0 %v4241
    %5614 = vmatpush1.bf16.msra.mxu0 %v4240
    %5615 = vmatprep.subr.bf16.mxu0 %v4259
    %5616 = vmatpush1.bf16.msra.mxu0 %v4258
    %5617 = vmatprep.subr.bf16.mxu0 %v4277
    %5618 = vmatpush1.bf16.msra.mxu0 %v4276
    %5619 = vmatprep.subr.bf16.mxu0 %v4295
    %5620 = vmatpush1.bf16.msra.mxu0 %v4294
    %5621 = vmatprep.subr.bf16.mxu0 %v4313
    %5622 = vmatpush1.bf16.msra.mxu0 %v4312
    %5623 = vmatprep.subr.bf16.mxu0 %v4331
    %5624 = vmatpush1.bf16.msra.mxu0 %v4330
    %5625 = vmatprep.subr.bf16.mxu0 %v4349
    %5626 = vmatpush1.bf16.msra.mxu0 %v4348
    %5627 = vmatprep.subr.bf16.mxu0 %v4367
    %5628 = vmatpush1.bf16.msra.mxu0 %v4366
    %5629 = vmatprep.subr.bf16.mxu0 %v4385
    %5630 = vmatpush1.bf16.msra.mxu0 %v4384
    %5631 = vmatprep.subr.bf16.mxu0 %v4403
    %5632 = vmatpush1.bf16.msra.mxu0 %v4402
    %5633 = vmatprep.subr.bf16.mxu0 %v4421
    %5634 = vmatpush1.bf16.msra.mxu0 %v4420
    %5635 = vmatprep.subr.bf16.mxu0 %v4439
    %5636 = vmatpush1.bf16.msra.mxu0 %v4438
    %5637 = vmatprep.subr.bf16.mxu0 %v4457
    %5638 = vmatpush1.bf16.msra.mxu0 %v4456
    %5639 = vmatprep.subr.bf16.mxu0 %v4475
    %5640 = vmatpush1.bf16.msra.mxu0 %v4474
    %5641 = vmatprep.mubr.bf16.mxu0 %v1015
    %5642 = vmatmul.mubr.bf16.gmra.mrb[0].mxu0 %v1014
    %v5643 = vpop.f32.mrb[0].mxu0
    %v5644 = vadd.f32 %v5593, %v5643
    %v5645 = vpop.f32.mrb[0].mxu0
    %v5646 = vadd.f32 %v5595, %v5645
    %v5647 = vpop.f32.mrb[0].mxu0
    %v5648 = vadd.f32 %v5597, %v5647
    %v5649 = vpop.f32.mrb[0].mxu0
    %v5650 = vadd.f32 %v5599, %v5649
    %5651 = vmatprep.mubr.bf16.mxu0 %v1021
    %5652 = vmatmul.mubr.bf16.gmra.mrb[0].mxu0 %v1020
    %v5653 = vpop.f32.mrb[0].mxu0
    %v5654 = vadd.f32 %v5603, %v5653
    %v5655 = vpop.f32.mrb[0].mxu0
    %v5656 = vadd.f32 %v5605, %v5655
    %v5657 = vpop.f32.mrb[0].mxu0
    %v5658 = vpop.f32.mrb[0].mxu0
    %5659 = vdwg.mxu0
    %5660 = vmatprep.subr.bf16.mxu0 %v3631
    %5661 = vmatpush1.bf16.msra.mxu0 %v3630
    %5662 = vmatprep.subr.bf16.mxu0 %v3649
    %5663 = vmatpush1.bf16.msra.mxu0 %v3648
    %5664 = vmatprep.subr.bf16.mxu0 %v3667
    %5665 = vmatpush1.bf16.msra.mxu0 %v3666
    %5666 = vmatprep.subr.bf16.mxu0 %v3685
    %5667 = vmatpush1.bf16.msra.mxu0 %v3684
    %5668 = vmatprep.subr.bf16.mxu0 %v3703
    %5669 = vmatpush1.bf16.msra.mxu0 %v3702
    %5670 = vmatprep.subr.bf16.mxu0 %v3721
    %5671 = vmatpush1.bf16.msra.mxu0 %v3720
    %5672 = vmatprep.subr.bf16.mxu0 %v3739
    %5673 = vmatpush1.bf16.msra.mxu0 %v3738
    %5674 = vmatprep.subr.bf16.mxu0 %v3757
    %5675 = vmatpush1.bf16.msra.mxu0 %v3756
    %5676 = vmatprep.subr.bf16.mxu0 %v3775
    %5677 = vmatpush1.bf16.msra.mxu0 %v3774
    %5678 = vmatprep.subr.bf16.mxu0 %v3793
    %5679 = vmatpush1.bf16.msra.mxu0 %v3792
    %5680 = vmatprep.subr.bf16.mxu0 %v3811
    %5681 = vmatpush1.bf16.msra.mxu0 %v3810
    %5682 = vmatprep.subr.bf16.mxu0 %v3829
    %5683 = vmatpush1.bf16.msra.mxu0 %v3828
    %5684 = vmatprep.subr.bf16.mxu0 %v3847
    %5685 = vmatpush1.bf16.msra.mxu0 %v3846
    %5686 = vmatprep.subr.bf16.mxu0 %v3865
    %5687 = vmatpush1.bf16.msra.mxu0 %v3864
    %5688 = vmatprep.subr.bf16.mxu0 %v3883
    %5689 = vmatpush1.bf16.msra.mxu0 %v3882
    %5690 = vmatprep.subr.bf16.mxu0 %v3901
    %5691 = vmatpush1.bf16.msra.mxu0 %v3900
    %5692 = vmatprep.mubr.bf16.mxu0 %v1011
    %5693 = vmatmul.mubr.bf16.gmra.mrb[0].mxu0 %v1010
    %v5694 = vpop.f32.mrb[0].mxu0
    %v5695 = vadd.f32 0.0, %v5694
    %v5696 = vpop.f32.mrb[0].mxu0
    %v5697 = vadd.f32 0.0, %v5696
    %v5698 = vpop.f32.mrb[0].mxu0
    %v5699 = vadd.f32 0.0, %v5698
    %v5700 = vpop.f32.mrb[0].mxu0
    %v5701 = vadd.f32 0.0, %v5700
    %5702 = vmatprep.mubr.bf16.mxu0 %v1017
    %5703 = vmatmul.mubr.bf16.gmra.mrb[0].mxu0 %v1016
    %v5704 = vpop.f32.mrb[0].mxu0
    %v5705 = vadd.f32 0.0, %v5704
    %v5706 = vpop.f32.mrb[0].mxu0
    %v5707 = vadd.f32 0.0, %v5706
    %v5708 = vpop.f32.mrb[0].mxu0
    %v5709 = vpop.f32.mrb[0].mxu0
    %5710 = vdwg.mxu0
    %5711 = vmatprep.subr.bf16.mxu0 %v3919
    %5712 = vmatpush1.bf16.msra.mxu0 %v3918
    %5713 = vmatprep.subr.bf16.mxu0 %v3937
    %5714 = vmatpush1.bf16.msra.mxu0 %v3936
    %5715 = vmatprep.subr.bf16.mxu0 %v3955
    %5716 = vmatpush1.bf16.msra.mxu0 %v3954
    %5717 = vmatprep.subr.bf16.mxu0 %v3973
    %5718 = vmatpush1.bf16.msra.mxu0 %v3972
    %5719 = vmatprep.subr.bf16.mxu0 %v3991
    %5720 = vmatpush1.bf16.msra.mxu0 %v3990
    %5721 = vmatprep.subr.bf16.mxu0 %v4009
    %5722 = vmatpush1.bf16.msra.mxu0 %v4008
    %5723 = vmatprep.subr.bf16.mxu0 %v4027
    %5724 = vmatpush1.bf16.msra.mxu0 %v4026
    %5725 = vmatprep.subr.bf16.mxu0 %v4045
    %5726 = vmatpush1.bf16.msra.mxu0 %v4044
    %5727 = vmatprep.subr.bf16.mxu0 %v4063
    %5728 = vmatpush1.bf16.msra.mxu0 %v4062
    %5729 = vmatprep.subr.bf16.mxu0 %v4081
    %5730 = vmatpush1.bf16.msra.mxu0 %v4080
    %5731 = vmatprep.subr.bf16.mxu0 %v4099
    %5732 = vmatpush1.bf16.msra.mxu0 %v4098
    %5733 = vmatprep.subr.bf16.mxu0 %v4117
    %5734 = vmatpush1.bf16.msra.mxu0 %v4116
    %5735 = vmatprep.subr.bf16.mxu0 %v4135
    %5736 = vmatpush1.bf16.msra.mxu0 %v4134
    %5737 = vmatprep.subr.bf16.mxu0 %v4153
    %5738 = vmatpush1.bf16.msra.mxu0 %v4152
    %5739 = vmatprep.subr.bf16.mxu0 %v4171
    %5740 = vmatpush1.bf16.msra.mxu0 %v4170
    %5741 = vmatprep.subr.bf16.mxu0 %v4189
    %5742 = vmatpush1.bf16.msra.mxu0 %v4188
    %5743 = vmatprep.mubr.bf16.mxu0 %v1013
    %5744 = vmatmul.mubr.bf16.gmra.mrb[0].mxu0 %v1012
    %v5745 = vpop.f32.mrb[0].mxu0
    %v5746 = vadd.f32 %v5695, %v5745
    %v5747 = vpop.f32.mrb[0].mxu0
    %v5748 = vadd.f32 %v5697, %v5747
    %v5749 = vpop.f32.mrb[0].mxu0
    %v5750 = vadd.f32 %v5699, %v5749
    %v5751 = vpop.f32.mrb[0].mxu0
    %v5752 = vadd.f32 %v5701, %v5751
    %5753 = vmatprep.mubr.bf16.mxu0 %v1019
    %5754 = vmatmul.mubr.bf16.gmra.mrb[0].mxu0 %v1018
    %v5755 = vpop.f32.mrb[0].mxu0
    %v5756 = vadd.f32 %v5705, %v5755
    %v5757 = vpop.f32.mrb[0].mxu0
    %v5758 = vadd.f32 %v5707, %v5757
    %v5759 = vpop.f32.mrb[0].mxu0
    %v5760 = vpop.f32.mrb[0].mxu0
    %5761 = vdwg.mxu0
    %5762 = vmatprep.subr.bf16.mxu0 %v4207
    %5763 = vmatpush1.bf16.msra.mxu0 %v4206
    %5764 = vmatprep.subr.bf16.mxu0 %v4225
    %5765 = vmatpush1.bf16.msra.mxu0 %v4224
    %5766 = vmatprep.subr.bf16.mxu0 %v4243
    %5767 = vmatpush1.bf16.msra.mxu0 %v4242
    %5768 = vmatprep.subr.bf16.mxu0 %v4261
    %5769 = vmatpush1.bf16.msra.mxu0 %v4260
    %5770 = vmatprep.subr.bf16.mxu0 %v4279
    %5771 = vmatpush1.bf16.msra.mxu0 %v4278
    %5772 = vmatprep.subr.bf16.mxu0 %v4297
    %5773 = vmatpush1.bf16.msra.mxu0 %v4296
    %5774 = vmatprep.subr.bf16.mxu0 %v4315
    %5775 = vmatpush1.bf16.msra.mxu0 %v4314
    %5776 = vmatprep.subr.bf16.mxu0 %v4333
    %5777 = vmatpush1.bf16.msra.mxu0 %v4332
    %5778 = vmatprep.subr.bf16.mxu0 %v4351
    %5779 = vmatpush1.bf16.msra.mxu0 %v4350
    %5780 = vmatprep.subr.bf16.mxu0 %v4369
    %5781 = vmatpush1.bf16.msra.mxu0 %v4368
    %5782 = vmatprep.subr.bf16.mxu0 %v4387
    %5783 = vmatpush1.bf16.msra.mxu0 %v4386
    %5784 = vmatprep.subr.bf16.mxu0 %v4405
    %5785 = vmatpush1.bf16.msra.mxu0 %v4404
    %5786 = vmatprep.subr.bf16.mxu0 %v4423
    %5787 = vmatpush1.bf16.msra.mxu0 %v4422
    %5788 = vmatprep.subr.bf16.mxu0 %v4441
    %5789 = vmatpush1.bf16.msra.mxu0 %v4440
    %5790 = vmatprep.subr.bf16.mxu0 %v4459
    %5791 = vmatpush1.bf16.msra.mxu0 %v4458
    %5792 = vmatprep.subr.bf16.mxu0 %v4477
    %5793 = vmatpush1.bf16.msra.mxu0 %v4476
    %5794 = vmatprep.mubr.bf16.mxu0 %v1015
    %5795 = vmatmul.mubr.bf16.gmra.mrb[0].mxu0 %v1014
    %v5796 = vpop.f32.mrb[0].mxu0
    %v5797 = vadd.f32 %v5746, %v5796
    %v5798 = vpop.f32.mrb[0].mxu0
    %v5799 = vadd.f32 %v5748, %v5798
    %v5800 = vpop.f32.mrb[0].mxu0
    %v5801 = vadd.f32 %v5750, %v5800
    %v5802 = vpop.f32.mrb[0].mxu0
    %v5803 = vadd.f32 %v5752, %v5802
    %5804 = vmatprep.mubr.bf16.mxu0 %v1021
    %5805 = vmatmul.mubr.bf16.gmra.mrb[0].mxu0 %v1020
    %v5806 = vpop.f32.mrb[0].mxu0
    %v5807 = vadd.f32 %v5756, %v5806
    %v5808 = vpop.f32.mrb[0].mxu0
    %v5809 = vadd.f32 %v5758, %v5808
    %v5810 = vpop.f32.mrb[0].mxu0
    %v5811 = vpop.f32.mrb[0].mxu0
    %5812 = vdwg.mxu0
    %5813 = vmatprep.subr.bf16.mxu0 %v3633
    %5814 = vmatpush1.bf16.msra.mxu0 %v3632
    %5815 = vmatprep.subr.bf16.mxu0 %v3651
    %5816 = vmatpush1.bf16.msra.mxu0 %v3650
    %5817 = vmatprep.subr.bf16.mxu0 %v3669
    %5818 = vmatpush1.bf16.msra.mxu0 %v3668
    %5819 = vmatprep.subr.bf16.mxu0 %v3687
    %5820 = vmatpush1.bf16.msra.mxu0 %v3686
    %5821 = vmatprep.subr.bf16.mxu0 %v3705
    %5822 = vmatpush1.bf16.msra.mxu0 %v3704
    %5823 = vmatprep.subr.bf16.mxu0 %v3723
    %5824 = vmatpush1.bf16.msra.mxu0 %v3722
    %5825 = vmatprep.subr.bf16.mxu0 %v3741
    %5826 = vmatpush1.bf16.msra.mxu0 %v3740
    %5827 = vmatprep.subr.bf16.mxu0 %v3759
    %5828 = vmatpush1.bf16.msra.mxu0 %v3758
    %5829 = vmatprep.subr.bf16.mxu0 %v3777
    %5830 = vmatpush1.bf16.msra.mxu0 %v3776
    %5831 = vmatprep.subr.bf16.mxu0 %v3795
    %5832 = vmatpush1.bf16.msra.mxu0 %v3794
    %5833 = vmatprep.subr.bf16.mxu0 %v3813
    %5834 = vmatpush1.bf16.msra.mxu0 %v3812
    %5835 = vmatprep.subr.bf16.mxu0 %v3831
    %5836 = vmatpush1.bf16.msra.mxu0 %v3830
    %5837 = vmatprep.subr.bf16.mxu0 %v3849
    %5838 = vmatpush1.bf16.msra.mxu0 %v3848
    %5839 = vmatprep.subr.bf16.mxu0 %v3867
    %5840 = vmatpush1.bf16.msra.mxu0 %v3866
    %5841 = vmatprep.subr.bf16.mxu0 %v3885
    %5842 = vmatpush1.bf16.msra.mxu0 %v3884
    %5843 = vmatprep.subr.bf16.mxu0 %v3903
    %5844 = vmatpush1.bf16.msra.mxu0 %v3902
    %5845 = vmatprep.mubr.bf16.mxu0 %v1011
    %5846 = vmatmul.mubr.bf16.gmra.mrb[0].mxu0 %v1010
    %v5847 = vpop.f32.mrb[0].mxu0
    %v5848 = vadd.f32 0.0, %v5847
    %v5849 = vpop.f32.mrb[0].mxu0
    %v5850 = vadd.f32 0.0, %v5849
    %v5851 = vpop.f32.mrb[0].mxu0
    %v5852 = vadd.f32 0.0, %v5851
    %v5853 = vpop.f32.mrb[0].mxu0
    %v5854 = vadd.f32 0.0, %v5853
    %5855 = vmatprep.mubr.bf16.mxu0 %v1017
    %5856 = vmatmul.mubr.bf16.gmra.mrb[0].mxu0 %v1016
    %v5857 = vpop.f32.mrb[0].mxu0
    %v5858 = vadd.f32 0.0, %v5857
    %v5859 = vpop.f32.mrb[0].mxu0
    %v5860 = vadd.f32 0.0, %v5859
    %v5861 = vpop.f32.mrb[0].mxu0
    %v5862 = vpop.f32.mrb[0].mxu0
    %5863 = vdwg.mxu0
    %5864 = vmatprep.subr.bf16.mxu0 %v3921
    %5865 = vmatpush1.bf16.msra.mxu0 %v3920
    %5866 = vmatprep.subr.bf16.mxu0 %v3939
    %5867 = vmatpush1.bf16.msra.mxu0 %v3938
    %5868 = vmatprep.subr.bf16.mxu0 %v3957
    %5869 = vmatpush1.bf16.msra.mxu0 %v3956
    %5870 = vmatprep.subr.bf16.mxu0 %v3975
    %5871 = vmatpush1.bf16.msra.mxu0 %v3974
    %5872 = vmatprep.subr.bf16.mxu0 %v3993
    %5873 = vmatpush1.bf16.msra.mxu0 %v3992
    %5874 = vmatprep.subr.bf16.mxu0 %v4011
    %5875 = vmatpush1.bf16.msra.mxu0 %v4010
    %5876 = vmatprep.subr.bf16.mxu0 %v4029
    %5877 = vmatpush1.bf16.msra.mxu0 %v4028
    %5878 = vmatprep.subr.bf16.mxu0 %v4047
    %5879 = vmatpush1.bf16.msra.mxu0 %v4046
    %5880 = vmatprep.subr.bf16.mxu0 %v4065
    %5881 = vmatpush1.bf16.msra.mxu0 %v4064
    %5882 = vmatprep.subr.bf16.mxu0 %v4083
    %5883 = vmatpush1.bf16.msra.mxu0 %v4082
    %5884 = vmatprep.subr.bf16.mxu0 %v4101
    %5885 = vmatpush1.bf16.msra.mxu0 %v4100
    %5886 = vmatprep.subr.bf16.mxu0 %v4119
    %5887 = vmatpush1.bf16.msra.mxu0 %v4118
    %5888 = vmatprep.subr.bf16.mxu0 %v4137
    %5889 = vmatpush1.bf16.msra.mxu0 %v4136
    %5890 = vmatprep.subr.bf16.mxu0 %v4155
    %5891 = vmatpush1.bf16.msra.mxu0 %v4154
    %5892 = vmatprep.subr.bf16.mxu0 %v4173
    %5893 = vmatpush1.bf16.msra.mxu0 %v4172
    %5894 = vmatprep.subr.bf16.mxu0 %v4191
    %5895 = vmatpush1.bf16.msra.mxu0 %v4190
    %5896 = vmatprep.mubr.bf16.mxu0 %v1013
    %5897 = vmatmul.mubr.bf16.gmra.mrb[0].mxu0 %v1012
    %v5898 = vpop.f32.mrb[0].mxu0
    %v5899 = vadd.f32 %v5848, %v5898
    %v5900 = vpop.f32.mrb[0].mxu0
    %v5901 = vadd.f32 %v5850, %v5900
    %v5902 = vpop.f32.mrb[0].mxu0
    %v5903 = vadd.f32 %v5852, %v5902
    %v5904 = vpop.f32.mrb[0].mxu0
    %v5905 = vadd.f32 %v5854, %v5904
    %5906 = vmatprep.mubr.bf16.mxu0 %v1019
    %5907 = vmatmul.mubr.bf16.gmra.mrb[0].mxu0 %v1018
    %v5908 = vpop.f32.mrb[0].mxu0
    %v5909 = vadd.f32 %v5858, %v5908
    %v5910 = vpop.f32.mrb[0].mxu0
    %v5911 = vadd.f32 %v5860, %v5910
    %v5912 = vpop.f32.mrb[0].mxu0
    %v5913 = vpop.f32.mrb[0].mxu0
    %5914 = vdwg.mxu0
    %5915 = vmatprep.subr.bf16.mxu0 %v4209
    %5916 = vmatpush1.bf16.msra.mxu0 %v4208
    %5917 = vmatprep.subr.bf16.mxu0 %v4227
    %5918 = vmatpush1.bf16.msra.mxu0 %v4226
    %5919 = vmatprep.subr.bf16.mxu0 %v4245
    %5920 = vmatpush1.bf16.msra.mxu0 %v4244
    %5921 = vmatprep.subr.bf16.mxu0 %v4263
    %5922 = vmatpush1.bf16.msra.mxu0 %v4262
    %5923 = vmatprep.subr.bf16.mxu0 %v4281
    %5924 = vmatpush1.bf16.msra.mxu0 %v4280
    %5925 = vmatprep.subr.bf16.mxu0 %v4299
    %5926 = vmatpush1.bf16.msra.mxu0 %v4298
    %5927 = vmatprep.subr.bf16.mxu0 %v4317
    %5928 = vmatpush1.bf16.msra.mxu0 %v4316
    %5929 = vmatprep.subr.bf16.mxu0 %v4335
    %5930 = vmatpush1.bf16.msra.mxu0 %v4334
    %5931 = vmatprep.subr.bf16.mxu0 %v4353
    %5932 = vmatpush1.bf16.msra.mxu0 %v4352
    %5933 = vmatprep.subr.bf16.mxu0 %v4371
    %5934 = vmatpush1.bf16.msra.mxu0 %v4370
    %5935 = vmatprep.subr.bf16.mxu0 %v4389
    %5936 = vmatpush1.bf16.msra.mxu0 %v4388
    %5937 = vmatprep.subr.bf16.mxu0 %v4407
    %5938 = vmatpush1.bf16.msra.mxu0 %v4406
    %5939 = vmatprep.subr.bf16.mxu0 %v4425
    %5940 = vmatpush1.bf16.msra.mxu0 %v4424
    %5941 = vmatprep.subr.bf16.mxu0 %v4443
    %5942 = vmatpush1.bf16.msra.mxu0 %v4442
    %5943 = vmatprep.subr.bf16.mxu0 %v4461
    %5944 = vmatpush1.bf16.msra.mxu0 %v4460
    %5945 = vmatprep.subr.bf16.mxu0 %v4479
    %5946 = vmatpush1.bf16.msra.mxu0 %v4478
    %5947 = vmatprep.mubr.bf16.mxu0 %v1015
    %5948 = vmatmul.mubr.bf16.gmra.mrb[0].mxu0 %v1014
    %v5949 = vpop.f32.mrb[0].mxu0
    %v5950 = vadd.f32 %v5899, %v5949
    %v5951 = vpop.f32.mrb[0].mxu0
    %v5952 = vadd.f32 %v5901, %v5951
    %v5953 = vpop.f32.mrb[0].mxu0
    %v5954 = vadd.f32 %v5903, %v5953
    %v5955 = vpop.f32.mrb[0].mxu0
    %v5956 = vadd.f32 %v5905, %v5955
    %5957 = vmatprep.mubr.bf16.mxu0 %v1021
    %5958 = vmatmul.mubr.bf16.gmra.mrb[0].mxu0 %v1020
    %v5959 = vpop.f32.mrb[0].mxu0
    %v5960 = vadd.f32 %v5909, %v5959
    %v5961 = vpop.f32.mrb[0].mxu0
    %v5962 = vadd.f32 %v5911, %v5961
    %v5963 = vpop.f32.mrb[0].mxu0
    %v5964 = vpop.f32.mrb[0].mxu0
    %5965 = vdwg.mxu0
    %5966 = vmatprep.subr.bf16.mxu0 %v3635
    %5967 = vmatpush1.bf16.msra.mxu0 %v3634
    %5968 = vmatprep.subr.bf16.mxu0 %v3653
    %5969 = vmatpush1.bf16.msra.mxu0 %v3652
    %5970 = vmatprep.subr.bf16.mxu0 %v3671
    %5971 = vmatpush1.bf16.msra.mxu0 %v3670
    %5972 = vmatprep.subr.bf16.mxu0 %v3689
    %5973 = vmatpush1.bf16.msra.mxu0 %v3688
    %5974 = vmatprep.subr.bf16.mxu0 %v3707
    %5975 = vmatpush1.bf16.msra.mxu0 %v3706
    %5976 = vmatprep.subr.bf16.mxu0 %v3725
    %5977 = vmatpush1.bf16.msra.mxu0 %v3724
    %5978 = vmatprep.subr.bf16.mxu0 %v3743
    %5979 = vmatpush1.bf16.msra.mxu0 %v3742
    %5980 = vmatprep.subr.bf16.mxu0 %v3761
    %5981 = vmatpush1.bf16.msra.mxu0 %v3760
    %5982 = vmatprep.subr.bf16.mxu0 %v3779
    %5983 = vmatpush1.bf16.msra.mxu0 %v3778
    %5984 = vmatprep.subr.bf16.mxu0 %v3797
    %5985 = vmatpush1.bf16.msra.mxu0 %v3796
    %5986 = vmatprep.subr.bf16.mxu0 %v3815
    %5987 = vmatpush1.bf16.msra.mxu0 %v3814
    %5988 = vmatprep.subr.bf16.mxu0 %v3833
    %5989 = vmatpush1.bf16.msra.mxu0 %v3832
    %5990 = vmatprep.subr.bf16.mxu0 %v3851
    %5991 = vmatpush1.bf16.msra.mxu0 %v3850
    %5992 = vmatprep.subr.bf16.mxu0 %v3869
    %5993 = vmatpush1.bf16.msra.mxu0 %v3868
    %5994 = vmatprep.subr.bf16.mxu0 %v3887
    %5995 = vmatpush1.bf16.msra.mxu0 %v3886
    %5996 = vmatprep.subr.bf16.mxu0 %v3905
    %5997 = vmatpush1.bf16.msra.mxu0 %v3904
    %5998 = vmatprep.mubr.bf16.mxu0 %v1011
    %5999 = vmatmul.mubr.bf16.gmra.mrb[0].mxu0 %v1010
    %v6000 = vpop.f32.mrb[0].mxu0
    %v6001 = vadd.f32 0.0, %v6000
    %v6002 = vpop.f32.mrb[0].mxu0
    %v6003 = vadd.f32 0.0, %v6002
    %v6004 = vpop.f32.mrb[0].mxu0
    %v6005 = vadd.f32 0.0, %v6004
    %v6006 = vpop.f32.mrb[0].mxu0
    %v6007 = vadd.f32 0.0, %v6006
    %6008 = vmatprep.mubr.bf16.mxu0 %v1017
    %6009 = vmatmul.mubr.bf16.gmra.mrb[0].mxu0 %v1016
    %v6010 = vpop.f32.mrb[0].mxu0
    %v6011 = vadd.f32 0.0, %v6010
    %v6012 = vpop.f32.mrb[0].mxu0
    %v6013 = vadd.f32 0.0, %v6012
    %v6014 = vpop.f32.mrb[0].mxu0
    %v6015 = vpop.f32.mrb[0].mxu0
    %6016 = vdwg.mxu0
    %6017 = vmatprep.subr.bf16.mxu0 %v3923
    %6018 = vmatpush1.bf16.msra.mxu0 %v3922
    %6019 = vmatprep.subr.bf16.mxu0 %v3941
    %6020 = vmatpush1.bf16.msra.mxu0 %v3940
    %6021 = vmatprep.subr.bf16.mxu0 %v3959
    %6022 = vmatpush1.bf16.msra.mxu0 %v3958
    %6023 = vmatprep.subr.bf16.mxu0 %v3977
    %6024 = vmatpush1.bf16.msra.mxu0 %v3976
    %6025 = vmatprep.subr.bf16.mxu0 %v3995
    %6026 = vmatpush1.bf16.msra.mxu0 %v3994
    %6027 = vmatprep.subr.bf16.mxu0 %v4013
    %6028 = vmatpush1.bf16.msra.mxu0 %v4012
    %6029 = vmatprep.subr.bf16.mxu0 %v4031
    %6030 = vmatpush1.bf16.msra.mxu0 %v4030
    %6031 = vmatprep.subr.bf16.mxu0 %v4049
    %6032 = vmatpush1.bf16.msra.mxu0 %v4048
    %6033 = vmatprep.subr.bf16.mxu0 %v4067
    %6034 = vmatpush1.bf16.msra.mxu0 %v4066
    %6035 = vmatprep.subr.bf16.mxu0 %v4085
    %6036 = vmatpush1.bf16.msra.mxu0 %v4084
    %6037 = vmatprep.subr.bf16.mxu0 %v4103
    %6038 = vmatpush1.bf16.msra.mxu0 %v4102
    %6039 = vmatprep.subr.bf16.mxu0 %v4121
    %6040 = vmatpush1.bf16.msra.mxu0 %v4120
    %6041 = vmatprep.subr.bf16.mxu0 %v4139
    %6042 = vmatpush1.bf16.msra.mxu0 %v4138
    %6043 = vmatprep.subr.bf16.mxu0 %v4157
    %6044 = vmatpush1.bf16.msra.mxu0 %v4156
    %6045 = vmatprep.subr.bf16.mxu0 %v4175
    %6046 = vmatpush1.bf16.msra.mxu0 %v4174
    %6047 = vmatprep.subr.bf16.mxu0 %v4193
    %6048 = vmatpush1.bf16.msra.mxu0 %v4192
    %6049 = vmatprep.mubr.bf16.mxu0 %v1013
    %6050 = vmatmul.mubr.bf16.gmra.mrb[0].mxu0 %v1012
    %v6051 = vpop.f32.mrb[0].mxu0
    %v6052 = vadd.f32 %v6001, %v6051
    %v6053 = vpop.f32.mrb[0].mxu0
    %v6054 = vadd.f32 %v6003, %v6053
    %v6055 = vpop.f32.mrb[0].mxu0
    %v6056 = vadd.f32 %v6005, %v6055
    %v6057 = vpop.f32.mrb[0].mxu0
    %v6058 = vadd.f32 %v6007, %v6057
    %6059 = vmatprep.mubr.bf16.mxu0 %v1019
    %6060 = vmatmul.mubr.bf16.gmra.mrb[0].mxu0 %v1018
    %v6061 = vpop.f32.mrb[0].mxu0
    %v6062 = vadd.f32 %v6011, %v6061
    %v6063 = vpop.f32.mrb[0].mxu0
    %v6064 = vadd.f32 %v6013, %v6063
    %v6065 = vpop.f32.mrb[0].mxu0
    %v6066 = vpop.f32.mrb[0].mxu0
    %6067 = vdwg.mxu0
    %6068 = vmatprep.subr.bf16.mxu0 %v4211
    %6069 = vmatpush1.bf16.msra.mxu0 %v4210
    %6070 = vmatprep.subr.bf16.mxu0 %v4229
    %6071 = vmatpush1.bf16.msra.mxu0 %v4228
    %6072 = vmatprep.subr.bf16.mxu0 %v4247
    %6073 = vmatpush1.bf16.msra.mxu0 %v4246
    %6074 = vmatprep.subr.bf16.mxu0 %v4265
    %6075 = vmatpush1.bf16.msra.mxu0 %v4264
    %6076 = vmatprep.subr.bf16.mxu0 %v4283
    %6077 = vmatpush1.bf16.msra.mxu0 %v4282
    %6078 = vmatprep.subr.bf16.mxu0 %v4301
    %6079 = vmatpush1.bf16.msra.mxu0 %v4300
    %6080 = vmatprep.subr.bf16.mxu0 %v4319
    %6081 = vmatpush1.bf16.msra.mxu0 %v4318
    %6082 = vmatprep.subr.bf16.mxu0 %v4337
    %6083 = vmatpush1.bf16.msra.mxu0 %v4336
    %6084 = vmatprep.subr.bf16.mxu0 %v4355
    %6085 = vmatpush1.bf16.msra.mxu0 %v4354
    %6086 = vmatprep.subr.bf16.mxu0 %v4373
    %6087 = vmatpush1.bf16.msra.mxu0 %v4372
    %6088 = vmatprep.subr.bf16.mxu0 %v4391
    %6089 = vmatpush1.bf16.msra.mxu0 %v4390
    %6090 = vmatprep.subr.bf16.mxu0 %v4409
    %6091 = vmatpush1.bf16.msra.mxu0 %v4408
    %6092 = vmatprep.subr.bf16.mxu0 %v4427
    %6093 = vmatpush1.bf16.msra.mxu0 %v4426
    %6094 = vmatprep.subr.bf16.mxu0 %v4445
    %6095 = vmatpush1.bf16.msra.mxu0 %v4444
    %6096 = vmatprep.subr.bf16.mxu0 %v4463
    %6097 = vmatpush1.bf16.msra.mxu0 %v4462
    %6098 = vmatprep.subr.bf16.mxu0 %v4481
    %6099 = vmatpush1.bf16.msra.mxu0 %v4480
    %6100 = vmatprep.mubr.bf16.mxu0 %v1015
    %6101 = vmatmul.mubr.bf16.gmra.mrb[0].mxu0 %v1014
    %v6102 = vpop.f32.mrb[0].mxu0
    %v6103 = vadd.f32 %v6052, %v6102
    %v6104 = vpop.f32.mrb[0].mxu0
    %v6105 = vadd.f32 %v6054, %v6104
    %v6106 = vpop.f32.mrb[0].mxu0
    %v6107 = vadd.f32 %v6056, %v6106
    %v6108 = vpop.f32.mrb[0].mxu0
    %v6109 = vadd.f32 %v6058, %v6108
    %6110 = vmatprep.mubr.bf16.mxu0 %v1021
    %6111 = vmatmul.mubr.bf16.gmra.mrb[0].mxu0 %v1020
    %v6112 = vpop.f32.mrb[0].mxu0
    %v6113 = vadd.f32 %v6062, %v6112
    %v6114 = vpop.f32.mrb[0].mxu0
    %v6115 = vadd.f32 %v6064, %v6114
    %v6116 = vpop.f32.mrb[0].mxu0
    %v6117 = vpop.f32.mrb[0].mxu0
    %6118 = vdwg.mxu0
    %6119 = vmatprep.subr.bf16.mxu0 %v3637
    %6120 = vmatpush1.bf16.msra.mxu0 %v3636
    %6121 = vmatprep.subr.bf16.mxu0 %v3655
    %6122 = vmatpush1.bf16.msra.mxu0 %v3654
    %6123 = vmatprep.subr.bf16.mxu0 %v3673
    %6124 = vmatpush1.bf16.msra.mxu0 %v3672
    %6125 = vmatprep.subr.bf16.mxu0 %v3691
    %6126 = vmatpush1.bf16.msra.mxu0 %v3690
    %6127 = vmatprep.subr.bf16.mxu0 %v3709
    %6128 = vmatpush1.bf16.msra.mxu0 %v3708
    %6129 = vmatprep.subr.bf16.mxu0 %v3727
    %6130 = vmatpush1.bf16.msra.mxu0 %v3726
    %6131 = vmatprep.subr.bf16.mxu0 %v3745
    %6132 = vmatpush1.bf16.msra.mxu0 %v3744
    %6133 = vmatprep.subr.bf16.mxu0 %v3763
    %6134 = vmatpush1.bf16.msra.mxu0 %v3762
    %6135 = vmatprep.subr.bf16.mxu0 %v3781
    %6136 = vmatpush1.bf16.msra.mxu0 %v3780
    %6137 = vmatprep.subr.bf16.mxu0 %v3799
    %6138 = vmatpush1.bf16.msra.mxu0 %v3798
    %6139 = vmatprep.subr.bf16.mxu0 %v3817
    %6140 = vmatpush1.bf16.msra.mxu0 %v3816
    %6141 = vmatprep.subr.bf16.mxu0 %v3835
    %6142 = vmatpush1.bf16.msra.mxu0 %v3834
    %6143 = vmatprep.subr.bf16.mxu0 %v3853
    %6144 = vmatpush1.bf16.msra.mxu0 %v3852
    %6145 = vmatprep.subr.bf16.mxu0 %v3871
    %6146 = vmatpush1.bf16.msra.mxu0 %v3870
    %6147 = vmatprep.subr.bf16.mxu0 %v3889
    %6148 = vmatpush1.bf16.msra.mxu0 %v3888
    %6149 = vmatprep.subr.bf16.mxu0 %v3907
    %6150 = vmatpush1.bf16.msra.mxu0 %v3906
    %6151 = vmatprep.mubr.bf16.mxu0 %v1011
    %6152 = vmatmul.mubr.bf16.gmra.mrb[0].mxu0 %v1010
    %v6153 = vpop.f32.mrb[0].mxu0
    %v6154 = vadd.f32 0.0, %v6153
    %v6155 = vpop.f32.mrb[0].mxu0
    %v6156 = vadd.f32 0.0, %v6155
    %v6157 = vpop.f32.mrb[0].mxu0
    %v6158 = vadd.f32 0.0, %v6157
    %v6159 = vpop.f32.mrb[0].mxu0
    %v6160 = vadd.f32 0.0, %v6159
    %6161 = vmatprep.mubr.bf16.mxu0 %v1017
    %6162 = vmatmul.mubr.bf16.gmra.mrb[0].mxu0 %v1016
    %v6163 = vpop.f32.mrb[0].mxu0
    %v6164 = vadd.f32 0.0, %v6163
    %v6165 = vpop.f32.mrb[0].mxu0
    %v6166 = vadd.f32 0.0, %v6165
    %v6167 = vpop.f32.mrb[0].mxu0
    %v6168 = vpop.f32.mrb[0].mxu0
    %6169 = vdwg.mxu0
    %6170 = vmatprep.subr.bf16.mxu0 %v3925
    %6171 = vmatpush1.bf16.msra.mxu0 %v3924
    %6172 = vmatprep.subr.bf16.mxu0 %v3943
    %6173 = vmatpush1.bf16.msra.mxu0 %v3942
    %6174 = vmatprep.subr.bf16.mxu0 %v3961
    %6175 = vmatpush1.bf16.msra.mxu0 %v3960
    %6176 = vmatprep.subr.bf16.mxu0 %v3979
    %6177 = vmatpush1.bf16.msra.mxu0 %v3978
    %6178 = vmatprep.subr.bf16.mxu0 %v3997
    %6179 = vmatpush1.bf16.msra.mxu0 %v3996
    %6180 = vmatprep.subr.bf16.mxu0 %v4015
    %6181 = vmatpush1.bf16.msra.mxu0 %v4014
    %6182 = vmatprep.subr.bf16.mxu0 %v4033
    %6183 = vmatpush1.bf16.msra.mxu0 %v4032
    %6184 = vmatprep.subr.bf16.mxu0 %v4051
    %6185 = vmatpush1.bf16.msra.mxu0 %v4050
    %6186 = vmatprep.subr.bf16.mxu0 %v4069
    %6187 = vmatpush1.bf16.msra.mxu0 %v4068
    %6188 = vmatprep.subr.bf16.mxu0 %v4087
    %6189 = vmatpush1.bf16.msra.mxu0 %v4086
    %6190 = vmatprep.subr.bf16.mxu0 %v4105
    %6191 = vmatpush1.bf16.msra.mxu0 %v4104
    %6192 = vmatprep.subr.bf16.mxu0 %v4123
    %6193 = vmatpush1.bf16.msra.mxu0 %v4122
    %6194 = vmatprep.subr.bf16.mxu0 %v4141
    %6195 = vmatpush1.bf16.msra.mxu0 %v4140
    %6196 = vmatprep.subr.bf16.mxu0 %v4159
    %6197 = vmatpush1.bf16.msra.mxu0 %v4158
    %6198 = vmatprep.subr.bf16.mxu0 %v4177
    %6199 = vmatpush1.bf16.msra.mxu0 %v4176
    %6200 = vmatprep.subr.bf16.mxu0 %v4195
    %6201 = vmatpush1.bf16.msra.mxu0 %v4194
    %6202 = vmatprep.mubr.bf16.mxu0 %v1013
    %6203 = vmatmul.mubr.bf16.gmra.mrb[0].mxu0 %v1012
    %v6204 = vpop.f32.mrb[0].mxu0
    %v6205 = vadd.f32 %v6154, %v6204
    %v6206 = vpop.f32.mrb[0].mxu0
    %v6207 = vadd.f32 %v6156, %v6206
    %v6208 = vpop.f32.mrb[0].mxu0
    %v6209 = vadd.f32 %v6158, %v6208
    %v6210 = vpop.f32.mrb[0].mxu0
    %v6211 = vadd.f32 %v6160, %v6210
    %6212 = vmatprep.mubr.bf16.mxu0 %v1019
    %6213 = vmatmul.mubr.bf16.gmra.mrb[0].mxu0 %v1018
    %v6214 = vpop.f32.mrb[0].mxu0
    %v6215 = vadd.f32 %v6164, %v6214
    %v6216 = vpop.f32.mrb[0].mxu0
    %v6217 = vadd.f32 %v6166, %v6216
    %v6218 = vpop.f32.mrb[0].mxu0
    %v6219 = vpop.f32.mrb[0].mxu0
    %6220 = vdwg.mxu0
    %6221 = vmatprep.subr.bf16.mxu0 %v4213
    %6222 = vmatpush1.bf16.msra.mxu0 %v4212
    %6223 = vmatprep.subr.bf16.mxu0 %v4231
    %6224 = vmatpush1.bf16.msra.mxu0 %v4230
    %6225 = vmatprep.subr.bf16.mxu0 %v4249
    %6226 = vmatpush1.bf16.msra.mxu0 %v4248
    %6227 = vmatprep.subr.bf16.mxu0 %v4267
    %6228 = vmatpush1.bf16.msra.mxu0 %v4266
    %6229 = vmatprep.subr.bf16.mxu0 %v4285
    %6230 = vmatpush1.bf16.msra.mxu0 %v4284
    %6231 = vmatprep.subr.bf16.mxu0 %v4303
    %6232 = vmatpush1.bf16.msra.mxu0 %v4302
    %6233 = vmatprep.subr.bf16.mxu0 %v4321
    %6234 = vmatpush1.bf16.msra.mxu0 %v4320
    %6235 = vmatprep.subr.bf16.mxu0 %v4339
    %6236 = vmatpush1.bf16.msra.mxu0 %v4338
    %6237 = vmatprep.subr.bf16.mxu0 %v4357
    %6238 = vmatpush1.bf16.msra.mxu0 %v4356
    %6239 = vmatprep.subr.bf16.mxu0 %v4375
    %6240 = vmatpush1.bf16.msra.mxu0 %v4374
    %6241 = vmatprep.subr.bf16.mxu0 %v4393
    %6242 = vmatpush1.bf16.msra.mxu0 %v4392
    %6243 = vmatprep.subr.bf16.mxu0 %v4411
    %6244 = vmatpush1.bf16.msra.mxu0 %v4410
    %6245 = vmatprep.subr.bf16.mxu0 %v4429
    %6246 = vmatpush1.bf16.msra.mxu0 %v4428
    %6247 = vmatprep.subr.bf16.mxu0 %v4447
    %6248 = vmatpush1.bf16.msra.mxu0 %v4446
    %6249 = vmatprep.subr.bf16.mxu0 %v4465
    %6250 = vmatpush1.bf16.msra.mxu0 %v4464
    %6251 = vmatprep.subr.bf16.mxu0 %v4483
    %6252 = vmatpush1.bf16.msra.mxu0 %v4482
    %6253 = vmatprep.mubr.bf16.mxu0 %v1015
    %6254 = vmatmul.mubr.bf16.gmra.mrb[0].mxu0 %v1014
    %v6255 = vpop.f32.mrb[0].mxu0
    %v6256 = vadd.f32 %v6205, %v6255
    %v6257 = vpop.f32.mrb[0].mxu0
    %v6258 = vadd.f32 %v6207, %v6257
    %v6259 = vpop.f32.mrb[0].mxu0
    %v6260 = vadd.f32 %v6209, %v6259
    %v6261 = vpop.f32.mrb[0].mxu0
    %v6262 = vadd.f32 %v6211, %v6261
    %6263 = vmatprep.mubr.bf16.mxu0 %v1021
    %6264 = vmatmul.mubr.bf16.gmra.mrb[0].mxu0 %v1020
    %v6265 = vpop.f32.mrb[0].mxu0
    %v6266 = vadd.f32 %v6215, %v6265
    %v6267 = vpop.f32.mrb[0].mxu0
    %v6268 = vadd.f32 %v6217, %v6267
    %v6269 = vpop.f32.mrb[0].mxu0
    %v6270 = vpop.f32.mrb[0].mxu0
    %6271 = vdwg.mxu0
    %6272 = vmatprep.subr.bf16.mxu0 %v3639
    %6273 = vmatpush1.bf16.msra.mxu0 %v3638
    %6274 = vmatprep.subr.bf16.mxu0 %v3657
    %6275 = vmatpush1.bf16.msra.mxu0 %v3656
    %6276 = vmatprep.subr.bf16.mxu0 %v3675
    %6277 = vmatpush1.bf16.msra.mxu0 %v3674
    %6278 = vmatprep.subr.bf16.mxu0 %v3693
    %6279 = vmatpush1.bf16.msra.mxu0 %v3692
    %6280 = vmatprep.subr.bf16.mxu0 %v3711
    %6281 = vmatpush1.bf16.msra.mxu0 %v3710
    %6282 = vmatprep.subr.bf16.mxu0 %v3729
    %6283 = vmatpush1.bf16.msra.mxu0 %v3728
    %6284 = vmatprep.subr.bf16.mxu0 %v3747
    %6285 = vmatpush1.bf16.msra.mxu0 %v3746
    %6286 = vmatprep.subr.bf16.mxu0 %v3765
    %6287 = vmatpush1.bf16.msra.mxu0 %v3764
    %6288 = vmatprep.subr.bf16.mxu0 %v3783
    %6289 = vmatpush1.bf16.msra.mxu0 %v3782
    %6290 = vmatprep.subr.bf16.mxu0 %v3801
    %6291 = vmatpush1.bf16.msra.mxu0 %v3800
    %6292 = vmatprep.subr.bf16.mxu0 %v3819
    %6293 = vmatpush1.bf16.msra.mxu0 %v3818
    %6294 = vmatprep.subr.bf16.mxu0 %v3837
    %6295 = vmatpush1.bf16.msra.mxu0 %v3836
    %6296 = vmatprep.subr.bf16.mxu0 %v3855
    %6297 = vmatpush1.bf16.msra.mxu0 %v3854
    %6298 = vmatprep.subr.bf16.mxu0 %v3873
    %6299 = vmatpush1.bf16.msra.mxu0 %v3872
    %6300 = vmatprep.subr.bf16.mxu0 %v3891
    %6301 = vmatpush1.bf16.msra.mxu0 %v3890
    %6302 = vmatprep.subr.bf16.mxu0 %v3909
    %6303 = vmatpush1.bf16.msra.mxu0 %v3908
    %6304 = vmatprep.mubr.bf16.mxu0 %v1011
    %6305 = vmatmul.mubr.bf16.gmra.mrb[0].mxu0 %v1010
    %v6306 = vpop.f32.mrb[0].mxu0
    %v6307 = vadd.f32 0.0, %v6306
    %v6308 = vpop.f32.mrb[0].mxu0
    %v6309 = vadd.f32 0.0, %v6308
    %v6310 = vpop.f32.mrb[0].mxu0
    %v6311 = vadd.f32 0.0, %v6310
    %v6312 = vpop.f32.mrb[0].mxu0
    %v6313 = vadd.f32 0.0, %v6312
    %6314 = vmatprep.mubr.bf16.mxu0 %v1017
    %6315 = vmatmul.mubr.bf16.gmra.mrb[0].mxu0 %v1016
    %v6316 = vpop.f32.mrb[0].mxu0
    %v6317 = vadd.f32 0.0, %v6316
    %v6318 = vpop.f32.mrb[0].mxu0
    %v6319 = vadd.f32 0.0, %v6318
    %v6320 = vpop.f32.mrb[0].mxu0
    %v6321 = vpop.f32.mrb[0].mxu0
    %6322 = vdwg.mxu0
    %6323 = vmatprep.subr.bf16.mxu0 %v3927
    %6324 = vmatpush1.bf16.msra.mxu0 %v3926
    %6325 = vmatprep.subr.bf16.mxu0 %v3945
    %6326 = vmatpush1.bf16.msra.mxu0 %v3944
    %6327 = vmatprep.subr.bf16.mxu0 %v3963
    %6328 = vmatpush1.bf16.msra.mxu0 %v3962
    %6329 = vmatprep.subr.bf16.mxu0 %v3981
    %6330 = vmatpush1.bf16.msra.mxu0 %v3980
    %6331 = vmatprep.subr.bf16.mxu0 %v3999
    %6332 = vmatpush1.bf16.msra.mxu0 %v3998
    %6333 = vmatprep.subr.bf16.mxu0 %v4017
    %6334 = vmatpush1.bf16.msra.mxu0 %v4016
    %6335 = vmatprep.subr.bf16.mxu0 %v4035
    %6336 = vmatpush1.bf16.msra.mxu0 %v4034
    %6337 = vmatprep.subr.bf16.mxu0 %v4053
    %6338 = vmatpush1.bf16.msra.mxu0 %v4052
    %6339 = vmatprep.subr.bf16.mxu0 %v4071
    %6340 = vmatpush1.bf16.msra.mxu0 %v4070
    %6341 = vmatprep.subr.bf16.mxu0 %v4089
    %6342 = vmatpush1.bf16.msra.mxu0 %v4088
    %6343 = vmatprep.subr.bf16.mxu0 %v4107
    %6344 = vmatpush1.bf16.msra.mxu0 %v4106
    %6345 = vmatprep.subr.bf16.mxu0 %v4125
    %6346 = vmatpush1.bf16.msra.mxu0 %v4124
    %6347 = vmatprep.subr.bf16.mxu0 %v4143
    %6348 = vmatpush1.bf16.msra.mxu0 %v4142
    %6349 = vmatprep.subr.bf16.mxu0 %v4161
    %6350 = vmatpush1.bf16.msra.mxu0 %v4160
    %6351 = vmatprep.subr.bf16.mxu0 %v4179
    %6352 = vmatpush1.bf16.msra.mxu0 %v4178
    %6353 = vmatprep.subr.bf16.mxu0 %v4197
    %6354 = vmatpush1.bf16.msra.mxu0 %v4196
    %6355 = vmatprep.mubr.bf16.mxu0 %v1013
    %6356 = vmatmul.mubr.bf16.gmra.mrb[0].mxu0 %v1012
    %v6357 = vpop.f32.mrb[0].mxu0
    %v6358 = vadd.f32 %v6307, %v6357
    %v6359 = vpop.f32.mrb[0].mxu0
    %v6360 = vadd.f32 %v6309, %v6359
    %v6361 = vpop.f32.mrb[0].mxu0
    %v6362 = vadd.f32 %v6311, %v6361
    %v6363 = vpop.f32.mrb[0].mxu0
    %v6364 = vadd.f32 %v6313, %v6363
    %6365 = vmatprep.mubr.bf16.mxu0 %v1019
    %6366 = vmatmul.mubr.bf16.gmra.mrb[0].mxu0 %v1018
    %v6367 = vpop.f32.mrb[0].mxu0
    %v6368 = vadd.f32 %v6317, %v6367
    %v6369 = vpop.f32.mrb[0].mxu0
    %v6370 = vadd.f32 %v6319, %v6369
    %v6371 = vpop.f32.mrb[0].mxu0
    %v6372 = vpop.f32.mrb[0].mxu0
    %6373 = vdwg.mxu0
    %6374 = vmatprep.subr.bf16.mxu0 %v4215
    %6375 = vmatpush1.bf16.msra.mxu0 %v4214
    %6376 = vmatprep.subr.bf16.mxu0 %v4233
    %6377 = vmatpush1.bf16.msra.mxu0 %v4232
    %6378 = vmatprep.subr.bf16.mxu0 %v4251
    %6379 = vmatpush1.bf16.msra.mxu0 %v4250
    %6380 = vmatprep.subr.bf16.mxu0 %v4269
    %6381 = vmatpush1.bf16.msra.mxu0 %v4268
    %6382 = vmatprep.subr.bf16.mxu0 %v4287
    %6383 = vmatpush1.bf16.msra.mxu0 %v4286
    %6384 = vmatprep.subr.bf16.mxu0 %v4305
    %6385 = vmatpush1.bf16.msra.mxu0 %v4304
    %6386 = vmatprep.subr.bf16.mxu0 %v4323
    %6387 = vmatpush1.bf16.msra.mxu0 %v4322
    %6388 = vmatprep.subr.bf16.mxu0 %v4341
    %6389 = vmatpush1.bf16.msra.mxu0 %v4340
    %6390 = vmatprep.subr.bf16.mxu0 %v4359
    %6391 = vmatpush1.bf16.msra.mxu0 %v4358
    %6392 = vmatprep.subr.bf16.mxu0 %v4377
    %6393 = vmatpush1.bf16.msra.mxu0 %v4376
    %6394 = vmatprep.subr.bf16.mxu0 %v4395
    %6395 = vmatpush1.bf16.msra.mxu0 %v4394
    %6396 = vmatprep.subr.bf16.mxu0 %v4413
    %6397 = vmatpush1.bf16.msra.mxu0 %v4412
    %6398 = vmatprep.subr.bf16.mxu0 %v4431
    %6399 = vmatpush1.bf16.msra.mxu0 %v4430
    %6400 = vmatprep.subr.bf16.mxu0 %v4449
    %6401 = vmatpush1.bf16.msra.mxu0 %v4448
    %6402 = vmatprep.subr.bf16.mxu0 %v4467
    %6403 = vmatpush1.bf16.msra.mxu0 %v4466
    %6404 = vmatprep.subr.bf16.mxu0 %v4485
    %6405 = vmatpush1.bf16.msra.mxu0 %v4484
    %6406 = vmatprep.mubr.bf16.mxu0 %v1015
    %6407 = vmatmul.mubr.bf16.gmra.mrb[0].mxu0 %v1014
    %v6408 = vpop.f32.mrb[0].mxu0
    %v6409 = vadd.f32 %v6358, %v6408
    %v6410 = vpop.f32.mrb[0].mxu0
    %v6411 = vadd.f32 %v6360, %v6410
    %v6412 = vpop.f32.mrb[0].mxu0
    %v6413 = vadd.f32 %v6362, %v6412
    %v6414 = vpop.f32.mrb[0].mxu0
    %v6415 = vadd.f32 %v6364, %v6414
    %6416 = vmatprep.mubr.bf16.mxu0 %v1021
    %6417 = vmatmul.mubr.bf16.gmra.mrb[0].mxu0 %v1020
    %v6418 = vpop.f32.mrb[0].mxu0
    %v6419 = vadd.f32 %v6368, %v6418
    %v6420 = vpop.f32.mrb[0].mxu0
    %v6421 = vadd.f32 %v6370, %v6420
    %v6422 = vpop.f32.mrb[0].mxu0
    %v6423 = vpop.f32.mrb[0].mxu0
    %6424 = vdwg.mxu0
    %6425 = vmatprep.subr.bf16.mxu0 %v3641
    %6426 = vmatpush1.bf16.msra.mxu0 %v3640
    %6427 = vmatprep.subr.bf16.mxu0 %v3659
    %6428 = vmatpush1.bf16.msra.mxu0 %v3658
    %6429 = vmatprep.subr.bf16.mxu0 %v3677
    %6430 = vmatpush1.bf16.msra.mxu0 %v3676
    %6431 = vmatprep.subr.bf16.mxu0 %v3695
    %6432 = vmatpush1.bf16.msra.mxu0 %v3694
    %6433 = vmatprep.subr.bf16.mxu0 %v3713
    %6434 = vmatpush1.bf16.msra.mxu0 %v3712
    %6435 = vmatprep.subr.bf16.mxu0 %v3731
    %6436 = vmatpush1.bf16.msra.mxu0 %v3730
    %6437 = vmatprep.subr.bf16.mxu0 %v3749
    %6438 = vmatpush1.bf16.msra.mxu0 %v3748
    %6439 = vmatprep.subr.bf16.mxu0 %v3767
    %6440 = vmatpush1.bf16.msra.mxu0 %v3766
    %6441 = vmatprep.subr.bf16.mxu0 %v3785
    %6442 = vmatpush1.bf16.msra.mxu0 %v3784
    %6443 = vmatprep.subr.bf16.mxu0 %v3803
    %6444 = vmatpush1.bf16.msra.mxu0 %v3802
    %6445 = vmatprep.subr.bf16.mxu0 %v3821
    %6446 = vmatpush1.bf16.msra.mxu0 %v3820
    %6447 = vmatprep.subr.bf16.mxu0 %v3839
    %6448 = vmatpush1.bf16.msra.mxu0 %v3838
    %6449 = vmatprep.subr.bf16.mxu0 %v3857
    %6450 = vmatpush1.bf16.msra.mxu0 %v3856
    %6451 = vmatprep.subr.bf16.mxu0 %v3875
    %6452 = vmatpush1.bf16.msra.mxu0 %v3874
    %6453 = vmatprep.subr.bf16.mxu0 %v3893
    %6454 = vmatpush1.bf16.msra.mxu0 %v3892
    %6455 = vmatprep.subr.bf16.mxu0 %v3911
    %6456 = vmatpush1.bf16.msra.mxu0 %v3910
    %6457 = vmatprep.mubr.bf16.mxu0 %v1011
    %6458 = vmatmul.mubr.bf16.gmra.mrb[0].mxu0 %v1010
    %v6459 = vpop.f32.mrb[0].mxu0
    %v6460 = vadd.f32 0.0, %v6459
    %v6461 = vpop.f32.mrb[0].mxu0
    %v6462 = vadd.f32 0.0, %v6461
    %v6463 = vpop.f32.mrb[0].mxu0
    %v6464 = vadd.f32 0.0, %v6463
    %v6465 = vpop.f32.mrb[0].mxu0
    %v6466 = vadd.f32 0.0, %v6465
    %6467 = vmatprep.mubr.bf16.mxu0 %v1017
    %6468 = vmatmul.mubr.bf16.gmra.mrb[0].mxu0 %v1016
    %v6469 = vpop.f32.mrb[0].mxu0
    %v6470 = vadd.f32 0.0, %v6469
    %v6471 = vpop.f32.mrb[0].mxu0
    %v6472 = vadd.f32 0.0, %v6471
    %v6473 = vpop.f32.mrb[0].mxu0
    %v6474 = vpop.f32.mrb[0].mxu0
    %6475 = vdwg.mxu0
    %6476 = vmatprep.subr.bf16.mxu0 %v3929
    %6477 = vmatpush1.bf16.msra.mxu0 %v3928
    %6478 = vmatprep.subr.bf16.mxu0 %v3947
    %6479 = vmatpush1.bf16.msra.mxu0 %v3946
    %6480 = vmatprep.subr.bf16.mxu0 %v3965
    %6481 = vmatpush1.bf16.msra.mxu0 %v3964
    %6482 = vmatprep.subr.bf16.mxu0 %v3983
    %6483 = vmatpush1.bf16.msra.mxu0 %v3982
    %6484 = vmatprep.subr.bf16.mxu0 %v4001
    %6485 = vmatpush1.bf16.msra.mxu0 %v4000
    %6486 = vmatprep.subr.bf16.mxu0 %v4019
    %6487 = vmatpush1.bf16.msra.mxu0 %v4018
    %6488 = vmatprep.subr.bf16.mxu0 %v4037
    %6489 = vmatpush1.bf16.msra.mxu0 %v4036
    %6490 = vmatprep.subr.bf16.mxu0 %v4055
    %6491 = vmatpush1.bf16.msra.mxu0 %v4054
    %6492 = vmatprep.subr.bf16.mxu0 %v4073
    %6493 = vmatpush1.bf16.msra.mxu0 %v4072
    %6494 = vmatprep.subr.bf16.mxu0 %v4091
    %6495 = vmatpush1.bf16.msra.mxu0 %v4090
    %6496 = vmatprep.subr.bf16.mxu0 %v4109
    %6497 = vmatpush1.bf16.msra.mxu0 %v4108
    %6498 = vmatprep.subr.bf16.mxu0 %v4127
    %6499 = vmatpush1.bf16.msra.mxu0 %v4126
    %6500 = vmatprep.subr.bf16.mxu0 %v4145
    %6501 = vmatpush1.bf16.msra.mxu0 %v4144
    %6502 = vmatprep.subr.bf16.mxu0 %v4163
    %6503 = vmatpush1.bf16.msra.mxu0 %v4162
    %6504 = vmatprep.subr.bf16.mxu0 %v4181
    %6505 = vmatpush1.bf16.msra.mxu0 %v4180
    %6506 = vmatprep.subr.bf16.mxu0 %v4199
    %6507 = vmatpush1.bf16.msra.mxu0 %v4198
    %6508 = vmatprep.mubr.bf16.mxu0 %v1013
    %6509 = vmatmul.mubr.bf16.gmra.mrb[0].mxu0 %v1012
    %v6510 = vpop.f32.mrb[0].mxu0
    %v6511 = vadd.f32 %v6460, %v6510
    %v6512 = vpop.f32.mrb[0].mxu0
    %v6513 = vadd.f32 %v6462, %v6512
    %v6514 = vpop.f32.mrb[0].mxu0
    %v6515 = vadd.f32 %v6464, %v6514
    %v6516 = vpop.f32.mrb[0].mxu0
    %v6517 = vadd.f32 %v6466, %v6516
    %6518 = vmatprep.mubr.bf16.mxu0 %v1019
    %6519 = vmatmul.mubr.bf16.gmra.mrb[0].mxu0 %v1018
    %v6520 = vpop.f32.mrb[0].mxu0
    %v6521 = vadd.f32 %v6470, %v6520
    %v6522 = vpop.f32.mrb[0].mxu0
    %v6523 = vadd.f32 %v6472, %v6522
    %v6524 = vpop.f32.mrb[0].mxu0
    %v6525 = vpop.f32.mrb[0].mxu0
    %6526 = vdwg.mxu0
    %6527 = vmatprep.subr.bf16.mxu0 %v4217
    %6528 = vmatpush1.bf16.msra.mxu0 %v4216
    %6529 = vmatprep.subr.bf16.mxu0 %v4235
    %6530 = vmatpush1.bf16.msra.mxu0 %v4234
    %6531 = vmatprep.subr.bf16.mxu0 %v4253
    %6532 = vmatpush1.bf16.msra.mxu0 %v4252
    %6533 = vmatprep.subr.bf16.mxu0 %v4271
    %6534 = vmatpush1.bf16.msra.mxu0 %v4270
    %6535 = vmatprep.subr.bf16.mxu0 %v4289
    %6536 = vmatpush1.bf16.msra.mxu0 %v4288
    %6537 = vmatprep.subr.bf16.mxu0 %v4307
    %6538 = vmatpush1.bf16.msra.mxu0 %v4306
    %6539 = vmatprep.subr.bf16.mxu0 %v4325
    %6540 = vmatpush1.bf16.msra.mxu0 %v4324
    %6541 = vmatprep.subr.bf16.mxu0 %v4343
    %6542 = vmatpush1.bf16.msra.mxu0 %v4342
    %6543 = vmatprep.subr.bf16.mxu0 %v4361
    %6544 = vmatpush1.bf16.msra.mxu0 %v4360
    %6545 = vmatprep.subr.bf16.mxu0 %v4379
    %6546 = vmatpush1.bf16.msra.mxu0 %v4378
    %6547 = vmatprep.subr.bf16.mxu0 %v4397
    %6548 = vmatpush1.bf16.msra.mxu0 %v4396
    %6549 = vmatprep.subr.bf16.mxu0 %v4415
    %6550 = vmatpush1.bf16.msra.mxu0 %v4414
    %6551 = vmatprep.subr.bf16.mxu0 %v4433
    %6552 = vmatpush1.bf16.msra.mxu0 %v4432
    %6553 = vmatprep.subr.bf16.mxu0 %v4451
    %6554 = vmatpush1.bf16.msra.mxu0 %v4450
    %6555 = vmatprep.subr.bf16.mxu0 %v4469
    %6556 = vmatpush1.bf16.msra.mxu0 %v4468
    %6557 = vmatprep.subr.bf16.mxu0 %v4487
    %6558 = vmatpush1.bf16.msra.mxu0 %v4486
    %6559 = vmatprep.mubr.bf16.mxu0 %v1015
    %6560 = vmatmul.mubr.bf16.gmra.mrb[0].mxu0 %v1014
    %v6561 = vpop.f32.mrb[0].mxu0
    %v6562 = vadd.f32 %v6511, %v6561
    %v6563 = vpop.f32.mrb[0].mxu0
    %v6564 = vadd.f32 %v6513, %v6563
    %v6565 = vpop.f32.mrb[0].mxu0
    %v6566 = vadd.f32 %v6515, %v6565
    %v6567 = vpop.f32.mrb[0].mxu0
    %v6568 = vadd.f32 %v6517, %v6567
    %6569 = vmatprep.mubr.bf16.mxu0 %v1021
    %6570 = vmatmul.mubr.bf16.gmra.mrb[0].mxu0 %v1020
    %v6571 = vpop.f32.mrb[0].mxu0
    %v6572 = vadd.f32 %v6521, %v6571
    %v6573 = vpop.f32.mrb[0].mxu0
    %v6574 = vadd.f32 %v6523, %v6573
    %v6575 = vpop.f32.mrb[0].mxu0
    %v6576 = vpop.f32.mrb[0].mxu0
    %6577 = vdwg.mxu0
    %6578 = vmatprep.subr.bf16.mxu0 %v3643
    %6579 = vmatpush1.bf16.msra.mxu0 %v3642
    %6580 = vmatprep.subr.bf16.mxu0 %v3661
    %6581 = vmatpush1.bf16.msra.mxu0 %v3660
    %6582 = vmatprep.subr.bf16.mxu0 %v3679
    %6583 = vmatpush1.bf16.msra.mxu0 %v3678
    %6584 = vmatprep.subr.bf16.mxu0 %v3697
    %6585 = vmatpush1.bf16.msra.mxu0 %v3696
    %6586 = vmatprep.subr.bf16.mxu0 %v3715
    %6587 = vmatpush1.bf16.msra.mxu0 %v3714
    %6588 = vmatprep.subr.bf16.mxu0 %v3733
    %6589 = vmatpush1.bf16.msra.mxu0 %v3732
    %6590 = vmatprep.subr.bf16.mxu0 %v3751
    %6591 = vmatpush1.bf16.msra.mxu0 %v3750
    %6592 = vmatprep.subr.bf16.mxu0 %v3769
    %6593 = vmatpush1.bf16.msra.mxu0 %v3768
    %6594 = vmatprep.subr.bf16.mxu0 %v3787
    %6595 = vmatpush1.bf16.msra.mxu0 %v3786
    %6596 = vmatprep.subr.bf16.mxu0 %v3805
    %6597 = vmatpush1.bf16.msra.mxu0 %v3804
    %6598 = vmatprep.subr.bf16.mxu0 %v3823
    %6599 = vmatpush1.bf16.msra.mxu0 %v3822
    %6600 = vmatprep.subr.bf16.mxu0 %v3841
    %6601 = vmatpush1.bf16.msra.mxu0 %v3840
    %6602 = vmatprep.subr.bf16.mxu0 %v3859
    %6603 = vmatpush1.bf16.msra.mxu0 %v3858
    %6604 = vmatprep.subr.bf16.mxu0 %v3877
    %6605 = vmatpush1.bf16.msra.mxu0 %v3876
    %6606 = vmatprep.subr.bf16.mxu0 %v3895
    %6607 = vmatpush1.bf16.msra.mxu0 %v3894
    %6608 = vmatprep.subr.bf16.mxu0 %v3913
    %6609 = vmatpush1.bf16.msra.mxu0 %v3912
    %6610 = vmatprep.mubr.bf16.mxu0 %v1011
    %6611 = vmatmul.mubr.bf16.gmra.mrb[0].mxu0 %v1010
    %v6612 = vpop.f32.mrb[0].mxu0
    %v6613 = vadd.f32 0.0, %v6612
    %v6614 = vpop.f32.mrb[0].mxu0
    %v6615 = vadd.f32 0.0, %v6614
    %v6616 = vpop.f32.mrb[0].mxu0
    %v6617 = vadd.f32 0.0, %v6616
    %v6618 = vpop.f32.mrb[0].mxu0
    %v6619 = vadd.f32 0.0, %v6618
    %6620 = vmatprep.mubr.bf16.mxu0 %v1017
    %6621 = vmatmul.mubr.bf16.gmra.mrb[0].mxu0 %v1016
    %v6622 = vpop.f32.mrb[0].mxu0
    %v6623 = vadd.f32 0.0, %v6622
    %v6624 = vpop.f32.mrb[0].mxu0
    %v6625 = vadd.f32 0.0, %v6624
    %v6626 = vpop.f32.mrb[0].mxu0
    %v6627 = vpop.f32.mrb[0].mxu0
    %6628 = vdwg.mxu0
    %6629 = vmatprep.subr.bf16.mxu0 %v3931
    %6630 = vmatpush1.bf16.msra.mxu0 %v3930
    %6631 = vmatprep.subr.bf16.mxu0 %v3949
    %6632 = vmatpush1.bf16.msra.mxu0 %v3948
    %6633 = vmatprep.subr.bf16.mxu0 %v3967
    %6634 = vmatpush1.bf16.msra.mxu0 %v3966
    %6635 = vmatprep.subr.bf16.mxu0 %v3985
    %6636 = vmatpush1.bf16.msra.mxu0 %v3984
    %6637 = vmatprep.subr.bf16.mxu0 %v4003
    %6638 = vmatpush1.bf16.msra.mxu0 %v4002
    %6639 = vmatprep.subr.bf16.mxu0 %v4021
    %6640 = vmatpush1.bf16.msra.mxu0 %v4020
    %6641 = vmatprep.subr.bf16.mxu0 %v4039
    %6642 = vmatpush1.bf16.msra.mxu0 %v4038
    %6643 = vmatprep.subr.bf16.mxu0 %v4057
    %6644 = vmatpush1.bf16.msra.mxu0 %v4056
    %6645 = vmatprep.subr.bf16.mxu0 %v4075
    %6646 = vmatpush1.bf16.msra.mxu0 %v4074
    %6647 = vmatprep.subr.bf16.mxu0 %v4093
    %6648 = vmatpush1.bf16.msra.mxu0 %v4092
    %6649 = vmatprep.subr.bf16.mxu0 %v4111
    %6650 = vmatpush1.bf16.msra.mxu0 %v4110
    %6651 = vmatprep.subr.bf16.mxu0 %v4129
    %6652 = vmatpush1.bf16.msra.mxu0 %v4128
    %6653 = vmatprep.subr.bf16.mxu0 %v4147
    %6654 = vmatpush1.bf16.msra.mxu0 %v4146
    %6655 = vmatprep.subr.bf16.mxu0 %v4165
    %6656 = vmatpush1.bf16.msra.mxu0 %v4164
    %6657 = vmatprep.subr.bf16.mxu0 %v4183
    %6658 = vmatpush1.bf16.msra.mxu0 %v4182
    %6659 = vmatprep.subr.bf16.mxu0 %v4201
    %6660 = vmatpush1.bf16.msra.mxu0 %v4200
    %6661 = vmatprep.mubr.bf16.mxu0 %v1013
    %6662 = vmatmul.mubr.bf16.gmra.mrb[0].mxu0 %v1012
    %v6663 = vpop.f32.mrb[0].mxu0
    %v6664 = vadd.f32 %v6613, %v6663
    %v6665 = vpop.f32.mrb[0].mxu0
    %v6666 = vadd.f32 %v6615, %v6665
    %v6667 = vpop.f32.mrb[0].mxu0
    %v6668 = vadd.f32 %v6617, %v6667
    %v6669 = vpop.f32.mrb[0].mxu0
    %v6670 = vadd.f32 %v6619, %v6669
    %6671 = vmatprep.mubr.bf16.mxu0 %v1019
    %6672 = vmatmul.mubr.bf16.gmra.mrb[0].mxu0 %v1018
    %v6673 = vpop.f32.mrb[0].mxu0
    %v6674 = vadd.f32 %v6623, %v6673
    %v6675 = vpop.f32.mrb[0].mxu0
    %v6676 = vadd.f32 %v6625, %v6675
    %v6677 = vpop.f32.mrb[0].mxu0
    %v6678 = vpop.f32.mrb[0].mxu0
    %6679 = vdwg.mxu0
    %6680 = vmatprep.subr.bf16.mxu0 %v4219
    %6681 = vmatpush1.bf16.msra.mxu0 %v4218
    %6682 = vmatprep.subr.bf16.mxu0 %v4237
    %6683 = vmatpush1.bf16.msra.mxu0 %v4236
    %6684 = vmatprep.subr.bf16.mxu0 %v4255
    %6685 = vmatpush1.bf16.msra.mxu0 %v4254
    %6686 = vmatprep.subr.bf16.mxu0 %v4273
    %6687 = vmatpush1.bf16.msra.mxu0 %v4272
    %6688 = vmatprep.subr.bf16.mxu0 %v4291
    %6689 = vmatpush1.bf16.msra.mxu0 %v4290
    %6690 = vmatprep.subr.bf16.mxu0 %v4309
    %6691 = vmatpush1.bf16.msra.mxu0 %v4308
    %6692 = vmatprep.subr.bf16.mxu0 %v4327
    %6693 = vmatpush1.bf16.msra.mxu0 %v4326
    %6694 = vmatprep.subr.bf16.mxu0 %v4345
    %6695 = vmatpush1.bf16.msra.mxu0 %v4344
    %6696 = vmatprep.subr.bf16.mxu0 %v4363
    %6697 = vmatpush1.bf16.msra.mxu0 %v4362
    %6698 = vmatprep.subr.bf16.mxu0 %v4381
    %6699 = vmatpush1.bf16.msra.mxu0 %v4380
    %6700 = vmatprep.subr.bf16.mxu0 %v4399
    %6701 = vmatpush1.bf16.msra.mxu0 %v4398
    %6702 = vmatprep.subr.bf16.mxu0 %v4417
    %6703 = vmatpush1.bf16.msra.mxu0 %v4416
    %6704 = vmatprep.subr.bf16.mxu0 %v4435
    %6705 = vmatpush1.bf16.msra.mxu0 %v4434
    %6706 = vmatprep.subr.bf16.mxu0 %v4453
    %6707 = vmatpush1.bf16.msra.mxu0 %v4452
    %6708 = vmatprep.subr.bf16.mxu0 %v4471
    %6709 = vmatpush1.bf16.msra.mxu0 %v4470
    %6710 = vmatprep.subr.bf16.mxu0 %v4489
    %6711 = vmatpush1.bf16.msra.mxu0 %v4488
    %6712 = vmatprep.mubr.bf16.mxu0 %v1015
    %6713 = vmatmul.mubr.bf16.gmra.mrb[0].mxu0 %v1014
    %v6714 = vpop.f32.mrb[0].mxu0
    %v6715 = vadd.f32 %v6664, %v6714
    %v6716 = vpop.f32.mrb[0].mxu0
    %v6717 = vadd.f32 %v6666, %v6716
    %v6718 = vpop.f32.mrb[0].mxu0
    %v6719 = vadd.f32 %v6668, %v6718
    %v6720 = vpop.f32.mrb[0].mxu0
    %v6721 = vadd.f32 %v6670, %v6720
    %6722 = vmatprep.mubr.bf16.mxu0 %v1021
    %6723 = vmatmul.mubr.bf16.gmra.mrb[0].mxu0 %v1020
    %v6724 = vpop.f32.mrb[0].mxu0
    %v6725 = vadd.f32 %v6674, %v6724
    %v6726 = vpop.f32.mrb[0].mxu0
    %v6727 = vadd.f32 %v6676, %v6726
    %v6728 = vpop.f32.mrb[0].mxu0
    %v6729 = vpop.f32.mrb[0].mxu0
    %6730 = vdwg.mxu0
    %v6731 = vld [vmem:[%s6] sm:$0xff]
    %v6732 = vld [vmem:[%s6 + $0x8] sm:$0xff]
    %v6733 = vld [vmem:[%s6 + $0x10] sm:$0xff]
    %v6734 = vld [vmem:[%s6 + $0x18] sm:$0xff]
    %v6735 = vld [vmem:[%s6 + $0x20] sm:$0xff]
    %v6736 = vld [vmem:[%s6 + $0x28] sm:$0xff]
    %v6737 = vld [vmem:[%s6 + $0x30] sm:$0xff]
    %v6738 = vld [vmem:[%s6 + $0x38] sm:$0xff]
    %v6739 = vld [vmem:[%s6 + $0x40] sm:$0xff]
    %v6740 = vld [vmem:[%s6 + $0x48] sm:$0xff]
    %v6741 = vld [vmem:[%s6 + $0x50] sm:$0xff]
    %v6742 = vld [vmem:[%s6 + $0x58] sm:$0xff]
    %v6743 = vld [vmem:[%s6 + $0x60] sm:$0xff]
    %v6744 = vld [vmem:[%s6 + $0x68] sm:$0xff]
    %v6745 = vld [vmem:[%s6 + $0x70] sm:$0xff]
    %v6746 = vld [vmem:[%s6 + $0x78] sm:$0xff]
    %v6747 = vld [vmem:[%s6 + $0x80] sm:$0xff]
    %v6748 = vld [vmem:[%s6 + $0x88] sm:$0xff]
    %v6749 = vld [vmem:[%s6 + $0x90] sm:$0xff]
    %v6750 = vld [vmem:[%s6 + $0x98] sm:$0xff]
    %v6751 = vld [vmem:[%s6 + $0xa0] sm:$0xff]
    %v6752 = vld [vmem:[%s6 + $0xa8] sm:$0xff]
    %v6753 = vld [vmem:[%s6 + $0xb0] sm:$0xff]
    %v6754 = vld [vmem:[%s6 + $0xb8] sm:$0xff]
    %v6755 = vld [vmem:[%s6 + $0xc0] sm:$0xff]
    %v6756 = vld [vmem:[%s6 + $0xc8] sm:$0xff]
    %v6757 = vld [vmem:[%s6 + $0xd0] sm:$0xff]
    %v6758 = vld [vmem:[%s6 + $0xd8] sm:$0xff]
    %v6759 = vld [vmem:[%s6 + $0xe0] sm:$0xff]
    %v6760 = vld [vmem:[%s6 + $0xe8] sm:$0xff]
    %v6761 = vld [vmem:[%s6 + $0xf0] sm:$0xff]
    %v6762 = vld [vmem:[%s6 + $0xf8] sm:$0xff]
    %v6763 = vld [vmem:[%s6 + $0x100] sm:$0xff]
    %v6764 = vld [vmem:[%s6 + $0x108] sm:$0xff]
    %v6765 = vld [vmem:[%s6 + $0x110] sm:$0xff]
    %v6766 = vld [vmem:[%s6 + $0x118] sm:$0xff]
    %v6767 = vld [vmem:[%s6 + $0x120] sm:$0xff]
    %v6768 = vld [vmem:[%s6 + $0x128] sm:$0xff]
    %v6769 = vld [vmem:[%s6 + $0x130] sm:$0xff]
    %v6770 = vld [vmem:[%s6 + $0x138] sm:$0xff]
    %v6771 = vld [vmem:[%s6 + $0x140] sm:$0xff]
    %v6772 = vld [vmem:[%s6 + $0x148] sm:$0xff]
    %v6773 = vld [vmem:[%s6 + $0x150] sm:$0xff]
    %v6774 = vld [vmem:[%s6 + $0x158] sm:$0xff]
    %v6775 = vld [vmem:[%s6 + $0x160] sm:$0xff]
    %v6776 = vld [vmem:[%s6 + $0x168] sm:$0xff]
    %v6777 = vld [vmem:[%s6 + $0x170] sm:$0xff]
    %v6778 = vld [vmem:[%s6 + $0x178] sm:$0xff]
    %v6779 = vld [vmem:[%s6 + $0x180] sm:$0xff]
    %v6780 = vld [vmem:[%s6 + $0x188] sm:$0xff]
    %v6781 = vld [vmem:[%s6 + $0x190] sm:$0xff]
    %v6782 = vld [vmem:[%s6 + $0x198] sm:$0xff]
    %v6783 = vld [vmem:[%s6 + $0x1a0] sm:$0xff]
    %v6784 = vld [vmem:[%s6 + $0x1a8] sm:$0xff]
    %v6785 = vld [vmem:[%s6 + $0x1b0] sm:$0xff]
    %v6786 = vld [vmem:[%s6 + $0x1b8] sm:$0xff]
    %v6787 = vld [vmem:[%s6 + $0x1c0] sm:$0xff]
    %v6788 = vld [vmem:[%s6 + $0x1c8] sm:$0xff]
    %v6789 = vld [vmem:[%s6 + $0x1d0] sm:$0xff]
    %v6790 = vld [vmem:[%s6 + $0x1d8] sm:$0xff]
    %v6791 = vld [vmem:[%s6 + $0x1e0] sm:$0xff]
    %v6792 = vld [vmem:[%s6 + $0x1e8] sm:$0xff]
    %v6793 = vld [vmem:[%s6 + $0x1f0] sm:$0xff]
    %v6794 = vld [vmem:[%s6 + $0x1f8] sm:$0xff]
    %v6795 = vld [vmem:[%s6 + $0x200] sm:$0xff]
    %v6796 = vld [vmem:[%s6 + $0x208] sm:$0xff]
    %v6797 = vld [vmem:[%s6 + $0x210] sm:$0xff]
    %v6798 = vld [vmem:[%s6 + $0x218] sm:$0xff]
    %v6799 = vld [vmem:[%s6 + $0x220] sm:$0xff]
    %v6800 = vld [vmem:[%s6 + $0x228] sm:$0xff]
    %v6801 = vld [vmem:[%s6 + $0x230] sm:$0xff]
    %v6802 = vld [vmem:[%s6 + $0x238] sm:$0xff]
    %v6803 = vld [vmem:[%s6 + $0x240] sm:$0xff]
    %v6804 = vld [vmem:[%s6 + $0x248] sm:$0xff]
    %v6805 = vld [vmem:[%s6 + $0x250] sm:$0xff]
    %v6806 = vld [vmem:[%s6 + $0x258] sm:$0xff]
    %v6807 = vld [vmem:[%s6 + $0x260] sm:$0xff]
    %v6808 = vld [vmem:[%s6 + $0x268] sm:$0xff]
    %v6809 = vld [vmem:[%s6 + $0x270] sm:$0xff]
    %v6810 = vld [vmem:[%s6 + $0x278] sm:$0xff]
    %v6811 = vld [vmem:[%s6 + $0x280] sm:$0xff]
    %v6812 = vld [vmem:[%s6 + $0x288] sm:$0xff]
    %v6813 = vld [vmem:[%s6 + $0x290] sm:$0xff]
    %v6814 = vld [vmem:[%s6 + $0x298] sm:$0xff]
    %v6815 = vld [vmem:[%s6 + $0x2a0] sm:$0xff]
    %v6816 = vld [vmem:[%s6 + $0x2a8] sm:$0xff]
    %v6817 = vld [vmem:[%s6 + $0x2b0] sm:$0xff]
    %v6818 = vld [vmem:[%s6 + $0x2b8] sm:$0xff]
    %v6819 = vld [vmem:[%s6 + $0x2c0] sm:$0xff]
    %v6820 = vld [vmem:[%s6 + $0x2c8] sm:$0xff]
    %v6821 = vld [vmem:[%s6 + $0x2d0] sm:$0xff]
    %v6822 = vld [vmem:[%s6 + $0x2d8] sm:$0xff]
    %v6823 = vld [vmem:[%s6 + $0x2e0] sm:$0xff]
    %v6824 = vld [vmem:[%s6 + $0x2e8] sm:$0xff]
    %v6825 = vld [vmem:[%s6 + $0x2f0] sm:$0xff]
    %v6826 = vld [vmem:[%s6 + $0x2f8] sm:$0xff]
    %v6827 = vld [vmem:[#allocation11] sm:$0xff]
    %v6828 = vld [vmem:[#allocation11 + $0x8] sm:$0xff]
    %v6829 = vld [vmem:[#allocation11 + $0x10] sm:$0xff]
    %v6830 = vld [vmem:[#allocation11 + $0x18] sm:$0xff]
    %v6831 = vld [vmem:[#allocation11 + $0x20] sm:$0xff]
    %v6832 = vld [vmem:[#allocation11 + $0x28] sm:$0xff]
    %v6833 = vmul.f32 %v5491, %v5950
    %v6834 = vmul.f32 %v5493, %v5952
    %v6835 = vmul.f32 %v5644, %v6103
    %v6836 = vmul.f32 %v5646, %v6105
    %v6837 = vmul.f32 %v5797, %v6256
    %v6838 = vmul.f32 %v5799, %v6258
    %6839 = vmatprep.subr.mxu0 0.0
    %6840 = vmatpush1.msra.mxu0 %v6731
    %6841 = vmatprep.subr.mxu0 0.0
    %6842 = vmatpush1.msra.mxu0 %v6732
    %6843 = vmatprep.subr.mxu0 0.0
    %6844 = vmatpush1.msra.mxu0 %v6733
    %6845 = vmatprep.subr.mxu0 0.0
    %6846 = vmatpush1.msra.mxu0 %v6734
    %6847 = vmatprep.subr.mxu0 0.0
    %6848 = vmatpush1.msra.mxu0 %v6735
    %6849 = vmatprep.subr.mxu0 0.0
    %6850 = vmatpush1.msra.mxu0 %v6736
    %6851 = vmatprep.subr.mxu0 0.0
    %6852 = vmatpush1.msra.mxu0 %v6737
    %6853 = vmatprep.subr.mxu0 0.0
    %6854 = vmatpush1.msra.mxu0 %v6738
    %6855 = vmatprep.subr.mxu0 0.0
    %6856 = vmatpush1.msra.mxu0 %v6739
    %6857 = vmatprep.subr.mxu0 0.0
    %6858 = vmatpush1.msra.mxu0 %v6740
    %6859 = vmatprep.subr.mxu0 0.0
    %6860 = vmatpush1.msra.mxu0 %v6741
    %6861 = vmatprep.subr.mxu0 0.0
    %6862 = vmatpush1.msra.mxu0 %v6742
    %6863 = vmatprep.subr.mxu0 0.0
    %6864 = vmatpush1.msra.mxu0 %v6743
    %6865 = vmatprep.subr.mxu0 0.0
    %6866 = vmatpush1.msra.mxu0 %v6744
    %6867 = vmatprep.subr.mxu0 0.0
    %6868 = vmatpush1.msra.mxu0 %v6745
    %6869 = vmatprep.subr.mxu0 0.0
    %6870 = vmatpush1.msra.mxu0 %v6746
    %6871 = vmatprep.subr.mxu0 0.0
    %6872 = vmatpush1.msra.mxu0 %v6747
    %6873 = vmatprep.subr.mxu0 0.0
    %6874 = vmatpush1.msra.mxu0 %v6748
    %6875 = vmatprep.subr.mxu0 0.0
    %6876 = vmatpush1.msra.mxu0 %v6749
    %6877 = vmatprep.subr.mxu0 0.0
    %6878 = vmatpush1.msra.mxu0 %v6750
    %6879 = vmatprep.subr.mxu0 0.0
    %6880 = vmatpush1.msra.mxu0 %v6751
    %6881 = vmatprep.subr.mxu0 0.0
    %6882 = vmatpush1.msra.mxu0 %v6752
    %6883 = vmatprep.subr.mxu0 0.0
    %6884 = vmatpush1.msra.mxu0 %v6753
    %6885 = vmatprep.subr.mxu0 0.0
    %6886 = vmatpush1.msra.mxu0 %v6754
    %6887 = vmatprep.subr.mxu0 0.0
    %6888 = vmatpush1.msra.mxu0 %v6755
    %6889 = vmatprep.subr.mxu0 0.0
    %6890 = vmatpush1.msra.mxu0 %v6756
    %6891 = vmatprep.subr.mxu0 0.0
    %6892 = vmatpush1.msra.mxu0 %v6757
    %6893 = vmatprep.subr.mxu0 0.0
    %6894 = vmatpush1.msra.mxu0 %v6758
    %6895 = vmatprep.subr.mxu0 0.0
    %6896 = vmatpush1.msra.mxu0 %v6759
    %6897 = vmatprep.subr.mxu0 0.0
    %6898 = vmatpush1.msra.mxu0 %v6760
    %6899 = vmatprep.subr.mxu0 0.0
    %6900 = vmatpush1.msra.mxu0 %v6761
    %6901 = vmatprep.subr.mxu0 0.0
    %6902 = vmatpush1.msra.mxu0 %v6762
    %6903 = vmatprep.mubr.f32.mxu0 %v6834
    %6904 = vmatmul.mubr.f32.gmra.mrb[0].mxu0 %v6833
    %v6905 = vpop.f32.mrb[0].mxu0
    %v6906 = vadd.f32 0.0, %v6905
    %v6907 = vpop.f32.mrb[0].mxu0
    %6908 = vdwg.mxu0
    %6909 = vmatprep.subr.mxu0 0.0
    %6910 = vmatpush1.msra.mxu0 %v6763
    %6911 = vmatprep.subr.mxu0 0.0
    %6912 = vmatpush1.msra.mxu0 %v6764
    %6913 = vmatprep.subr.mxu0 0.0
    %6914 = vmatpush1.msra.mxu0 %v6765
    %6915 = vmatprep.subr.mxu0 0.0
    %6916 = vmatpush1.msra.mxu0 %v6766
    %6917 = vmatprep.subr.mxu0 0.0
    %6918 = vmatpush1.msra.mxu0 %v6767
    %6919 = vmatprep.subr.mxu0 0.0
    %6920 = vmatpush1.msra.mxu0 %v6768
    %6921 = vmatprep.subr.mxu0 0.0
    %6922 = vmatpush1.msra.mxu0 %v6769
    %6923 = vmatprep.subr.mxu0 0.0
    %6924 = vmatpush1.msra.mxu0 %v6770
    %6925 = vmatprep.subr.mxu0 0.0
    %6926 = vmatpush1.msra.mxu0 %v6771
    %6927 = vmatprep.subr.mxu0 0.0
    %6928 = vmatpush1.msra.mxu0 %v6772
    %6929 = vmatprep.subr.mxu0 0.0
    %6930 = vmatpush1.msra.mxu0 %v6773
    %6931 = vmatprep.subr.mxu0 0.0
    %6932 = vmatpush1.msra.mxu0 %v6774
    %6933 = vmatprep.subr.mxu0 0.0
    %6934 = vmatpush1.msra.mxu0 %v6775
    %6935 = vmatprep.subr.mxu0 0.0
    %6936 = vmatpush1.msra.mxu0 %v6776
    %6937 = vmatprep.subr.mxu0 0.0
    %6938 = vmatpush1.msra.mxu0 %v6777
    %6939 = vmatprep.subr.mxu0 0.0
    %6940 = vmatpush1.msra.mxu0 %v6778
    %6941 = vmatprep.subr.mxu0 0.0
    %6942 = vmatpush1.msra.mxu0 %v6779
    %6943 = vmatprep.subr.mxu0 0.0
    %6944 = vmatpush1.msra.mxu0 %v6780
    %6945 = vmatprep.subr.mxu0 0.0
    %6946 = vmatpush1.msra.mxu0 %v6781
    %6947 = vmatprep.subr.mxu0 0.0
    %6948 = vmatpush1.msra.mxu0 %v6782
    %6949 = vmatprep.subr.mxu0 0.0
    %6950 = vmatpush1.msra.mxu0 %v6783
    %6951 = vmatprep.subr.mxu0 0.0
    %6952 = vmatpush1.msra.mxu0 %v6784
    %6953 = vmatprep.subr.mxu0 0.0
    %6954 = vmatpush1.msra.mxu0 %v6785
    %6955 = vmatprep.subr.mxu0 0.0
    %6956 = vmatpush1.msra.mxu0 %v6786
    %6957 = vmatprep.subr.mxu0 0.0
    %6958 = vmatpush1.msra.mxu0 %v6787
    %6959 = vmatprep.subr.mxu0 0.0
    %6960 = vmatpush1.msra.mxu0 %v6788
    %6961 = vmatprep.subr.mxu0 0.0
    %6962 = vmatpush1.msra.mxu0 %v6789
    %6963 = vmatprep.subr.mxu0 0.0
    %6964 = vmatpush1.msra.mxu0 %v6790
    %6965 = vmatprep.subr.mxu0 0.0
    %6966 = vmatpush1.msra.mxu0 %v6791
    %6967 = vmatprep.subr.mxu0 0.0
    %6968 = vmatpush1.msra.mxu0 %v6792
    %6969 = vmatprep.subr.mxu0 0.0
    %6970 = vmatpush1.msra.mxu0 %v6793
    %6971 = vmatprep.subr.mxu0 0.0
    %6972 = vmatpush1.msra.mxu0 %v6794
    %6973 = vmatprep.mubr.f32.mxu0 %v6836
    %6974 = vmatmul.mubr.f32.gmra.mrb[0].mxu0 %v6835
    %v6975 = vpop.f32.mrb[0].mxu0
    %v6976 = vadd.f32 %v6906, %v6975
    %v6977 = vpop.f32.mrb[0].mxu0
    %6978 = vdwg.mxu0
    %6979 = vmatprep.subr.mxu0 0.0
    %6980 = vmatpush1.msra.mxu0 %v6795
    %6981 = vmatprep.subr.mxu0 0.0
    %6982 = vmatpush1.msra.mxu0 %v6796
    %6983 = vmatprep.subr.mxu0 0.0
    %6984 = vmatpush1.msra.mxu0 %v6797
    %6985 = vmatprep.subr.mxu0 0.0
    %6986 = vmatpush1.msra.mxu0 %v6798
    %6987 = vmatprep.subr.mxu0 0.0
    %6988 = vmatpush1.msra.mxu0 %v6799
    %6989 = vmatprep.subr.mxu0 0.0
    %6990 = vmatpush1.msra.mxu0 %v6800
    %6991 = vmatprep.subr.mxu0 0.0
    %6992 = vmatpush1.msra.mxu0 %v6801
    %6993 = vmatprep.subr.mxu0 0.0
    %6994 = vmatpush1.msra.mxu0 %v6802
    %6995 = vmatprep.subr.mxu0 0.0
    %6996 = vmatpush1.msra.mxu0 %v6803
    %6997 = vmatprep.subr.mxu0 0.0
    %6998 = vmatpush1.msra.mxu0 %v6804
    %6999 = vmatprep.subr.mxu0 0.0
    %7000 = vmatpush1.msra.mxu0 %v6805
    %7001 = vmatprep.subr.mxu0 0.0
    %7002 = vmatpush1.msra.mxu0 %v6806
    %7003 = vmatprep.subr.mxu0 0.0
    %7004 = vmatpush1.msra.mxu0 %v6807
    %7005 = vmatprep.subr.mxu0 0.0
    %7006 = vmatpush1.msra.mxu0 %v6808
    %7007 = vmatprep.subr.mxu0 0.0
    %7008 = vmatpush1.msra.mxu0 %v6809
    %7009 = vmatprep.subr.mxu0 0.0
    %7010 = vmatpush1.msra.mxu0 %v6810
    %7011 = vmatprep.subr.mxu0 0.0
    %7012 = vmatpush1.msra.mxu0 %v6811
    %7013 = vmatprep.subr.mxu0 0.0
    %7014 = vmatpush1.msra.mxu0 %v6812
    %7015 = vmatprep.subr.mxu0 0.0
    %7016 = vmatpush1.msra.mxu0 %v6813
    %7017 = vmatprep.subr.mxu0 0.0
    %7018 = vmatpush1.msra.mxu0 %v6814
    %7019 = vmatprep.subr.mxu0 0.0
    %7020 = vmatpush1.msra.mxu0 %v6815
    %7021 = vmatprep.subr.mxu0 0.0
    %7022 = vmatpush1.msra.mxu0 %v6816
    %7023 = vmatprep.subr.mxu0 0.0
    %7024 = vmatpush1.msra.mxu0 %v6817
    %7025 = vmatprep.subr.mxu0 0.0
    %7026 = vmatpush1.msra.mxu0 %v6818
    %7027 = vmatprep.subr.mxu0 0.0
    %7028 = vmatpush1.msra.mxu0 %v6819
    %7029 = vmatprep.subr.mxu0 0.0
    %7030 = vmatpush1.msra.mxu0 %v6820
    %7031 = vmatprep.subr.mxu0 0.0
    %7032 = vmatpush1.msra.mxu0 %v6821
    %7033 = vmatprep.subr.mxu0 0.0
    %7034 = vmatpush1.msra.mxu0 %v6822
    %7035 = vmatprep.subr.mxu0 0.0
    %7036 = vmatpush1.msra.mxu0 %v6823
    %7037 = vmatprep.subr.mxu0 0.0
    %7038 = vmatpush1.msra.mxu0 %v6824
    %7039 = vmatprep.subr.mxu0 0.0
    %7040 = vmatpush1.msra.mxu0 %v6825
    %7041 = vmatprep.subr.mxu0 0.0
    %7042 = vmatpush1.msra.mxu0 %v6826
    %7043 = vmatprep.mubr.f32.mxu0 %v6838
    %7044 = vmatmul.mubr.f32.gmra.mrb[0].mxu0 %v6837
    %v7045 = vpop.f32.mrb[0].mxu0
    %v7046 = vadd.f32 %v6976, %v7045
    %v7047 = vpop.f32.mrb[0].mxu0
    %7048 = vdwg.mxu0
    %v7049 = vmul.f32 %v7046, 0.10206208
    %v7050 = vmul.f32 %v5491, %v5954
    %v7051 = vmul.f32 %v5493, %v5956
    %v7052 = vmul.f32 %v5644, %v6107
    %v7053 = vmul.f32 %v5646, %v6109
    %v7054 = vmul.f32 %v5797, %v6260
    %v7055 = vmul.f32 %v5799, %v6262
    %7056 = vmatprep.subr.mxu0 0.0
    %7057 = vmatpush1.msra.mxu0 %v6731
    %7058 = vmatprep.subr.mxu0 0.0
    %7059 = vmatpush1.msra.mxu0 %v6732
    %7060 = vmatprep.subr.mxu0 0.0
    %7061 = vmatpush1.msra.mxu0 %v6733
    %7062 = vmatprep.subr.mxu0 0.0
    %7063 = vmatpush1.msra.mxu0 %v6734
    %7064 = vmatprep.subr.mxu0 0.0
    %7065 = vmatpush1.msra.mxu0 %v6735
    %7066 = vmatprep.subr.mxu0 0.0
    %7067 = vmatpush1.msra.mxu0 %v6736
    %7068 = vmatprep.subr.mxu0 0.0
    %7069 = vmatpush1.msra.mxu0 %v6737
    %7070 = vmatprep.subr.mxu0 0.0
    %7071 = vmatpush1.msra.mxu0 %v6738
    %7072 = vmatprep.subr.mxu0 0.0
    %7073 = vmatpush1.msra.mxu0 %v6739
    %7074 = vmatprep.subr.mxu0 0.0
    %7075 = vmatpush1.msra.mxu0 %v6740
    %7076 = vmatprep.subr.mxu0 0.0
    %7077 = vmatpush1.msra.mxu0 %v6741
    %7078 = vmatprep.subr.mxu0 0.0
    %7079 = vmatpush1.msra.mxu0 %v6742
    %7080 = vmatprep.subr.mxu0 0.0
    %7081 = vmatpush1.msra.mxu0 %v6743
    %7082 = vmatprep.subr.mxu0 0.0
    %7083 = vmatpush1.msra.mxu0 %v6744
    %7084 = vmatprep.subr.mxu0 0.0
    %7085 = vmatpush1.msra.mxu0 %v6745
    %7086 = vmatprep.subr.mxu0 0.0
    %7087 = vmatpush1.msra.mxu0 %v6746
    %7088 = vmatprep.subr.mxu0 0.0
    %7089 = vmatpush1.msra.mxu0 %v6747
    %7090 = vmatprep.subr.mxu0 0.0
    %7091 = vmatpush1.msra.mxu0 %v6748
    %7092 = vmatprep.subr.mxu0 0.0
    %7093 = vmatpush1.msra.mxu0 %v6749
    %7094 = vmatprep.subr.mxu0 0.0
    %7095 = vmatpush1.msra.mxu0 %v6750
    %7096 = vmatprep.subr.mxu0 0.0
    %7097 = vmatpush1.msra.mxu0 %v6751
    %7098 = vmatprep.subr.mxu0 0.0
    %7099 = vmatpush1.msra.mxu0 %v6752
    %7100 = vmatprep.subr.mxu0 0.0
    %7101 = vmatpush1.msra.mxu0 %v6753
    %7102 = vmatprep.subr.mxu0 0.0
    %7103 = vmatpush1.msra.mxu0 %v6754
    %7104 = vmatprep.subr.mxu0 0.0
    %7105 = vmatpush1.msra.mxu0 %v6755
    %7106 = vmatprep.subr.mxu0 0.0
    %7107 = vmatpush1.msra.mxu0 %v6756
    %7108 = vmatprep.subr.mxu0 0.0
    %7109 = vmatpush1.msra.mxu0 %v6757
    %7110 = vmatprep.subr.mxu0 0.0
    %7111 = vmatpush1.msra.mxu0 %v6758
    %7112 = vmatprep.subr.mxu0 0.0
    %7113 = vmatpush1.msra.mxu0 %v6759
    %7114 = vmatprep.subr.mxu0 0.0
    %7115 = vmatpush1.msra.mxu0 %v6760
    %7116 = vmatprep.subr.mxu0 0.0
    %7117 = vmatpush1.msra.mxu0 %v6761
    %7118 = vmatprep.subr.mxu0 0.0
    %7119 = vmatpush1.msra.mxu0 %v6762
    %7120 = vmatprep.mubr.f32.mxu0 %v7051
    %7121 = vmatmul.mubr.f32.gmra.mrb[0].mxu0 %v7050
    %v7122 = vpop.f32.mrb[0].mxu0
    %v7123 = vadd.f32 0.0, %v7122
    %v7124 = vpop.f32.mrb[0].mxu0
    %7125 = vdwg.mxu0
    %7126 = vmatprep.subr.mxu0 0.0
    %7127 = vmatpush1.msra.mxu0 %v6763
    %7128 = vmatprep.subr.mxu0 0.0
    %7129 = vmatpush1.msra.mxu0 %v6764
    %7130 = vmatprep.subr.mxu0 0.0
    %7131 = vmatpush1.msra.mxu0 %v6765
    %7132 = vmatprep.subr.mxu0 0.0
    %7133 = vmatpush1.msra.mxu0 %v6766
    %7134 = vmatprep.subr.mxu0 0.0
    %7135 = vmatpush1.msra.mxu0 %v6767
    %7136 = vmatprep.subr.mxu0 0.0
    %7137 = vmatpush1.msra.mxu0 %v6768
    %7138 = vmatprep.subr.mxu0 0.0
    %7139 = vmatpush1.msra.mxu0 %v6769
    %7140 = vmatprep.subr.mxu0 0.0
    %7141 = vmatpush1.msra.mxu0 %v6770
    %7142 = vmatprep.subr.mxu0 0.0
    %7143 = vmatpush1.msra.mxu0 %v6771
    %7144 = vmatprep.subr.mxu0 0.0
    %7145 = vmatpush1.msra.mxu0 %v6772
    %7146 = vmatprep.subr.mxu0 0.0
    %7147 = vmatpush1.msra.mxu0 %v6773
    %7148 = vmatprep.subr.mxu0 0.0
    %7149 = vmatpush1.msra.mxu0 %v6774
    %7150 = vmatprep.subr.mxu0 0.0
    %7151 = vmatpush1.msra.mxu0 %v6775
    %7152 = vmatprep.subr.mxu0 0.0
    %7153 = vmatpush1.msra.mxu0 %v6776
    %7154 = vmatprep.subr.mxu0 0.0
    %7155 = vmatpush1.msra.mxu0 %v6777
    %7156 = vmatprep.subr.mxu0 0.0
    %7157 = vmatpush1.msra.mxu0 %v6778
    %7158 = vmatprep.subr.mxu0 0.0
    %7159 = vmatpush1.msra.mxu0 %v6779
    %7160 = vmatprep.subr.mxu0 0.0
    %7161 = vmatpush1.msra.mxu0 %v6780
    %7162 = vmatprep.subr.mxu0 0.0
    %7163 = vmatpush1.msra.mxu0 %v6781
    %7164 = vmatprep.subr.mxu0 0.0
    %7165 = vmatpush1.msra.mxu0 %v6782
    %7166 = vmatprep.subr.mxu0 0.0
    %7167 = vmatpush1.msra.mxu0 %v6783
    %7168 = vmatprep.subr.mxu0 0.0
    %7169 = vmatpush1.msra.mxu0 %v6784
    %7170 = vmatprep.subr.mxu0 0.0
    %7171 = vmatpush1.msra.mxu0 %v6785
    %7172 = vmatprep.subr.mxu0 0.0
    %7173 = vmatpush1.msra.mxu0 %v6786
    %7174 = vmatprep.subr.mxu0 0.0
    %7175 = vmatpush1.msra.mxu0 %v6787
    %7176 = vmatprep.subr.mxu0 0.0
    %7177 = vmatpush1.msra.mxu0 %v6788
    %7178 = vmatprep.subr.mxu0 0.0
    %7179 = vmatpush1.msra.mxu0 %v6789
    %7180 = vmatprep.subr.mxu0 0.0
    %7181 = vmatpush1.msra.mxu0 %v6790
    %7182 = vmatprep.subr.mxu0 0.0
    %7183 = vmatpush1.msra.mxu0 %v6791
    %7184 = vmatprep.subr.mxu0 0.0
    %7185 = vmatpush1.msra.mxu0 %v6792
    %7186 = vmatprep.subr.mxu0 0.0
    %7187 = vmatpush1.msra.mxu0 %v6793
    %7188 = vmatprep.subr.mxu0 0.0
    %7189 = vmatpush1.msra.mxu0 %v6794
    %7190 = vmatprep.mubr.f32.mxu0 %v7053
    %7191 = vmatmul.mubr.f32.gmra.mrb[0].mxu0 %v7052
    %v7192 = vpop.f32.mrb[0].mxu0
    %v7193 = vadd.f32 %v7123, %v7192
    %v7194 = vpop.f32.mrb[0].mxu0
    %7195 = vdwg.mxu0
    %7196 = vmatprep.subr.mxu0 0.0
    %7197 = vmatpush1.msra.mxu0 %v6795
    %7198 = vmatprep.subr.mxu0 0.0
    %7199 = vmatpush1.msra.mxu0 %v6796
    %7200 = vmatprep.subr.mxu0 0.0
    %7201 = vmatpush1.msra.mxu0 %v6797
    %7202 = vmatprep.subr.mxu0 0.0
    %7203 = vmatpush1.msra.mxu0 %v6798
    %7204 = vmatprep.subr.mxu0 0.0
    %7205 = vmatpush1.msra.mxu0 %v6799
    %7206 = vmatprep.subr.mxu0 0.0
    %7207 = vmatpush1.msra.mxu0 %v6800
    %7208 = vmatprep.subr.mxu0 0.0
    %7209 = vmatpush1.msra.mxu0 %v6801
    %7210 = vmatprep.subr.mxu0 0.0
    %7211 = vmatpush1.msra.mxu0 %v6802
    %7212 = vmatprep.subr.mxu0 0.0
    %7213 = vmatpush1.msra.mxu0 %v6803
    %7214 = vmatprep.subr.mxu0 0.0
    %7215 = vmatpush1.msra.mxu0 %v6804
    %7216 = vmatprep.subr.mxu0 0.0
    %7217 = vmatpush1.msra.mxu0 %v6805
    %7218 = vmatprep.subr.mxu0 0.0
    %7219 = vmatpush1.msra.mxu0 %v6806
    %7220 = vmatprep.subr.mxu0 0.0
    %7221 = vmatpush1.msra.mxu0 %v6807
    %7222 = vmatprep.subr.mxu0 0.0
    %7223 = vmatpush1.msra.mxu0 %v6808
    %7224 = vmatprep.subr.mxu0 0.0
    %7225 = vmatpush1.msra.mxu0 %v6809
    %7226 = vmatprep.subr.mxu0 0.0
    %7227 = vmatpush1.msra.mxu0 %v6810
    %7228 = vmatprep.subr.mxu0 0.0
    %7229 = vmatpush1.msra.mxu0 %v6811
    %7230 = vmatprep.subr.mxu0 0.0
    %7231 = vmatpush1.msra.mxu0 %v6812
    %7232 = vmatprep.subr.mxu0 0.0
    %7233 = vmatpush1.msra.mxu0 %v6813
    %7234 = vmatprep.subr.mxu0 0.0
    %7235 = vmatpush1.msra.mxu0 %v6814
    %7236 = vmatprep.subr.mxu0 0.0
    %7237 = vmatpush1.msra.mxu0 %v6815
    %7238 = vmatprep.subr.mxu0 0.0
    %7239 = vmatpush1.msra.mxu0 %v6816
    %7240 = vmatprep.subr.mxu0 0.0
    %7241 = vmatpush1.msra.mxu0 %v6817
    %7242 = vmatprep.subr.mxu0 0.0
    %7243 = vmatpush1.msra.mxu0 %v6818
    %7244 = vmatprep.subr.mxu0 0.0
    %7245 = vmatpush1.msra.mxu0 %v6819
    %7246 = vmatprep.subr.mxu0 0.0
    %7247 = vmatpush1.msra.mxu0 %v6820
    %7248 = vmatprep.subr.mxu0 0.0
    %7249 = vmatpush1.msra.mxu0 %v6821
    %7250 = vmatprep.subr.mxu0 0.0
    %7251 = vmatpush1.msra.mxu0 %v6822
    %7252 = vmatprep.subr.mxu0 0.0
    %7253 = vmatpush1.msra.mxu0 %v6823
    %7254 = vmatprep.subr.mxu0 0.0
    %7255 = vmatpush1.msra.mxu0 %v6824
    %7256 = vmatprep.subr.mxu0 0.0
    %7257 = vmatpush1.msra.mxu0 %v6825
    %7258 = vmatprep.subr.mxu0 0.0
    %7259 = vmatpush1.msra.mxu0 %v6826
    %7260 = vmatprep.mubr.f32.mxu0 %v7055
    %7261 = vmatmul.mubr.f32.gmra.mrb[0].mxu0 %v7054
    %v7262 = vpop.f32.mrb[0].mxu0
    %v7263 = vadd.f32 %v7193, %v7262
    %v7264 = vpop.f32.mrb[0].mxu0
    %7265 = vdwg.mxu0
    %v7266 = vmul.f32 %v7263, 0.10206208
    %v7267 = vmul.f32 %v5491, %v5960
    %v7268 = vmul.f32 %v5493, %v5962
    %v7269 = vmul.f32 %v5644, %v6113
    %v7270 = vmul.f32 %v5646, %v6115
    %v7271 = vmul.f32 %v5797, %v6266
    %v7272 = vmul.f32 %v5799, %v6268
    %7273 = vmatprep.subr.mxu0 0.0
    %7274 = vmatpush1.msra.mxu0 %v6731
    %7275 = vmatprep.subr.mxu0 0.0
    %7276 = vmatpush1.msra.mxu0 %v6732
    %7277 = vmatprep.subr.mxu0 0.0
    %7278 = vmatpush1.msra.mxu0 %v6733
    %7279 = vmatprep.subr.mxu0 0.0
    %7280 = vmatpush1.msra.mxu0 %v6734
    %7281 = vmatprep.subr.mxu0 0.0
    %7282 = vmatpush1.msra.mxu0 %v6735
    %7283 = vmatprep.subr.mxu0 0.0
    %7284 = vmatpush1.msra.mxu0 %v6736
    %7285 = vmatprep.subr.mxu0 0.0
    %7286 = vmatpush1.msra.mxu0 %v6737
    %7287 = vmatprep.subr.mxu0 0.0
    %7288 = vmatpush1.msra.mxu0 %v6738
    %7289 = vmatprep.subr.mxu0 0.0
    %7290 = vmatpush1.msra.mxu0 %v6739
    %7291 = vmatprep.subr.mxu0 0.0
    %7292 = vmatpush1.msra.mxu0 %v6740
    %7293 = vmatprep.subr.mxu0 0.0
    %7294 = vmatpush1.msra.mxu0 %v6741
    %7295 = vmatprep.subr.mxu0 0.0
    %7296 = vmatpush1.msra.mxu0 %v6742
    %7297 = vmatprep.subr.mxu0 0.0
    %7298 = vmatpush1.msra.mxu0 %v6743
    %7299 = vmatprep.subr.mxu0 0.0
    %7300 = vmatpush1.msra.mxu0 %v6744
    %7301 = vmatprep.subr.mxu0 0.0
    %7302 = vmatpush1.msra.mxu0 %v6745
    %7303 = vmatprep.subr.mxu0 0.0
    %7304 = vmatpush1.msra.mxu0 %v6746
    %7305 = vmatprep.subr.mxu0 0.0
    %7306 = vmatpush1.msra.mxu0 %v6747
    %7307 = vmatprep.subr.mxu0 0.0
    %7308 = vmatpush1.msra.mxu0 %v6748
    %7309 = vmatprep.subr.mxu0 0.0
    %7310 = vmatpush1.msra.mxu0 %v6749
    %7311 = vmatprep.subr.mxu0 0.0
    %7312 = vmatpush1.msra.mxu0 %v6750
    %7313 = vmatprep.subr.mxu0 0.0
    %7314 = vmatpush1.msra.mxu0 %v6751
    %7315 = vmatprep.subr.mxu0 0.0
    %7316 = vmatpush1.msra.mxu0 %v6752
    %7317 = vmatprep.subr.mxu0 0.0
    %7318 = vmatpush1.msra.mxu0 %v6753
    %7319 = vmatprep.subr.mxu0 0.0
    %7320 = vmatpush1.msra.mxu0 %v6754
    %7321 = vmatprep.subr.mxu0 0.0
    %7322 = vmatpush1.msra.mxu0 %v6755
    %7323 = vmatprep.subr.mxu0 0.0
    %7324 = vmatpush1.msra.mxu0 %v6756
    %7325 = vmatprep.subr.mxu0 0.0
    %7326 = vmatpush1.msra.mxu0 %v6757
    %7327 = vmatprep.subr.mxu0 0.0
    %7328 = vmatpush1.msra.mxu0 %v6758
    %7329 = vmatprep.subr.mxu0 0.0
    %7330 = vmatpush1.msra.mxu0 %v6759
    %7331 = vmatprep.subr.mxu0 0.0
    %7332 = vmatpush1.msra.mxu0 %v6760
    %7333 = vmatprep.subr.mxu0 0.0
    %7334 = vmatpush1.msra.mxu0 %v6761
    %7335 = vmatprep.subr.mxu0 0.0
    %7336 = vmatpush1.msra.mxu0 %v6762
    %7337 = vmatprep.mubr.f32.mxu0 %v7268
    %7338 = vmatmul.mubr.f32.gmra.mrb[0].mxu0 %v7267
    %v7339 = vpop.f32.mrb[0].mxu0
    %v7340 = vadd.f32 0.0, %v7339
    %v7341 = vpop.f32.mrb[0].mxu0
    %7342 = vdwg.mxu0
    %7343 = vmatprep.subr.mxu0 0.0
    %7344 = vmatpush1.msra.mxu0 %v6763
    %7345 = vmatprep.subr.mxu0 0.0
    %7346 = vmatpush1.msra.mxu0 %v6764
    %7347 = vmatprep.subr.mxu0 0.0
    %7348 = vmatpush1.msra.mxu0 %v6765
    %7349 = vmatprep.subr.mxu0 0.0
    %7350 = vmatpush1.msra.mxu0 %v6766
    %7351 = vmatprep.subr.mxu0 0.0
    %7352 = vmatpush1.msra.mxu0 %v6767
    %7353 = vmatprep.subr.mxu0 0.0
    %7354 = vmatpush1.msra.mxu0 %v6768
    %7355 = vmatprep.subr.mxu0 0.0
    %7356 = vmatpush1.msra.mxu0 %v6769
    %7357 = vmatprep.subr.mxu0 0.0
    %7358 = vmatpush1.msra.mxu0 %v6770
    %7359 = vmatprep.subr.mxu0 0.0
    %7360 = vmatpush1.msra.mxu0 %v6771
    %7361 = vmatprep.subr.mxu0 0.0
    %7362 = vmatpush1.msra.mxu0 %v6772
    %7363 = vmatprep.subr.mxu0 0.0
    %7364 = vmatpush1.msra.mxu0 %v6773
    %7365 = vmatprep.subr.mxu0 0.0
    %7366 = vmatpush1.msra.mxu0 %v6774
    %7367 = vmatprep.subr.mxu0 0.0
    %7368 = vmatpush1.msra.mxu0 %v6775
    %7369 = vmatprep.subr.mxu0 0.0
    %7370 = vmatpush1.msra.mxu0 %v6776
    %7371 = vmatprep.subr.mxu0 0.0
    %7372 = vmatpush1.msra.mxu0 %v6777
    %7373 = vmatprep.subr.mxu0 0.0
    %7374 = vmatpush1.msra.mxu0 %v6778
    %7375 = vmatprep.subr.mxu0 0.0
    %7376 = vmatpush1.msra.mxu0 %v6779
    %7377 = vmatprep.subr.mxu0 0.0
    %7378 = vmatpush1.msra.mxu0 %v6780
    %7379 = vmatprep.subr.mxu0 0.0
    %7380 = vmatpush1.msra.mxu0 %v6781
    %7381 = vmatprep.subr.mxu0 0.0
    %7382 = vmatpush1.msra.mxu0 %v6782
    %7383 = vmatprep.subr.mxu0 0.0
    %7384 = vmatpush1.msra.mxu0 %v6783
    %7385 = vmatprep.subr.mxu0 0.0
    %7386 = vmatpush1.msra.mxu0 %v6784
    %7387 = vmatprep.subr.mxu0 0.0
    %7388 = vmatpush1.msra.mxu0 %v6785
    %7389 = vmatprep.subr.mxu0 0.0
    %7390 = vmatpush1.msra.mxu0 %v6786
    %7391 = vmatprep.subr.mxu0 0.0
    %7392 = vmatpush1.msra.mxu0 %v6787
    %7393 = vmatprep.subr.mxu0 0.0
    %7394 = vmatpush1.msra.mxu0 %v6788
    %7395 = vmatprep.subr.mxu0 0.0
    %7396 = vmatpush1.msra.mxu0 %v6789
    %7397 = vmatprep.subr.mxu0 0.0
    %7398 = vmatpush1.msra.mxu0 %v6790
    %7399 = vmatprep.subr.mxu0 0.0
    %7400 = vmatpush1.msra.mxu0 %v6791
    %7401 = vmatprep.subr.mxu0 0.0
    %7402 = vmatpush1.msra.mxu0 %v6792
    %7403 = vmatprep.subr.mxu0 0.0
    %7404 = vmatpush1.msra.mxu0 %v6793
    %7405 = vmatprep.subr.mxu0 0.0
    %7406 = vmatpush1.msra.mxu0 %v6794
    %7407 = vmatprep.mubr.f32.mxu0 %v7270
    %7408 = vmatmul.mubr.f32.gmra.mrb[0].mxu0 %v7269
    %v7409 = vpop.f32.mrb[0].mxu0
    %v7410 = vadd.f32 %v7340, %v7409
    %v7411 = vpop.f32.mrb[0].mxu0
    %7412 = vdwg.mxu0
    %7413 = vmatprep.subr.mxu0 0.0
    %7414 = vmatpush1.msra.mxu0 %v6795
    %7415 = vmatprep.subr.mxu0 0.0
    %7416 = vmatpush1.msra.mxu0 %v6796
    %7417 = vmatprep.subr.mxu0 0.0
    %7418 = vmatpush1.msra.mxu0 %v6797
    %7419 = vmatprep.subr.mxu0 0.0
    %7420 = vmatpush1.msra.mxu0 %v6798
    %7421 = vmatprep.subr.mxu0 0.0
    %7422 = vmatpush1.msra.mxu0 %v6799
    %7423 = vmatprep.subr.mxu0 0.0
    %7424 = vmatpush1.msra.mxu0 %v6800
    %7425 = vmatprep.subr.mxu0 0.0
    %7426 = vmatpush1.msra.mxu0 %v6801
    %7427 = vmatprep.subr.mxu0 0.0
    %7428 = vmatpush1.msra.mxu0 %v6802
    %7429 = vmatprep.subr.mxu0 0.0
    %7430 = vmatpush1.msra.mxu0 %v6803
    %7431 = vmatprep.subr.mxu0 0.0
    %7432 = vmatpush1.msra.mxu0 %v6804
    %7433 = vmatprep.subr.mxu0 0.0
    %7434 = vmatpush1.msra.mxu0 %v6805
    %7435 = vmatprep.subr.mxu0 0.0
    %7436 = vmatpush1.msra.mxu0 %v6806
    %7437 = vmatprep.subr.mxu0 0.0
    %7438 = vmatpush1.msra.mxu0 %v6807
    %7439 = vmatprep.subr.mxu0 0.0
    %7440 = vmatpush1.msra.mxu0 %v6808
    %7441 = vmatprep.subr.mxu0 0.0
    %7442 = vmatpush1.msra.mxu0 %v6809
    %7443 = vmatprep.subr.mxu0 0.0
    %7444 = vmatpush1.msra.mxu0 %v6810
    %7445 = vmatprep.subr.mxu0 0.0
    %7446 = vmatpush1.msra.mxu0 %v6811
    %7447 = vmatprep.subr.mxu0 0.0
    %7448 = vmatpush1.msra.mxu0 %v6812
    %7449 = vmatprep.subr.mxu0 0.0
    %7450 = vmatpush1.msra.mxu0 %v6813
    %7451 = vmatprep.subr.mxu0 0.0
    %7452 = vmatpush1.msra.mxu0 %v6814
    %7453 = vmatprep.subr.mxu0 0.0
    %7454 = vmatpush1.msra.mxu0 %v6815
    %7455 = vmatprep.subr.mxu0 0.0
    %7456 = vmatpush1.msra.mxu0 %v6816
    %7457 = vmatprep.subr.mxu0 0.0
    %7458 = vmatpush1.msra.mxu0 %v6817
    %7459 = vmatprep.subr.mxu0 0.0
    %7460 = vmatpush1.msra.mxu0 %v6818
    %7461 = vmatprep.subr.mxu0 0.0
    %7462 = vmatpush1.msra.mxu0 %v6819
    %7463 = vmatprep.subr.mxu0 0.0
    %7464 = vmatpush1.msra.mxu0 %v6820
    %7465 = vmatprep.subr.mxu0 0.0
    %7466 = vmatpush1.msra.mxu0 %v6821
    %7467 = vmatprep.subr.mxu0 0.0
    %7468 = vmatpush1.msra.mxu0 %v6822
    %7469 = vmatprep.subr.mxu0 0.0
    %7470 = vmatpush1.msra.mxu0 %v6823
    %7471 = vmatprep.subr.mxu0 0.0
    %7472 = vmatpush1.msra.mxu0 %v6824
    %7473 = vmatprep.subr.mxu0 0.0
    %7474 = vmatpush1.msra.mxu0 %v6825
    %7475 = vmatprep.subr.mxu0 0.0
    %7476 = vmatpush1.msra.mxu0 %v6826
    %7477 = vmatprep.mubr.f32.mxu0 %v7272
    %7478 = vmatmul.mubr.f32.gmra.mrb[0].mxu0 %v7271
    %v7479 = vpop.f32.mrb[0].mxu0
    %v7480 = vadd.f32 %v7410, %v7479
    %v7481 = vpop.f32.mrb[0].mxu0
    %7482 = vdwg.mxu0
    %v7483 = vmul.f32 %v7480, 0.10206208
    %v7484 = vmul.f32 %v5495, %v5950
    %v7485 = vmul.f32 %v5497, %v5952
    %v7486 = vmul.f32 %v5648, %v6103
    %v7487 = vmul.f32 %v5650, %v6105
    %v7488 = vmul.f32 %v5801, %v6256
    %v7489 = vmul.f32 %v5803, %v6258
    %7490 = vmatprep.subr.mxu0 0.0
    %7491 = vmatpush1.msra.mxu0 %v6731
    %7492 = vmatprep.subr.mxu0 0.0
    %7493 = vmatpush1.msra.mxu0 %v6732
    %7494 = vmatprep.subr.mxu0 0.0
    %7495 = vmatpush1.msra.mxu0 %v6733
    %7496 = vmatprep.subr.mxu0 0.0
    %7497 = vmatpush1.msra.mxu0 %v6734
    %7498 = vmatprep.subr.mxu0 0.0
    %7499 = vmatpush1.msra.mxu0 %v6735
    %7500 = vmatprep.subr.mxu0 0.0
    %7501 = vmatpush1.msra.mxu0 %v6736
    %7502 = vmatprep.subr.mxu0 0.0
    %7503 = vmatpush1.msra.mxu0 %v6737
    %7504 = vmatprep.subr.mxu0 0.0
    %7505 = vmatpush1.msra.mxu0 %v6738
    %7506 = vmatprep.subr.mxu0 0.0
    %7507 = vmatpush1.msra.mxu0 %v6739
    %7508 = vmatprep.subr.mxu0 0.0
    %7509 = vmatpush1.msra.mxu0 %v6740
    %7510 = vmatprep.subr.mxu0 0.0
    %7511 = vmatpush1.msra.mxu0 %v6741
    %7512 = vmatprep.subr.mxu0 0.0
    %7513 = vmatpush1.msra.mxu0 %v6742
    %7514 = vmatprep.subr.mxu0 0.0
    %7515 = vmatpush1.msra.mxu0 %v6743
    %7516 = vmatprep.subr.mxu0 0.0
    %7517 = vmatpush1.msra.mxu0 %v6744
    %7518 = vmatprep.subr.mxu0 0.0
    %7519 = vmatpush1.msra.mxu0 %v6745
    %7520 = vmatprep.subr.mxu0 0.0
    %7521 = vmatpush1.msra.mxu0 %v6746
    %7522 = vmatprep.subr.mxu0 0.0
    %7523 = vmatpush1.msra.mxu0 %v6747
    %7524 = vmatprep.subr.mxu0 0.0
    %7525 = vmatpush1.msra.mxu0 %v6748
    %7526 = vmatprep.subr.mxu0 0.0
    %7527 = vmatpush1.msra.mxu0 %v6749
    %7528 = vmatprep.subr.mxu0 0.0
    %7529 = vmatpush1.msra.mxu0 %v6750
    %7530 = vmatprep.subr.mxu0 0.0
    %7531 = vmatpush1.msra.mxu0 %v6751
    %7532 = vmatprep.subr.mxu0 0.0
    %7533 = vmatpush1.msra.mxu0 %v6752
    %7534 = vmatprep.subr.mxu0 0.0
    %7535 = vmatpush1.msra.mxu0 %v6753
    %7536 = vmatprep.subr.mxu0 0.0
    %7537 = vmatpush1.msra.mxu0 %v6754
    %7538 = vmatprep.subr.mxu0 0.0
    %7539 = vmatpush1.msra.mxu0 %v6755
    %7540 = vmatprep.subr.mxu0 0.0
    %7541 = vmatpush1.msra.mxu0 %v6756
    %7542 = vmatprep.subr.mxu0 0.0
    %7543 = vmatpush1.msra.mxu0 %v6757
    %7544 = vmatprep.subr.mxu0 0.0
    %7545 = vmatpush1.msra.mxu0 %v6758
    %7546 = vmatprep.subr.mxu0 0.0
    %7547 = vmatpush1.msra.mxu0 %v6759
    %7548 = vmatprep.subr.mxu0 0.0
    %7549 = vmatpush1.msra.mxu0 %v6760
    %7550 = vmatprep.subr.mxu0 0.0
    %7551 = vmatpush1.msra.mxu0 %v6761
    %7552 = vmatprep.subr.mxu0 0.0
    %7553 = vmatpush1.msra.mxu0 %v6762
    %7554 = vmatprep.mubr.f32.mxu0 %v7485
    %7555 = vmatmul.mubr.f32.gmra.mrb[0].mxu0 %v7484
    %v7556 = vpop.f32.mrb[0].mxu0
    %v7557 = vadd.f32 0.0, %v7556
    %v7558 = vpop.f32.mrb[0].mxu0
    %7559 = vdwg.mxu0
    %7560 = vmatprep.subr.mxu0 0.0
    %7561 = vmatpush1.msra.mxu0 %v6763
    %7562 = vmatprep.subr.mxu0 0.0
    %7563 = vmatpush1.msra.mxu0 %v6764
    %7564 = vmatprep.subr.mxu0 0.0
    %7565 = vmatpush1.msra.mxu0 %v6765
    %7566 = vmatprep.subr.mxu0 0.0
    %7567 = vmatpush1.msra.mxu0 %v6766
    %7568 = vmatprep.subr.mxu0 0.0
    %7569 = vmatpush1.msra.mxu0 %v6767
    %7570 = vmatprep.subr.mxu0 0.0
    %7571 = vmatpush1.msra.mxu0 %v6768
    %7572 = vmatprep.subr.mxu0 0.0
    %7573 = vmatpush1.msra.mxu0 %v6769
    %7574 = vmatprep.subr.mxu0 0.0
    %7575 = vmatpush1.msra.mxu0 %v6770
    %7576 = vmatprep.subr.mxu0 0.0
    %7577 = vmatpush1.msra.mxu0 %v6771
    %7578 = vmatprep.subr.mxu0 0.0
    %7579 = vmatpush1.msra.mxu0 %v6772
    %7580 = vmatprep.subr.mxu0 0.0
    %7581 = vmatpush1.msra.mxu0 %v6773
    %7582 = vmatprep.subr.mxu0 0.0
    %7583 = vmatpush1.msra.mxu0 %v6774
    %7584 = vmatprep.subr.mxu0 0.0
    %7585 = vmatpush1.msra.mxu0 %v6775
    %7586 = vmatprep.subr.mxu0 0.0
    %7587 = vmatpush1.msra.mxu0 %v6776
    %7588 = vmatprep.subr.mxu0 0.0
    %7589 = vmatpush1.msra.mxu0 %v6777
    %7590 = vmatprep.subr.mxu0 0.0
    %7591 = vmatpush1.msra.mxu0 %v6778
    %7592 = vmatprep.subr.mxu0 0.0
    %7593 = vmatpush1.msra.mxu0 %v6779
    %7594 = vmatprep.subr.mxu0 0.0
    %7595 = vmatpush1.msra.mxu0 %v6780
    %7596 = vmatprep.subr.mxu0 0.0
    %7597 = vmatpush1.msra.mxu0 %v6781
    %7598 = vmatprep.subr.mxu0 0.0
    %7599 = vmatpush1.msra.mxu0 %v6782
    %7600 = vmatprep.subr.mxu0 0.0
    %7601 = vmatpush1.msra.mxu0 %v6783
    %7602 = vmatprep.subr.mxu0 0.0
    %7603 = vmatpush1.msra.mxu0 %v6784
    %7604 = vmatprep.subr.mxu0 0.0
    %7605 = vmatpush1.msra.mxu0 %v6785
    %7606 = vmatprep.subr.mxu0 0.0
    %7607 = vmatpush1.msra.mxu0 %v6786
    %7608 = vmatprep.subr.mxu0 0.0
    %7609 = vmatpush1.msra.mxu0 %v6787
    %7610 = vmatprep.subr.mxu0 0.0
    %7611 = vmatpush1.msra.mxu0 %v6788
    %7612 = vmatprep.subr.mxu0 0.0
    %7613 = vmatpush1.msra.mxu0 %v6789
    %7614 = vmatprep.subr.mxu0 0.0
    %7615 = vmatpush1.msra.mxu0 %v6790
    %7616 = vmatprep.subr.mxu0 0.0
    %7617 = vmatpush1.msra.mxu0 %v6791
    %7618 = vmatprep.subr.mxu0 0.0
    %7619 = vmatpush1.msra.mxu0 %v6792
    %7620 = vmatprep.subr.mxu0 0.0
    %7621 = vmatpush1.msra.mxu0 %v6793
    %7622 = vmatprep.subr.mxu0 0.0
    %7623 = vmatpush1.msra.mxu0 %v6794
    %7624 = vmatprep.mubr.f32.mxu0 %v7487
    %7625 = vmatmul.mubr.f32.gmra.mrb[0].mxu0 %v7486
    %v7626 = vpop.f32.mrb[0].mxu0
    %v7627 = vadd.f32 %v7557, %v7626
    %v7628 = vpop.f32.mrb[0].mxu0
    %7629 = vdwg.mxu0
    %7630 = vmatprep.subr.mxu0 0.0
    %7631 = vmatpush1.msra.mxu0 %v6795
    %7632 = vmatprep.subr.mxu0 0.0
    %7633 = vmatpush1.msra.mxu0 %v6796
    %7634 = vmatprep.subr.mxu0 0.0
    %7635 = vmatpush1.msra.mxu0 %v6797
    %7636 = vmatprep.subr.mxu0 0.0
    %7637 = vmatpush1.msra.mxu0 %v6798
    %7638 = vmatprep.subr.mxu0 0.0
    %7639 = vmatpush1.msra.mxu0 %v6799
    %7640 = vmatprep.subr.mxu0 0.0
    %7641 = vmatpush1.msra.mxu0 %v6800
    %7642 = vmatprep.subr.mxu0 0.0
    %7643 = vmatpush1.msra.mxu0 %v6801
    %7644 = vmatprep.subr.mxu0 0.0
    %7645 = vmatpush1.msra.mxu0 %v6802
    %7646 = vmatprep.subr.mxu0 0.0
    %7647 = vmatpush1.msra.mxu0 %v6803
    %7648 = vmatprep.subr.mxu0 0.0
    %7649 = vmatpush1.msra.mxu0 %v6804
    %7650 = vmatprep.subr.mxu0 0.0
    %7651 = vmatpush1.msra.mxu0 %v6805
    %7652 = vmatprep.subr.mxu0 0.0
    %7653 = vmatpush1.msra.mxu0 %v6806
    %7654 = vmatprep.subr.mxu0 0.0
    %7655 = vmatpush1.msra.mxu0 %v6807
    %7656 = vmatprep.subr.mxu0 0.0
    %7657 = vmatpush1.msra.mxu0 %v6808
    %7658 = vmatprep.subr.mxu0 0.0
    %7659 = vmatpush1.msra.mxu0 %v6809
    %7660 = vmatprep.subr.mxu0 0.0
    %7661 = vmatpush1.msra.mxu0 %v6810
    %7662 = vmatprep.subr.mxu0 0.0
    %7663 = vmatpush1.msra.mxu0 %v6811
    %7664 = vmatprep.subr.mxu0 0.0
    %7665 = vmatpush1.msra.mxu0 %v6812
    %7666 = vmatprep.subr.mxu0 0.0
    %7667 = vmatpush1.msra.mxu0 %v6813
    %7668 = vmatprep.subr.mxu0 0.0
    %7669 = vmatpush1.msra.mxu0 %v6814
    %7670 = vmatprep.subr.mxu0 0.0
    %7671 = vmatpush1.msra.mxu0 %v6815
    %7672 = vmatprep.subr.mxu0 0.0
    %7673 = vmatpush1.msra.mxu0 %v6816
    %7674 = vmatprep.subr.mxu0 0.0
    %7675 = vmatpush1.msra.mxu0 %v6817
    %7676 = vmatprep.subr.mxu0 0.0
    %7677 = vmatpush1.msra.mxu0 %v6818
    %7678 = vmatprep.subr.mxu0 0.0
    %7679 = vmatpush1.msra.mxu0 %v6819
    %7680 = vmatprep.subr.mxu0 0.0
    %7681 = vmatpush1.msra.mxu0 %v6820
    %7682 = vmatprep.subr.mxu0 0.0
    %7683 = vmatpush1.msra.mxu0 %v6821
    %7684 = vmatprep.subr.mxu0 0.0
    %7685 = vmatpush1.msra.mxu0 %v6822
    %7686 = vmatprep.subr.mxu0 0.0
    %7687 = vmatpush1.msra.mxu0 %v6823
    %7688 = vmatprep.subr.mxu0 0.0
    %7689 = vmatpush1.msra.mxu0 %v6824
    %7690 = vmatprep.subr.mxu0 0.0
    %7691 = vmatpush1.msra.mxu0 %v6825
    %7692 = vmatprep.subr.mxu0 0.0
    %7693 = vmatpush1.msra.mxu0 %v6826
    %7694 = vmatprep.mubr.f32.mxu0 %v7489
    %7695 = vmatmul.mubr.f32.gmra.mrb[0].mxu0 %v7488
    %v7696 = vpop.f32.mrb[0].mxu0
    %v7697 = vadd.f32 %v7627, %v7696
    %v7698 = vpop.f32.mrb[0].mxu0
    %7699 = vdwg.mxu0
    %v7700 = vmul.f32 %v7697, 0.10206208
    %v7701 = vmul.f32 %v5495, %v5954
    %v7702 = vmul.f32 %v5497, %v5956
    %v7703 = vmul.f32 %v5648, %v6107
    %v7704 = vmul.f32 %v5650, %v6109
    %v7705 = vmul.f32 %v5801, %v6260
    %v7706 = vmul.f32 %v5803, %v6262
    %7707 = vmatprep.subr.mxu0 0.0
    %7708 = vmatpush1.msra.mxu0 %v6731
    %7709 = vmatprep.subr.mxu0 0.0
    %7710 = vmatpush1.msra.mxu0 %v6732
    %7711 = vmatprep.subr.mxu0 0.0
    %7712 = vmatpush1.msra.mxu0 %v6733
    %7713 = vmatprep.subr.mxu0 0.0
    %7714 = vmatpush1.msra.mxu0 %v6734
    %7715 = vmatprep.subr.mxu0 0.0
    %7716 = vmatpush1.msra.mxu0 %v6735
    %7717 = vmatprep.subr.mxu0 0.0
    %7718 = vmatpush1.msra.mxu0 %v6736
    %7719 = vmatprep.subr.mxu0 0.0
    %7720 = vmatpush1.msra.mxu0 %v6737
    %7721 = vmatprep.subr.mxu0 0.0
    %7722 = vmatpush1.msra.mxu0 %v6738
    %7723 = vmatprep.subr.mxu0 0.0
    %7724 = vmatpush1.msra.mxu0 %v6739
    %7725 = vmatprep.subr.mxu0 0.0
    %7726 = vmatpush1.msra.mxu0 %v6740
    %7727 = vmatprep.subr.mxu0 0.0
    %7728 = vmatpush1.msra.mxu0 %v6741
    %7729 = vmatprep.subr.mxu0 0.0
    %7730 = vmatpush1.msra.mxu0 %v6742
    %7731 = vmatprep.subr.mxu0 0.0
    %7732 = vmatpush1.msra.mxu0 %v6743
    %7733 = vmatprep.subr.mxu0 0.0
    %7734 = vmatpush1.msra.mxu0 %v6744
    %7735 = vmatprep.subr.mxu0 0.0
    %7736 = vmatpush1.msra.mxu0 %v6745
    %7737 = vmatprep.subr.mxu0 0.0
    %7738 = vmatpush1.msra.mxu0 %v6746
    %7739 = vmatprep.subr.mxu0 0.0
    %7740 = vmatpush1.msra.mxu0 %v6747
    %7741 = vmatprep.subr.mxu0 0.0
    %7742 = vmatpush1.msra.mxu0 %v6748
    %7743 = vmatprep.subr.mxu0 0.0
    %7744 = vmatpush1.msra.mxu0 %v6749
    %7745 = vmatprep.subr.mxu0 0.0
    %7746 = vmatpush1.msra.mxu0 %v6750
    %7747 = vmatprep.subr.mxu0 0.0
    %7748 = vmatpush1.msra.mxu0 %v6751
    %7749 = vmatprep.subr.mxu0 0.0
    %7750 = vmatpush1.msra.mxu0 %v6752
    %7751 = vmatprep.subr.mxu0 0.0
    %7752 = vmatpush1.msra.mxu0 %v6753
    %7753 = vmatprep.subr.mxu0 0.0
    %7754 = vmatpush1.msra.mxu0 %v6754
    %7755 = vmatprep.subr.mxu0 0.0
    %7756 = vmatpush1.msra.mxu0 %v6755
    %7757 = vmatprep.subr.mxu0 0.0
    %7758 = vmatpush1.msra.mxu0 %v6756
    %7759 = vmatprep.subr.mxu0 0.0
    %7760 = vmatpush1.msra.mxu0 %v6757
    %7761 = vmatprep.subr.mxu0 0.0
    %7762 = vmatpush1.msra.mxu0 %v6758
    %7763 = vmatprep.subr.mxu0 0.0
    %7764 = vmatpush1.msra.mxu0 %v6759
    %7765 = vmatprep.subr.mxu0 0.0
    %7766 = vmatpush1.msra.mxu0 %v6760
    %7767 = vmatprep.subr.mxu0 0.0
    %7768 = vmatpush1.msra.mxu0 %v6761
    %7769 = vmatprep.subr.mxu0 0.0
    %7770 = vmatpush1.msra.mxu0 %v6762
    %7771 = vmatprep.mubr.f32.mxu0 %v7702
    %7772 = vmatmul.mubr.f32.gmra.mrb[0].mxu0 %v7701
    %v7773 = vpop.f32.mrb[0].mxu0
    %v7774 = vadd.f32 0.0, %v7773
    %v7775 = vpop.f32.mrb[0].mxu0
    %7776 = vdwg.mxu0
    %7777 = vmatprep.subr.mxu0 0.0
    %7778 = vmatpush1.msra.mxu0 %v6763
    %7779 = vmatprep.subr.mxu0 0.0
    %7780 = vmatpush1.msra.mxu0 %v6764
    %7781 = vmatprep.subr.mxu0 0.0
    %7782 = vmatpush1.msra.mxu0 %v6765
    %7783 = vmatprep.subr.mxu0 0.0
    %7784 = vmatpush1.msra.mxu0 %v6766
    %7785 = vmatprep.subr.mxu0 0.0
    %7786 = vmatpush1.msra.mxu0 %v6767
    %7787 = vmatprep.subr.mxu0 0.0
    %7788 = vmatpush1.msra.mxu0 %v6768
    %7789 = vmatprep.subr.mxu0 0.0
    %7790 = vmatpush1.msra.mxu0 %v6769
    %7791 = vmatprep.subr.mxu0 0.0
    %7792 = vmatpush1.msra.mxu0 %v6770
    %7793 = vmatprep.subr.mxu0 0.0
    %7794 = vmatpush1.msra.mxu0 %v6771
    %7795 = vmatprep.subr.mxu0 0.0
    %7796 = vmatpush1.msra.mxu0 %v6772
    %7797 = vmatprep.subr.mxu0 0.0
    %7798 = vmatpush1.msra.mxu0 %v6773
    %7799 = vmatprep.subr.mxu0 0.0
    %7800 = vmatpush1.msra.mxu0 %v6774
    %7801 = vmatprep.subr.mxu0 0.0
    %7802 = vmatpush1.msra.mxu0 %v6775
    %7803 = vmatprep.subr.mxu0 0.0
    %7804 = vmatpush1.msra.mxu0 %v6776
    %7805 = vmatprep.subr.mxu0 0.0
    %7806 = vmatpush1.msra.mxu0 %v6777
    %7807 = vmatprep.subr.mxu0 0.0
    %7808 = vmatpush1.msra.mxu0 %v6778
    %7809 = vmatprep.subr.mxu0 0.0
    %7810 = vmatpush1.msra.mxu0 %v6779
    %7811 = vmatprep.subr.mxu0 0.0
    %7812 = vmatpush1.msra.mxu0 %v6780
    %7813 = vmatprep.subr.mxu0 0.0
    %7814 = vmatpush1.msra.mxu0 %v6781
    %7815 = vmatprep.subr.mxu0 0.0
    %7816 = vmatpush1.msra.mxu0 %v6782
    %7817 = vmatprep.subr.mxu0 0.0
    %7818 = vmatpush1.msra.mxu0 %v6783
    %7819 = vmatprep.subr.mxu0 0.0
    %7820 = vmatpush1.msra.mxu0 %v6784
    %7821 = vmatprep.subr.mxu0 0.0
    %7822 = vmatpush1.msra.mxu0 %v6785
    %7823 = vmatprep.subr.mxu0 0.0
    %7824 = vmatpush1.msra.mxu0 %v6786
    %7825 = vmatprep.subr.mxu0 0.0
    %7826 = vmatpush1.msra.mxu0 %v6787
    %7827 = vmatprep.subr.mxu0 0.0
    %7828 = vmatpush1.msra.mxu0 %v6788
    %7829 = vmatprep.subr.mxu0 0.0
    %7830 = vmatpush1.msra.mxu0 %v6789
    %7831 = vmatprep.subr.mxu0 0.0
    %7832 = vmatpush1.msra.mxu0 %v6790
    %7833 = vmatprep.subr.mxu0 0.0
    %7834 = vmatpush1.msra.mxu0 %v6791
    %7835 = vmatprep.subr.mxu0 0.0
    %7836 = vmatpush1.msra.mxu0 %v6792
    %7837 = vmatprep.subr.mxu0 0.0
    %7838 = vmatpush1.msra.mxu0 %v6793
    %7839 = vmatprep.subr.mxu0 0.0
    %7840 = vmatpush1.msra.mxu0 %v6794
    %7841 = vmatprep.mubr.f32.mxu0 %v7704
    %7842 = vmatmul.mubr.f32.gmra.mrb[0].mxu0 %v7703
    %v7843 = vpop.f32.mrb[0].mxu0
    %v7844 = vadd.f32 %v7774, %v7843
    %v7845 = vpop.f32.mrb[0].mxu0
    %7846 = vdwg.mxu0
    %7847 = vmatprep.subr.mxu0 0.0
    %7848 = vmatpush1.msra.mxu0 %v6795
    %7849 = vmatprep.subr.mxu0 0.0
    %7850 = vmatpush1.msra.mxu0 %v6796
    %7851 = vmatprep.subr.mxu0 0.0
    %7852 = vmatpush1.msra.mxu0 %v6797
    %7853 = vmatprep.subr.mxu0 0.0
    %7854 = vmatpush1.msra.mxu0 %v6798
    %7855 = vmatprep.subr.mxu0 0.0
    %7856 = vmatpush1.msra.mxu0 %v6799
    %7857 = vmatprep.subr.mxu0 0.0
    %7858 = vmatpush1.msra.mxu0 %v6800
    %7859 = vmatprep.subr.mxu0 0.0
    %7860 = vmatpush1.msra.mxu0 %v6801
    %7861 = vmatprep.subr.mxu0 0.0
    %7862 = vmatpush1.msra.mxu0 %v6802
    %7863 = vmatprep.subr.mxu0 0.0
    %7864 = vmatpush1.msra.mxu0 %v6803
    %7865 = vmatprep.subr.mxu0 0.0
    %7866 = vmatpush1.msra.mxu0 %v6804
    %7867 = vmatprep.subr.mxu0 0.0
    %7868 = vmatpush1.msra.mxu0 %v6805
    %7869 = vmatprep.subr.mxu0 0.0
    %7870 = vmatpush1.msra.mxu0 %v6806
    %7871 = vmatprep.subr.mxu0 0.0
    %7872 = vmatpush1.msra.mxu0 %v6807
    %7873 = vmatprep.subr.mxu0 0.0
    %7874 = vmatpush1.msra.mxu0 %v6808
    %7875 = vmatprep.subr.mxu0 0.0
    %7876 = vmatpush1.msra.mxu0 %v6809
    %7877 = vmatprep.subr.mxu0 0.0
    %7878 = vmatpush1.msra.mxu0 %v6810
    %7879 = vmatprep.subr.mxu0 0.0
    %7880 = vmatpush1.msra.mxu0 %v6811
    %7881 = vmatprep.subr.mxu0 0.0
    %7882 = vmatpush1.msra.mxu0 %v6812
    %7883 = vmatprep.subr.mxu0 0.0
    %7884 = vmatpush1.msra.mxu0 %v6813
    %7885 = vmatprep.subr.mxu0 0.0
    %7886 = vmatpush1.msra.mxu0 %v6814
    %7887 = vmatprep.subr.mxu0 0.0
    %7888 = vmatpush1.msra.mxu0 %v6815
    %7889 = vmatprep.subr.mxu0 0.0
    %7890 = vmatpush1.msra.mxu0 %v6816
    %7891 = vmatprep.subr.mxu0 0.0
    %7892 = vmatpush1.msra.mxu0 %v6817
    %7893 = vmatprep.subr.mxu0 0.0
    %7894 = vmatpush1.msra.mxu0 %v6818
    %7895 = vmatprep.subr.mxu0 0.0
    %7896 = vmatpush1.msra.mxu0 %v6819
    %7897 = vmatprep.subr.mxu0 0.0
    %7898 = vmatpush1.msra.mxu0 %v6820
    %7899 = vmatprep.subr.mxu0 0.0
    %7900 = vmatpush1.msra.mxu0 %v6821
    %7901 = vmatprep.subr.mxu0 0.0
    %7902 = vmatpush1.msra.mxu0 %v6822
    %7903 = vmatprep.subr.mxu0 0.0
    %7904 = vmatpush1.msra.mxu0 %v6823
    %7905 = vmatprep.subr.mxu0 0.0
    %7906 = vmatpush1.msra.mxu0 %v6824
    %7907 = vmatprep.subr.mxu0 0.0
    %7908 = vmatpush1.msra.mxu0 %v6825
    %7909 = vmatprep.subr.mxu0 0.0
    %7910 = vmatpush1.msra.mxu0 %v6826
    %7911 = vmatprep.mubr.f32.mxu0 %v7706
    %7912 = vmatmul.mubr.f32.gmra.mrb[0].mxu0 %v7705
    %v7913 = vpop.f32.mrb[0].mxu0
    %v7914 = vadd.f32 %v7844, %v7913
    %v7915 = vpop.f32.mrb[0].mxu0
    %7916 = vdwg.mxu0
    %v7917 = vmul.f32 %v7914, 0.10206208
    %v7918 = vmul.f32 %v5495, %v5960
    %v7919 = vmul.f32 %v5497, %v5962
    %v7920 = vmul.f32 %v5648, %v6113
    %v7921 = vmul.f32 %v5650, %v6115
    %v7922 = vmul.f32 %v5801, %v6266
    %v7923 = vmul.f32 %v5803, %v6268
    %7924 = vmatprep.subr.mxu0 0.0
    %7925 = vmatpush1.msra.mxu0 %v6731
    %7926 = vmatprep.subr.mxu0 0.0
    %7927 = vmatpush1.msra.mxu0 %v6732
    %7928 = vmatprep.subr.mxu0 0.0
    %7929 = vmatpush1.msra.mxu0 %v6733
    %7930 = vmatprep.subr.mxu0 0.0
    %7931 = vmatpush1.msra.mxu0 %v6734
    %7932 = vmatprep.subr.mxu0 0.0
    %7933 = vmatpush1.msra.mxu0 %v6735
    %7934 = vmatprep.subr.mxu0 0.0
    %7935 = vmatpush1.msra.mxu0 %v6736
    %7936 = vmatprep.subr.mxu0 0.0
    %7937 = vmatpush1.msra.mxu0 %v6737
    %7938 = vmatprep.subr.mxu0 0.0
    %7939 = vmatpush1.msra.mxu0 %v6738
    %7940 = vmatprep.subr.mxu0 0.0
    %7941 = vmatpush1.msra.mxu0 %v6739
    %7942 = vmatprep.subr.mxu0 0.0
    %7943 = vmatpush1.msra.mxu0 %v6740
    %7944 = vmatprep.subr.mxu0 0.0
    %7945 = vmatpush1.msra.mxu0 %v6741
    %7946 = vmatprep.subr.mxu0 0.0
    %7947 = vmatpush1.msra.mxu0 %v6742
    %7948 = vmatprep.subr.mxu0 0.0
    %7949 = vmatpush1.msra.mxu0 %v6743
    %7950 = vmatprep.subr.mxu0 0.0
    %7951 = vmatpush1.msra.mxu0 %v6744
    %7952 = vmatprep.subr.mxu0 0.0
    %7953 = vmatpush1.msra.mxu0 %v6745
    %7954 = vmatprep.subr.mxu0 0.0
    %7955 = vmatpush1.msra.mxu0 %v6746
    %7956 = vmatprep.subr.mxu0 0.0
    %7957 = vmatpush1.msra.mxu0 %v6747
    %7958 = vmatprep.subr.mxu0 0.0
    %7959 = vmatpush1.msra.mxu0 %v6748
    %7960 = vmatprep.subr.mxu0 0.0
    %7961 = vmatpush1.msra.mxu0 %v6749
    %7962 = vmatprep.subr.mxu0 0.0
    %7963 = vmatpush1.msra.mxu0 %v6750
    %7964 = vmatprep.subr.mxu0 0.0
    %7965 = vmatpush1.msra.mxu0 %v6751
    %7966 = vmatprep.subr.mxu0 0.0
    %7967 = vmatpush1.msra.mxu0 %v6752
    %7968 = vmatprep.subr.mxu0 0.0
    %7969 = vmatpush1.msra.mxu0 %v6753
    %7970 = vmatprep.subr.mxu0 0.0
    %7971 = vmatpush1.msra.mxu0 %v6754
    %7972 = vmatprep.subr.mxu0 0.0
    %7973 = vmatpush1.msra.mxu0 %v6755
    %7974 = vmatprep.subr.mxu0 0.0
    %7975 = vmatpush1.msra.mxu0 %v6756
    %7976 = vmatprep.subr.mxu0 0.0
    %7977 = vmatpush1.msra.mxu0 %v6757
    %7978 = vmatprep.subr.mxu0 0.0
    %7979 = vmatpush1.msra.mxu0 %v6758
    %7980 = vmatprep.subr.mxu0 0.0
    %7981 = vmatpush1.msra.mxu0 %v6759
    %7982 = vmatprep.subr.mxu0 0.0
    %7983 = vmatpush1.msra.mxu0 %v6760
    %7984 = vmatprep.subr.mxu0 0.0
    %7985 = vmatpush1.msra.mxu0 %v6761
    %7986 = vmatprep.subr.mxu0 0.0
    %7987 = vmatpush1.msra.mxu0 %v6762
    %7988 = vmatprep.mubr.f32.mxu0 %v7919
    %7989 = vmatmul.mubr.f32.gmra.mrb[0].mxu0 %v7918
    %v7990 = vpop.f32.mrb[0].mxu0
    %v7991 = vadd.f32 0.0, %v7990
    %v7992 = vpop.f32.mrb[0].mxu0
    %7993 = vdwg.mxu0
    %7994 = vmatprep.subr.mxu0 0.0
    %7995 = vmatpush1.msra.mxu0 %v6763
    %7996 = vmatprep.subr.mxu0 0.0
    %7997 = vmatpush1.msra.mxu0 %v6764
    %7998 = vmatprep.subr.mxu0 0.0
    %7999 = vmatpush1.msra.mxu0 %v6765
    %8000 = vmatprep.subr.mxu0 0.0
    %8001 = vmatpush1.msra.mxu0 %v6766
    %8002 = vmatprep.subr.mxu0 0.0
    %8003 = vmatpush1.msra.mxu0 %v6767
    %8004 = vmatprep.subr.mxu0 0.0
    %8005 = vmatpush1.msra.mxu0 %v6768
    %8006 = vmatprep.subr.mxu0 0.0
    %8007 = vmatpush1.msra.mxu0 %v6769
    %8008 = vmatprep.subr.mxu0 0.0
    %8009 = vmatpush1.msra.mxu0 %v6770
    %8010 = vmatprep.subr.mxu0 0.0
    %8011 = vmatpush1.msra.mxu0 %v6771
    %8012 = vmatprep.subr.mxu0 0.0
    %8013 = vmatpush1.msra.mxu0 %v6772
    %8014 = vmatprep.subr.mxu0 0.0
    %8015 = vmatpush1.msra.mxu0 %v6773
    %8016 = vmatprep.subr.mxu0 0.0
    %8017 = vmatpush1.msra.mxu0 %v6774
    %8018 = vmatprep.subr.mxu0 0.0
    %8019 = vmatpush1.msra.mxu0 %v6775
    %8020 = vmatprep.subr.mxu0 0.0
    %8021 = vmatpush1.msra.mxu0 %v6776
    %8022 = vmatprep.subr.mxu0 0.0
    %8023 = vmatpush1.msra.mxu0 %v6777
    %8024 = vmatprep.subr.mxu0 0.0
    %8025 = vmatpush1.msra.mxu0 %v6778
    %8026 = vmatprep.subr.mxu0 0.0
    %8027 = vmatpush1.msra.mxu0 %v6779
    %8028 = vmatprep.subr.mxu0 0.0
    %8029 = vmatpush1.msra.mxu0 %v6780
    %8030 = vmatprep.subr.mxu0 0.0
    %8031 = vmatpush1.msra.mxu0 %v6781
    %8032 = vmatprep.subr.mxu0 0.0
    %8033 = vmatpush1.msra.mxu0 %v6782
    %8034 = vmatprep.subr.mxu0 0.0
    %8035 = vmatpush1.msra.mxu0 %v6783
    %8036 = vmatprep.subr.mxu0 0.0
    %8037 = vmatpush1.msra.mxu0 %v6784
    %8038 = vmatprep.subr.mxu0 0.0
    %8039 = vmatpush1.msra.mxu0 %v6785
    %8040 = vmatprep.subr.mxu0 0.0
    %8041 = vmatpush1.msra.mxu0 %v6786
    %8042 = vmatprep.subr.mxu0 0.0
    %8043 = vmatpush1.msra.mxu0 %v6787
    %8044 = vmatprep.subr.mxu0 0.0
    %8045 = vmatpush1.msra.mxu0 %v6788
    %8046 = vmatprep.subr.mxu0 0.0
    %8047 = vmatpush1.msra.mxu0 %v6789
    %8048 = vmatprep.subr.mxu0 0.0
    %8049 = vmatpush1.msra.mxu0 %v6790
    %8050 = vmatprep.subr.mxu0 0.0
    %8051 = vmatpush1.msra.mxu0 %v6791
    %8052 = vmatprep.subr.mxu0 0.0
    %8053 = vmatpush1.msra.mxu0 %v6792
    %8054 = vmatprep.subr.mxu0 0.0
    %8055 = vmatpush1.msra.mxu0 %v6793
    %8056 = vmatprep.subr.mxu0 0.0
    %8057 = vmatpush1.msra.mxu0 %v6794
    %8058 = vmatprep.mubr.f32.mxu0 %v7921
    %8059 = vmatmul.mubr.f32.gmra.mrb[0].mxu0 %v7920
    %v8060 = vpop.f32.mrb[0].mxu0
    %v8061 = vadd.f32 %v7991, %v8060
    %v8062 = vpop.f32.mrb[0].mxu0
    %8063 = vdwg.mxu0
    %8064 = vmatprep.subr.mxu0 0.0
    %8065 = vmatpush1.msra.mxu0 %v6795
    %8066 = vmatprep.subr.mxu0 0.0
    %8067 = vmatpush1.msra.mxu0 %v6796
    %8068 = vmatprep.subr.mxu0 0.0
    %8069 = vmatpush1.msra.mxu0 %v6797
    %8070 = vmatprep.subr.mxu0 0.0
    %8071 = vmatpush1.msra.mxu0 %v6798
    %8072 = vmatprep.subr.mxu0 0.0
    %8073 = vmatpush1.msra.mxu0 %v6799
    %8074 = vmatprep.subr.mxu0 0.0
    %8075 = vmatpush1.msra.mxu0 %v6800
    %8076 = vmatprep.subr.mxu0 0.0
    %8077 = vmatpush1.msra.mxu0 %v6801
    %8078 = vmatprep.subr.mxu0 0.0
    %8079 = vmatpush1.msra.mxu0 %v6802
    %8080 = vmatprep.subr.mxu0 0.0
    %8081 = vmatpush1.msra.mxu0 %v6803
    %8082 = vmatprep.subr.mxu0 0.0
    %8083 = vmatpush1.msra.mxu0 %v6804
    %8084 = vmatprep.subr.mxu0 0.0
    %8085 = vmatpush1.msra.mxu0 %v6805
    %8086 = vmatprep.subr.mxu0 0.0
    %8087 = vmatpush1.msra.mxu0 %v6806
    %8088 = vmatprep.subr.mxu0 0.0
    %8089 = vmatpush1.msra.mxu0 %v6807
    %8090 = vmatprep.subr.mxu0 0.0
    %8091 = vmatpush1.msra.mxu0 %v6808
    %8092 = vmatprep.subr.mxu0 0.0
    %8093 = vmatpush1.msra.mxu0 %v6809
    %8094 = vmatprep.subr.mxu0 0.0
    %8095 = vmatpush1.msra.mxu0 %v6810
    %8096 = vmatprep.subr.mxu0 0.0
    %8097 = vmatpush1.msra.mxu0 %v6811
    %8098 = vmatprep.subr.mxu0 0.0
    %8099 = vmatpush1.msra.mxu0 %v6812
    %8100 = vmatprep.subr.mxu0 0.0
    %8101 = vmatpush1.msra.mxu0 %v6813
    %8102 = vmatprep.subr.mxu0 0.0
    %8103 = vmatpush1.msra.mxu0 %v6814
    %8104 = vmatprep.subr.mxu0 0.0
    %8105 = vmatpush1.msra.mxu0 %v6815
    %8106 = vmatprep.subr.mxu0 0.0
    %8107 = vmatpush1.msra.mxu0 %v6816
    %8108 = vmatprep.subr.mxu0 0.0
    %8109 = vmatpush1.msra.mxu0 %v6817
    %8110 = vmatprep.subr.mxu0 0.0
    %8111 = vmatpush1.msra.mxu0 %v6818
    %8112 = vmatprep.subr.mxu0 0.0
    %8113 = vmatpush1.msra.mxu0 %v6819
    %8114 = vmatprep.subr.mxu0 0.0
    %8115 = vmatpush1.msra.mxu0 %v6820
    %8116 = vmatprep.subr.mxu0 0.0
    %8117 = vmatpush1.msra.mxu0 %v6821
    %8118 = vmatprep.subr.mxu0 0.0
    %8119 = vmatpush1.msra.mxu0 %v6822
    %8120 = vmatprep.subr.mxu0 0.0
    %8121 = vmatpush1.msra.mxu0 %v6823
    %8122 = vmatprep.subr.mxu0 0.0
    %8123 = vmatpush1.msra.mxu0 %v6824
    %8124 = vmatprep.subr.mxu0 0.0
    %8125 = vmatpush1.msra.mxu0 %v6825
    %8126 = vmatprep.subr.mxu0 0.0
    %8127 = vmatpush1.msra.mxu0 %v6826
    %8128 = vmatprep.mubr.f32.mxu0 %v7923
    %8129 = vmatmul.mubr.f32.gmra.mrb[0].mxu0 %v7922
    %v8130 = vpop.f32.mrb[0].mxu0
    %v8131 = vadd.f32 %v8061, %v8130
    %v8132 = vpop.f32.mrb[0].mxu0
    %8133 = vdwg.mxu0
    %v8134 = vmul.f32 %v8131, 0.10206208
    %v8135 = vmul.f32 %v5501, %v5950
    %v8136 = vmul.f32 %v5503, %v5952
    %v8137 = vmul.f32 %v5654, %v6103
    %v8138 = vmul.f32 %v5656, %v6105
    %v8139 = vmul.f32 %v5807, %v6256
    %v8140 = vmul.f32 %v5809, %v6258
    %8141 = vmatprep.subr.mxu0 0.0
    %8142 = vmatpush1.msra.mxu0 %v6731
    %8143 = vmatprep.subr.mxu0 0.0
    %8144 = vmatpush1.msra.mxu0 %v6732
    %8145 = vmatprep.subr.mxu0 0.0
    %8146 = vmatpush1.msra.mxu0 %v6733
    %8147 = vmatprep.subr.mxu0 0.0
    %8148 = vmatpush1.msra.mxu0 %v6734
    %8149 = vmatprep.subr.mxu0 0.0
    %8150 = vmatpush1.msra.mxu0 %v6735
    %8151 = vmatprep.subr.mxu0 0.0
    %8152 = vmatpush1.msra.mxu0 %v6736
    %8153 = vmatprep.subr.mxu0 0.0
    %8154 = vmatpush1.msra.mxu0 %v6737
    %8155 = vmatprep.subr.mxu0 0.0
    %8156 = vmatpush1.msra.mxu0 %v6738
    %8157 = vmatprep.subr.mxu0 0.0
    %8158 = vmatpush1.msra.mxu0 %v6739
    %8159 = vmatprep.subr.mxu0 0.0
    %8160 = vmatpush1.msra.mxu0 %v6740
    %8161 = vmatprep.subr.mxu0 0.0
    %8162 = vmatpush1.msra.mxu0 %v6741
    %8163 = vmatprep.subr.mxu0 0.0
    %8164 = vmatpush1.msra.mxu0 %v6742
    %8165 = vmatprep.subr.mxu0 0.0
    %8166 = vmatpush1.msra.mxu0 %v6743
    %8167 = vmatprep.subr.mxu0 0.0
    %8168 = vmatpush1.msra.mxu0 %v6744
    %8169 = vmatprep.subr.mxu0 0.0
    %8170 = vmatpush1.msra.mxu0 %v6745
    %8171 = vmatprep.subr.mxu0 0.0
    %8172 = vmatpush1.msra.mxu0 %v6746
    %8173 = vmatprep.subr.mxu0 0.0
    %8174 = vmatpush1.msra.mxu0 %v6747
    %8175 = vmatprep.subr.mxu0 0.0
    %8176 = vmatpush1.msra.mxu0 %v6748
    %8177 = vmatprep.subr.mxu0 0.0
    %8178 = vmatpush1.msra.mxu0 %v6749
    %8179 = vmatprep.subr.mxu0 0.0
    %8180 = vmatpush1.msra.mxu0 %v6750
    %8181 = vmatprep.subr.mxu0 0.0
    %8182 = vmatpush1.msra.mxu0 %v6751
    %8183 = vmatprep.subr.mxu0 0.0
    %8184 = vmatpush1.msra.mxu0 %v6752
    %8185 = vmatprep.subr.mxu0 0.0
    %8186 = vmatpush1.msra.mxu0 %v6753
    %8187 = vmatprep.subr.mxu0 0.0
    %8188 = vmatpush1.msra.mxu0 %v6754
    %8189 = vmatprep.subr.mxu0 0.0
    %8190 = vmatpush1.msra.mxu0 %v6755
    %8191 = vmatprep.subr.mxu0 0.0
    %8192 = vmatpush1.msra.mxu0 %v6756
    %8193 = vmatprep.subr.mxu0 0.0
    %8194 = vmatpush1.msra.mxu0 %v6757
    %8195 = vmatprep.subr.mxu0 0.0
    %8196 = vmatpush1.msra.mxu0 %v6758
    %8197 = vmatprep.subr.mxu0 0.0
    %8198 = vmatpush1.msra.mxu0 %v6759
    %8199 = vmatprep.subr.mxu0 0.0
    %8200 = vmatpush1.msra.mxu0 %v6760
    %8201 = vmatprep.subr.mxu0 0.0
    %8202 = vmatpush1.msra.mxu0 %v6761
    %8203 = vmatprep.subr.mxu0 0.0
    %8204 = vmatpush1.msra.mxu0 %v6762
    %8205 = vmatprep.mubr.f32.mxu0 %v8136
    %8206 = vmatmul.mubr.f32.gmra.mrb[0].mxu0 %v8135
    %v8207 = vpop.f32.mrb[0].mxu0
    %v8208 = vadd.f32 0.0, %v8207
    %v8209 = vpop.f32.mrb[0].mxu0
    %8210 = vdwg.mxu0
    %8211 = vmatprep.subr.mxu0 0.0
    %8212 = vmatpush1.msra.mxu0 %v6763
    %8213 = vmatprep.subr.mxu0 0.0
    %8214 = vmatpush1.msra.mxu0 %v6764
    %8215 = vmatprep.subr.mxu0 0.0
    %8216 = vmatpush1.msra.mxu0 %v6765
    %8217 = vmatprep.subr.mxu0 0.0
    %8218 = vmatpush1.msra.mxu0 %v6766
    %8219 = vmatprep.subr.mxu0 0.0
    %8220 = vmatpush1.msra.mxu0 %v6767
    %8221 = vmatprep.subr.mxu0 0.0
    %8222 = vmatpush1.msra.mxu0 %v6768
    %8223 = vmatprep.subr.mxu0 0.0
    %8224 = vmatpush1.msra.mxu0 %v6769
    %8225 = vmatprep.subr.mxu0 0.0
    %8226 = vmatpush1.msra.mxu0 %v6770
    %8227 = vmatprep.subr.mxu0 0.0
    %8228 = vmatpush1.msra.mxu0 %v6771
    %8229 = vmatprep.subr.mxu0 0.0
    %8230 = vmatpush1.msra.mxu0 %v6772
    %8231 = vmatprep.subr.mxu0 0.0
    %8232 = vmatpush1.msra.mxu0 %v6773
    %8233 = vmatprep.subr.mxu0 0.0
    %8234 = vmatpush1.msra.mxu0 %v6774
    %8235 = vmatprep.subr.mxu0 0.0
    %8236 = vmatpush1.msra.mxu0 %v6775
    %8237 = vmatprep.subr.mxu0 0.0
    %8238 = vmatpush1.msra.mxu0 %v6776
    %8239 = vmatprep.subr.mxu0 0.0
    %8240 = vmatpush1.msra.mxu0 %v6777
    %8241 = vmatprep.subr.mxu0 0.0
    %8242 = vmatpush1.msra.mxu0 %v6778
    %8243 = vmatprep.subr.mxu0 0.0
    %8244 = vmatpush1.msra.mxu0 %v6779
    %8245 = vmatprep.subr.mxu0 0.0
    %8246 = vmatpush1.msra.mxu0 %v6780
    %8247 = vmatprep.subr.mxu0 0.0
    %8248 = vmatpush1.msra.mxu0 %v6781
    %8249 = vmatprep.subr.mxu0 0.0
    %8250 = vmatpush1.msra.mxu0 %v6782
    %8251 = vmatprep.subr.mxu0 0.0
    %8252 = vmatpush1.msra.mxu0 %v6783
    %8253 = vmatprep.subr.mxu0 0.0
    %8254 = vmatpush1.msra.mxu0 %v6784
    %8255 = vmatprep.subr.mxu0 0.0
    %8256 = vmatpush1.msra.mxu0 %v6785
    %8257 = vmatprep.subr.mxu0 0.0
    %8258 = vmatpush1.msra.mxu0 %v6786
    %8259 = vmatprep.subr.mxu0 0.0
    %8260 = vmatpush1.msra.mxu0 %v6787
    %8261 = vmatprep.subr.mxu0 0.0
    %8262 = vmatpush1.msra.mxu0 %v6788
    %8263 = vmatprep.subr.mxu0 0.0
    %8264 = vmatpush1.msra.mxu0 %v6789
    %8265 = vmatprep.subr.mxu0 0.0
    %8266 = vmatpush1.msra.mxu0 %v6790
    %8267 = vmatprep.subr.mxu0 0.0
    %8268 = vmatpush1.msra.mxu0 %v6791
    %8269 = vmatprep.subr.mxu0 0.0
    %8270 = vmatpush1.msra.mxu0 %v6792
    %8271 = vmatprep.subr.mxu0 0.0
    %8272 = vmatpush1.msra.mxu0 %v6793
    %8273 = vmatprep.subr.mxu0 0.0
    %8274 = vmatpush1.msra.mxu0 %v6794
    %8275 = vmatprep.mubr.f32.mxu0 %v8138
    %8276 = vmatmul.mubr.f32.gmra.mrb[0].mxu0 %v8137
    %v8277 = vpop.f32.mrb[0].mxu0
    %v8278 = vadd.f32 %v8208, %v8277
    %v8279 = vpop.f32.mrb[0].mxu0
    %8280 = vdwg.mxu0
    %8281 = vmatprep.subr.mxu0 0.0
    %8282 = vmatpush1.msra.mxu0 %v6795
    %8283 = vmatprep.subr.mxu0 0.0
    %8284 = vmatpush1.msra.mxu0 %v6796
    %8285 = vmatprep.subr.mxu0 0.0
    %8286 = vmatpush1.msra.mxu0 %v6797
    %8287 = vmatprep.subr.mxu0 0.0
    %8288 = vmatpush1.msra.mxu0 %v6798
    %8289 = vmatprep.subr.mxu0 0.0
    %8290 = vmatpush1.msra.mxu0 %v6799
    %8291 = vmatprep.subr.mxu0 0.0
    %8292 = vmatpush1.msra.mxu0 %v6800
    %8293 = vmatprep.subr.mxu0 0.0
    %8294 = vmatpush1.msra.mxu0 %v6801
    %8295 = vmatprep.subr.mxu0 0.0
    %8296 = vmatpush1.msra.mxu0 %v6802
    %8297 = vmatprep.subr.mxu0 0.0
    %8298 = vmatpush1.msra.mxu0 %v6803
    %8299 = vmatprep.subr.mxu0 0.0
    %8300 = vmatpush1.msra.mxu0 %v6804
    %8301 = vmatprep.subr.mxu0 0.0
    %8302 = vmatpush1.msra.mxu0 %v6805
    %8303 = vmatprep.subr.mxu0 0.0
    %8304 = vmatpush1.msra.mxu0 %v6806
    %8305 = vmatprep.subr.mxu0 0.0
    %8306 = vmatpush1.msra.mxu0 %v6807
    %8307 = vmatprep.subr.mxu0 0.0
    %8308 = vmatpush1.msra.mxu0 %v6808
    %8309 = vmatprep.subr.mxu0 0.0
    %8310 = vmatpush1.msra.mxu0 %v6809
    %8311 = vmatprep.subr.mxu0 0.0
    %8312 = vmatpush1.msra.mxu0 %v6810
    %8313 = vmatprep.subr.mxu0 0.0
    %8314 = vmatpush1.msra.mxu0 %v6811
    %8315 = vmatprep.subr.mxu0 0.0
    %8316 = vmatpush1.msra.mxu0 %v6812
    %8317 = vmatprep.subr.mxu0 0.0
    %8318 = vmatpush1.msra.mxu0 %v6813
    %8319 = vmatprep.subr.mxu0 0.0
    %8320 = vmatpush1.msra.mxu0 %v6814
    %8321 = vmatprep.subr.mxu0 0.0
    %8322 = vmatpush1.msra.mxu0 %v6815
    %8323 = vmatprep.subr.mxu0 0.0
    %8324 = vmatpush1.msra.mxu0 %v6816
    %8325 = vmatprep.subr.mxu0 0.0
    %8326 = vmatpush1.msra.mxu0 %v6817
    %8327 = vmatprep.subr.mxu0 0.0
    %8328 = vmatpush1.msra.mxu0 %v6818
    %8329 = vmatprep.subr.mxu0 0.0
    %8330 = vmatpush1.msra.mxu0 %v6819
    %8331 = vmatprep.subr.mxu0 0.0
    %8332 = vmatpush1.msra.mxu0 %v6820
    %8333 = vmatprep.subr.mxu0 0.0
    %8334 = vmatpush1.msra.mxu0 %v6821
    %8335 = vmatprep.subr.mxu0 0.0
    %8336 = vmatpush1.msra.mxu0 %v6822
    %8337 = vmatprep.subr.mxu0 0.0
    %8338 = vmatpush1.msra.mxu0 %v6823
    %8339 = vmatprep.subr.mxu0 0.0
    %8340 = vmatpush1.msra.mxu0 %v6824
    %8341 = vmatprep.subr.mxu0 0.0
    %8342 = vmatpush1.msra.mxu0 %v6825
    %8343 = vmatprep.subr.mxu0 0.0
    %8344 = vmatpush1.msra.mxu0 %v6826
    %8345 = vmatprep.mubr.f32.mxu0 %v8140
    %8346 = vmatmul.mubr.f32.gmra.mrb[0].mxu0 %v8139
    %v8347 = vpop.f32.mrb[0].mxu0
    %v8348 = vadd.f32 %v8278, %v8347
    %v8349 = vpop.f32.mrb[0].mxu0
    %8350 = vdwg.mxu0
    %v8351 = vmul.f32 %v8348, 0.10206208
    %v8352 = vmul.f32 %v5501, %v5954
    %v8353 = vmul.f32 %v5503, %v5956
    %v8354 = vmul.f32 %v5654, %v6107
    %v8355 = vmul.f32 %v5656, %v6109
    %v8356 = vmul.f32 %v5807, %v6260
    %v8357 = vmul.f32 %v5809, %v6262
    %8358 = vmatprep.subr.mxu0 0.0
    %8359 = vmatpush1.msra.mxu0 %v6731
    %8360 = vmatprep.subr.mxu0 0.0
    %8361 = vmatpush1.msra.mxu0 %v6732
    %8362 = vmatprep.subr.mxu0 0.0
    %8363 = vmatpush1.msra.mxu0 %v6733
    %8364 = vmatprep.subr.mxu0 0.0
    %8365 = vmatpush1.msra.mxu0 %v6734
    %8366 = vmatprep.subr.mxu0 0.0
    %8367 = vmatpush1.msra.mxu0 %v6735
    %8368 = vmatprep.subr.mxu0 0.0
    %8369 = vmatpush1.msra.mxu0 %v6736
    %8370 = vmatprep.subr.mxu0 0.0
    %8371 = vmatpush1.msra.mxu0 %v6737
    %8372 = vmatprep.subr.mxu0 0.0
    %8373 = vmatpush1.msra.mxu0 %v6738
    %8374 = vmatprep.subr.mxu0 0.0
    %8375 = vmatpush1.msra.mxu0 %v6739
    %8376 = vmatprep.subr.mxu0 0.0
    %8377 = vmatpush1.msra.mxu0 %v6740
    %8378 = vmatprep.subr.mxu0 0.0
    %8379 = vmatpush1.msra.mxu0 %v6741
    %8380 = vmatprep.subr.mxu0 0.0
    %8381 = vmatpush1.msra.mxu0 %v6742
    %8382 = vmatprep.subr.mxu0 0.0
    %8383 = vmatpush1.msra.mxu0 %v6743
    %8384 = vmatprep.subr.mxu0 0.0
    %8385 = vmatpush1.msra.mxu0 %v6744
    %8386 = vmatprep.subr.mxu0 0.0
    %8387 = vmatpush1.msra.mxu0 %v6745
    %8388 = vmatprep.subr.mxu0 0.0
    %8389 = vmatpush1.msra.mxu0 %v6746
    %8390 = vmatprep.subr.mxu0 0.0
    %8391 = vmatpush1.msra.mxu0 %v6747
    %8392 = vmatprep.subr.mxu0 0.0
    %8393 = vmatpush1.msra.mxu0 %v6748
    %8394 = vmatprep.subr.mxu0 0.0
    %8395 = vmatpush1.msra.mxu0 %v6749
    %8396 = vmatprep.subr.mxu0 0.0
    %8397 = vmatpush1.msra.mxu0 %v6750
    %8398 = vmatprep.subr.mxu0 0.0
    %8399 = vmatpush1.msra.mxu0 %v6751
    %8400 = vmatprep.subr.mxu0 0.0
    %8401 = vmatpush1.msra.mxu0 %v6752
    %8402 = vmatprep.subr.mxu0 0.0
    %8403 = vmatpush1.msra.mxu0 %v6753
    %8404 = vmatprep.subr.mxu0 0.0
    %8405 = vmatpush1.msra.mxu0 %v6754
    %8406 = vmatprep.subr.mxu0 0.0
    %8407 = vmatpush1.msra.mxu0 %v6755
    %8408 = vmatprep.subr.mxu0 0.0
    %8409 = vmatpush1.msra.mxu0 %v6756
    %8410 = vmatprep.subr.mxu0 0.0
    %8411 = vmatpush1.msra.mxu0 %v6757
    %8412 = vmatprep.subr.mxu0 0.0
    %8413 = vmatpush1.msra.mxu0 %v6758
    %8414 = vmatprep.subr.mxu0 0.0
    %8415 = vmatpush1.msra.mxu0 %v6759
    %8416 = vmatprep.subr.mxu0 0.0
    %8417 = vmatpush1.msra.mxu0 %v6760
    %8418 = vmatprep.subr.mxu0 0.0
    %8419 = vmatpush1.msra.mxu0 %v6761
    %8420 = vmatprep.subr.mxu0 0.0
    %8421 = vmatpush1.msra.mxu0 %v6762
    %8422 = vmatprep.mubr.f32.mxu0 %v8353
    %8423 = vmatmul.mubr.f32.gmra.mrb[0].mxu0 %v8352
    %v8424 = vpop.f32.mrb[0].mxu0
    %v8425 = vadd.f32 0.0, %v8424
    %v8426 = vpop.f32.mrb[0].mxu0
    %8427 = vdwg.mxu0
    %8428 = vmatprep.subr.mxu0 0.0
    %8429 = vmatpush1.msra.mxu0 %v6763
    %8430 = vmatprep.subr.mxu0 0.0
    %8431 = vmatpush1.msra.mxu0 %v6764
    %8432 = vmatprep.subr.mxu0 0.0
    %8433 = vmatpush1.msra.mxu0 %v6765
    %8434 = vmatprep.subr.mxu0 0.0
    %8435 = vmatpush1.msra.mxu0 %v6766
    %8436 = vmatprep.subr.mxu0 0.0
    %8437 = vmatpush1.msra.mxu0 %v6767
    %8438 = vmatprep.subr.mxu0 0.0
    %8439 = vmatpush1.msra.mxu0 %v6768
    %8440 = vmatprep.subr.mxu0 0.0
    %8441 = vmatpush1.msra.mxu0 %v6769
    %8442 = vmatprep.subr.mxu0 0.0
    %8443 = vmatpush1.msra.mxu0 %v6770
    %8444 = vmatprep.subr.mxu0 0.0
    %8445 = vmatpush1.msra.mxu0 %v6771
    %8446 = vmatprep.subr.mxu0 0.0
    %8447 = vmatpush1.msra.mxu0 %v6772
    %8448 = vmatprep.subr.mxu0 0.0
    %8449 = vmatpush1.msra.mxu0 %v6773
    %8450 = vmatprep.subr.mxu0 0.0
    %8451 = vmatpush1.msra.mxu0 %v6774
    %8452 = vmatprep.subr.mxu0 0.0
    %8453 = vmatpush1.msra.mxu0 %v6775
    %8454 = vmatprep.subr.mxu0 0.0
    %8455 = vmatpush1.msra.mxu0 %v6776
    %8456 = vmatprep.subr.mxu0 0.0
    %8457 = vmatpush1.msra.mxu0 %v6777
    %8458 = vmatprep.subr.mxu0 0.0
    %8459 = vmatpush1.msra.mxu0 %v6778
    %8460 = vmatprep.subr.mxu0 0.0
    %8461 = vmatpush1.msra.mxu0 %v6779
    %8462 = vmatprep.subr.mxu0 0.0
    %8463 = vmatpush1.msra.mxu0 %v6780
    %8464 = vmatprep.subr.mxu0 0.0
    %8465 = vmatpush1.msra.mxu0 %v6781
    %8466 = vmatprep.subr.mxu0 0.0
    %8467 = vmatpush1.msra.mxu0 %v6782
    %8468 = vmatprep.subr.mxu0 0.0
    %8469 = vmatpush1.msra.mxu0 %v6783
    %8470 = vmatprep.subr.mxu0 0.0
    %8471 = vmatpush1.msra.mxu0 %v6784
    %8472 = vmatprep.subr.mxu0 0.0
    %8473 = vmatpush1.msra.mxu0 %v6785
    %8474 = vmatprep.subr.mxu0 0.0
    %8475 = vmatpush1.msra.mxu0 %v6786
    %8476 = vmatprep.subr.mxu0 0.0
    %8477 = vmatpush1.msra.mxu0 %v6787
    %8478 = vmatprep.subr.mxu0 0.0
    %8479 = vmatpush1.msra.mxu0 %v6788
    %8480 = vmatprep.subr.mxu0 0.0
    %8481 = vmatpush1.msra.mxu0 %v6789
    %8482 = vmatprep.subr.mxu0 0.0
    %8483 = vmatpush1.msra.mxu0 %v6790
    %8484 = vmatprep.subr.mxu0 0.0
    %8485 = vmatpush1.msra.mxu0 %v6791
    %8486 = vmatprep.subr.mxu0 0.0
    %8487 = vmatpush1.msra.mxu0 %v6792
    %8488 = vmatprep.subr.mxu0 0.0
    %8489 = vmatpush1.msra.mxu0 %v6793
    %8490 = vmatprep.subr.mxu0 0.0
    %8491 = vmatpush1.msra.mxu0 %v6794
    %8492 = vmatprep.mubr.f32.mxu0 %v8355
    %8493 = vmatmul.mubr.f32.gmra.mrb[0].mxu0 %v8354
    %v8494 = vpop.f32.mrb[0].mxu0
    %v8495 = vadd.f32 %v8425, %v8494
    %v8496 = vpop.f32.mrb[0].mxu0
    %8497 = vdwg.mxu0
    %8498 = vmatprep.subr.mxu0 0.0
    %8499 = vmatpush1.msra.mxu0 %v6795
    %8500 = vmatprep.subr.mxu0 0.0
    %8501 = vmatpush1.msra.mxu0 %v6796
    %8502 = vmatprep.subr.mxu0 0.0
    %8503 = vmatpush1.msra.mxu0 %v6797
    %8504 = vmatprep.subr.mxu0 0.0
    %8505 = vmatpush1.msra.mxu0 %v6798
    %8506 = vmatprep.subr.mxu0 0.0
    %8507 = vmatpush1.msra.mxu0 %v6799
    %8508 = vmatprep.subr.mxu0 0.0
    %8509 = vmatpush1.msra.mxu0 %v6800
    %8510 = vmatprep.subr.mxu0 0.0
    %8511 = vmatpush1.msra.mxu0 %v6801
    %8512 = vmatprep.subr.mxu0 0.0
    %8513 = vmatpush1.msra.mxu0 %v6802
    %8514 = vmatprep.subr.mxu0 0.0
    %8515 = vmatpush1.msra.mxu0 %v6803
    %8516 = vmatprep.subr.mxu0 0.0
    %8517 = vmatpush1.msra.mxu0 %v6804
    %8518 = vmatprep.subr.mxu0 0.0
    %8519 = vmatpush1.msra.mxu0 %v6805
    %8520 = vmatprep.subr.mxu0 0.0
    %8521 = vmatpush1.msra.mxu0 %v6806
    %8522 = vmatprep.subr.mxu0 0.0
    %8523 = vmatpush1.msra.mxu0 %v6807
    %8524 = vmatprep.subr.mxu0 0.0
    %8525 = vmatpush1.msra.mxu0 %v6808
    %8526 = vmatprep.subr.mxu0 0.0
    %8527 = vmatpush1.msra.mxu0 %v6809
    %8528 = vmatprep.subr.mxu0 0.0
    %8529 = vmatpush1.msra.mxu0 %v6810
    %8530 = vmatprep.subr.mxu0 0.0
    %8531 = vmatpush1.msra.mxu0 %v6811
    %8532 = vmatprep.subr.mxu0 0.0
    %8533 = vmatpush1.msra.mxu0 %v6812
    %8534 = vmatprep.subr.mxu0 0.0
    %8535 = vmatpush1.msra.mxu0 %v6813
    %8536 = vmatprep.subr.mxu0 0.0
    %8537 = vmatpush1.msra.mxu0 %v6814
    %8538 = vmatprep.subr.mxu0 0.0
    %8539 = vmatpush1.msra.mxu0 %v6815
    %8540 = vmatprep.subr.mxu0 0.0
    %8541 = vmatpush1.msra.mxu0 %v6816
    %8542 = vmatprep.subr.mxu0 0.0
    %8543 = vmatpush1.msra.mxu0 %v6817
    %8544 = vmatprep.subr.mxu0 0.0
    %8545 = vmatpush1.msra.mxu0 %v6818
    %8546 = vmatprep.subr.mxu0 0.0
    %8547 = vmatpush1.msra.mxu0 %v6819
    %8548 = vmatprep.subr.mxu0 0.0
    %8549 = vmatpush1.msra.mxu0 %v6820
    %8550 = vmatprep.subr.mxu0 0.0
    %8551 = vmatpush1.msra.mxu0 %v6821
    %8552 = vmatprep.subr.mxu0 0.0
    %8553 = vmatpush1.msra.mxu0 %v6822
    %8554 = vmatprep.subr.mxu0 0.0
    %8555 = vmatpush1.msra.mxu0 %v6823
    %8556 = vmatprep.subr.mxu0 0.0
    %8557 = vmatpush1.msra.mxu0 %v6824
    %8558 = vmatprep.subr.mxu0 0.0
    %8559 = vmatpush1.msra.mxu0 %v6825
    %8560 = vmatprep.subr.mxu0 0.0
    %8561 = vmatpush1.msra.mxu0 %v6826
    %8562 = vmatprep.mubr.f32.mxu0 %v8357
    %8563 = vmatmul.mubr.f32.gmra.mrb[0].mxu0 %v8356
    %v8564 = vpop.f32.mrb[0].mxu0
    %v8565 = vadd.f32 %v8495, %v8564
    %v8566 = vpop.f32.mrb[0].mxu0
    %8567 = vdwg.mxu0
    %v8568 = vmul.f32 %v8565, 0.10206208
    %v8569 = vmul.f32 %v5501, %v5960
    %v8570 = vmul.f32 %v5503, %v5962
    %v8571 = vmul.f32 %v5654, %v6113
    %v8572 = vmul.f32 %v5656, %v6115
    %v8573 = vmul.f32 %v5807, %v6266
    %v8574 = vmul.f32 %v5809, %v6268
    %8575 = vmatprep.subr.mxu0 0.0
    %8576 = vmatpush1.msra.mxu0 %v6731
    %8577 = vmatprep.subr.mxu0 0.0
    %8578 = vmatpush1.msra.mxu0 %v6732
    %8579 = vmatprep.subr.mxu0 0.0
    %8580 = vmatpush1.msra.mxu0 %v6733
    %8581 = vmatprep.subr.mxu0 0.0
    %8582 = vmatpush1.msra.mxu0 %v6734
    %8583 = vmatprep.subr.mxu0 0.0
    %8584 = vmatpush1.msra.mxu0 %v6735
    %8585 = vmatprep.subr.mxu0 0.0
    %8586 = vmatpush1.msra.mxu0 %v6736
    %8587 = vmatprep.subr.mxu0 0.0
    %8588 = vmatpush1.msra.mxu0 %v6737
    %8589 = vmatprep.subr.mxu0 0.0
    %8590 = vmatpush1.msra.mxu0 %v6738
    %8591 = vmatprep.subr.mxu0 0.0
    %8592 = vmatpush1.msra.mxu0 %v6739
    %8593 = vmatprep.subr.mxu0 0.0
    %8594 = vmatpush1.msra.mxu0 %v6740
    %8595 = vmatprep.subr.mxu0 0.0
    %8596 = vmatpush1.msra.mxu0 %v6741
    %8597 = vmatprep.subr.mxu0 0.0
    %8598 = vmatpush1.msra.mxu0 %v6742
    %8599 = vmatprep.subr.mxu0 0.0
    %8600 = vmatpush1.msra.mxu0 %v6743
    %8601 = vmatprep.subr.mxu0 0.0
    %8602 = vmatpush1.msra.mxu0 %v6744
    %8603 = vmatprep.subr.mxu0 0.0
    %8604 = vmatpush1.msra.mxu0 %v6745
    %8605 = vmatprep.subr.mxu0 0.0
    %8606 = vmatpush1.msra.mxu0 %v6746
    %8607 = vmatprep.subr.mxu0 0.0
    %8608 = vmatpush1.msra.mxu0 %v6747
    %8609 = vmatprep.subr.mxu0 0.0
    %8610 = vmatpush1.msra.mxu0 %v6748
    %8611 = vmatprep.subr.mxu0 0.0
    %8612 = vmatpush1.msra.mxu0 %v6749
    %8613 = vmatprep.subr.mxu0 0.0
    %8614 = vmatpush1.msra.mxu0 %v6750
    %8615 = vmatprep.subr.mxu0 0.0
    %8616 = vmatpush1.msra.mxu0 %v6751
    %8617 = vmatprep.subr.mxu0 0.0
    %8618 = vmatpush1.msra.mxu0 %v6752
    %8619 = vmatprep.subr.mxu0 0.0
    %8620 = vmatpush1.msra.mxu0 %v6753
    %8621 = vmatprep.subr.mxu0 0.0
    %8622 = vmatpush1.msra.mxu0 %v6754
    %8623 = vmatprep.subr.mxu0 0.0
    %8624 = vmatpush1.msra.mxu0 %v6755
    %8625 = vmatprep.subr.mxu0 0.0
    %8626 = vmatpush1.msra.mxu0 %v6756
    %8627 = vmatprep.subr.mxu0 0.0
    %8628 = vmatpush1.msra.mxu0 %v6757
    %8629 = vmatprep.subr.mxu0 0.0
    %8630 = vmatpush1.msra.mxu0 %v6758
    %8631 = vmatprep.subr.mxu0 0.0
    %8632 = vmatpush1.msra.mxu0 %v6759
    %8633 = vmatprep.subr.mxu0 0.0
    %8634 = vmatpush1.msra.mxu0 %v6760
    %8635 = vmatprep.subr.mxu0 0.0
    %8636 = vmatpush1.msra.mxu0 %v6761
    %8637 = vmatprep.subr.mxu0 0.0
    %8638 = vmatpush1.msra.mxu0 %v6762
    %8639 = vmatprep.mubr.f32.mxu0 %v8570
    %8640 = vmatmul.mubr.f32.gmra.mrb[0].mxu0 %v8569
    %v8641 = vpop.f32.mrb[0].mxu0
    %v8642 = vadd.f32 0.0, %v8641
    %v8643 = vpop.f32.mrb[0].mxu0
    %8644 = vdwg.mxu0
    %8645 = vmatprep.subr.mxu0 0.0
    %8646 = vmatpush1.msra.mxu0 %v6763
    %8647 = vmatprep.subr.mxu0 0.0
    %8648 = vmatpush1.msra.mxu0 %v6764
    %8649 = vmatprep.subr.mxu0 0.0
    %8650 = vmatpush1.msra.mxu0 %v6765
    %8651 = vmatprep.subr.mxu0 0.0
    %8652 = vmatpush1.msra.mxu0 %v6766
    %8653 = vmatprep.subr.mxu0 0.0
    %8654 = vmatpush1.msra.mxu0 %v6767
    %8655 = vmatprep.subr.mxu0 0.0
    %8656 = vmatpush1.msra.mxu0 %v6768
    %8657 = vmatprep.subr.mxu0 0.0
    %8658 = vmatpush1.msra.mxu0 %v6769
    %8659 = vmatprep.subr.mxu0 0.0
    %8660 = vmatpush1.msra.mxu0 %v6770
    %8661 = vmatprep.subr.mxu0 0.0
    %8662 = vmatpush1.msra.mxu0 %v6771
    %8663 = vmatprep.subr.mxu0 0.0
    %8664 = vmatpush1.msra.mxu0 %v6772
    %8665 = vmatprep.subr.mxu0 0.0
    %8666 = vmatpush1.msra.mxu0 %v6773
    %8667 = vmatprep.subr.mxu0 0.0
    %8668 = vmatpush1.msra.mxu0 %v6774
    %8669 = vmatprep.subr.mxu0 0.0
    %8670 = vmatpush1.msra.mxu0 %v6775
    %8671 = vmatprep.subr.mxu0 0.0
    %8672 = vmatpush1.msra.mxu0 %v6776
    %8673 = vmatprep.subr.mxu0 0.0
    %8674 = vmatpush1.msra.mxu0 %v6777
    %8675 = vmatprep.subr.mxu0 0.0
    %8676 = vmatpush1.msra.mxu0 %v6778
    %8677 = vmatprep.subr.mxu0 0.0
    %8678 = vmatpush1.msra.mxu0 %v6779
    %8679 = vmatprep.subr.mxu0 0.0
    %8680 = vmatpush1.msra.mxu0 %v6780
    %8681 = vmatprep.subr.mxu0 0.0
    %8682 = vmatpush1.msra.mxu0 %v6781
    %8683 = vmatprep.subr.mxu0 0.0
    %8684 = vmatpush1.msra.mxu0 %v6782
    %8685 = vmatprep.subr.mxu0 0.0
    %8686 = vmatpush1.msra.mxu0 %v6783
    %8687 = vmatprep.subr.mxu0 0.0
    %8688 = vmatpush1.msra.mxu0 %v6784
    %8689 = vmatprep.subr.mxu0 0.0
    %8690 = vmatpush1.msra.mxu0 %v6785
    %8691 = vmatprep.subr.mxu0 0.0
    %8692 = vmatpush1.msra.mxu0 %v6786
    %8693 = vmatprep.subr.mxu0 0.0
    %8694 = vmatpush1.msra.mxu0 %v6787
    %8695 = vmatprep.subr.mxu0 0.0
    %8696 = vmatpush1.msra.mxu0 %v6788
    %8697 = vmatprep.subr.mxu0 0.0
    %8698 = vmatpush1.msra.mxu0 %v6789
    %8699 = vmatprep.subr.mxu0 0.0
    %8700 = vmatpush1.msra.mxu0 %v6790
    %8701 = vmatprep.subr.mxu0 0.0
    %8702 = vmatpush1.msra.mxu0 %v6791
    %8703 = vmatprep.subr.mxu0 0.0
    %8704 = vmatpush1.msra.mxu0 %v6792
    %8705 = vmatprep.subr.mxu0 0.0
    %8706 = vmatpush1.msra.mxu0 %v6793
    %8707 = vmatprep.subr.mxu0 0.0
    %8708 = vmatpush1.msra.mxu0 %v6794
    %8709 = vmatprep.mubr.f32.mxu0 %v8572
    %8710 = vmatmul.mubr.f32.gmra.mrb[0].mxu0 %v8571
    %v8711 = vpop.f32.mrb[0].mxu0
    %v8712 = vadd.f32 %v8642, %v8711
    %v8713 = vpop.f32.mrb[0].mxu0
    %8714 = vdwg.mxu0
    %8715 = vmatprep.subr.mxu0 0.0
    %8716 = vmatpush1.msra.mxu0 %v6795
    %8717 = vmatprep.subr.mxu0 0.0
    %8718 = vmatpush1.msra.mxu0 %v6796
    %8719 = vmatprep.subr.mxu0 0.0
    %8720 = vmatpush1.msra.mxu0 %v6797
    %8721 = vmatprep.subr.mxu0 0.0
    %8722 = vmatpush1.msra.mxu0 %v6798
    %8723 = vmatprep.subr.mxu0 0.0
    %8724 = vmatpush1.msra.mxu0 %v6799
    %8725 = vmatprep.subr.mxu0 0.0
    %8726 = vmatpush1.msra.mxu0 %v6800
    %8727 = vmatprep.subr.mxu0 0.0
    %8728 = vmatpush1.msra.mxu0 %v6801
    %8729 = vmatprep.subr.mxu0 0.0
    %8730 = vmatpush1.msra.mxu0 %v6802
    %8731 = vmatprep.subr.mxu0 0.0
    %8732 = vmatpush1.msra.mxu0 %v6803
    %8733 = vmatprep.subr.mxu0 0.0
    %8734 = vmatpush1.msra.mxu0 %v6804
    %8735 = vmatprep.subr.mxu0 0.0
    %8736 = vmatpush1.msra.mxu0 %v6805
    %8737 = vmatprep.subr.mxu0 0.0
    %8738 = vmatpush1.msra.mxu0 %v6806
    %8739 = vmatprep.subr.mxu0 0.0
    %8740 = vmatpush1.msra.mxu0 %v6807
    %8741 = vmatprep.subr.mxu0 0.0
    %8742 = vmatpush1.msra.mxu0 %v6808
    %8743 = vmatprep.subr.mxu0 0.0
    %8744 = vmatpush1.msra.mxu0 %v6809
    %8745 = vmatprep.subr.mxu0 0.0
    %8746 = vmatpush1.msra.mxu0 %v6810
    %8747 = vmatprep.subr.mxu0 0.0
    %8748 = vmatpush1.msra.mxu0 %v6811
    %8749 = vmatprep.subr.mxu0 0.0
    %8750 = vmatpush1.msra.mxu0 %v6812
    %8751 = vmatprep.subr.mxu0 0.0
    %8752 = vmatpush1.msra.mxu0 %v6813
    %8753 = vmatprep.subr.mxu0 0.0
    %8754 = vmatpush1.msra.mxu0 %v6814
    %8755 = vmatprep.subr.mxu0 0.0
    %8756 = vmatpush1.msra.mxu0 %v6815
    %8757 = vmatprep.subr.mxu0 0.0
    %8758 = vmatpush1.msra.mxu0 %v6816
    %8759 = vmatprep.subr.mxu0 0.0
    %8760 = vmatpush1.msra.mxu0 %v6817
    %8761 = vmatprep.subr.mxu0 0.0
    %8762 = vmatpush1.msra.mxu0 %v6818
    %8763 = vmatprep.subr.mxu0 0.0
    %8764 = vmatpush1.msra.mxu0 %v6819
    %8765 = vmatprep.subr.mxu0 0.0
    %8766 = vmatpush1.msra.mxu0 %v6820
    %8767 = vmatprep.subr.mxu0 0.0
    %8768 = vmatpush1.msra.mxu0 %v6821
    %8769 = vmatprep.subr.mxu0 0.0
    %8770 = vmatpush1.msra.mxu0 %v6822
    %8771 = vmatprep.subr.mxu0 0.0
    %8772 = vmatpush1.msra.mxu0 %v6823
    %8773 = vmatprep.subr.mxu0 0.0
    %8774 = vmatpush1.msra.mxu0 %v6824
    %8775 = vmatprep.subr.mxu0 0.0
    %8776 = vmatpush1.msra.mxu0 %v6825
    %8777 = vmatprep.subr.mxu0 0.0
    %8778 = vmatpush1.msra.mxu0 %v6826
    %8779 = vmatprep.mubr.f32.mxu0 %v8574
    %8780 = vmatmul.mubr.f32.gmra.mrb[0].mxu0 %v8573
    %v8781 = vpop.f32.mrb[0].mxu0
    %v8782 = vadd.f32 %v8712, %v8781
    %v8783 = vpop.f32.mrb[0].mxu0
    %8784 = vdwg.mxu0
    %v8785 = vmul.f32 %v8782, 0.10206208
    %vm8786 = vcmask 1048128
    %8787 = vst.msk [vmem:[#allocation13] sm:$0xff] %vm8786, 0.0
    %v8788 = vmax.f32 %v7049, %v7266
    %v8789 = vmax.f32 %v8788, %v7483
    %v8790 = vsub.f32 %v7049, %v8789
    %v8791 = vmul.f32 %v8790, 1.442695
    %v8792 = vpow.pop %v8791
    %v8793 = vsub.f32 %v7266, %v8789
    %v8794 = vmul.f32 %v8793, 1.442695
    %v8795 = vpow.pop %v8794
    %v8796 = vsub.f32 %v7483, %v8789
    %v8797 = vmul.f32 %v8796, 1.442695
    %v8798 = vpow.pop %v8797
    %v8799 = vadd.f32 %v8792, %v8795
    %v8800 = vadd.f32 %v8799, %v8798
    %v8801 = vrcp.pop %v8800
    %v8802 = vmul.f32 1.0, %v8801
    %v8803 = vmul.f32 %v8792, %v8802
    %vm8804 = vcmask 64512
    %8805 = vst.msk [vmem:[#allocation13] sm:$0xff] %vm8804, %v8803
    %v8806 = vmul.f32 %v8795, %v8802
    %8808 = vrot.lane.b32.xlu0 %v8806, 8
    %v8809 = vpop.permute.xlu0 %8808
    %vm8811 = vcmask 130112
    %8812 = vst.msk [vmem:[#allocation13] sm:$0xff] %vm8811, %v8809
    %v8813 = vmul.f32 %v8798, %v8802
    %8815 = vrot.lane.b32.xlu0 %v8813, 16
    %v8816 = vpop.permute.xlu0 %8815
    %vm8818 = vcmask 195712
    %8819 = vst.msk [vmem:[#allocation13] sm:$0xff] %vm8818, %v8816
    %v8820 = vmax.f32 %v7700, %v7917
    %v8821 = vmax.f32 %v8820, %v8134
    %v8822 = vsub.f32 %v7700, %v8821
    %v8823 = vmul.f32 %v8822, 1.442695
    %v8824 = vpow.pop %v8823
    %v8825 = vsub.f32 %v7917, %v8821
    %v8826 = vmul.f32 %v8825, 1.442695
    %v8827 = vpow.pop %v8826
    %v8828 = vsub.f32 %v8134, %v8821
    %v8829 = vmul.f32 %v8828, 1.442695
    %v8830 = vpow.pop %v8829
    %v8831 = vadd.f32 %v8824, %v8827
    %v8832 = vadd.f32 %v8831, %v8830
    %v8833 = vrcp.pop %v8832
    %v8834 = vmul.f32 1.0, %v8833
    %v8835 = vmul.f32 %v8824, %v8834
    %8837 = vrot.lane.b32.xlu0 %v8835, 24
    %v8838 = vpop.permute.xlu0 %8837
    %vm8840 = vcmask 261312
    %8841 = vst.msk [vmem:[#allocation13] sm:$0xff] %vm8840, %v8838
    %v8842 = vadd.f32 %v8803, %v8835
    %v8843 = vmul.f32 %v8827, %v8834
    %8845 = vrot.lane.b32.xlu0 %v8843, 32
    %v8846 = vpop.permute.xlu0 %8845
    %vm8848 = vcmask 326912
    %8849 = vst.msk [vmem:[#allocation13] sm:$0xff] %vm8848, %v8846
    %v8850 = vadd.f32 %v8806, %v8843
    %v8851 = vmul.f32 %v8830, %v8834
    %8853 = vrot.lane.b32.xlu0 %v8851, 40
    %v8854 = vpop.permute.xlu0 %8853
    %vm8856 = vcmask 392512
    %8857 = vst.msk [vmem:[#allocation13] sm:$0xff] %vm8856, %v8854
    %v8858 = vadd.f32 %v8813, %v8851
    %v8859 = vmax.f32 %v8351, %v8568
    %v8860 = vmax.f32 %v8859, %v8785
    %v8861 = vsub.f32 %v8351, %v8860
    %v8862 = vmul.f32 %v8861, 1.442695
    %v8863 = vpow.pop %v8862
    %v8864 = vsub.f32 %v8568, %v8860
    %v8865 = vmul.f32 %v8864, 1.442695
    %v8866 = vpow.pop %v8865
    %v8867 = vsub.f32 %v8785, %v8860
    %v8868 = vmul.f32 %v8867, 1.442695
    %v8869 = vpow.pop %v8868
    %v8870 = vadd.f32 %v8863, %v8866
    %v8871 = vadd.f32 %v8870, %v8869
    %v8872 = vrcp.pop %v8871
    %v8873 = vmul.f32 1.0, %v8872
    %v8874 = vmul.f32 %v8863, %v8873
    %8876 = vrot.lane.b32.xlu0 %v8874, 48
    %v8877 = vpop.permute.xlu0 %8876
    %vm8879 = vcmask 458112
    %8880 = vst.msk [vmem:[#allocation13] sm:$0xff] %vm8879, %v8877
    %v8881 = vadd.f32 %v8842, %v8874
    %v8882 = vmul.f32 %v8866, %v8873
    %8884 = vrot.lane.b32.xlu0 %v8882, 56
    %v8885 = vpop.permute.xlu0 %8884
    %vm8887 = vcmask 523712
    %8888 = vst.msk [vmem:[#allocation13] sm:$0xff] %vm8887, %v8885
    %v8889 = vadd.f32 %v8850, %v8882
    %v8890 = vmul.f32 %v8869, %v8873
    %8892 = vrot.lane.b32.xlu0 %v8890, 64
    %v8893 = vpop.permute.xlu0 %8892
    %vm8895 = vcmask 589312
    %8896 = vst.msk [vmem:[#allocation13] sm:$0xff] %vm8895, %v8893
    %v8897 = vadd.f32 %v8858, %v8890
    %v8899 = vsel %vm8804, %v8881, 0
    %8901 = vmatprep.subr.mxu0 %v6828
    %8902 = vmatpush1.msra.mxu0 %v6827
    %8903 = vmatprep.subr.mxu0 0.0
    %8904 = vmatpush1.msra.mxu0 0.0
    %8905 = vmatprep.subr.mxu0 0.0
    %8906 = vmatpush1.msra.mxu0 0.0
    %8907 = vmatprep.subr.mxu0 0.0
    %8908 = vmatpush1.msra.mxu0 0.0
    %8909 = vmatprep.subr.mxu0 0.0
    %8910 = vmatpush1.msra.mxu0 0.0
    %8911 = vmatprep.subr.mxu0 0.0
    %8912 = vmatpush1.msra.mxu0 0.0
    %8913 = vmatprep.subr.mxu0 0.0
    %8914 = vmatpush1.msra.mxu0 0.0
    %8915 = vmatprep.subr.mxu0 0.0
    %8916 = vmatpush1.msra.mxu0 0.0
    %8917 = vmatprep.subr.mxu0 0.0
    %8918 = vmatpush1.msra.mxu0 0.0
    %8919 = vmatprep.subr.mxu0 0.0
    %8920 = vmatpush1.msra.mxu0 0.0
    %8921 = vmatprep.subr.mxu0 0.0
    %8922 = vmatpush1.msra.mxu0 0.0
    %8923 = vmatprep.subr.mxu0 0.0
    %8924 = vmatpush1.msra.mxu0 0.0
    %8925 = vmatprep.subr.mxu0 0.0
    %8926 = vmatpush1.msra.mxu0 0.0
    %8927 = vmatprep.subr.mxu0 0.0
    %8928 = vmatpush1.msra.mxu0 0.0
    %8929 = vmatprep.subr.mxu0 0.0
    %8930 = vmatpush1.msra.mxu0 0.0
    %8931 = vmatprep.subr.mxu0 0.0
    %8932 = vmatpush1.msra.mxu0 0.0
    %8933 = vmatprep.subr.mxu0 0.0
    %8934 = vmatpush1.msra.mxu0 0.0
    %8935 = vmatprep.subr.mxu0 0.0
    %8936 = vmatpush1.msra.mxu0 0.0
    %8937 = vmatprep.subr.mxu0 0.0
    %8938 = vmatpush1.msra.mxu0 0.0
    %8939 = vmatprep.subr.mxu0 0.0
    %8940 = vmatpush1.msra.mxu0 0.0
    %8941 = vmatprep.subr.mxu0 0.0
    %8942 = vmatpush1.msra.mxu0 0.0
    %8943 = vmatprep.subr.mxu0 0.0
    %8944 = vmatpush1.msra.mxu0 0.0
    %8945 = vmatprep.subr.mxu0 0.0
    %8946 = vmatpush1.msra.mxu0 0.0
    %8947 = vmatprep.subr.mxu0 0.0
    %8948 = vmatpush1.msra.mxu0 0.0
    %8949 = vmatprep.subr.mxu0 0.0
    %8950 = vmatpush1.msra.mxu0 0.0
    %8951 = vmatprep.subr.mxu0 0.0
    %8952 = vmatpush1.msra.mxu0 0.0
    %8953 = vmatprep.subr.mxu0 0.0
    %8954 = vmatpush1.msra.mxu0 0.0
    %8955 = vmatprep.subr.mxu0 0.0
    %8956 = vmatpush1.msra.mxu0 0.0
    %8957 = vmatprep.subr.mxu0 0.0
    %8958 = vmatpush1.msra.mxu0 0.0
    %8959 = vmatprep.subr.mxu0 0.0
    %8960 = vmatpush1.msra.mxu0 0.0
    %8961 = vmatprep.subr.mxu0 0.0
    %8962 = vmatpush1.msra.mxu0 0.0
    %8963 = vmatprep.subr.mxu0 0.0
    %8964 = vmatpush1.msra.mxu0 0.0
    %8965 = vmatprep.mubr.f32.mxu0 0.0
    %8966 = vmatmul.mubr.f32.gmra.mrb[0].mxu0 %v8899
    %v8967 = vpop.f32.mrb[0].mxu0
    %v8968 = vadd.f32 0.0, %v8967
    %v8969 = vpop.f32.mrb[0].mxu0
    %v8970 = vadd.f32 0.0, %v8969
    %8971 = vdwg.mxu0
    %8972 = vmatprep.subr.mxu0 %v6830
    %8973 = vmatpush1.msra.mxu0 %v6829
    %8974 = vmatprep.subr.mxu0 0.0
    %8975 = vmatpush1.msra.mxu0 0.0
    %8976 = vmatprep.subr.mxu0 0.0
    %8977 = vmatpush1.msra.mxu0 0.0
    %8978 = vmatprep.subr.mxu0 0.0
    %8979 = vmatpush1.msra.mxu0 0.0
    %8980 = vmatprep.subr.mxu0 0.0
    %8981 = vmatpush1.msra.mxu0 0.0
    %8982 = vmatprep.subr.mxu0 0.0
    %8983 = vmatpush1.msra.mxu0 0.0
    %8984 = vmatprep.subr.mxu0 0.0
    %8985 = vmatpush1.msra.mxu0 0.0
    %8986 = vmatprep.subr.mxu0 0.0
    %8987 = vmatpush1.msra.mxu0 0.0
    %8988 = vmatprep.subr.mxu0 0.0
    %8989 = vmatpush1.msra.mxu0 0.0
    %8990 = vmatprep.subr.mxu0 0.0
    %8991 = vmatpush1.msra.mxu0 0.0
    %8992 = vmatprep.subr.mxu0 0.0
    %8993 = vmatpush1.msra.mxu0 0.0
    %8994 = vmatprep.subr.mxu0 0.0
    %8995 = vmatpush1.msra.mxu0 0.0
    %8996 = vmatprep.subr.mxu0 0.0
    %8997 = vmatpush1.msra.mxu0 0.0
    %8998 = vmatprep.subr.mxu0 0.0
    %8999 = vmatpush1.msra.mxu0 0.0
    %9000 = vmatprep.subr.mxu0 0.0
    %9001 = vmatpush1.msra.mxu0 0.0
    %9002 = vmatprep.subr.mxu0 0.0
    %9003 = vmatpush1.msra.mxu0 0.0
    %9004 = vmatprep.subr.mxu0 0.0
    %9005 = vmatpush1.msra.mxu0 0.0
    %9006 = vmatprep.subr.mxu0 0.0
    %9007 = vmatpush1.msra.mxu0 0.0
    %9008 = vmatprep.subr.mxu0 0.0
    %9009 = vmatpush1.msra.mxu0 0.0
    %9010 = vmatprep.subr.mxu0 0.0
    %9011 = vmatpush1.msra.mxu0 0.0
    %9012 = vmatprep.subr.mxu0 0.0
    %9013 = vmatpush1.msra.mxu0 0.0
    %9014 = vmatprep.subr.mxu0 0.0
    %9015 = vmatpush1.msra.mxu0 0.0
    %9016 = vmatprep.subr.mxu0 0.0
    %9017 = vmatpush1.msra.mxu0 0.0
    %9018 = vmatprep.subr.mxu0 0.0
    %9019 = vmatpush1.msra.mxu0 0.0
    %9020 = vmatprep.subr.mxu0 0.0
    %9021 = vmatpush1.msra.mxu0 0.0
    %9022 = vmatprep.subr.mxu0 0.0
    %9023 = vmatpush1.msra.mxu0 0.0
    %9024 = vmatprep.subr.mxu0 0.0
    %9025 = vmatpush1.msra.mxu0 0.0
    %9026 = vmatprep.subr.mxu0 0.0
    %9027 = vmatpush1.msra.mxu0 0.0
    %9028 = vmatprep.subr.mxu0 0.0
    %9029 = vmatpush1.msra.mxu0 0.0
    %9030 = vmatprep.subr.mxu0 0.0
    %9031 = vmatpush1.msra.mxu0 0.0
    %9032 = vmatprep.subr.mxu0 0.0
    %9033 = vmatpush1.msra.mxu0 0.0
    %9034 = vmatprep.subr.mxu0 0.0
    %9035 = vmatpush1.msra.mxu0 0.0
    %9036 = vmatprep.mubr.f32.mxu0 0.0
    %9037 = vmatmul.mubr.f32.gmra.mrb[0].mxu0 %v8899
    %v9038 = vpop.f32.mrb[0].mxu0
    %v9039 = vadd.f32 0.0, %v9038
    %v9040 = vpop.f32.mrb[0].mxu0
    %v9041 = vadd.f32 0.0, %v9040
    %9042 = vdwg.mxu0
    %9043 = vmatprep.subr.mxu0 %v6832
    %9044 = vmatpush1.msra.mxu0 %v6831
    %9045 = vmatprep.subr.mxu0 0.0
    %9046 = vmatpush1.msra.mxu0 0.0
    %9047 = vmatprep.subr.mxu0 0.0
    %9048 = vmatpush1.msra.mxu0 0.0
    %9049 = vmatprep.subr.mxu0 0.0
    %9050 = vmatpush1.msra.mxu0 0.0
    %9051 = vmatprep.subr.mxu0 0.0
    %9052 = vmatpush1.msra.mxu0 0.0
    %9053 = vmatprep.subr.mxu0 0.0
    %9054 = vmatpush1.msra.mxu0 0.0
    %9055 = vmatprep.subr.mxu0 0.0
    %9056 = vmatpush1.msra.mxu0 0.0
    %9057 = vmatprep.subr.mxu0 0.0
    %9058 = vmatpush1.msra.mxu0 0.0
    %9059 = vmatprep.subr.mxu0 0.0
    %9060 = vmatpush1.msra.mxu0 0.0
    %9061 = vmatprep.subr.mxu0 0.0
    %9062 = vmatpush1.msra.mxu0 0.0
    %9063 = vmatprep.subr.mxu0 0.0
    %9064 = vmatpush1.msra.mxu0 0.0
    %9065 = vmatprep.subr.mxu0 0.0
    %9066 = vmatpush1.msra.mxu0 0.0
    %9067 = vmatprep.subr.mxu0 0.0
    %9068 = vmatpush1.msra.mxu0 0.0
    %9069 = vmatprep.subr.mxu0 0.0
    %9070 = vmatpush1.msra.mxu0 0.0
    %9071 = vmatprep.subr.mxu0 0.0
    %9072 = vmatpush1.msra.mxu0 0.0
    %9073 = vmatprep.subr.mxu0 0.0
    %9074 = vmatpush1.msra.mxu0 0.0
    %9075 = vmatprep.subr.mxu0 0.0
    %9076 = vmatpush1.msra.mxu0 0.0
    %9077 = vmatprep.subr.mxu0 0.0
    %9078 = vmatpush1.msra.mxu0 0.0
    %9079 = vmatprep.subr.mxu0 0.0
    %9080 = vmatpush1.msra.mxu0 0.0
    %9081 = vmatprep.subr.mxu0 0.0
    %9082 = vmatpush1.msra.mxu0 0.0
    %9083 = vmatprep.subr.mxu0 0.0
    %9084 = vmatpush1.msra.mxu0 0.0
    %9085 = vmatprep.subr.mxu0 0.0
    %9086 = vmatpush1.msra.mxu0 0.0
    %9087 = vmatprep.subr.mxu0 0.0
    %9088 = vmatpush1.msra.mxu0 0.0
    %9089 = vmatprep.subr.mxu0 0.0
    %9090 = vmatpush1.msra.mxu0 0.0
    %9091 = vmatprep.subr.mxu0 0.0
    %9092 = vmatpush1.msra.mxu0 0.0
    %9093 = vmatprep.subr.mxu0 0.0
    %9094 = vmatpush1.msra.mxu0 0.0
    %9095 = vmatprep.subr.mxu0 0.0
    %9096 = vmatpush1.msra.mxu0 0.0
    %9097 = vmatprep.subr.mxu0 0.0
    %9098 = vmatpush1.msra.mxu0 0.0
    %9099 = vmatprep.subr.mxu0 0.0
    %9100 = vmatpush1.msra.mxu0 0.0
    %9101 = vmatprep.subr.mxu0 0.0
    %9102 = vmatpush1.msra.mxu0 0.0
    %9103 = vmatprep.subr.mxu0 0.0
    %9104 = vmatpush1.msra.mxu0 0.0
    %9105 = vmatprep.subr.mxu0 0.0
    %9106 = vmatpush1.msra.mxu0 0.0
    %9107 = vmatprep.mubr.f32.mxu0 0.0
    %9108 = vmatmul.mubr.f32.gmra.mrb[0].mxu0 %v8899
    %v9109 = vpop.f32.mrb[0].mxu0
    %v9110 = vadd.f32 0.0, %v9109
    %v9111 = vpop.f32.mrb[0].mxu0
    %v9112 = vadd.f32 0.0, %v9111
    %9113 = vdwg.mxu0
    %v9114 = vmul.f32 %v8968, %v6409
    %v9115 = vmul.f32 %v8970, %v6411
    %v9116 = vmul.f32 %v9039, %v6562
    %v9117 = vmul.f32 %v9041, %v6564
    %v9118 = vmul.f32 %v9110, %v6715
    %v9119 = vmul.f32 %v9112, %v6717
    %v9121 = vsel %vm8804, %v8889, 0
    %9123 = vmatprep.subr.mxu0 %v6828
    %9124 = vmatpush1.msra.mxu0 %v6827
    %9125 = vmatprep.subr.mxu0 0.0
    %9126 = vmatpush1.msra.mxu0 0.0
    %9127 = vmatprep.subr.mxu0 0.0
    %9128 = vmatpush1.msra.mxu0 0.0
    %9129 = vmatprep.subr.mxu0 0.0
    %9130 = vmatpush1.msra.mxu0 0.0
    %9131 = vmatprep.subr.mxu0 0.0
    %9132 = vmatpush1.msra.mxu0 0.0
    %9133 = vmatprep.subr.mxu0 0.0
    %9134 = vmatpush1.msra.mxu0 0.0
    %9135 = vmatprep.subr.mxu0 0.0
    %9136 = vmatpush1.msra.mxu0 0.0
    %9137 = vmatprep.subr.mxu0 0.0
    %9138 = vmatpush1.msra.mxu0 0.0
    %9139 = vmatprep.subr.mxu0 0.0
    %9140 = vmatpush1.msra.mxu0 0.0
    %9141 = vmatprep.subr.mxu0 0.0
    %9142 = vmatpush1.msra.mxu0 0.0
    %9143 = vmatprep.subr.mxu0 0.0
    %9144 = vmatpush1.msra.mxu0 0.0
    %9145 = vmatprep.subr.mxu0 0.0
    %9146 = vmatpush1.msra.mxu0 0.0
    %9147 = vmatprep.subr.mxu0 0.0
    %9148 = vmatpush1.msra.mxu0 0.0
    %9149 = vmatprep.subr.mxu0 0.0
    %9150 = vmatpush1.msra.mxu0 0.0
    %9151 = vmatprep.subr.mxu0 0.0
    %9152 = vmatpush1.msra.mxu0 0.0
    %9153 = vmatprep.subr.mxu0 0.0
    %9154 = vmatpush1.msra.mxu0 0.0
    %9155 = vmatprep.subr.mxu0 0.0
    %9156 = vmatpush1.msra.mxu0 0.0
    %9157 = vmatprep.subr.mxu0 0.0
    %9158 = vmatpush1.msra.mxu0 0.0
    %9159 = vmatprep.subr.mxu0 0.0
    %9160 = vmatpush1.msra.mxu0 0.0
    %9161 = vmatprep.subr.mxu0 0.0
    %9162 = vmatpush1.msra.mxu0 0.0
    %9163 = vmatprep.subr.mxu0 0.0
    %9164 = vmatpush1.msra.mxu0 0.0
    %9165 = vmatprep.subr.mxu0 0.0
    %9166 = vmatpush1.msra.mxu0 0.0
    %9167 = vmatprep.subr.mxu0 0.0
    %9168 = vmatpush1.msra.mxu0 0.0
    %9169 = vmatprep.subr.mxu0 0.0
    %9170 = vmatpush1.msra.mxu0 0.0
    %9171 = vmatprep.subr.mxu0 0.0
    %9172 = vmatpush1.msra.mxu0 0.0
    %9173 = vmatprep.subr.mxu0 0.0
    %9174 = vmatpush1.msra.mxu0 0.0
    %9175 = vmatprep.subr.mxu0 0.0
    %9176 = vmatpush1.msra.mxu0 0.0
    %9177 = vmatprep.subr.mxu0 0.0
    %9178 = vmatpush1.msra.mxu0 0.0
    %9179 = vmatprep.subr.mxu0 0.0
    %9180 = vmatpush1.msra.mxu0 0.0
    %9181 = vmatprep.subr.mxu0 0.0
    %9182 = vmatpush1.msra.mxu0 0.0
    %9183 = vmatprep.subr.mxu0 0.0
    %9184 = vmatpush1.msra.mxu0 0.0
    %9185 = vmatprep.subr.mxu0 0.0
    %9186 = vmatpush1.msra.mxu0 0.0
    %9187 = vmatprep.mubr.f32.mxu0 0.0
    %9188 = vmatmul.mubr.f32.gmra.mrb[0].mxu0 %v9121
    %v9189 = vpop.f32.mrb[0].mxu0
    %v9190 = vadd.f32 0.0, %v9189
    %v9191 = vpop.f32.mrb[0].mxu0
    %v9192 = vadd.f32 0.0, %v9191
    %9193 = vdwg.mxu0
    %9194 = vmatprep.subr.mxu0 %v6830
    %9195 = vmatpush1.msra.mxu0 %v6829
    %9196 = vmatprep.subr.mxu0 0.0
    %9197 = vmatpush1.msra.mxu0 0.0
    %9198 = vmatprep.subr.mxu0 0.0
    %9199 = vmatpush1.msra.mxu0 0.0
    %9200 = vmatprep.subr.mxu0 0.0
    %9201 = vmatpush1.msra.mxu0 0.0
    %9202 = vmatprep.subr.mxu0 0.0
    %9203 = vmatpush1.msra.mxu0 0.0
    %9204 = vmatprep.subr.mxu0 0.0
    %9205 = vmatpush1.msra.mxu0 0.0
    %9206 = vmatprep.subr.mxu0 0.0
    %9207 = vmatpush1.msra.mxu0 0.0
    %9208 = vmatprep.subr.mxu0 0.0
    %9209 = vmatpush1.msra.mxu0 0.0
    %9210 = vmatprep.subr.mxu0 0.0
    %9211 = vmatpush1.msra.mxu0 0.0
    %9212 = vmatprep.subr.mxu0 0.0
    %9213 = vmatpush1.msra.mxu0 0.0
    %9214 = vmatprep.subr.mxu0 0.0
    %9215 = vmatpush1.msra.mxu0 0.0
    %9216 = vmatprep.subr.mxu0 0.0
    %9217 = vmatpush1.msra.mxu0 0.0
    %9218 = vmatprep.subr.mxu0 0.0
    %9219 = vmatpush1.msra.mxu0 0.0
    %9220 = vmatprep.subr.mxu0 0.0
    %9221 = vmatpush1.msra.mxu0 0.0
    %9222 = vmatprep.subr.mxu0 0.0
    %9223 = vmatpush1.msra.mxu0 0.0
    %9224 = vmatprep.subr.mxu0 0.0
    %9225 = vmatpush1.msra.mxu0 0.0
    %9226 = vmatprep.subr.mxu0 0.0
    %9227 = vmatpush1.msra.mxu0 0.0
    %9228 = vmatprep.subr.mxu0 0.0
    %9229 = vmatpush1.msra.mxu0 0.0
    %9230 = vmatprep.subr.mxu0 0.0
    %9231 = vmatpush1.msra.mxu0 0.0
    %9232 = vmatprep.subr.mxu0 0.0
    %9233 = vmatpush1.msra.mxu0 0.0
    %9234 = vmatprep.subr.mxu0 0.0
    %9235 = vmatpush1.msra.mxu0 0.0
    %9236 = vmatprep.subr.mxu0 0.0
    %9237 = vmatpush1.msra.mxu0 0.0
    %9238 = vmatprep.subr.mxu0 0.0
    %9239 = vmatpush1.msra.mxu0 0.0
    %9240 = vmatprep.subr.mxu0 0.0
    %9241 = vmatpush1.msra.mxu0 0.0
    %9242 = vmatprep.subr.mxu0 0.0
    %9243 = vmatpush1.msra.mxu0 0.0
    %9244 = vmatprep.subr.mxu0 0.0
    %9245 = vmatpush1.msra.mxu0 0.0
    %9246 = vmatprep.subr.mxu0 0.0
    %9247 = vmatpush1.msra.mxu0 0.0
    %9248 = vmatprep.subr.mxu0 0.0
    %9249 = vmatpush1.msra.mxu0 0.0
    %9250 = vmatprep.subr.mxu0 0.0
    %9251 = vmatpush1.msra.mxu0 0.0
    %9252 = vmatprep.subr.mxu0 0.0
    %9253 = vmatpush1.msra.mxu0 0.0
    %9254 = vmatprep.subr.mxu0 0.0
    %9255 = vmatpush1.msra.mxu0 0.0
    %9256 = vmatprep.subr.mxu0 0.0
    %9257 = vmatpush1.msra.mxu0 0.0
    %9258 = vmatprep.mubr.f32.mxu0 0.0
    %9259 = vmatmul.mubr.f32.gmra.mrb[0].mxu0 %v9121
    %v9260 = vpop.f32.mrb[0].mxu0
    %v9261 = vadd.f32 0.0, %v9260
    %v9262 = vpop.f32.mrb[0].mxu0
    %v9263 = vadd.f32 0.0, %v9262
    %9264 = vdwg.mxu0
    %9265 = vmatprep.subr.mxu0 %v6832
    %9266 = vmatpush1.msra.mxu0 %v6831
    %9267 = vmatprep.subr.mxu0 0.0
    %9268 = vmatpush1.msra.mxu0 0.0
    %9269 = vmatprep.subr.mxu0 0.0
    %9270 = vmatpush1.msra.mxu0 0.0
    %9271 = vmatprep.subr.mxu0 0.0
    %9272 = vmatpush1.msra.mxu0 0.0
    %9273 = vmatprep.subr.mxu0 0.0
    %9274 = vmatpush1.msra.mxu0 0.0
    %9275 = vmatprep.subr.mxu0 0.0
    %9276 = vmatpush1.msra.mxu0 0.0
    %9277 = vmatprep.subr.mxu0 0.0
    %9278 = vmatpush1.msra.mxu0 0.0
    %9279 = vmatprep.subr.mxu0 0.0
    %9280 = vmatpush1.msra.mxu0 0.0
    %9281 = vmatprep.subr.mxu0 0.0
    %9282 = vmatpush1.msra.mxu0 0.0
    %9283 = vmatprep.subr.mxu0 0.0
    %9284 = vmatpush1.msra.mxu0 0.0
    %9285 = vmatprep.subr.mxu0 0.0
    %9286 = vmatpush1.msra.mxu0 0.0
    %9287 = vmatprep.subr.mxu0 0.0
    %9288 = vmatpush1.msra.mxu0 0.0
    %9289 = vmatprep.subr.mxu0 0.0
    %9290 = vmatpush1.msra.mxu0 0.0
    %9291 = vmatprep.subr.mxu0 0.0
    %9292 = vmatpush1.msra.mxu0 0.0
    %9293 = vmatprep.subr.mxu0 0.0
    %9294 = vmatpush1.msra.mxu0 0.0
    %9295 = vmatprep.subr.mxu0 0.0
    %9296 = vmatpush1.msra.mxu0 0.0
    %9297 = vmatprep.subr.mxu0 0.0
    %9298 = vmatpush1.msra.mxu0 0.0
    %9299 = vmatprep.subr.mxu0 0.0
    %9300 = vmatpush1.msra.mxu0 0.0
    %9301 = vmatprep.subr.mxu0 0.0
    %9302 = vmatpush1.msra.mxu0 0.0
    %9303 = vmatprep.subr.mxu0 0.0
    %9304 = vmatpush1.msra.mxu0 0.0
    %9305 = vmatprep.subr.mxu0 0.0
    %9306 = vmatpush1.msra.mxu0 0.0
    %9307 = vmatprep.subr.mxu0 0.0
    %9308 = vmatpush1.msra.mxu0 0.0
    %9309 = vmatprep.subr.mxu0 0.0
    %9310 = vmatpush1.msra.mxu0 0.0
    %9311 = vmatprep.subr.mxu0 0.0
    %9312 = vmatpush1.msra.mxu0 0.0
    %9313 = vmatprep.subr.mxu0 0.0
    %9314 = vmatpush1.msra.mxu0 0.0
    %9315 = vmatprep.subr.mxu0 0.0
    %9316 = vmatpush1.msra.mxu0 0.0
    %9317 = vmatprep.subr.mxu0 0.0
    %9318 = vmatpush1.msra.mxu0 0.0
    %9319 = vmatprep.subr.mxu0 0.0
    %9320 = vmatpush1.msra.mxu0 0.0
    %9321 = vmatprep.subr.mxu0 0.0
    %9322 = vmatpush1.msra.mxu0 0.0
    %9323 = vmatprep.subr.mxu0 0.0
    %9324 = vmatpush1.msra.mxu0 0.0
    %9325 = vmatprep.subr.mxu0 0.0
    %9326 = vmatpush1.msra.mxu0 0.0
    %9327 = vmatprep.subr.mxu0 0.0
    %9328 = vmatpush1.msra.mxu0 0.0
    %9329 = vmatprep.mubr.f32.mxu0 0.0
    %9330 = vmatmul.mubr.f32.gmra.mrb[0].mxu0 %v9121
    %v9331 = vpop.f32.mrb[0].mxu0
    %v9332 = vadd.f32 0.0, %v9331
    %v9333 = vpop.f32.mrb[0].mxu0
    %v9334 = vadd.f32 0.0, %v9333
    %9335 = vdwg.mxu0
    %v9336 = vmul.f32 %v9190, %v6413
    %v9337 = vmul.f32 %v9192, %v6415
    %v9338 = vmul.f32 %v9261, %v6566
    %v9339 = vmul.f32 %v9263, %v6568
    %v9340 = vmul.f32 %v9332, %v6719
    %v9341 = vmul.f32 %v9334, %v6721
    %v9342 = vadd.f32 %v9114, %v9336
    %v9343 = vadd.f32 %v9115, %v9337
    %v9344 = vadd.f32 %v9116, %v9338
    %v9345 = vadd.f32 %v9117, %v9339
    %v9346 = vadd.f32 %v9118, %v9340
    %v9347 = vadd.f32 %v9119, %v9341
    %v9349 = vsel %vm8804, %v8897, 0
    %9351 = vmatprep.subr.mxu0 %v6828
    %9352 = vmatpush1.msra.mxu0 %v6827
    %9353 = vmatprep.subr.mxu0 0.0
    %9354 = vmatpush1.msra.mxu0 0.0
    %9355 = vmatprep.subr.mxu0 0.0
    %9356 = vmatpush1.msra.mxu0 0.0
    %9357 = vmatprep.subr.mxu0 0.0
    %9358 = vmatpush1.msra.mxu0 0.0
    %9359 = vmatprep.subr.mxu0 0.0
    %9360 = vmatpush1.msra.mxu0 0.0
    %9361 = vmatprep.subr.mxu0 0.0
    %9362 = vmatpush1.msra.mxu0 0.0
    %9363 = vmatprep.subr.mxu0 0.0
    %9364 = vmatpush1.msra.mxu0 0.0
    %9365 = vmatprep.subr.mxu0 0.0
    %9366 = vmatpush1.msra.mxu0 0.0
    %9367 = vmatprep.subr.mxu0 0.0
    %9368 = vmatpush1.msra.mxu0 0.0
    %9369 = vmatprep.subr.mxu0 0.0
    %9370 = vmatpush1.msra.mxu0 0.0
    %9371 = vmatprep.subr.mxu0 0.0
    %9372 = vmatpush1.msra.mxu0 0.0
    %9373 = vmatprep.subr.mxu0 0.0
    %9374 = vmatpush1.msra.mxu0 0.0
    %9375 = vmatprep.subr.mxu0 0.0
    %9376 = vmatpush1.msra.mxu0 0.0
    %9377 = vmatprep.subr.mxu0 0.0
    %9378 = vmatpush1.msra.mxu0 0.0
    %9379 = vmatprep.subr.mxu0 0.0
    %9380 = vmatpush1.msra.mxu0 0.0
    %9381 = vmatprep.subr.mxu0 0.0
    %9382 = vmatpush1.msra.mxu0 0.0
    %9383 = vmatprep.subr.mxu0 0.0
    %9384 = vmatpush1.msra.mxu0 0.0
    %9385 = vmatprep.subr.mxu0 0.0
    %9386 = vmatpush1.msra.mxu0 0.0
    %9387 = vmatprep.subr.mxu0 0.0
    %9388 = vmatpush1.msra.mxu0 0.0
    %9389 = vmatprep.subr.mxu0 0.0
    %9390 = vmatpush1.msra.mxu0 0.0
    %9391 = vmatprep.subr.mxu0 0.0
    %9392 = vmatpush1.msra.mxu0 0.0
    %9393 = vmatprep.subr.mxu0 0.0
    %9394 = vmatpush1.msra.mxu0 0.0
    %9395 = vmatprep.subr.mxu0 0.0
    %9396 = vmatpush1.msra.mxu0 0.0
    %9397 = vmatprep.subr.mxu0 0.0
    %9398 = vmatpush1.msra.mxu0 0.0
    %9399 = vmatprep.subr.mxu0 0.0
    %9400 = vmatpush1.msra.mxu0 0.0
    %9401 = vmatprep.subr.mxu0 0.0
    %9402 = vmatpush1.msra.mxu0 0.0
    %9403 = vmatprep.subr.mxu0 0.0
    %9404 = vmatpush1.msra.mxu0 0.0
    %9405 = vmatprep.subr.mxu0 0.0
    %9406 = vmatpush1.msra.mxu0 0.0
    %9407 = vmatprep.subr.mxu0 0.0
    %9408 = vmatpush1.msra.mxu0 0.0
    %9409 = vmatprep.subr.mxu0 0.0
    %9410 = vmatpush1.msra.mxu0 0.0
    %9411 = vmatprep.subr.mxu0 0.0
    %9412 = vmatpush1.msra.mxu0 0.0
    %9413 = vmatprep.subr.mxu0 0.0
    %9414 = vmatpush1.msra.mxu0 0.0
    %9415 = vmatprep.mubr.f32.mxu0 0.0
    %9416 = vmatmul.mubr.f32.gmra.mrb[0].mxu0 %v9349
    %v9417 = vpop.f32.mrb[0].mxu0
    %v9418 = vadd.f32 0.0, %v9417
    %v9419 = vpop.f32.mrb[0].mxu0
    %v9420 = vadd.f32 0.0, %v9419
    %9421 = vdwg.mxu0
    %9422 = vmatprep.subr.mxu0 %v6830
    %9423 = vmatpush1.msra.mxu0 %v6829
    %9424 = vmatprep.subr.mxu0 0.0
    %9425 = vmatpush1.msra.mxu0 0.0
    %9426 = vmatprep.subr.mxu0 0.0
    %9427 = vmatpush1.msra.mxu0 0.0
    %9428 = vmatprep.subr.mxu0 0.0
    %9429 = vmatpush1.msra.mxu0 0.0
    %9430 = vmatprep.subr.mxu0 0.0
    %9431 = vmatpush1.msra.mxu0 0.0
    %9432 = vmatprep.subr.mxu0 0.0
    %9433 = vmatpush1.msra.mxu0 0.0
    %9434 = vmatprep.subr.mxu0 0.0
    %9435 = vmatpush1.msra.mxu0 0.0
    %9436 = vmatprep.subr.mxu0 0.0
    %9437 = vmatpush1.msra.mxu0 0.0
    %9438 = vmatprep.subr.mxu0 0.0
    %9439 = vmatpush1.msra.mxu0 0.0
    %9440 = vmatprep.subr.mxu0 0.0
    %9441 = vmatpush1.msra.mxu0 0.0
    %9442 = vmatprep.subr.mxu0 0.0
    %9443 = vmatpush1.msra.mxu0 0.0
    %9444 = vmatprep.subr.mxu0 0.0
    %9445 = vmatpush1.msra.mxu0 0.0
    %9446 = vmatprep.subr.mxu0 0.0
    %9447 = vmatpush1.msra.mxu0 0.0
    %9448 = vmatprep.subr.mxu0 0.0
    %9449 = vmatpush1.msra.mxu0 0.0
    %9450 = vmatprep.subr.mxu0 0.0
    %9451 = vmatpush1.msra.mxu0 0.0
    %9452 = vmatprep.subr.mxu0 0.0
    %9453 = vmatpush1.msra.mxu0 0.0
    %9454 = vmatprep.subr.mxu0 0.0
    %9455 = vmatpush1.msra.mxu0 0.0
    %9456 = vmatprep.subr.mxu0 0.0
    %9457 = vmatpush1.msra.mxu0 0.0
    %9458 = vmatprep.subr.mxu0 0.0
    %9459 = vmatpush1.msra.mxu0 0.0
    %9460 = vmatprep.subr.mxu0 0.0
    %9461 = vmatpush1.msra.mxu0 0.0
    %9462 = vmatprep.subr.mxu0 0.0
    %9463 = vmatpush1.msra.mxu0 0.0
    %9464 = vmatprep.subr.mxu0 0.0
    %9465 = vmatpush1.msra.mxu0 0.0
    %9466 = vmatprep.subr.mxu0 0.0
    %9467 = vmatpush1.msra.mxu0 0.0
    %9468 = vmatprep.subr.mxu0 0.0
    %9469 = vmatpush1.msra.mxu0 0.0
    %9470 = vmatprep.subr.mxu0 0.0
    %9471 = vmatpush1.msra.mxu0 0.0
    %9472 = vmatprep.subr.mxu0 0.0
    %9473 = vmatpush1.msra.mxu0 0.0
    %9474 = vmatprep.subr.mxu0 0.0
    %9475 = vmatpush1.msra.mxu0 0.0
    %9476 = vmatprep.subr.mxu0 0.0
    %9477 = vmatpush1.msra.mxu0 0.0
    %9478 = vmatprep.subr.mxu0 0.0
    %9479 = vmatpush1.msra.mxu0 0.0
    %9480 = vmatprep.subr.mxu0 0.0
    %9481 = vmatpush1.msra.mxu0 0.0
    %9482 = vmatprep.subr.mxu0 0.0
    %9483 = vmatpush1.msra.mxu0 0.0
    %9484 = vmatprep.subr.mxu0 0.0
    %9485 = vmatpush1.msra.mxu0 0.0
    %9486 = vmatprep.mubr.f32.mxu0 0.0
    %9487 = vmatmul.mubr.f32.gmra.mrb[0].mxu0 %v9349
    %v9488 = vpop.f32.mrb[0].mxu0
    %v9489 = vadd.f32 0.0, %v9488
    %v9490 = vpop.f32.mrb[0].mxu0
    %v9491 = vadd.f32 0.0, %v9490
    %9492 = vdwg.mxu0
    %9493 = vmatprep.subr.mxu0 %v6832
    %9494 = vmatpush1.msra.mxu0 %v6831
    %9495 = vmatprep.subr.mxu0 0.0
    %9496 = vmatpush1.msra.mxu0 0.0
    %9497 = vmatprep.subr.mxu0 0.0
    %9498 = vmatpush1.msra.mxu0 0.0
    %9499 = vmatprep.subr.mxu0 0.0
    %9500 = vmatpush1.msra.mxu0 0.0
    %9501 = vmatprep.subr.mxu0 0.0
    %9502 = vmatpush1.msra.mxu0 0.0
    %9503 = vmatprep.subr.mxu0 0.0
    %9504 = vmatpush1.msra.mxu0 0.0
    %9505 = vmatprep.subr.mxu0 0.0
    %9506 = vmatpush1.msra.mxu0 0.0
    %9507 = vmatprep.subr.mxu0 0.0
    %9508 = vmatpush1.msra.mxu0 0.0
    %9509 = vmatprep.subr.mxu0 0.0
    %9510 = vmatpush1.msra.mxu0 0.0
    %9511 = vmatprep.subr.mxu0 0.0
    %9512 = vmatpush1.msra.mxu0 0.0
    %9513 = vmatprep.subr.mxu0 0.0
    %9514 = vmatpush1.msra.mxu0 0.0
    %9515 = vmatprep.subr.mxu0 0.0
    %9516 = vmatpush1.msra.mxu0 0.0
    %9517 = vmatprep.subr.mxu0 0.0
    %9518 = vmatpush1.msra.mxu0 0.0
    %9519 = vmatprep.subr.mxu0 0.0
    %9520 = vmatpush1.msra.mxu0 0.0
    %9521 = vmatprep.subr.mxu0 0.0
    %9522 = vmatpush1.msra.mxu0 0.0
    %9523 = vmatprep.subr.mxu0 0.0
    %9524 = vmatpush1.msra.mxu0 0.0
    %9525 = vmatprep.subr.mxu0 0.0
    %9526 = vmatpush1.msra.mxu0 0.0
    %9527 = vmatprep.subr.mxu0 0.0
    %9528 = vmatpush1.msra.mxu0 0.0
    %9529 = vmatprep.subr.mxu0 0.0
    %9530 = vmatpush1.msra.mxu0 0.0
    %9531 = vmatprep.subr.mxu0 0.0
    %9532 = vmatpush1.msra.mxu0 0.0
    %9533 = vmatprep.subr.mxu0 0.0
    %9534 = vmatpush1.msra.mxu0 0.0
    %9535 = vmatprep.subr.mxu0 0.0
    %9536 = vmatpush1.msra.mxu0 0.0
    %9537 = vmatprep.subr.mxu0 0.0
    %9538 = vmatpush1.msra.mxu0 0.0
    %9539 = vmatprep.subr.mxu0 0.0
    %9540 = vmatpush1.msra.mxu0 0.0
    %9541 = vmatprep.subr.mxu0 0.0
    %9542 = vmatpush1.msra.mxu0 0.0
    %9543 = vmatprep.subr.mxu0 0.0
    %9544 = vmatpush1.msra.mxu0 0.0
    %9545 = vmatprep.subr.mxu0 0.0
    %9546 = vmatpush1.msra.mxu0 0.0
    %9547 = vmatprep.subr.mxu0 0.0
    %9548 = vmatpush1.msra.mxu0 0.0
    %9549 = vmatprep.subr.mxu0 0.0
    %9550 = vmatpush1.msra.mxu0 0.0
    %9551 = vmatprep.subr.mxu0 0.0
    %9552 = vmatpush1.msra.mxu0 0.0
    %9553 = vmatprep.subr.mxu0 0.0
    %9554 = vmatpush1.msra.mxu0 0.0
    %9555 = vmatprep.subr.mxu0 0.0
    %9556 = vmatpush1.msra.mxu0 0.0
    %9557 = vmatprep.mubr.f32.mxu0 0.0
    %9558 = vmatmul.mubr.f32.gmra.mrb[0].mxu0 %v9349
    %v9559 = vpop.f32.mrb[0].mxu0
    %v9560 = vadd.f32 0.0, %v9559
    %v9561 = vpop.f32.mrb[0].mxu0
    %v9562 = vadd.f32 0.0, %v9561
    %9563 = vdwg.mxu0
    %v9564 = vmul.f32 %v9418, %v6419
    %v9565 = vmul.f32 %v9420, %v6421
    %v9566 = vmul.f32 %v9489, %v6572
    %v9567 = vmul.f32 %v9491, %v6574
    %v9568 = vmul.f32 %v9560, %v6725
    %v9569 = vmul.f32 %v9562, %v6727
    %v9570 = vadd.f32 %v9342, %v9564
    %v9571 = vadd.f32 %v9343, %v9565
    %v9572 = vadd.f32 %v9344, %v9566
    %v9573 = vadd.f32 %v9345, %v9567
    %v9574 = vadd.f32 %v9346, %v9568
    %v9575 = vadd.f32 %v9347, %v9569
    %v9576 = vld [vmem:[#allocation7] sm:$0xff]
    %v9577 = vld [vmem:[#allocation7 + $0x8] sm:$0xff]
    %v9578 = vld [vmem:[#allocation7 + $0x10] sm:$0xff]
    %v9579 = vld [vmem:[#allocation7 + $0x18] sm:$0xff]
    %v9580 = vld [vmem:[#allocation7 + $0x20] sm:$0xff]
    %v9581 = vld [vmem:[#allocation7 + $0x28] sm:$0xff]
    %v9582 = vld [vmem:[#allocation7 + $0x30] sm:$0xff]
    %v9583 = vld [vmem:[#allocation7 + $0x38] sm:$0xff]
    %v9584 = vld [vmem:[#allocation7 + $0x40] sm:$0xff]
    %v9585 = vld [vmem:[#allocation7 + $0x48] sm:$0xff]
    %v9586 = vld [vmem:[#allocation7 + $0x50] sm:$0xff]
    %v9587 = vld [vmem:[#allocation7 + $0x58] sm:$0xff]
    %v9588 = vld [vmem:[#allocation7 + $0x60] sm:$0xff]
    %v9589 = vld [vmem:[#allocation7 + $0x68] sm:$0xff]
    %v9590 = vld [vmem:[#allocation7 + $0x70] sm:$0xff]
    %v9591 = vld [vmem:[#allocation7 + $0x78] sm:$0xff]
    %v9592 = vld [vmem:[#allocation7 + $0x80] sm:$0xff]
    %v9593 = vld [vmem:[#allocation7 + $0x88] sm:$0xff]
    %v9594 = vld [vmem:[#allocation7 + $0x90] sm:$0xff]
    %v9595 = vld [vmem:[#allocation7 + $0x98] sm:$0xff]
    %v9596 = vld [vmem:[#allocation7 + $0xa0] sm:$0xff]
    %v9597 = vld [vmem:[#allocation7 + $0xa8] sm:$0xff]
    %v9598 = vld [vmem:[#allocation7 + $0xb0] sm:$0xff]
    %v9599 = vld [vmem:[#allocation7 + $0xb8] sm:$0xff]
    %v9600 = vld [vmem:[#allocation7 + $0xc0] sm:$0xff]
    %v9601 = vld [vmem:[#allocation7 + $0xc8] sm:$0xff]
    %v9602 = vld [vmem:[#allocation7 + $0xd0] sm:$0xff]
    %v9603 = vld [vmem:[#allocation7 + $0xd8] sm:$0xff]
    %v9604 = vld [vmem:[#allocation7 + $0xe0] sm:$0xff]
    %v9605 = vld [vmem:[#allocation7 + $0xe8] sm:$0xff]
    %v9606 = vld [vmem:[#allocation7 + $0xf0] sm:$0xff]
    %v9607 = vld [vmem:[#allocation7 + $0xf8] sm:$0xff]
    %v9608 = vld [vmem:[#allocation7 + $0x100] sm:$0xff]
    %v9609 = vld [vmem:[#allocation7 + $0x108] sm:$0xff]
    %v9610 = vld [vmem:[#allocation7 + $0x110] sm:$0xff]
    %v9611 = vld [vmem:[#allocation7 + $0x118] sm:$0xff]
    %v9612 = vld [vmem:[#allocation7 + $0x120] sm:$0xff]
    %v9613 = vld [vmem:[#allocation7 + $0x128] sm:$0xff]
    %v9614 = vld [vmem:[#allocation7 + $0x130] sm:$0xff]
    %v9615 = vld [vmem:[#allocation7 + $0x138] sm:$0xff]
    %v9616 = vld [vmem:[#allocation7 + $0x140] sm:$0xff]
    %v9617 = vld [vmem:[#allocation7 + $0x148] sm:$0xff]
    %v9618 = vld [vmem:[#allocation7 + $0x150] sm:$0xff]
    %v9619 = vld [vmem:[#allocation7 + $0x158] sm:$0xff]
    %v9620 = vld [vmem:[#allocation7 + $0x160] sm:$0xff]
    %v9621 = vld [vmem:[#allocation7 + $0x168] sm:$0xff]
    %v9622 = vld [vmem:[#allocation7 + $0x170] sm:$0xff]
    %v9623 = vld [vmem:[#allocation7 + $0x178] sm:$0xff]
    %v9624 = vld [vmem:[#allocation7 + $0x180] sm:$0xff]
    %v9625 = vld [vmem:[#allocation7 + $0x188] sm:$0xff]
    %v9626 = vld [vmem:[#allocation7 + $0x190] sm:$0xff]
    %v9627 = vld [vmem:[#allocation7 + $0x198] sm:$0xff]
    %v9628 = vld [vmem:[#allocation7 + $0x1a0] sm:$0xff]
    %v9629 = vld [vmem:[#allocation7 + $0x1a8] sm:$0xff]
    %v9630 = vld [vmem:[#allocation7 + $0x1b0] sm:$0xff]
    %v9631 = vld [vmem:[#allocation7 + $0x1b8] sm:$0xff]
    %v9632 = vld [vmem:[#allocation7 + $0x1c0] sm:$0xff]
    %v9633 = vld [vmem:[#allocation7 + $0x1c8] sm:$0xff]
    %v9634 = vld [vmem:[#allocation7 + $0x1d0] sm:$0xff]
    %v9635 = vld [vmem:[#allocation7 + $0x1d8] sm:$0xff]
    %v9636 = vld [vmem:[#allocation7 + $0x1e0] sm:$0xff]
    %v9637 = vld [vmem:[#allocation7 + $0x1e8] sm:$0xff]
    %v9638 = vld [vmem:[#allocation7 + $0x1f0] sm:$0xff]
    %v9639 = vld [vmem:[#allocation7 + $0x1f8] sm:$0xff]
    %v9640 = vld [vmem:[#allocation7 + $0x200] sm:$0xff]
    %v9641 = vld [vmem:[#allocation7 + $0x208] sm:$0xff]
    %v9642 = vld [vmem:[#allocation7 + $0x210] sm:$0xff]
    %v9643 = vld [vmem:[#allocation7 + $0x218] sm:$0xff]
    %v9644 = vld [vmem:[#allocation7 + $0x220] sm:$0xff]
    %v9645 = vld [vmem:[#allocation7 + $0x228] sm:$0xff]
    %v9646 = vld [vmem:[#allocation7 + $0x230] sm:$0xff]
    %v9647 = vld [vmem:[#allocation7 + $0x238] sm:$0xff]
    %v9648 = vld [vmem:[#allocation7 + $0x240] sm:$0xff]
    %v9649 = vld [vmem:[#allocation7 + $0x248] sm:$0xff]
    %v9650 = vld [vmem:[#allocation7 + $0x250] sm:$0xff]
    %v9651 = vld [vmem:[#allocation7 + $0x258] sm:$0xff]
    %v9652 = vld [vmem:[#allocation7 + $0x260] sm:$0xff]
    %v9653 = vld [vmem:[#allocation7 + $0x268] sm:$0xff]
    %v9654 = vld [vmem:[#allocation7 + $0x270] sm:$0xff]
    %v9655 = vld [vmem:[#allocation7 + $0x278] sm:$0xff]
    %v9656 = vld [vmem:[#allocation7 + $0x280] sm:$0xff]
    %v9657 = vld [vmem:[#allocation7 + $0x288] sm:$0xff]
    %v9658 = vld [vmem:[#allocation7 + $0x290] sm:$0xff]
    %v9659 = vld [vmem:[#allocation7 + $0x298] sm:$0xff]
    %v9660 = vld [vmem:[#allocation7 + $0x2a0] sm:$0xff]
    %v9661 = vld [vmem:[#allocation7 + $0x2a8] sm:$0xff]
    %v9662 = vld [vmem:[#allocation7 + $0x2b0] sm:$0xff]
    %v9663 = vld [vmem:[#allocation7 + $0x2b8] sm:$0xff]
    %v9664 = vld [vmem:[#allocation7 + $0x2c0] sm:$0xff]
    %v9665 = vld [vmem:[#allocation7 + $0x2c8] sm:$0xff]
    %v9666 = vld [vmem:[#allocation7 + $0x2d0] sm:$0xff]
    %v9667 = vld [vmem:[#allocation7 + $0x2d8] sm:$0xff]
    %v9668 = vld [vmem:[#allocation7 + $0x2e0] sm:$0xff]
    %v9669 = vld [vmem:[#allocation7 + $0x2e8] sm:$0xff]
    %v9670 = vld [vmem:[#allocation7 + $0x2f0] sm:$0xff]
    %v9671 = vld [vmem:[#allocation7 + $0x2f8] sm:$0xff]
    %9672 = vmatprep.subr.mxu0 0.0
    %9673 = vmatpush1.msra.mxu0 %v9576
    %9674 = vmatprep.subr.mxu0 0.0
    %9675 = vmatpush1.msra.mxu0 %v9577
    %9676 = vmatprep.subr.mxu0 0.0
    %9677 = vmatpush1.msra.mxu0 %v9578
    %9678 = vmatprep.subr.mxu0 0.0
    %9679 = vmatpush1.msra.mxu0 %v9579
    %9680 = vmatprep.subr.mxu0 0.0
    %9681 = vmatpush1.msra.mxu0 %v9580
    %9682 = vmatprep.subr.mxu0 0.0
    %9683 = vmatpush1.msra.mxu0 %v9581
    %9684 = vmatprep.subr.mxu0 0.0
    %9685 = vmatpush1.msra.mxu0 %v9582
    %9686 = vmatprep.subr.mxu0 0.0
    %9687 = vmatpush1.msra.mxu0 %v9583
    %9688 = vmatprep.subr.mxu0 0.0
    %9689 = vmatpush1.msra.mxu0 %v9584
    %9690 = vmatprep.subr.mxu0 0.0
    %9691 = vmatpush1.msra.mxu0 %v9585
    %9692 = vmatprep.subr.mxu0 0.0
    %9693 = vmatpush1.msra.mxu0 %v9586
    %9694 = vmatprep.subr.mxu0 0.0
    %9695 = vmatpush1.msra.mxu0 %v9587
    %9696 = vmatprep.subr.mxu0 0.0
    %9697 = vmatpush1.msra.mxu0 %v9588
    %9698 = vmatprep.subr.mxu0 0.0
    %9699 = vmatpush1.msra.mxu0 %v9589
    %9700 = vmatprep.subr.mxu0 0.0
    %9701 = vmatpush1.msra.mxu0 %v9590
    %9702 = vmatprep.subr.mxu0 0.0
    %9703 = vmatpush1.msra.mxu0 %v9591
    %9704 = vmatprep.subr.mxu0 0.0
    %9705 = vmatpush1.msra.mxu0 %v9592
    %9706 = vmatprep.subr.mxu0 0.0
    %9707 = vmatpush1.msra.mxu0 %v9593
    %9708 = vmatprep.subr.mxu0 0.0
    %9709 = vmatpush1.msra.mxu0 %v9594
    %9710 = vmatprep.subr.mxu0 0.0
    %9711 = vmatpush1.msra.mxu0 %v9595
    %9712 = vmatprep.subr.mxu0 0.0
    %9713 = vmatpush1.msra.mxu0 %v9596
    %9714 = vmatprep.subr.mxu0 0.0
    %9715 = vmatpush1.msra.mxu0 %v9597
    %9716 = vmatprep.subr.mxu0 0.0
    %9717 = vmatpush1.msra.mxu0 %v9598
    %9718 = vmatprep.subr.mxu0 0.0
    %9719 = vmatpush1.msra.mxu0 %v9599
    %9720 = vmatprep.subr.mxu0 0.0
    %9721 = vmatpush1.msra.mxu0 %v9600
    %9722 = vmatprep.subr.mxu0 0.0
    %9723 = vmatpush1.msra.mxu0 %v9601
    %9724 = vmatprep.subr.mxu0 0.0
    %9725 = vmatpush1.msra.mxu0 %v9602
    %9726 = vmatprep.subr.mxu0 0.0
    %9727 = vmatpush1.msra.mxu0 %v9603
    %9728 = vmatprep.subr.mxu0 0.0
    %9729 = vmatpush1.msra.mxu0 %v9604
    %9730 = vmatprep.subr.mxu0 0.0
    %9731 = vmatpush1.msra.mxu0 %v9605
    %9732 = vmatprep.subr.mxu0 0.0
    %9733 = vmatpush1.msra.mxu0 %v9606
    %9734 = vmatprep.subr.mxu0 0.0
    %9735 = vmatpush1.msra.mxu0 %v9607
    %9736 = vmatprep.mubr.f32.mxu0 %v9571
    %9737 = vmatmul.mubr.f32.gmra.mrb[0].mxu0 %v9570
    %v9738 = vpop.f32.mrb[0].mxu0
    %v9739 = vadd.f32 0.0, %v9738
    %v9740 = vpop.f32.mrb[0].mxu0
    %9741 = vdwg.mxu0
    %9742 = vmatprep.subr.mxu0 0.0
    %9743 = vmatpush1.msra.mxu0 %v9608
    %9744 = vmatprep.subr.mxu0 0.0
    %9745 = vmatpush1.msra.mxu0 %v9609
    %9746 = vmatprep.subr.mxu0 0.0
    %9747 = vmatpush1.msra.mxu0 %v9610
    %9748 = vmatprep.subr.mxu0 0.0
    %9749 = vmatpush1.msra.mxu0 %v9611
    %9750 = vmatprep.subr.mxu0 0.0
    %9751 = vmatpush1.msra.mxu0 %v9612
    %9752 = vmatprep.subr.mxu0 0.0
    %9753 = vmatpush1.msra.mxu0 %v9613
    %9754 = vmatprep.subr.mxu0 0.0
    %9755 = vmatpush1.msra.mxu0 %v9614
    %9756 = vmatprep.subr.mxu0 0.0
    %9757 = vmatpush1.msra.mxu0 %v9615
    %9758 = vmatprep.subr.mxu0 0.0
    %9759 = vmatpush1.msra.mxu0 %v9616
    %9760 = vmatprep.subr.mxu0 0.0
    %9761 = vmatpush1.msra.mxu0 %v9617
    %9762 = vmatprep.subr.mxu0 0.0
    %9763 = vmatpush1.msra.mxu0 %v9618
    %9764 = vmatprep.subr.mxu0 0.0
    %9765 = vmatpush1.msra.mxu0 %v9619
    %9766 = vmatprep.subr.mxu0 0.0
    %9767 = vmatpush1.msra.mxu0 %v9620
    %9768 = vmatprep.subr.mxu0 0.0
    %9769 = vmatpush1.msra.mxu0 %v9621
    %9770 = vmatprep.subr.mxu0 0.0
    %9771 = vmatpush1.msra.mxu0 %v9622
    %9772 = vmatprep.subr.mxu0 0.0
    %9773 = vmatpush1.msra.mxu0 %v9623
    %9774 = vmatprep.subr.mxu0 0.0
    %9775 = vmatpush1.msra.mxu0 %v9624
    %9776 = vmatprep.subr.mxu0 0.0
    %9777 = vmatpush1.msra.mxu0 %v9625
    %9778 = vmatprep.subr.mxu0 0.0
    %9779 = vmatpush1.msra.mxu0 %v9626
    %9780 = vmatprep.subr.mxu0 0.0
    %9781 = vmatpush1.msra.mxu0 %v9627
    %9782 = vmatprep.subr.mxu0 0.0
    %9783 = vmatpush1.msra.mxu0 %v9628
    %9784 = vmatprep.subr.mxu0 0.0
    %9785 = vmatpush1.msra.mxu0 %v9629
    %9786 = vmatprep.subr.mxu0 0.0
    %9787 = vmatpush1.msra.mxu0 %v9630
    %9788 = vmatprep.subr.mxu0 0.0
    %9789 = vmatpush1.msra.mxu0 %v9631
    %9790 = vmatprep.subr.mxu0 0.0
    %9791 = vmatpush1.msra.mxu0 %v9632
    %9792 = vmatprep.subr.mxu0 0.0
    %9793 = vmatpush1.msra.mxu0 %v9633
    %9794 = vmatprep.subr.mxu0 0.0
    %9795 = vmatpush1.msra.mxu0 %v9634
    %9796 = vmatprep.subr.mxu0 0.0
    %9797 = vmatpush1.msra.mxu0 %v9635
    %9798 = vmatprep.subr.mxu0 0.0
    %9799 = vmatpush1.msra.mxu0 %v9636
    %9800 = vmatprep.subr.mxu0 0.0
    %9801 = vmatpush1.msra.mxu0 %v9637
    %9802 = vmatprep.subr.mxu0 0.0
    %9803 = vmatpush1.msra.mxu0 %v9638
    %9804 = vmatprep.subr.mxu0 0.0
    %9805 = vmatpush1.msra.mxu0 %v9639
    %9806 = vmatprep.mubr.f32.mxu0 %v9573
    %9807 = vmatmul.mubr.f32.gmra.mrb[0].mxu0 %v9572
    %v9808 = vpop.f32.mrb[0].mxu0
    %v9809 = vadd.f32 %v9739, %v9808
    %v9810 = vpop.f32.mrb[0].mxu0
    %9811 = vdwg.mxu0
    %9812 = vmatprep.subr.mxu0 0.0
    %9813 = vmatpush1.msra.mxu0 %v9640
    %9814 = vmatprep.subr.mxu0 0.0
    %9815 = vmatpush1.msra.mxu0 %v9641
    %9816 = vmatprep.subr.mxu0 0.0
    %9817 = vmatpush1.msra.mxu0 %v9642
    %9818 = vmatprep.subr.mxu0 0.0
    %9819 = vmatpush1.msra.mxu0 %v9643
    %9820 = vmatprep.subr.mxu0 0.0
    %9821 = vmatpush1.msra.mxu0 %v9644
    %9822 = vmatprep.subr.mxu0 0.0
    %9823 = vmatpush1.msra.mxu0 %v9645
    %9824 = vmatprep.subr.mxu0 0.0
    %9825 = vmatpush1.msra.mxu0 %v9646
    %9826 = vmatprep.subr.mxu0 0.0
    %9827 = vmatpush1.msra.mxu0 %v9647
    %9828 = vmatprep.subr.mxu0 0.0
    %9829 = vmatpush1.msra.mxu0 %v9648
    %9830 = vmatprep.subr.mxu0 0.0
    %9831 = vmatpush1.msra.mxu0 %v9649
    %9832 = vmatprep.subr.mxu0 0.0
    %9833 = vmatpush1.msra.mxu0 %v9650
    %9834 = vmatprep.subr.mxu0 0.0
    %9835 = vmatpush1.msra.mxu0 %v9651
    %9836 = vmatprep.subr.mxu0 0.0
    %9837 = vmatpush1.msra.mxu0 %v9652
    %9838 = vmatprep.subr.mxu0 0.0
    %9839 = vmatpush1.msra.mxu0 %v9653
    %9840 = vmatprep.subr.mxu0 0.0
    %9841 = vmatpush1.msra.mxu0 %v9654
    %9842 = vmatprep.subr.mxu0 0.0
    %9843 = vmatpush1.msra.mxu0 %v9655
    %9844 = vmatprep.subr.mxu0 0.0
    %9845 = vmatpush1.msra.mxu0 %v9656
    %9846 = vmatprep.subr.mxu0 0.0
    %9847 = vmatpush1.msra.mxu0 %v9657
    %9848 = vmatprep.subr.mxu0 0.0
    %9849 = vmatpush1.msra.mxu0 %v9658
    %9850 = vmatprep.subr.mxu0 0.0
    %9851 = vmatpush1.msra.mxu0 %v9659
    %9852 = vmatprep.subr.mxu0 0.0
    %9853 = vmatpush1.msra.mxu0 %v9660
    %9854 = vmatprep.subr.mxu0 0.0
    %9855 = vmatpush1.msra.mxu0 %v9661
    %9856 = vmatprep.subr.mxu0 0.0
    %9857 = vmatpush1.msra.mxu0 %v9662
    %9858 = vmatprep.subr.mxu0 0.0
    %9859 = vmatpush1.msra.mxu0 %v9663
    %9860 = vmatprep.subr.mxu0 0.0
    %9861 = vmatpush1.msra.mxu0 %v9664
    %9862 = vmatprep.subr.mxu0 0.0
    %9863 = vmatpush1.msra.mxu0 %v9665
    %9864 = vmatprep.subr.mxu0 0.0
    %9865 = vmatpush1.msra.mxu0 %v9666
    %9866 = vmatprep.subr.mxu0 0.0
    %9867 = vmatpush1.msra.mxu0 %v9667
    %9868 = vmatprep.subr.mxu0 0.0
    %9869 = vmatpush1.msra.mxu0 %v9668
    %9870 = vmatprep.subr.mxu0 0.0
    %9871 = vmatpush1.msra.mxu0 %v9669
    %9872 = vmatprep.subr.mxu0 0.0
    %9873 = vmatpush1.msra.mxu0 %v9670
    %9874 = vmatprep.subr.mxu0 0.0
    %9875 = vmatpush1.msra.mxu0 %v9671
    %9876 = vmatprep.mubr.f32.mxu0 %v9575
    %9877 = vmatmul.mubr.f32.gmra.mrb[0].mxu0 %v9574
    %v9878 = vpop.f32.mrb[0].mxu0
    %v9879 = vadd.f32 %v9809, %v9878
    %v9880 = vpop.f32.mrb[0].mxu0
    %9881 = vdwg.mxu0
    %v9882 = vmul.f32 %v9879, 0.33333334
    %v9883 = vld [vmem:[#allocation8] sm:$0x1]
    %v9885 = vlaneseq
    %v9886 = vshrl.u32 %v9885, 7
    %v9887 = vsub.s32 0, %v9886
    %v9888 = vrot.slane %v9883, %v9887
    %v9890 = vadd.f32 %v9882, %v9888
    %9891 = vst [vmem:[#allocation14] sm:$0xff] %v9890
    %v9892 = vld [vmem:[%s4] sm:$0xff]
    %v9893 = vld [vmem:[%s4 + $0x8] sm:$0xff]
    %v9894 = vld [vmem:[%s4 + $0x10] sm:$0xff]
    %v9895 = vld [vmem:[%s4 + $0x18] sm:$0xff]
    %v9896 = vld [vmem:[%s4 + $0x20] sm:$0xff]
    %v9897 = vld [vmem:[%s4 + $0x28] sm:$0xff]
    %v9898 = vld [vmem:[%s4 + $0x30] sm:$0xff]
    %v9899 = vld [vmem:[%s4 + $0x38] sm:$0xff]
    %v9900 = vld [vmem:[%s4 + $0x40] sm:$0xff]
    %v9901 = vld [vmem:[%s4 + $0x48] sm:$0xff]
    %v9902 = vld [vmem:[%s4 + $0x50] sm:$0xff]
    %v9903 = vld [vmem:[%s4 + $0x58] sm:$0xff]
    %v9904 = vld [vmem:[%s4 + $0x60] sm:$0xff]
    %v9905 = vld [vmem:[%s4 + $0x68] sm:$0xff]
    %v9906 = vld [vmem:[%s4 + $0x70] sm:$0xff]
    %v9907 = vld [vmem:[%s4 + $0x78] sm:$0xff]
    %v9908 = vld [vmem:[#allocation10] sm:$0x1]
    %v9910 = vlaneseq
    %v9911 = vshrl.u32 %v9910, 7
    %v9912 = vsub.s32 0, %v9911
    %v9913 = vrot.slane %v9908, %v9912
    %9915 = vmatprep.subr.mxu0 0.0
    %9916 = vmatpush1.msra.mxu0 %v9892
    %9917 = vmatprep.subr.mxu0 0.0
    %9918 = vmatpush1.msra.mxu0 %v9893
    %9919 = vmatprep.subr.mxu0 0.0
    %9920 = vmatpush1.msra.mxu0 %v9894
    %9921 = vmatprep.subr.mxu0 0.0
    %9922 = vmatpush1.msra.mxu0 %v9895
    %9923 = vmatprep.subr.mxu0 0.0
    %9924 = vmatpush1.msra.mxu0 %v9896
    %9925 = vmatprep.subr.mxu0 0.0
    %9926 = vmatpush1.msra.mxu0 %v9897
    %9927 = vmatprep.subr.mxu0 0.0
    %9928 = vmatpush1.msra.mxu0 %v9898
    %9929 = vmatprep.subr.mxu0 0.0
    %9930 = vmatpush1.msra.mxu0 %v9899
    %9931 = vmatprep.subr.mxu0 0.0
    %9932 = vmatpush1.msra.mxu0 %v9900
    %9933 = vmatprep.subr.mxu0 0.0
    %9934 = vmatpush1.msra.mxu0 %v9901
    %9935 = vmatprep.subr.mxu0 0.0
    %9936 = vmatpush1.msra.mxu0 %v9902
    %9937 = vmatprep.subr.mxu0 0.0
    %9938 = vmatpush1.msra.mxu0 %v9903
    %9939 = vmatprep.subr.mxu0 0.0
    %9940 = vmatpush1.msra.mxu0 %v9904
    %9941 = vmatprep.subr.mxu0 0.0
    %9942 = vmatpush1.msra.mxu0 %v9905
    %9943 = vmatprep.subr.mxu0 0.0
    %9944 = vmatpush1.msra.mxu0 %v9906
    %9945 = vmatprep.subr.mxu0 0.0
    %9946 = vmatpush1.msra.mxu0 %v9907
    %9947 = vmatprep.subr.mxu0 0.0
    %9948 = vmatpush1.msra.mxu0 0.0
    %9949 = vmatprep.subr.mxu0 0.0
    %9950 = vmatpush1.msra.mxu0 0.0
    %9951 = vmatprep.subr.mxu0 0.0
    %9952 = vmatpush1.msra.mxu0 0.0
    %9953 = vmatprep.subr.mxu0 0.0
    %9954 = vmatpush1.msra.mxu0 0.0
    %9955 = vmatprep.subr.mxu0 0.0
    %9956 = vmatpush1.msra.mxu0 0.0
    %9957 = vmatprep.subr.mxu0 0.0
    %9958 = vmatpush1.msra.mxu0 0.0
    %9959 = vmatprep.subr.mxu0 0.0
    %9960 = vmatpush1.msra.mxu0 0.0
    %9961 = vmatprep.subr.mxu0 0.0
    %9962 = vmatpush1.msra.mxu0 0.0
    %9963 = vmatprep.subr.mxu0 0.0
    %9964 = vmatpush1.msra.mxu0 0.0
    %9965 = vmatprep.subr.mxu0 0.0
    %9966 = vmatpush1.msra.mxu0 0.0
    %9967 = vmatprep.subr.mxu0 0.0
    %9968 = vmatpush1.msra.mxu0 0.0
    %9969 = vmatprep.subr.mxu0 0.0
    %9970 = vmatpush1.msra.mxu0 0.0
    %9971 = vmatprep.subr.mxu0 0.0
    %9972 = vmatpush1.msra.mxu0 0.0
    %9973 = vmatprep.subr.mxu0 0.0
    %9974 = vmatpush1.msra.mxu0 0.0
    %9975 = vmatprep.subr.mxu0 0.0
    %9976 = vmatpush1.msra.mxu0 0.0
    %9977 = vmatprep.subr.mxu0 0.0
    %9978 = vmatpush1.msra.mxu0 0.0
    %9979 = vmatprep.mubr.f32.mxu0 0.0
    %9980 = vmatmul.mubr.f32.gmra.mrb[0].mxu0 %v9890
    %v9981 = vpop.f32.mrb[0].mxu0
    %v9982 = vadd.f32 %v9913, %v9981
    %v9983 = vpop.f32.mrb[0].mxu0
    %9984 = vdwg.mxu0
    %vm9985 = vcmask 80896
    %9986 = vst.msk [vmem:[#allocation16] sm:$0xff] %vm9985, %v9982
    // Predicated region
    $region58: #{tpu_custom_call.1} parent=1 // pred_check
      _
    $region59: #{tpu_custom_call.1} parent=1 // pred_check_branch
      %9988 = sbr.rel (0) target = $region61
    $region60: #{tpu_custom_call.1} parent=1 // pred_region
      %s9990 = ssub.s32 128, 128
      %9991 = vsyncadd [#allocation4], %s9990
      %s9993 = sshll.u32 [#allocation13], 4
      %s9994 = int_to_ptr.vmem [resolvable:$true] %s9993
      %9996 = dma.vmem_to_hbm [thread:$0]  %s9994, 128, %s8, [#allocation4]
    $region61: #{tpu_custom_call.1} parent=1 // pred_fallthru
      _
    // Predicated region
    $region62: #{tpu_custom_call.1} parent=1 // pred_check
      _
    $region63: #{tpu_custom_call.1} parent=1 // pred_check_branch
      %9998 = sbr.rel (0) target = $region65
    $region64: #{tpu_custom_call.1} parent=1 // pred_region
      %s10000 = ssub.s32 128, 128
      %10001 = vsyncadd [#allocation15], %s10000
      %s10003 = sshll.u32 [#allocation14], 4
      %s10004 = int_to_ptr.vmem [resolvable:$true] %s10003
      %10006 = dma.vmem_to_hbm [thread:$0]  %s10004, 128, %s9, [#allocation15]
    $region65: #{tpu_custom_call.1} parent=1 // pred_fallthru
      _
    // Predicated region
    $region66: #{tpu_custom_call.1} parent=1 // pred_check
      _
    $region67: #{tpu_custom_call.1} parent=1 // pred_check_branch
      %10008 = sbr.rel (0) target = $region69
    $region68: #{tpu_custom_call.1} parent=1 // pred_region
      %s10010 = ssub.s32 128, 128
      %10011 = vsyncadd [#allocation15], %s10010
      %s10013 = sshll.u32 [#allocation16], 4
      %s10014 = int_to_ptr.vmem [resolvable:$true] %s10013
      %10016 = dma.vmem_to_hbm [thread:$0]  %s10014, 128, %s10, [#allocation15]
    $region69: #{tpu_custom_call.1} parent=1 // pred_fallthru
      _
    // Predicated region
    $region70: #{tpu_custom_call.1} parent=1 // pred_check
      _
    $region71: #{tpu_custom_call.1} parent=1 // pred_check_branch
      %10018 = sbr.rel (0) target = $region73
    $region72: #{tpu_custom_call.1} parent=1 // pred_region
      %10019 = dma.done [#allocation4], 128
    $region73: #{tpu_custom_call.1} parent=1 // pred_fallthru
      _
    // Predicated region
    $region74: #{tpu_custom_call.1} parent=1 // pred_check
      _
    $region75: #{tpu_custom_call.1} parent=1 // pred_check_branch
      %10021 = sbr.rel (0) target = $region77
    $region76: #{tpu_custom_call.1} parent=1 // pred_region
      %10022 = dma.done [#allocation15], 128
    $region77: #{tpu_custom_call.1} parent=1 // pred_fallthru
      _
    // Predicated region
    $region78: #{tpu_custom_call.1} parent=1 // pred_check
      _
    $region79: #{tpu_custom_call.1} parent=1 // pred_check_branch
      %10024 = sbr.rel (0) target = $region81
    $region80: #{tpu_custom_call.1} parent=1 // pred_region
      %10025 = dma.done [#allocation15], 128
    $region81: #{tpu_custom_call.1} parent=1 // pred_fallthru
      _
    %10026 = vsyncpa [#allocation3], 1
    %10027 = vsyncpa [#allocation6], 1
    %10028 = vsyncpa [#allocation9], 1
    %10029 = vsyncpa [#allocation12], 1
    %10030 = vsyncpa [#allocation4], 1
    %10031 = vsyncpa [#allocation15], 1

</llo_original>
